<compile_context>
chip_gen: v5e
topology: v5e:2x2
jax: 0.10.0
libtpu: 0.0.40
codegen_flags: <defaults>
</compile_context>

<pallas_src>
import functools
import math

import jax
import jax.numpy as jnp
from jax.experimental import pallas as pl
from jax.experimental.pallas import tpu as pltpu


def _round_up(x, m):
    return ((x + m - 1) // m) * m


# ----------------------------------------------------------------------------
# Pallas kernels
# ----------------------------------------------------------------------------
def _matmul_bias_kernel(x_ref, w_ref, b_ref, o_ref, acc_ref, *, apply_relu):
    """Tiled GEMM: o = act(x @ w + b). Grid = (R tiles, M tiles, K tiles);
    the reduction axis K is the innermost grid axis."""
    k = pl.program_id(2)

    @pl.when(k == 0)
    def _init():
        acc_ref[...] = jnp.zeros_like(acc_ref)

    acc_ref[...] += jnp.dot(x_ref[...], w_ref[...],
                            preferred_element_type=jnp.float32)

    @pl.when(k == pl.num_programs(2) - 1)
    def _finalize():
        r = acc_ref[...] + b_ref[...]          # f32 bias add
        if apply_relu:
            r = jnp.maximum(r, 0.0)            # f32 ReLU
        o_ref[...] = r.astype(o_ref.dtype)


def _maxtaps_kernel(x_ref, o_ref):
    """x_ref: (T, tp, L) -- the T taps of every pooling window, flattened to a
    lane-dense (tp, L) layout; elementwise max over the tap axis."""
    x = x_ref[...]
    r = x[0]
    for i in range(1, x_ref.shape[0]):
        r = jnp.maximum(r, x[i])
    o_ref[...] = r


# ----------------------------------------------------------------------------
# Pallas wrappers
# ----------------------------------------------------------------------------
def matmul_bias_act(a, b, bias, relu, out_dtype=jnp.bfloat16):
    """a: (R, K), b: (K, M), bias: (M,) -> (R, M) = act(a @ b + bias).

    Operands are cast to bf16 and zero-padded so every tile is lane/sublane
    aligned; accumulation is f32 in VMEM scratch."""
    R, K = a.shape
    K2, M = b.shape
    assert K == K2, (K, K2)

    a = a.astype(jnp.bfloat16)
    b = b.astype(jnp.bfloat16)
    bias = bias.astype(jnp.float32)

    # --- tile / padding selection (all static Python ints) ---
    R8 = _round_up(R, 8)
    tr = min(256, R8)
    Rp = _round_up(R8, tr)

    Mp = _round_up(M, 128)                 # lane-dense output
    tm = 256 if Mp % 256 == 0 else 128
    tm = min(tm, Mp)

    # Pick a large reduction tile and pad K up to it: fewer grid steps beats
    # the extra (cheap) zero-row DMA at these sizes.
    tk = min(512, _round_up(K, 128))
    Kp = _round_up(K, tk)

    a_p = jnp.pad(a, ((0, Rp - R), (0, Kp - K)))
    b_p = jnp.pad(b, ((0, Kp - K), (0, Mp - M)))
    bias_p = jnp.pad(bias, (0, Mp - M)).reshape(1, Mp)

    grid = (Rp // tr, Mp // tm, Kp // tk)
    bytes_accessed = (a_p.size + b_p.size) * 2 + bias_p.size * 4 + Rp * Mp * jnp.dtype(out_dtype).itemsize
    kernel = functools.partial(_matmul_bias_kernel, apply_relu=relu)
    out = pl.pallas_call(
        kernel,
        out_shape=jax.ShapeDtypeStruct((Rp, Mp), out_dtype),
        grid_spec=pltpu.PrefetchScalarGridSpec(
            num_scalar_prefetch=0,
            grid=grid,
            in_specs=[
                pl.BlockSpec((tr, tk), lambda i, j, k: (i, k)),
                pl.BlockSpec((tk, tm), lambda i, j, k: (k, j)),
                pl.BlockSpec((1, tm), lambda i, j, k: (0, j)),
            ],
            out_specs=pl.BlockSpec((tr, tm), lambda i, j, k: (i, j)),
            scratch_shapes=[pltpu.VMEM((tr, tm), jnp.float32)],
        ),
        compiler_params=pltpu.CompilerParams(
            dimension_semantics=("parallel", "parallel", "arbitrary"),
        ),
        cost_estimate=pl.CostEstimate(
            flops=2 * Rp * Mp * Kp,
            transcendentals=0,
            bytes_accessed=int(bytes_accessed),
        ),
    )(a_p, b_p, bias_p)
    return out[:R, :M]


def conv2d_relu(x, w, b, stride, padding):
    """x: (N, H, W, Cin) NHWC bf16; w: (Cout, Cin, KH, KW) torch layout; b: (Cout,).
    Conv + ReLU via im2col (glue) + tiled Pallas GEMM (hot path)."""
    # TODO(synk): im2col patches are still materialized in HBM; a fused
    # direct-conv kernel would cut activation traffic further (minor at these sizes).
    N, H, W, C = x.shape
    Cout, Cin, KH, KW = w.shape
    assert Cin == C
    xp = jnp.pad(x, ((0, 0), (padding, padding), (padding, padding), (0, 0)))
    Hp, Wp = H + 2 * padding, W + 2 * padding
    Ho = (Hp - KH) // stride + 1
    Wo = (Wp - KW) // stride + 1
    cols = []
    for dy in range(KH):
        for dx in range(KW):
            cols.append(xp[:, dy:dy + stride * (Ho - 1) + 1:stride,
                           dx:dx + stride * (Wo - 1) + 1:stride, :])
    # patch order (ci, kh, kw) matches torch weight.reshape(Cout, Cin*KH*KW)
    patches = jnp.stack(cols, axis=-1)                   # (N, Ho, Wo, C, KH*KW)
    a = patches.reshape(N * Ho * Wo, C * KH * KW)
    bmat = w.reshape(Cout, Cin * KH * KW).T              # (C*KH*KW, Cout)
    out = matmul_bias_act(a, bmat, b, relu=True)         # (N*Ho*Wo, Cout) bf16
    return out.reshape(N, Ho, Wo, Cout)


def maxpool_3x3_s2(x):
    """3x3 max pool, stride 2, no padding (AlexNet), NHWC. Window extraction is
    glue; the 9-way elementwise max runs in a Pallas kernel over a flattened,
    lane-dense (P, 512) view (unmasked 512-lane stores)."""
    N, H, W, C = x.shape
    Ho = (H - 3) // 2 + 1
    Wo = (W - 3) // 2 + 1
    views = []
    for dy in range(3):
        for dx in range(3):
            views.append(x[:, dy:dy + 2 * (Ho - 1) + 1:2,
                           dx:dx + 2 * (Wo - 1) + 1:2, :])
    total = N * Ho * Wo * C
    stacked = jnp.stack(views, axis=0).reshape(9, total)  # (9, rows*C)

    L = 512                                              # lane-dense width
    P = -(-total // L)
    tp_cap = 256
    P_pad = _round_up(P, 8)
    if P_pad > tp_cap:
        P_pad = _round_up(P_pad, tp_cap)
        tp = tp_cap
    else:
        tp = P_pad                                       # full dim (ok < 8 mult cap)

    pad_elems = P_pad * L - total
    if pad_elems:
        stacked = jnp.pad(stacked, ((0, 0), (0, pad_elems)))
    stacked = stacked.reshape(9, P_pad, L)

    out = pl.pallas_call(
        _maxtaps_kernel,
        out_shape=jax.ShapeDtypeStruct((P_pad, L), x.dtype),
        grid_spec=pltpu.PrefetchScalarGridSpec(
            num_scalar_prefetch=0,
            grid=(P_pad // tp,),
            in_specs=[pl.BlockSpec((9, tp, L), lambda i: (0, i, 0))],
            out_specs=pl.BlockSpec((tp, L), lambda i: (i, 0)),
        ),
        compiler_params=pltpu.CompilerParams(
            dimension_semantics=("parallel",)),
    )(stacked)
    return out.reshape(-1)[:total].reshape(N, Ho, Wo, C)


def adaptive_avg_pool(x, out_hw=6):
    """PyTorch AdaptiveAvgPool2d((6,6)) semantics on NHWC input (cheap glue)."""
    N, H, W, C = x.shape
    xf = x.astype(jnp.float32)
    rows = []
    for i in range(out_hw):
        hs, he = (i * H) // out_hw, -(-((i + 1) * H) // out_hw)
        cols = []
        for j in range(out_hw):
            ws, we = (j * W) // out_hw, -(-((j + 1) * W) // out_hw)
            cols.append(jnp.mean(xf[:, hs:he, ws:we, :], axis=(1, 2)))
        rows.append(jnp.stack(cols, axis=1))
    return jnp.stack(rows, axis=1)                       # (N, 6, 6, C) f32


# ----------------------------------------------------------------------------
# AlexNet parameters + forward
# ----------------------------------------------------------------------------
# (Cout, Cin, kernel, stride, pad) for torchvision AlexNet features
ALEXNET_CONV_CFG = [
    (64, 3, 11, 4, 2),
    (192, 64, 5, 1, 2),
    (384, 192, 3, 1, 1),
    (256, 384, 3, 1, 1),
    (256, 256, 3, 1, 1),
]


def init_params(key, num_classes=2):
    # TODO(synk): torchvision pretrained AlexNet weights are not loadable here;
    # deterministic He-initialized random weights of identical shapes are used.
    params = {"convs": [], "linears": []}
    for cout, cin, k, _s, _p in ALEXNET_CONV_CFG:
        key, kw = jax.random.split(key)
        w = jax.random.normal(kw, (cout, cin, k, k), jnp.float32) * math.sqrt(2.0 / (cin * k * k))
        b = jnp.zeros((cout,), jnp.float32)
        params["convs"].append((w, b))
    for din, dout in [(256 * 6 * 6, 512), (512, 128), (128, num_classes)]:
        key, kw = jax.random.split(key)
        w = jax.random.normal(kw, (dout, din), jnp.float32) * math.sqrt(2.0 / din)
        b = jnp.zeros((dout,), jnp.float32)
        params["linears"].append((w, b))
    return params


def alexnet_forward(params, x_nchw):
    x = jnp.transpose(x_nchw, (0, 2, 3, 1)).astype(jnp.bfloat16)   # NCHW -> NHWC bf16
    convs = params["convs"]

    x = conv2d_relu(x, *convs[0], stride=4, padding=2)     # conv1 + ReLU
    x = maxpool_3x3_s2(x)
    x = conv2d_relu(x, *convs[1], stride=1, padding=2)     # conv2 + ReLU
    x = maxpool_3x3_s2(x)
    x = conv2d_relu(x, *convs[2], stride=1, padding=1)     # conv3 + ReLU
    x = conv2d_relu(x, *convs[3], stride=1, padding=1)     # conv4 + ReLU
    x = conv2d_relu(x, *convs[4], stride=1, padding=1)     # conv5 + ReLU
    x = maxpool_3x3_s2(x)
    x = adaptive_avg_pool(x, 6)                            # (N, 6, 6, 256) f32

    # torch flatten order: (N, C, H, W) -> (N, 9216)
    x = jnp.transpose(x, (0, 3, 1, 2)).reshape(x.shape[0], -1)

    (w1, b1), (w2, b2), (w3, b3) = params["linears"]
    x = matmul_bias_act(x, w1.T, b1, relu=True)
    # TODO(synk): nn.Dropout() treated as identity (eval-mode semantics).
    x = matmul_bias_act(x, w2.T, b2, relu=True)
    x = matmul_bias_act(x, w3.T, b3, relu=False, out_dtype=jnp.float32)
    return x


if __name__ == "__main__":
    key = jax.random.PRNGKey(0)
    kparam, kx = jax.random.split(key)
    params = init_params(kparam, num_classes=2)
    # Small NCHW input: 64 is the smallest spatial size that survives the
    # AlexNet conv/pool stack (adaptive avg-pool then maps to 6x6 -> 9216 feats).
    x = jax.random.normal(kx, (2, 3, 64, 64), jnp.float32)

    fwd = jax.jit(alexnet_forward)
    out = jax.block_until_ready(fwd(params, x))

    assert out.shape == (2, 2), out.shape
    assert bool(jnp.all(jnp.isfinite(out)))
    print("KERNEL_OK")
</pallas_src>

<mosaic_0001>
module attributes {stable_mosaic.version = 11 : i64} {
  func.func @_matmul_bias_kernel(%arg0: i32, %arg1: i32, %arg2: i32, %arg3: memref<256x384xbf16, #tpu.memory_space<vmem>>, %arg4: memref<384x128xbf16, #tpu.memory_space<vmem>>, %arg5: memref<1x128xf32, #tpu.memory_space<vmem>>, %arg6: memref<256x128xbf16, #tpu.memory_space<vmem>>, %arg7: memref<256x128xf32, #tpu.memory_space<vmem>>) attributes {dimension_semantics = [#tpu.dimension_semantics<parallel>, #tpu.dimension_semantics<parallel>, #tpu.dimension_semantics<arbitrary>], iteration_bounds = array<i64: 2, 1, 1>, scalar_prefetch = 0 : i64, scratch_operands = 1 : i64, tpu.core_type = #tpu.core_type<tc>, window_params = [{transform_indices = @transform_0, window_bounds = array<i64: 256, 384>}, {transform_indices = @transform_1, window_bounds = array<i64: 384, 128>}, {transform_indices = @transform_2, window_bounds = array<i64: 1, 128>}, {transform_indices = @transform_3, window_bounds = array<i64: 256, 128>}]} {
    %c0_i32 = arith.constant 0 : i32
    %0 = arith.cmpi eq, %arg2, %c0_i32 : i32
    %1 = arith.extui %0 : i1 to i32
    %c0_i32_0 = arith.constant 0 : i32
    %2 = arith.cmpi ne, %1, %c0_i32_0 : i32
    scf.if %2 {
      %cst_10 = arith.constant 0.000000e+00 : f32
      %12 = vector.broadcast %cst_10 : f32 to vector<256x128xf32>
      %c0_11 = arith.constant 0 : index
      %c0_12 = arith.constant 0 : index
      %13 = vector.load %arg7[%c0_11, %c0_12] : memref<256x128xf32, #tpu.memory_space<vmem>>, vector<256x128xf32>
      tpu.vector_store %arg7[%c0_11, %c0_12], %12 {strides = array<i32>} : memref<256x128xf32, #tpu.memory_space<vmem>>, vector<256x128xf32>,
    } else {
    }
    %c0 = arith.constant 0 : index
    %c0_1 = arith.constant 0 : index
    %3 = vector.load %arg7[%c0, %c0_1] : memref<256x128xf32, #tpu.memory_space<vmem>>, vector<256x128xf32>
    %c0_2 = arith.constant 0 : index
    %c0_3 = arith.constant 0 : index
    %4 = vector.load %arg3[%c0_2, %c0_3] : memref<256x384xbf16, #tpu.memory_space<vmem>>, vector<256x384xbf16>
    %c0_4 = arith.constant 0 : index
    %c0_5 = arith.constant 0 : index
    %5 = vector.load %arg4[%c0_4, %c0_5] : memref<384x128xbf16, #tpu.memory_space<vmem>>, vector<384x128xbf16>
    %cst = arith.constant dense<0.000000e+00> : vector<256x128xf32>
    %6 = tpu.matmul %4, %5, %cst {dimension_numbers = #tpu.dot_dimension_numbers<[1], [0], [0], [1], [0, 0, 1, 1], [], []>} : vector<256x384xbf16>, vector<384x128xbf16>, vector<256x128xf32> -> vector<256x128xf32>
    %7 = arith.addf %3, %6 : vector<256x128xf32>
    %c0_6 = arith.constant 0 : index
    %c0_7 = arith.constant 0 : index
    %8 = vector.load %arg7[%c0_6, %c0_7] : memref<256x128xf32, #tpu.memory_space<vmem>>, vector<256x128xf32>
    tpu.vector_store %arg7[%c0_6, %c0_7], %7 {strides = array<i32>} : memref<256x128xf32, #tpu.memory_space<vmem>>, vector<256x128xf32>,
    %c0_i32_8 = arith.constant 0 : i32
    %9 = arith.cmpi eq, %arg2, %c0_i32_8 : i32
    %10 = arith.extui %9 : i1 to i32
    %c0_i32_9 = arith.constant 0 : i32
    %11 = arith.cmpi ne, %10, %c0_i32_9 : i32
    scf.if %11 {
      %c0_10 = arith.constant 0 : index
      %c0_11 = arith.constant 0 : index
      %12 = vector.load %arg7[%c0_10, %c0_11] : memref<256x128xf32, #tpu.memory_space<vmem>>, vector<256x128xf32>
      %c0_12 = arith.constant 0 : index
      %c0_13 = arith.constant 0 : index
      %13 = vector.load %arg5[%c0_12, %c0_13] : memref<1x128xf32, #tpu.memory_space<vmem>>, vector<1x128xf32>
      %14 = vector.broadcast %13 : vector<1x128xf32> to vector<256x128xf32>
      %15 = arith.addf %12, %14 : vector<256x128xf32>
      %cst_14 = arith.constant 0.000000e+00 : f32
      %16 = vector.broadcast %cst_14 : f32 to vector<256x128xf32>
      %17 = arith.maximumf %15, %16 : vector<256x128xf32>
      %18 = arith.truncf %17 : vector<256x128xf32> to vector<256x128xbf16>
      %c0_15 = arith.constant 0 : index
      %c0_16 = arith.constant 0 : index
      %19 = vector.load %arg6[%c0_15, %c0_16] : memref<256x128xbf16, #tpu.memory_space<vmem>>, vector<256x128xbf16>
      tpu.vector_store %arg6[%c0_15, %c0_16], %18 {strides = array<i32>} : memref<256x128xbf16, #tpu.memory_space<vmem>>, vector<256x128xbf16>,
    } else {
    }
    return
  }
  func.func @transform_0(%arg0: i32, %arg1: i32, %arg2: i32) -> (i32, i32) {
    %c0_i32 = arith.constant 0 : i32
    return %arg0, %arg2 : i32, i32
  }
  func.func @transform_1(%arg0: i32, %arg1: i32, %arg2: i32) -> (i32, i32) {
    %c0_i32 = arith.constant 0 : i32
    return %arg2, %arg1 : i32, i32
  }
  func.func @transform_2(%arg0: i32, %arg1: i32, %arg2: i32) -> (i32, i32) {
    %c0_i32 = arith.constant 0 : i32
    %c0_i32_0 = arith.constant 0 : i32
    return %c0_i32, %arg1 : i32, i32
  }
  func.func @transform_3(%arg0: i32, %arg1: i32, %arg2: i32) -> (i32, i32) {
    %c0_i32 = arith.constant 0 : i32
    return %arg0, %arg1 : i32, i32
  }
}

module attributes {stable_mosaic.version = 11 : i64} {
  func.func @_maxtaps_kernel(%arg0: i32, %arg1: memref<9x16x512xbf16, #tpu.memory_space<vmem>>, %arg2: memref<16x512xbf16, #tpu.memory_space<vmem>>) attributes {dimension_semantics = [#tpu.dimension_semantics<parallel>], iteration_bounds = array<i64: 1>, scalar_prefetch = 0 : i64, scratch_operands = 0 : i64, tpu.core_type = #tpu.core_type<tc>, window_params = [{transform_indices = @transform_0, window_bounds = array<i64: 9, 16, 512>}, {transform_indices = @transform_1, window_bounds = array<i64: 16, 512>}]} {
    %c0 = arith.constant 0 : index
    %c0_0 = arith.constant 0 : index
    %c0_1 = arith.constant 0 : index
    %0 = vector.load %arg1[%c0, %c0_0, %c0_1] : memref<9x16x512xbf16, #tpu.memory_space<vmem>>, vector<9x16x512xbf16>
    %1 = vector.extract_strided_slice %0 {offsets = [0, 0, 0], sizes = [1, 16, 512], strides = [1, 1, 1]} : vector<9x16x512xbf16> to vector<1x16x512xbf16>
    %2 = vector.shape_cast %1 : vector<1x16x512xbf16> to vector<16x512xbf16>
    %3 = vector.extract_strided_slice %0 {offsets = [1, 0, 0], sizes = [1, 16, 512], strides = [1, 1, 1]} : vector<9x16x512xbf16> to vector<1x16x512xbf16>
    %4 = vector.shape_cast %3 : vector<1x16x512xbf16> to vector<16x512xbf16>
    %5 = arith.maximumf %2, %4 : vector<16x512xbf16>
    %6 = vector.extract_strided_slice %0 {offsets = [2, 0, 0], sizes = [1, 16, 512], strides = [1, 1, 1]} : vector<9x16x512xbf16> to vector<1x16x512xbf16>
    %7 = vector.shape_cast %6 : vector<1x16x512xbf16> to vector<16x512xbf16>
    %8 = arith.maximumf %5, %7 : vector<16x512xbf16>
    %9 = vector.extract_strided_slice %0 {offsets = [3, 0, 0], sizes = [1, 16, 512], strides = [1, 1, 1]} : vector<9x16x512xbf16> to vector<1x16x512xbf16>
    %10 = vector.shape_cast %9 : vector<1x16x512xbf16> to vector<16x512xbf16>
    %11 = arith.maximumf %8, %10 : vector<16x512xbf16>
    %12 = vector.extract_strided_slice %0 {offsets = [4, 0, 0], sizes = [1, 16, 512], strides = [1, 1, 1]} : vector<9x16x512xbf16> to vector<1x16x512xbf16>
    %13 = vector.shape_cast %12 : vector<1x16x512xbf16> to vector<16x512xbf16>
    %14 = arith.maximumf %11, %13 : vector<16x512xbf16>
    %15 = vector.extract_strided_slice %0 {offsets = [5, 0, 0], sizes = [1, 16, 512], strides = [1, 1, 1]} : vector<9x16x512xbf16> to vector<1x16x512xbf16>
    %16 = vector.shape_cast %15 : vector<1x16x512xbf16> to vector<16x512xbf16>
    %17 = arith.maximumf %14, %16 : vector<16x512xbf16>
    %18 = vector.extract_strided_slice %0 {offsets = [6, 0, 0], sizes = [1, 16, 512], strides = [1, 1, 1]} : vector<9x16x512xbf16> to vector<1x16x512xbf16>
    %19 = vector.shape_cast %18 : vector<1x16x512xbf16> to vector<16x512xbf16>
    %20 = arith.maximumf %17, %19 : vector<16x512xbf16>
    %21 = vector.extract_strided_slice %0 {offsets = [7, 0, 0], sizes = [1, 16, 512], strides = [1, 1, 1]} : vector<9x16x512xbf16> to vector<1x16x512xbf16>
    %22 = vector.shape_cast %21 : vector<1x16x512xbf16> to vector<16x512xbf16>
    %23 = arith.maximumf %20, %22 : vector<16x512xbf16>
    %24 = vector.extract_strided_slice %0 {offsets = [8, 0, 0], sizes = [1, 16, 512], strides = [1, 1, 1]} : vector<9x16x512xbf16> to vector<1x16x512xbf16>
    %25 = vector.shape_cast %24 : vector<1x16x512xbf16> to vector<16x512xbf16>
    %26 = arith.maximumf %23, %25 : vector<16x512xbf16>
    %c0_2 = arith.constant 0 : index
    %c0_3 = arith.constant 0 : index
    %27 = vector.load %arg2[%c0_2, %c0_3] : memref<16x512xbf16, #tpu.memory_space<vmem>>, vector<16x512xbf16>
    tpu.vector_store %arg2[%c0_2, %c0_3], %26 {strides = array<i32>} : memref<16x512xbf16, #tpu.memory_space<vmem>>, vector<16x512xbf16>,
    return
  }
  func.func @transform_0(%arg0: i32) -> (i32, i32, i32) {
    %c0_i32 = arith.constant 0 : i32
    %c0_i32_0 = arith.constant 0 : i32
    %c0_i32_1 = arith.constant 0 : i32
    return %c0_i32, %arg0, %c0_i32_0 : i32, i32, i32
  }
  func.func @transform_1(%arg0: i32) -> (i32, i32) {
    %c0_i32 = arith.constant 0 : i32
    %c0_i32_0 = arith.constant 0 : i32
    return %arg0, %c0_i32 : i32, i32
  }
}

module attributes {stable_mosaic.version = 11 : i64} {
  func.func @_matmul_bias_kernel(%arg0: i32, %arg1: i32, %arg2: i32, %arg3: memref<104x512xbf16, #tpu.memory_space<vmem>>, %arg4: memref<512x256xbf16, #tpu.memory_space<vmem>>, %arg5: memref<1x256xf32, #tpu.memory_space<vmem>>, %arg6: memref<104x256xbf16, #tpu.memory_space<vmem>>, %arg7: memref<104x256xf32, #tpu.memory_space<vmem>>) attributes {dimension_semantics = [#tpu.dimension_semantics<parallel>, #tpu.dimension_semantics<parallel>, #tpu.dimension_semantics<arbitrary>], iteration_bounds = array<i64: 1, 1, 4>, scalar_prefetch = 0 : i64, scratch_operands = 1 : i64, tpu.core_type = #tpu.core_type<tc>, window_params = [{transform_indices = @transform_0, window_bounds = array<i64: 104, 512>}, {transform_indices = @transform_1, window_bounds = array<i64: 512, 256>}, {transform_indices = @transform_2, window_bounds = array<i64: 1, 256>}, {transform_indices = @transform_3, window_bounds = array<i64: 104, 256>}]} {
    %c0_i32 = arith.constant 0 : i32
    %0 = arith.cmpi eq, %arg2, %c0_i32 : i32
    %1 = arith.extui %0 : i1 to i32
    %c0_i32_0 = arith.constant 0 : i32
    %2 = arith.cmpi ne, %1, %c0_i32_0 : i32
    scf.if %2 {
      %cst_9 = arith.constant 0.000000e+00 : f32
      %12 = vector.broadcast %cst_9 : f32 to vector<104x256xf32>
      %c0_10 = arith.constant 0 : index
      %c0_11 = arith.constant 0 : index
      %13 = vector.load %arg7[%c0_10, %c0_11] : memref<104x256xf32, #tpu.memory_space<vmem>>, vector<104x256xf32>
      tpu.vector_store %arg7[%c0_10, %c0_11], %12 {strides = array<i32>} : memref<104x256xf32, #tpu.memory_space<vmem>>, vector<104x256xf32>,
    } else {
    }
    %c0 = arith.constant 0 : index
    %c0_1 = arith.constant 0 : index
    %3 = vector.load %arg7[%c0, %c0_1] : memref<104x256xf32, #tpu.memory_space<vmem>>, vector<104x256xf32>
    %c0_2 = arith.constant 0 : index
    %c0_3 = arith.constant 0 : index
    %4 = vector.load %arg3[%c0_2, %c0_3] : memref<104x512xbf16, #tpu.memory_space<vmem>>, vector<104x512xbf16>
    %c0_4 = arith.constant 0 : index
    %c0_5 = arith.constant 0 : index
    %5 = vector.load %arg4[%c0_4, %c0_5] : memref<512x256xbf16, #tpu.memory_space<vmem>>, vector<512x256xbf16>
    %cst = arith.constant dense<0.000000e+00> : vector<104x256xf32>
    %6 = tpu.matmul %4, %5, %cst {dimension_numbers = #tpu.dot_dimension_numbers<[1], [0], [0], [1], [0, 0, 1, 1], [], []>} : vector<104x512xbf16>, vector<512x256xbf16>, vector<104x256xf32> -> vector<104x256xf32>
    %7 = arith.addf %3, %6 : vector<104x256xf32>
    %c0_6 = arith.constant 0 : index
    %c0_7 = arith.constant 0 : index
    %8 = vector.load %arg7[%c0_6, %c0_7] : memref<104x256xf32, #tpu.memory_space<vmem>>, vector<104x256xf32>
    tpu.vector_store %arg7[%c0_6, %c0_7], %7 {strides = array<i32>} : memref<104x256xf32, #tpu.memory_space<vmem>>, vector<104x256xf32>,
    %c3_i32 = arith.constant 3 : i32
    %9 = arith.cmpi eq, %arg2, %c3_i32 : i32
    %10 = arith.extui %9 : i1 to i32
    %c0_i32_8 = arith.constant 0 : i32
    %11 = arith.cmpi ne, %10, %c0_i32_8 : i32
    scf.if %11 {
      %c0_9 = arith.constant 0 : index
      %c0_10 = arith.constant 0 : index
      %12 = vector.load %arg7[%c0_9, %c0_10] : memref<104x256xf32, #tpu.memory_space<vmem>>, vector<104x256xf32>
      %c0_11 = arith.constant 0 : index
      %c0_12 = arith.constant 0 : index
      %13 = vector.load %arg5[%c0_11, %c0_12] : memref<1x256xf32, #tpu.memory_space<vmem>>, vector<1x256xf32>
      %14 = vector.broadcast %13 : vector<1x256xf32> to vector<104x256xf32>
      %15 = arith.addf %12, %14 : vector<104x256xf32>
      %cst_13 = arith.constant 0.000000e+00 : f32
      %16 = vector.broadcast %cst_13 : f32 to vector<104x256xf32>
      %17 = arith.maximumf %15, %16 : vector<104x256xf32>
      %18 = arith.truncf %17 : vector<104x256xf32> to vector<104x256xbf16>
      %c0_14 = arith.constant 0 : index
      %c0_15 = arith.constant 0 : index
      %19 = vector.load %arg6[%c0_14, %c0_15] : memref<104x256xbf16, #tpu.memory_space<vmem>>, vector<104x256xbf16>
      tpu.vector_store %arg6[%c0_14, %c0_15], %18 {strides = array<i32>} : memref<104x256xbf16, #tpu.memory_space<vmem>>, vector<104x256xbf16>,
    } else {
    }
    return
  }
  func.func @transform_0(%arg0: i32, %arg1: i32, %arg2: i32) -> (i32, i32) {
    %c0_i32 = arith.constant 0 : i32
    return %arg0, %arg2 : i32, i32
  }
  func.func @transform_1(%arg0: i32, %arg1: i32, %arg2: i32) -> (i32, i32) {
    %c0_i32 = arith.constant 0 : i32
    return %arg2, %arg1 : i32, i32
  }
  func.func @transform_2(%arg0: i32, %arg1: i32, %arg2: i32) -> (i32, i32) {
    %c0_i32 = arith.constant 0 : i32
    %c0_i32_0 = arith.constant 0 : i32
    return %c0_i32, %arg1 : i32, i32
  }
  func.func @transform_3(%arg0: i32, %arg1: i32, %arg2: i32) -> (i32, i32) {
    %c0_i32 = arith.constant 0 : i32
    return %arg0, %arg1 : i32, i32
  }
}

module attributes {stable_mosaic.version = 11 : i64} {
  func.func @_maxtaps_kernel(%arg0: i32, %arg1: memref<9x8x512xbf16, #tpu.memory_space<vmem>>, %arg2: memref<8x512xbf16, #tpu.memory_space<vmem>>) attributes {dimension_semantics = [#tpu.dimension_semantics<parallel>], iteration_bounds = array<i64: 1>, scalar_prefetch = 0 : i64, scratch_operands = 0 : i64, tpu.core_type = #tpu.core_type<tc>, window_params = [{transform_indices = @transform_0, window_bounds = array<i64: 9, 8, 512>}, {transform_indices = @transform_1, window_bounds = array<i64: 8, 512>}]} {
    %c0 = arith.constant 0 : index
    %c0_0 = arith.constant 0 : index
    %c0_1 = arith.constant 0 : index
    %0 = vector.load %arg1[%c0, %c0_0, %c0_1] : memref<9x8x512xbf16, #tpu.memory_space<vmem>>, vector<9x8x512xbf16>
    %1 = vector.extract_strided_slice %0 {offsets = [0, 0, 0], sizes = [1, 8, 512], strides = [1, 1, 1]} : vector<9x8x512xbf16> to vector<1x8x512xbf16>
    %2 = vector.shape_cast %1 : vector<1x8x512xbf16> to vector<8x512xbf16>
    %3 = vector.extract_strided_slice %0 {offsets = [1, 0, 0], sizes = [1, 8, 512], strides = [1, 1, 1]} : vector<9x8x512xbf16> to vector<1x8x512xbf16>
    %4 = vector.shape_cast %3 : vector<1x8x512xbf16> to vector<8x512xbf16>
    %5 = arith.maximumf %2, %4 : vector<8x512xbf16>
    %6 = vector.extract_strided_slice %0 {offsets = [2, 0, 0], sizes = [1, 8, 512], strides = [1, 1, 1]} : vector<9x8x512xbf16> to vector<1x8x512xbf16>
    %7 = vector.shape_cast %6 : vector<1x8x512xbf16> to vector<8x512xbf16>
    %8 = arith.maximumf %5, %7 : vector<8x512xbf16>
    %9 = vector.extract_strided_slice %0 {offsets = [3, 0, 0], sizes = [1, 8, 512], strides = [1, 1, 1]} : vector<9x8x512xbf16> to vector<1x8x512xbf16>
    %10 = vector.shape_cast %9 : vector<1x8x512xbf16> to vector<8x512xbf16>
    %11 = arith.maximumf %8, %10 : vector<8x512xbf16>
    %12 = vector.extract_strided_slice %0 {offsets = [4, 0, 0], sizes = [1, 8, 512], strides = [1, 1, 1]} : vector<9x8x512xbf16> to vector<1x8x512xbf16>
    %13 = vector.shape_cast %12 : vector<1x8x512xbf16> to vector<8x512xbf16>
    %14 = arith.maximumf %11, %13 : vector<8x512xbf16>
    %15 = vector.extract_strided_slice %0 {offsets = [5, 0, 0], sizes = [1, 8, 512], strides = [1, 1, 1]} : vector<9x8x512xbf16> to vector<1x8x512xbf16>
    %16 = vector.shape_cast %15 : vector<1x8x512xbf16> to vector<8x512xbf16>
    %17 = arith.maximumf %14, %16 : vector<8x512xbf16>
    %18 = vector.extract_strided_slice %0 {offsets = [6, 0, 0], sizes = [1, 8, 512], strides = [1, 1, 1]} : vector<9x8x512xbf16> to vector<1x8x512xbf16>
    %19 = vector.shape_cast %18 : vector<1x8x512xbf16> to vector<8x512xbf16>
    %20 = arith.maximumf %17, %19 : vector<8x512xbf16>
    %21 = vector.extract_strided_slice %0 {offsets = [7, 0, 0], sizes = [1, 8, 512], strides = [1, 1, 1]} : vector<9x8x512xbf16> to vector<1x8x512xbf16>
    %22 = vector.shape_cast %21 : vector<1x8x512xbf16> to vector<8x512xbf16>
    %23 = arith.maximumf %20, %22 : vector<8x512xbf16>
    %24 = vector.extract_strided_slice %0 {offsets = [8, 0, 0], sizes = [1, 8, 512], strides = [1, 1, 1]} : vector<9x8x512xbf16> to vector<1x8x512xbf16>
    %25 = vector.shape_cast %24 : vector<1x8x512xbf16> to vector<8x512xbf16>
    %26 = arith.maximumf %23, %25 : vector<8x512xbf16>
    %c0_2 = arith.constant 0 : index
    %c0_3 = arith.constant 0 : index
    %27 = vector.load %arg2[%c0_2, %c0_3] : memref<8x512xbf16, #tpu.memory_space<vmem>>, vector<8x512xbf16>
    tpu.vector_store %arg2[%c0_2, %c0_3], %26 {strides = array<i32>} : memref<8x512xbf16, #tpu.memory_space<vmem>>, vector<8x512xbf16>,
    return
  }
  func.func @transform_0(%arg0: i32) -> (i32, i32, i32) {
    %c0_i32 = arith.constant 0 : i32
    %c0_i32_0 = arith.constant 0 : i32
    %c0_i32_1 = arith.constant 0 : i32
    return %c0_i32, %arg0, %c0_i32_0 : i32, i32, i32
  }
  func.func @transform_1(%arg0: i32) -> (i32, i32) {
    %c0_i32 = arith.constant 0 : i32
    %c0_i32_0 = arith.constant 0 : i32
    return %arg0, %c0_i32 : i32, i32
  }
}

module attributes {stable_mosaic.version = 11 : i64} {
  func.func @_matmul_bias_kernel(%arg0: i32, %arg1: i32, %arg2: i32, %arg3: memref<24x512xbf16, #tpu.memory_space<vmem>>, %arg4: memref<512x128xbf16, #tpu.memory_space<vmem>>, %arg5: memref<1x128xf32, #tpu.memory_space<vmem>>, %arg6: memref<24x128xbf16, #tpu.memory_space<vmem>>, %arg7: memref<24x128xf32, #tpu.memory_space<vmem>>) attributes {dimension_semantics = [#tpu.dimension_semantics<parallel>, #tpu.dimension_semantics<parallel>, #tpu.dimension_semantics<arbitrary>], iteration_bounds = array<i64: 1, 3, 4>, scalar_prefetch = 0 : i64, scratch_operands = 1 : i64, tpu.core_type = #tpu.core_type<tc>, window_params = [{transform_indices = @transform_0, window_bounds = array<i64: 24, 512>}, {transform_indices = @transform_1, window_bounds = array<i64: 512, 128>}, {transform_indices = @transform_2, window_bounds = array<i64: 1, 128>}, {transform_indices = @transform_3, window_bounds = array<i64: 24, 128>}]} {
    %c0_i32 = arith.constant 0 : i32
    %0 = arith.cmpi eq, %arg2, %c0_i32 : i32
    %1 = arith.extui %0 : i1 to i32
    %c0_i32_0 = arith.constant 0 : i32
    %2 = arith.cmpi ne, %1, %c0_i32_0 : i32
    scf.if %2 {
      %cst_9 = arith.constant 0.000000e+00 : f32
      %12 = vector.broadcast %cst_9 : f32 to vector<24x128xf32>
      %c0_10 = arith.constant 0 : index
      %c0_11 = arith.constant 0 : index
      %13 = vector.load %arg7[%c0_10, %c0_11] : memref<24x128xf32, #tpu.memory_space<vmem>>, vector<24x128xf32>
      tpu.vector_store %arg7[%c0_10, %c0_11], %12 {strides = array<i32>} : memref<24x128xf32, #tpu.memory_space<vmem>>, vector<24x128xf32>,
    } else {
    }
    %c0 = arith.constant 0 : index
    %c0_1 = arith.constant 0 : index
    %3 = vector.load %arg7[%c0, %c0_1] : memref<24x128xf32, #tpu.memory_space<vmem>>, vector<24x128xf32>
    %c0_2 = arith.constant 0 : index
    %c0_3 = arith.constant 0 : index
    %4 = vector.load %arg3[%c0_2, %c0_3] : memref<24x512xbf16, #tpu.memory_space<vmem>>, vector<24x512xbf16>
    %c0_4 = arith.constant 0 : index
    %c0_5 = arith.constant 0 : index
    %5 = vector.load %arg4[%c0_4, %c0_5] : memref<512x128xbf16, #tpu.memory_space<vmem>>, vector<512x128xbf16>
    %cst = arith.constant dense<0.000000e+00> : vector<24x128xf32>
    %6 = tpu.matmul %4, %5, %cst {dimension_numbers = #tpu.dot_dimension_numbers<[1], [0], [0], [1], [0, 0, 1, 1], [], []>} : vector<24x512xbf16>, vector<512x128xbf16>, vector<24x128xf32> -> vector<24x128xf32>
    %7 = arith.addf %3, %6 : vector<24x128xf32>
    %c0_6 = arith.constant 0 : index
    %c0_7 = arith.constant 0 : index
    %8 = vector.load %arg7[%c0_6, %c0_7] : memref<24x128xf32, #tpu.memory_space<vmem>>, vector<24x128xf32>
    tpu.vector_store %arg7[%c0_6, %c0_7], %7 {strides = array<i32>} : memref<24x128xf32, #tpu.memory_space<vmem>>, vector<24x128xf32>,
    %c3_i32 = arith.constant 3 : i32
    %9 = arith.cmpi eq, %arg2, %c3_i32 : i32
    %10 = arith.extui %9 : i1 to i32
    %c0_i32_8 = arith.constant 0 : i32
    %11 = arith.cmpi ne, %10, %c0_i32_8 : i32
    scf.if %11 {
      %c0_9 = arith.constant 0 : index
      %c0_10 = arith.constant 0 : index
      %12 = vector.load %arg7[%c0_9, %c0_10] : memref<24x128xf32, #tpu.memory_space<vmem>>, vector<24x128xf32>
      %c0_11 = arith.constant 0 : index
      %c0_12 = arith.constant 0 : index
      %13 = vector.load %arg5[%c0_11, %c0_12] : memref<1x128xf32, #tpu.memory_space<vmem>>, vector<1x128xf32>
      %14 = vector.broadcast %13 : vector<1x128xf32> to vector<24x128xf32>
      %15 = arith.addf %12, %14 : vector<24x128xf32>
      %cst_13 = arith.constant 0.000000e+00 : f32
      %16 = vector.broadcast %cst_13 : f32 to vector<24x128xf32>
      %17 = arith.maximumf %15, %16 : vector<24x128xf32>
      %18 = arith.truncf %17 : vector<24x128xf32> to vector<24x128xbf16>
      %c0_14 = arith.constant 0 : index
      %c0_15 = arith.constant 0 : index
      %19 = vector.load %arg6[%c0_14, %c0_15] : memref<24x128xbf16, #tpu.memory_space<vmem>>, vector<24x128xbf16>
      tpu.vector_store %arg6[%c0_14, %c0_15], %18 {strides = array<i32>} : memref<24x128xbf16, #tpu.memory_space<vmem>>, vector<24x128xbf16>,
    } else {
    }
    return
  }
  func.func @transform_0(%arg0: i32, %arg1: i32, %arg2: i32) -> (i32, i32) {
    %c0_i32 = arith.constant 0 : i32
    return %arg0, %arg2 : i32, i32
  }
  func.func @transform_1(%arg0: i32, %arg1: i32, %arg2: i32) -> (i32, i32) {
    %c0_i32 = arith.constant 0 : i32
    return %arg2, %arg1 : i32, i32
  }
  func.func @transform_2(%arg0: i32, %arg1: i32, %arg2: i32) -> (i32, i32) {
    %c0_i32 = arith.constant 0 : i32
    %c0_i32_0 = arith.constant 0 : i32
    return %c0_i32, %arg1 : i32, i32
  }
  func.func @transform_3(%arg0: i32, %arg1: i32, %arg2: i32) -> (i32, i32) {
    %c0_i32 = arith.constant 0 : i32
    return %arg0, %arg1 : i32, i32
  }
}

module attributes {stable_mosaic.version = 11 : i64} {
  func.func @_matmul_bias_kernel(%arg0: i32, %arg1: i32, %arg2: i32, %arg3: memref<24x512xbf16, #tpu.memory_space<vmem>>, %arg4: memref<512x256xbf16, #tpu.memory_space<vmem>>, %arg5: memref<1x256xf32, #tpu.memory_space<vmem>>, %arg6: memref<24x256xbf16, #tpu.memory_space<vmem>>, %arg7: memref<24x256xf32, #tpu.memory_space<vmem>>) attributes {dimension_semantics = [#tpu.dimension_semantics<parallel>, #tpu.dimension_semantics<parallel>, #tpu.dimension_semantics<arbitrary>], iteration_bounds = array<i64: 1, 1, 7>, scalar_prefetch = 0 : i64, scratch_operands = 1 : i64, tpu.core_type = #tpu.core_type<tc>, window_params = [{transform_indices = @transform_0, window_bounds = array<i64: 24, 512>}, {transform_indices = @transform_1, window_bounds = array<i64: 512, 256>}, {transform_indices = @transform_2, window_bounds = array<i64: 1, 256>}, {transform_indices = @transform_3, window_bounds = array<i64: 24, 256>}]} {
    %c0_i32 = arith.constant 0 : i32
    %0 = arith.cmpi eq, %arg2, %c0_i32 : i32
    %1 = arith.extui %0 : i1 to i32
    %c0_i32_0 = arith.constant 0 : i32
    %2 = arith.cmpi ne, %1, %c0_i32_0 : i32
    scf.if %2 {
      %cst_9 = arith.constant 0.000000e+00 : f32
      %12 = vector.broadcast %cst_9 : f32 to vector<24x256xf32>
      %c0_10 = arith.constant 0 : index
      %c0_11 = arith.constant 0 : index
      %13 = vector.load %arg7[%c0_10, %c0_11] : memref<24x256xf32, #tpu.memory_space<vmem>>, vector<24x256xf32>
      tpu.vector_store %arg7[%c0_10, %c0_11], %12 {strides = array<i32>} : memref<24x256xf32, #tpu.memory_space<vmem>>, vector<24x256xf32>,
    } else {
    }
    %c0 = arith.constant 0 : index
    %c0_1 = arith.constant 0 : index
    %3 = vector.load %arg7[%c0, %c0_1] : memref<24x256xf32, #tpu.memory_space<vmem>>, vector<24x256xf32>
    %c0_2 = arith.constant 0 : index
    %c0_3 = arith.constant 0 : index
    %4 = vector.load %arg3[%c0_2, %c0_3] : memref<24x512xbf16, #tpu.memory_space<vmem>>, vector<24x512xbf16>
    %c0_4 = arith.constant 0 : index
    %c0_5 = arith.constant 0 : index
    %5 = vector.load %arg4[%c0_4, %c0_5] : memref<512x256xbf16, #tpu.memory_space<vmem>>, vector<512x256xbf16>
    %cst = arith.constant dense<0.000000e+00> : vector<24x256xf32>
    %6 = tpu.matmul %4, %5, %cst {dimension_numbers = #tpu.dot_dimension_numbers<[1], [0], [0], [1], [0, 0, 1, 1], [], []>} : vector<24x512xbf16>, vector<512x256xbf16>, vector<24x256xf32> -> vector<24x256xf32>
    %7 = arith.addf %3, %6 : vector<24x256xf32>
    %c0_6 = arith.constant 0 : index
    %c0_7 = arith.constant 0 : index
    %8 = vector.load %arg7[%c0_6, %c0_7] : memref<24x256xf32, #tpu.memory_space<vmem>>, vector<24x256xf32>
    tpu.vector_store %arg7[%c0_6, %c0_7], %7 {strides = array<i32>} : memref<24x256xf32, #tpu.memory_space<vmem>>, vector<24x256xf32>,
    %c6_i32 = arith.constant 6 : i32
    %9 = arith.cmpi eq, %arg2, %c6_i32 : i32
    %10 = arith.extui %9 : i1 to i32
    %c0_i32_8 = arith.constant 0 : i32
    %11 = arith.cmpi ne, %10, %c0_i32_8 : i32
    scf.if %11 {
      %c0_9 = arith.constant 0 : index
      %c0_10 = arith.constant 0 : index
      %12 = vector.load %arg7[%c0_9, %c0_10] : memref<24x256xf32, #tpu.memory_space<vmem>>, vector<24x256xf32>
      %c0_11 = arith.constant 0 : index
      %c0_12 = arith.constant 0 : index
      %13 = vector.load %arg5[%c0_11, %c0_12] : memref<1x256xf32, #tpu.memory_space<vmem>>, vector<1x256xf32>
      %14 = vector.broadcast %13 : vector<1x256xf32> to vector<24x256xf32>
      %15 = arith.addf %12, %14 : vector<24x256xf32>
      %cst_13 = arith.constant 0.000000e+00 : f32
      %16 = vector.broadcast %cst_13 : f32 to vector<24x256xf32>
      %17 = arith.maximumf %15, %16 : vector<24x256xf32>
      %18 = arith.truncf %17 : vector<24x256xf32> to vector<24x256xbf16>
      %c0_14 = arith.constant 0 : index
      %c0_15 = arith.constant 0 : index
      %19 = vector.load %arg6[%c0_14, %c0_15] : memref<24x256xbf16, #tpu.memory_space<vmem>>, vector<24x256xbf16>
      tpu.vector_store %arg6[%c0_14, %c0_15], %18 {strides = array<i32>} : memref<24x256xbf16, #tpu.memory_space<vmem>>, vector<24x256xbf16>,
    } else {
    }
    return
  }
  func.func @transform_0(%arg0: i32, %arg1: i32, %arg2: i32) -> (i32, i32) {
    %c0_i32 = arith.constant 0 : i32
    return %arg0, %arg2 : i32, i32
  }
  func.func @transform_1(%arg0: i32, %arg1: i32, %arg2: i32) -> (i32, i32) {
    %c0_i32 = arith.constant 0 : i32
    return %arg2, %arg1 : i32, i32
  }
  func.func @transform_2(%arg0: i32, %arg1: i32, %arg2: i32) -> (i32, i32) {
    %c0_i32 = arith.constant 0 : i32
    %c0_i32_0 = arith.constant 0 : i32
    return %c0_i32, %arg1 : i32, i32
  }
  func.func @transform_3(%arg0: i32, %arg1: i32, %arg2: i32) -> (i32, i32) {
    %c0_i32 = arith.constant 0 : i32
    return %arg0, %arg1 : i32, i32
  }
}

module attributes {stable_mosaic.version = 11 : i64} {
  func.func @_matmul_bias_kernel(%arg0: i32, %arg1: i32, %arg2: i32, %arg3: memref<24x512xbf16, #tpu.memory_space<vmem>>, %arg4: memref<512x256xbf16, #tpu.memory_space<vmem>>, %arg5: memref<1x256xf32, #tpu.memory_space<vmem>>, %arg6: memref<24x256xbf16, #tpu.memory_space<vmem>>, %arg7: memref<24x256xf32, #tpu.memory_space<vmem>>) attributes {dimension_semantics = [#tpu.dimension_semantics<parallel>, #tpu.dimension_semantics<parallel>, #tpu.dimension_semantics<arbitrary>], iteration_bounds = array<i64: 1, 1, 5>, scalar_prefetch = 0 : i64, scratch_operands = 1 : i64, tpu.core_type = #tpu.core_type<tc>, window_params = [{transform_indices = @transform_0, window_bounds = array<i64: 24, 512>}, {transform_indices = @transform_1, window_bounds = array<i64: 512, 256>}, {transform_indices = @transform_2, window_bounds = array<i64: 1, 256>}, {transform_indices = @transform_3, window_bounds = array<i64: 24, 256>}]} {
    %c0_i32 = arith.constant 0 : i32
    %0 = arith.cmpi eq, %arg2, %c0_i32 : i32
    %1 = arith.extui %0 : i1 to i32
    %c0_i32_0 = arith.constant 0 : i32
    %2 = arith.cmpi ne, %1, %c0_i32_0 : i32
    scf.if %2 {
      %cst_9 = arith.constant 0.000000e+00 : f32
      %12 = vector.broadcast %cst_9 : f32 to vector<24x256xf32>
      %c0_10 = arith.constant 0 : index
      %c0_11 = arith.constant 0 : index
      %13 = vector.load %arg7[%c0_10, %c0_11] : memref<24x256xf32, #tpu.memory_space<vmem>>, vector<24x256xf32>
      tpu.vector_store %arg7[%c0_10, %c0_11], %12 {strides = array<i32>} : memref<24x256xf32, #tpu.memory_space<vmem>>, vector<24x256xf32>,
    } else {
    }
    %c0 = arith.constant 0 : index
    %c0_1 = arith.constant 0 : index
    %3 = vector.load %arg7[%c0, %c0_1] : memref<24x256xf32, #tpu.memory_space<vmem>>, vector<24x256xf32>
    %c0_2 = arith.constant 0 : index
    %c0_3 = arith.constant 0 : index
    %4 = vector.load %arg3[%c0_2, %c0_3] : memref<24x512xbf16, #tpu.memory_space<vmem>>, vector<24x512xbf16>
    %c0_4 = arith.constant 0 : index
    %c0_5 = arith.constant 0 : index
    %5 = vector.load %arg4[%c0_4, %c0_5] : memref<512x256xbf16, #tpu.memory_space<vmem>>, vector<512x256xbf16>
    %cst = arith.constant dense<0.000000e+00> : vector<24x256xf32>
    %6 = tpu.matmul %4, %5, %cst {dimension_numbers = #tpu.dot_dimension_numbers<[1], [0], [0], [1], [0, 0, 1, 1], [], []>} : vector<24x512xbf16>, vector<512x256xbf16>, vector<24x256xf32> -> vector<24x256xf32>
    %7 = arith.addf %3, %6 : vector<24x256xf32>
    %c0_6 = arith.constant 0 : index
    %c0_7 = arith.constant 0 : index
    %8 = vector.load %arg7[%c0_6, %c0_7] : memref<24x256xf32, #tpu.memory_space<vmem>>, vector<24x256xf32>
    tpu.vector_store %arg7[%c0_6, %c0_7], %7 {strides = array<i32>} : memref<24x256xf32, #tpu.memory_space<vmem>>, vector<24x256xf32>,
    %c4_i32 = arith.constant 4 : i32
    %9 = arith.cmpi eq, %arg2, %c4_i32 : i32
    %10 = arith.extui %9 : i1 to i32
    %c0_i32_8 = arith.constant 0 : i32
    %11 = arith.cmpi ne, %10, %c0_i32_8 : i32
    scf.if %11 {
      %c0_9 = arith.constant 0 : index
      %c0_10 = arith.constant 0 : index
      %12 = vector.load %arg7[%c0_9, %c0_10] : memref<24x256xf32, #tpu.memory_space<vmem>>, vector<24x256xf32>
      %c0_11 = arith.constant 0 : index
      %c0_12 = arith.constant 0 : index
      %13 = vector.load %arg5[%c0_11, %c0_12] : memref<1x256xf32, #tpu.memory_space<vmem>>, vector<1x256xf32>
      %14 = vector.broadcast %13 : vector<1x256xf32> to vector<24x256xf32>
      %15 = arith.addf %12, %14 : vector<24x256xf32>
      %cst_13 = arith.constant 0.000000e+00 : f32
      %16 = vector.broadcast %cst_13 : f32 to vector<24x256xf32>
      %17 = arith.maximumf %15, %16 : vector<24x256xf32>
      %18 = arith.truncf %17 : vector<24x256xf32> to vector<24x256xbf16>
      %c0_14 = arith.constant 0 : index
      %c0_15 = arith.constant 0 : index
      %19 = vector.load %arg6[%c0_14, %c0_15] : memref<24x256xbf16, #tpu.memory_space<vmem>>, vector<24x256xbf16>
      tpu.vector_store %arg6[%c0_14, %c0_15], %18 {strides = array<i32>} : memref<24x256xbf16, #tpu.memory_space<vmem>>, vector<24x256xbf16>,
    } else {
    }
    return
  }
  func.func @transform_0(%arg0: i32, %arg1: i32, %arg2: i32) -> (i32, i32) {
    %c0_i32 = arith.constant 0 : i32
    return %arg0, %arg2 : i32, i32
  }
  func.func @transform_1(%arg0: i32, %arg1: i32, %arg2: i32) -> (i32, i32) {
    %c0_i32 = arith.constant 0 : i32
    return %arg2, %arg1 : i32, i32
  }
  func.func @transform_2(%arg0: i32, %arg1: i32, %arg2: i32) -> (i32, i32) {
    %c0_i32 = arith.constant 0 : i32
    %c0_i32_0 = arith.constant 0 : i32
    return %c0_i32, %arg1 : i32, i32
  }
  func.func @transform_3(%arg0: i32, %arg1: i32, %arg2: i32) -> (i32, i32) {
    %c0_i32 = arith.constant 0 : i32
    return %arg0, %arg1 : i32, i32
  }
}

module attributes {stable_mosaic.version = 11 : i64} {
  func.func @_matmul_bias_kernel(%arg0: i32, %arg1: i32, %arg2: i32, %arg3: memref<8x512xbf16, #tpu.memory_space<vmem>>, %arg4: memref<512x256xbf16, #tpu.memory_space<vmem>>, %arg5: memref<1x256xf32, #tpu.memory_space<vmem>>, %arg6: memref<8x256xbf16, #tpu.memory_space<vmem>>, %arg7: memref<8x256xf32, #tpu.memory_space<vmem>>) attributes {dimension_semantics = [#tpu.dimension_semantics<parallel>, #tpu.dimension_semantics<parallel>, #tpu.dimension_semantics<arbitrary>], iteration_bounds = array<i64: 1, 2, 18>, scalar_prefetch = 0 : i64, scratch_operands = 1 : i64, tpu.core_type = #tpu.core_type<tc>, window_params = [{transform_indices = @transform_0, window_bounds = array<i64: 8, 512>}, {transform_indices = @transform_1, window_bounds = array<i64: 512, 256>}, {transform_indices = @transform_2, window_bounds = array<i64: 1, 256>}, {transform_indices = @transform_3, window_bounds = array<i64: 8, 256>}]} {
    %c0_i32 = arith.constant 0 : i32
    %0 = arith.cmpi eq, %arg2, %c0_i32 : i32
    %1 = arith.extui %0 : i1 to i32
    %c0_i32_0 = arith.constant 0 : i32
    %2 = arith.cmpi ne, %1, %c0_i32_0 : i32
    scf.if %2 {
      %cst_9 = arith.constant 0.000000e+00 : f32
      %12 = vector.broadcast %cst_9 : f32 to vector<8x256xf32>
      %c0_10 = arith.constant 0 : index
      %c0_11 = arith.constant 0 : index
      %13 = vector.load %arg7[%c0_10, %c0_11] : memref<8x256xf32, #tpu.memory_space<vmem>>, vector<8x256xf32>
      tpu.vector_store %arg7[%c0_10, %c0_11], %12 {strides = array<i32>} : memref<8x256xf32, #tpu.memory_space<vmem>>, vector<8x256xf32>,
    } else {
    }
    %c0 = arith.constant 0 : index
    %c0_1 = arith.constant 0 : index
    %3 = vector.load %arg7[%c0, %c0_1] : memref<8x256xf32, #tpu.memory_space<vmem>>, vector<8x256xf32>
    %c0_2 = arith.constant 0 : index
    %c0_3 = arith.constant 0 : index
    %4 = vector.load %arg3[%c0_2, %c0_3] : memref<8x512xbf16, #tpu.memory_space<vmem>>, vector<8x512xbf16>
    %c0_4 = arith.constant 0 : index
    %c0_5 = arith.constant 0 : index
    %5 = vector.load %arg4[%c0_4, %c0_5] : memref<512x256xbf16, #tpu.memory_space<vmem>>, vector<512x256xbf16>
    %cst = arith.constant dense<0.000000e+00> : vector<8x256xf32>
    %6 = tpu.matmul %4, %5, %cst {dimension_numbers = #tpu.dot_dimension_numbers<[1], [0], [0], [1], [0, 0, 1, 1], [], []>} : vector<8x512xbf16>, vector<512x256xbf16>, vector<8x256xf32> -> vector<8x256xf32>
    %7 = arith.addf %3, %6 : vector<8x256xf32>
    %c0_6 = arith.constant 0 : index
    %c0_7 = arith.constant 0 : index
    %8 = vector.load %arg7[%c0_6, %c0_7] : memref<8x256xf32, #tpu.memory_space<vmem>>, vector<8x256xf32>
    tpu.vector_store %arg7[%c0_6, %c0_7], %7 {strides = array<i32>} : memref<8x256xf32, #tpu.memory_space<vmem>>, vector<8x256xf32>,
    %c17_i32 = arith.constant 17 : i32
    %9 = arith.cmpi eq, %arg2, %c17_i32 : i32
    %10 = arith.extui %9 : i1 to i32
    %c0_i32_8 = arith.constant 0 : i32
    %11 = arith.cmpi ne, %10, %c0_i32_8 : i32
    scf.if %11 {
      %c0_9 = arith.constant 0 : index
      %c0_10 = arith.constant 0 : index
      %12 = vector.load %arg7[%c0_9, %c0_10] : memref<8x256xf32, #tpu.memory_space<vmem>>, vector<8x256xf32>
      %c0_11 = arith.constant 0 : index
      %c0_12 = arith.constant 0 : index
      %13 = vector.load %arg5[%c0_11, %c0_12] : memref<1x256xf32, #tpu.memory_space<vmem>>, vector<1x256xf32>
      %14 = vector.broadcast %13 : vector<1x256xf32> to vector<8x256xf32>
      %15 = arith.addf %12, %14 : vector<8x256xf32>
      %cst_13 = arith.constant 0.000000e+00 : f32
      %16 = vector.broadcast %cst_13 : f32 to vector<8x256xf32>
      %17 = arith.maximumf %15, %16 : vector<8x256xf32>
      %18 = arith.truncf %17 : vector<8x256xf32> to vector<8x256xbf16>
      %c0_14 = arith.constant 0 : index
      %c0_15 = arith.constant 0 : index
      %19 = vector.load %arg6[%c0_14, %c0_15] : memref<8x256xbf16, #tpu.memory_space<vmem>>, vector<8x256xbf16>
      tpu.vector_store %arg6[%c0_14, %c0_15], %18 {strides = array<i32>} : memref<8x256xbf16, #tpu.memory_space<vmem>>, vector<8x256xbf16>,
    } else {
    }
    return
  }
  func.func @transform_0(%arg0: i32, %arg1: i32, %arg2: i32) -> (i32, i32) {
    %c0_i32 = arith.constant 0 : i32
    return %arg0, %arg2 : i32, i32
  }
  func.func @transform_1(%arg0: i32, %arg1: i32, %arg2: i32) -> (i32, i32) {
    %c0_i32 = arith.constant 0 : i32
    return %arg2, %arg1 : i32, i32
  }
  func.func @transform_2(%arg0: i32, %arg1: i32, %arg2: i32) -> (i32, i32) {
    %c0_i32 = arith.constant 0 : i32
    %c0_i32_0 = arith.constant 0 : i32
    return %c0_i32, %arg1 : i32, i32
  }
  func.func @transform_3(%arg0: i32, %arg1: i32, %arg2: i32) -> (i32, i32) {
    %c0_i32 = arith.constant 0 : i32
    return %arg0, %arg1 : i32, i32
  }
}

module attributes {stable_mosaic.version = 11 : i64} {
  func.func @_matmul_bias_kernel(%arg0: i32, %arg1: i32, %arg2: i32, %arg3: memref<8x512xbf16, #tpu.memory_space<vmem>>, %arg4: memref<512x128xbf16, #tpu.memory_space<vmem>>, %arg5: memref<1x128xf32, #tpu.memory_space<vmem>>, %arg6: memref<8x128xbf16, #tpu.memory_space<vmem>>, %arg7: memref<8x128xf32, #tpu.memory_space<vmem>>) attributes {dimension_semantics = [#tpu.dimension_semantics<parallel>, #tpu.dimension_semantics<parallel>, #tpu.dimension_semantics<arbitrary>], iteration_bounds = array<i64: 1, 1, 1>, scalar_prefetch = 0 : i64, scratch_operands = 1 : i64, tpu.core_type = #tpu.core_type<tc>, window_params = [{transform_indices = @transform_0, window_bounds = array<i64: 8, 512>}, {transform_indices = @transform_1, window_bounds = array<i64: 512, 128>}, {transform_indices = @transform_2, window_bounds = array<i64: 1, 128>}, {transform_indices = @transform_3, window_bounds = array<i64: 8, 128>}]} {
    %c0_i32 = arith.constant 0 : i32
    %0 = arith.cmpi eq, %arg2, %c0_i32 : i32
    %1 = arith.extui %0 : i1 to i32
    %c0_i32_0 = arith.constant 0 : i32
    %2 = arith.cmpi ne, %1, %c0_i32_0 : i32
    scf.if %2 {
      %cst_10 = arith.constant 0.000000e+00 : f32
      %12 = vector.broadcast %cst_10 : f32 to vector<8x128xf32>
      %c0_11 = arith.constant 0 : index
      %c0_12 = arith.constant 0 : index
      %13 = vector.load %arg7[%c0_11, %c0_12] : memref<8x128xf32, #tpu.memory_space<vmem>>, vector<8x128xf32>
      tpu.vector_store %arg7[%c0_11, %c0_12], %12 {strides = array<i32>} : memref<8x128xf32, #tpu.memory_space<vmem>>, vector<8x128xf32>,
    } else {
    }
    %c0 = arith.constant 0 : index
    %c0_1 = arith.constant 0 : index
    %3 = vector.load %arg7[%c0, %c0_1] : memref<8x128xf32, #tpu.memory_space<vmem>>, vector<8x128xf32>
    %c0_2 = arith.constant 0 : index
    %c0_3 = arith.constant 0 : index
    %4 = vector.load %arg3[%c0_2, %c0_3] : memref<8x512xbf16, #tpu.memory_space<vmem>>, vector<8x512xbf16>
    %c0_4 = arith.constant 0 : index
    %c0_5 = arith.constant 0 : index
    %5 = vector.load %arg4[%c0_4, %c0_5] : memref<512x128xbf16, #tpu.memory_space<vmem>>, vector<512x128xbf16>
    %cst = arith.constant dense<0.000000e+00> : vector<8x128xf32>
    %6 = tpu.matmul %4, %5, %cst {dimension_numbers = #tpu.dot_dimension_numbers<[1], [0], [0], [1], [0, 0, 1, 1], [], []>} : vector<8x512xbf16>, vector<512x128xbf16>, vector<8x128xf32> -> vector<8x128xf32>
    %7 = arith.addf %3, %6 : vector<8x128xf32>
    %c0_6 = arith.constant 0 : index
    %c0_7 = arith.constant 0 : index
    %8 = vector.load %arg7[%c0_6, %c0_7] : memref<8x128xf32, #tpu.memory_space<vmem>>, vector<8x128xf32>
    tpu.vector_store %arg7[%c0_6, %c0_7], %7 {strides = array<i32>} : memref<8x128xf32, #tpu.memory_space<vmem>>, vector<8x128xf32>,
    %c0_i32_8 = arith.constant 0 : i32
    %9 = arith.cmpi eq, %arg2, %c0_i32_8 : i32
    %10 = arith.extui %9 : i1 to i32
    %c0_i32_9 = arith.constant 0 : i32
    %11 = arith.cmpi ne, %10, %c0_i32_9 : i32
    scf.if %11 {
      %c0_10 = arith.constant 0 : index
      %c0_11 = arith.constant 0 : index
      %12 = vector.load %arg7[%c0_10, %c0_11] : memref<8x128xf32, #tpu.memory_space<vmem>>, vector<8x128xf32>
      %c0_12 = arith.constant 0 : index
      %c0_13 = arith.constant 0 : index
      %13 = vector.load %arg5[%c0_12, %c0_13] : memref<1x128xf32, #tpu.memory_space<vmem>>, vector<1x128xf32>
      %14 = vector.broadcast %13 : vector<1x128xf32> to vector<8x128xf32>
      %15 = arith.addf %12, %14 : vector<8x128xf32>
      %cst_14 = arith.constant 0.000000e+00 : f32
      %16 = vector.broadcast %cst_14 : f32 to vector<8x128xf32>
      %17 = arith.maximumf %15, %16 : vector<8x128xf32>
      %18 = arith.truncf %17 : vector<8x128xf32> to vector<8x128xbf16>
      %c0_15 = arith.constant 0 : index
      %c0_16 = arith.constant 0 : index
      %19 = vector.load %arg6[%c0_15, %c0_16] : memref<8x128xbf16, #tpu.memory_space<vmem>>, vector<8x128xbf16>
      tpu.vector_store %arg6[%c0_15, %c0_16], %18 {strides = array<i32>} : memref<8x128xbf16, #tpu.memory_space<vmem>>, vector<8x128xbf16>,
    } else {
    }
    return
  }
  func.func @transform_0(%arg0: i32, %arg1: i32, %arg2: i32) -> (i32, i32) {
    %c0_i32 = arith.constant 0 : i32
    return %arg0, %arg2 : i32, i32
  }
  func.func @transform_1(%arg0: i32, %arg1: i32, %arg2: i32) -> (i32, i32) {
    %c0_i32 = arith.constant 0 : i32
    return %arg2, %arg1 : i32, i32
  }
  func.func @transform_2(%arg0: i32, %arg1: i32, %arg2: i32) -> (i32, i32) {
    %c0_i32 = arith.constant 0 : i32
    %c0_i32_0 = arith.constant 0 : i32
    return %c0_i32, %arg1 : i32, i32
  }
  func.func @transform_3(%arg0: i32, %arg1: i32, %arg2: i32) -> (i32, i32) {
    %c0_i32 = arith.constant 0 : i32
    return %arg0, %arg1 : i32, i32
  }
}

module attributes {stable_mosaic.version = 11 : i64} {
  func.func @_matmul_bias_kernel(%arg0: i32, %arg1: i32, %arg2: i32, %arg3: memref<8x128xbf16, #tpu.memory_space<vmem>>, %arg4: memref<128x128xbf16, #tpu.memory_space<vmem>>, %arg5: memref<1x128xf32, #tpu.memory_space<vmem>>, %arg6: memref<8x128xf32, #tpu.memory_space<vmem>>, %arg7: memref<8x128xf32, #tpu.memory_space<vmem>>) attributes {dimension_semantics = [#tpu.dimension_semantics<parallel>, #tpu.dimension_semantics<parallel>, #tpu.dimension_semantics<arbitrary>], iteration_bounds = array<i64: 1, 1, 1>, scalar_prefetch = 0 : i64, scratch_operands = 1 : i64, tpu.core_type = #tpu.core_type<tc>, window_params = [{transform_indices = @transform_0, window_bounds = array<i64: 8, 128>}, {transform_indices = @transform_1, window_bounds = array<i64: 128, 128>}, {transform_indices = @transform_2, window_bounds = array<i64: 1, 128>}, {transform_indices = @transform_3, window_bounds = array<i64: 8, 128>}]} {
    %c0_i32 = arith.constant 0 : i32
    %0 = arith.cmpi eq, %arg2, %c0_i32 : i32
    %1 = arith.extui %0 : i1 to i32
    %c0_i32_0 = arith.constant 0 : i32
    %2 = arith.cmpi ne, %1, %c0_i32_0 : i32
    scf.if %2 {
      %cst_10 = arith.constant 0.000000e+00 : f32
      %12 = vector.broadcast %cst_10 : f32 to vector<8x128xf32>
      %c0_11 = arith.constant 0 : index
      %c0_12 = arith.constant 0 : index
      %13 = vector.load %arg7[%c0_11, %c0_12] : memref<8x128xf32, #tpu.memory_space<vmem>>, vector<8x128xf32>
      tpu.vector_store %arg7[%c0_11, %c0_12], %12 {strides = array<i32>} : memref<8x128xf32, #tpu.memory_space<vmem>>, vector<8x128xf32>,
    } else {
    }
    %c0 = arith.constant 0 : index
    %c0_1 = arith.constant 0 : index
    %3 = vector.load %arg7[%c0, %c0_1] : memref<8x128xf32, #tpu.memory_space<vmem>>, vector<8x128xf32>
    %c0_2 = arith.constant 0 : index
    %c0_3 = arith.constant 0 : index
    %4 = vector.load %arg3[%c0_2, %c0_3] : memref<8x128xbf16, #tpu.memory_space<vmem>>, vector<8x128xbf16>
    %c0_4 = arith.constant 0 : index
    %c0_5 = arith.constant 0 : index
    %5 = vector.load %arg4[%c0_4, %c0_5] : memref<128x128xbf16, #tpu.memory_space<vmem>>, vector<128x128xbf16>
    %cst = arith.constant dense<0.000000e+00> : vector<8x128xf32>
    %6 = tpu.matmul %4, %5, %cst {dimension_numbers = #tpu.dot_dimension_numbers<[1], [0], [0], [1], [0, 0, 1, 1], [], []>} : vector<8x128xbf16>, vector<128x128xbf16>, vector<8x128xf32> -> vector<8x128xf32>
    %7 = arith.addf %3, %6 : vector<8x128xf32>
    %c0_6 = arith.constant 0 : index
    %c0_7 = arith.constant 0 : index
    %8 = vector.load %arg7[%c0_6, %c0_7] : memref<8x128xf32, #tpu.memory_space<vmem>>, vector<8x128xf32>
    tpu.vector_store %arg7[%c0_6, %c0_7], %7 {strides = array<i32>} : memref<8x128xf32, #tpu.memory_space<vmem>>, vector<8x128xf32>,
    %c0_i32_8 = arith.constant 0 : i32
    %9 = arith.cmpi eq, %arg2, %c0_i32_8 : i32
    %10 = arith.extui %9 : i1 to i32
    %c0_i32_9 = arith.constant 0 : i32
    %11 = arith.cmpi ne, %10, %c0_i32_9 : i32
    scf.if %11 {
      %c0_10 = arith.constant 0 : index
      %c0_11 = arith.constant 0 : index
      %12 = vector.load %arg7[%c0_10, %c0_11] : memref<8x128xf32, #tpu.memory_space<vmem>>, vector<8x128xf32>
      %c0_12 = arith.constant 0 : index
      %c0_13 = arith.constant 0 : index
      %13 = vector.load %arg5[%c0_12, %c0_13] : memref<1x128xf32, #tpu.memory_space<vmem>>, vector<1x128xf32>
      %14 = vector.broadcast %13 : vector<1x128xf32> to vector<8x128xf32>
      %15 = arith.addf %12, %14 : vector<8x128xf32>
      %c0_14 = arith.constant 0 : index
      %c0_15 = arith.constant 0 : index
      %16 = vector.load %arg6[%c0_14, %c0_15] : memref<8x128xf32, #tpu.memory_space<vmem>>, vector<8x128xf32>
      tpu.vector_store %arg6[%c0_14, %c0_15], %15 {strides = array<i32>} : memref<8x128xf32, #tpu.memory_space<vmem>>, vector<8x128xf32>,
    } else {
    }
    return
  }
  func.func @transform_0(%arg0: i32, %arg1: i32, %arg2: i32) -> (i32, i32) {
    %c0_i32 = arith.constant 0 : i32
    return %arg0, %arg2 : i32, i32
  }
  func.func @transform_1(%arg0: i32, %arg1: i32, %arg2: i32) -> (i32, i32) {
    %c0_i32 = arith.constant 0 : i32
    return %arg2, %arg1 : i32, i32
  }
  func.func @transform_2(%arg0: i32, %arg1: i32, %arg2: i32) -> (i32, i32) {
    %c0_i32 = arith.constant 0 : i32
    %c0_i32_0 = arith.constant 0 : i32
    return %c0_i32, %arg1 : i32, i32
  }
  func.func @transform_3(%arg0: i32, %arg1: i32, %arg2: i32) -> (i32, i32) {
    %c0_i32 = arith.constant 0 : i32
    return %arg0, %arg1 : i32, i32
  }
}

</mosaic_0001>

<llo_original>
// kernel: alexnet_forward.11
$region0: #{alexnet_forward.11}
  #allocation0 [shape = 'u32[]', space=smem, size = 0x4, offset = 0x4, fixed_abs, tag = 'smem constant byte address 0x4 - core index']
  #allocation1 [shape = 'u32[72,128]{1,0:T(1,128)}', space=vmem, size = 0x9000, scoped, tag = 'internal scratch']
  #allocation2 [shape = 'f32[256,128]{1,0:T(8,128)}', space=vmem, size = 0x20000, scoped, tag = 'scratch operand']
  %s0 = inlined_call_operand.vmem [shape: bf16[512,384], index: 0, kind: input, shape index: {}]
  %s1 = inlined_call_operand.vmem [shape: bf16[384,128], index: 1, kind: input, shape index: {}]
  %s2 = inlined_call_operand.vmem [shape: f32[1,128], index: 2, kind: input, shape index: {}]
  %s3 = inlined_call_operand.vmem [shape: bf16[512,128], index: 3, kind: output, shape index: {}]
  %s4 = sld [smem:[#allocation0]]
  $region53: #{alexnet_forward.11} parent=0
    _
  %s6 = ssub.s32 1, %s4
  %s7 = scalar_select 0, %s6, %s4
  loop: start=0, step=1, limit=4
  $region2: #{alexnet_forward.11} parent=0 // loop_pre_header
    _
  $region3: #{alexnet_forward.11} parent=0 // loop_header
    %s9 = sphi 0, %s13
    %p10 = scmp.ge.s32.totalorder %s9, 4
    %s16 = sphi 0, %s35
    %s17 = sphi 0, %s31
    %s18 = sphi 0, %s27
    %s19 = sphi 0, %s16
    %s20 = sphi 0, %s17
    %s21 = sphi 0, %s18
    %s22 = sphi 0, %s19
    %s23 = sphi 0, %s20
    %s24 = sphi 0, %s21
    %s40 = sphi 0, %s42
    %s43 = sphi 0, %s40
    %s44 = sphi 0, %s43
    %s60 = sphi 0, %s44
    %s68 = sphi 0, %s70
    %s71 = sphi 0, %s68
    %s72 = sphi 0, %s71
    %s88 = sphi 0, %s72
    %s94 = sphi 0, %s96
    %s97 = sphi 0, %s94
    %s98 = sphi 0, %s97
    %s114 = sphi 0, %s98
    %s122 = sphi 0, %s124
    %s125 = sphi 0, %s122
    %s126 = sphi 0, %s125
    %s142 = sphi 0, %s126
  $region4: #{alexnet_forward.11} parent=0 // loop_header_branch
    %12 = sbr.rel (%p10) target = $region8
  $region5: #{alexnet_forward.11} parent=0 // loop_body
    %s14 = ssub.s32 %s9, 1
    %s15 = ssub.s32 %s9, 2
    %s25 = sadd.s32 1, %s18
    %p26 = scmp.ge.s32.totalorder %s25, 1
    %s27 = scalar_select %p26, 0, %s25
    %s28 = sadd.s32 1, %s17
    %s29 = scalar_select %p26, %s28, %s17
    %p30 = scmp.ge.s32.totalorder %s29, 1
    %s31 = scalar_select %p30, 0, %s29
    %s32 = sadd.s32 1, %s16
    %s33 = scalar_select %p30, %s32, %s16
    %p34 = scmp.ge.s32.totalorder %s33, 2
    %s35 = scalar_select %p34, 0, %s33
    %s36 = ssub.s32 %s16, %s35
    %s37 = ssub.s32 %s18, %s27
    %s38 = sor.u32 %s36, %s37
    %p39 = scmp.eq.s32.totalorder %s38, 0
    %s41 = sadd.s32 %s40, 1
    %s42 = scalar_select %p39, %s40, %s41
    %p45 = pneg %p39
    %p46 = scmp.eq.s32.totalorder %s9, 1
    %p47 = por %p45, %p46
    %p48 = scmp.ne.s32.totalorder %s40, %s43
    %p49 = scmp.eq.s32.totalorder %s9, 0
    %p50 = por %p48, %p49
    %p51 = scmp.ne.s32.totalorder %s40, %s43
    %p52 = scmp.eq.s32.totalorder %s14, 1
    %p53 = por %p51, %p52
    %p54 = scmp.ne.s32.totalorder %s43, %s44
    %p55 = scmp.eq.s32.totalorder %s14, 0
    %p56 = por %p54, %p55
    %p57 = scmp.ne.s32.totalorder %s43, %s44
    %p58 = scmp.eq.s32.totalorder %s15, 1
    %p59 = por %p57, %p58
    %p61 = scmp.ne.s32.totalorder %s44, %s60
    %p62 = scmp.eq.s32.totalorder %s15, 0
    %p63 = por %p61, %p62
    %s64 = ssub.s32 %s18, %s27
    %s65 = ssub.s32 %s17, %s31
    %s66 = sor.u32 %s64, %s65
    %p67 = scmp.eq.s32.totalorder %s66, 0
    %s69 = sadd.s32 %s68, 1
    %s70 = scalar_select %p67, %s68, %s69
    %p73 = pneg %p67
    %p74 = scmp.eq.s32.totalorder %s9, 1
    %p75 = por %p73, %p74
    %p76 = scmp.ne.s32.totalorder %s68, %s71
    %p77 = scmp.eq.s32.totalorder %s9, 0
    %p78 = por %p76, %p77
    %p79 = scmp.ne.s32.totalorder %s68, %s71
    %p80 = scmp.eq.s32.totalorder %s14, 1
    %p81 = por %p79, %p80
    %p82 = scmp.ne.s32.totalorder %s71, %s72
    %p83 = scmp.eq.s32.totalorder %s14, 0
    %p84 = por %p82, %p83
    %p85 = scmp.ne.s32.totalorder %s71, %s72
    %p86 = scmp.eq.s32.totalorder %s15, 1
    %p87 = por %p85, %p86
    %p89 = scmp.ne.s32.totalorder %s72, %s88
    %p90 = scmp.eq.s32.totalorder %s15, 0
    %p91 = por %p89, %p90
    %s92 = ssub.s32 %s17, %s31
    %p93 = scmp.eq.s32.totalorder %s92, 0
    %s95 = sadd.s32 %s94, 1
    %s96 = scalar_select %p93, %s94, %s95
    %p99 = pneg %p93
    %p100 = scmp.eq.s32.totalorder %s9, 1
    %p101 = por %p99, %p100
    %p102 = scmp.ne.s32.totalorder %s94, %s97
    %p103 = scmp.eq.s32.totalorder %s9, 0
    %p104 = por %p102, %p103
    %p105 = scmp.ne.s32.totalorder %s94, %s97
    %p106 = scmp.eq.s32.totalorder %s14, 1
    %p107 = por %p105, %p106
    %p108 = scmp.ne.s32.totalorder %s97, %s98
    %p109 = scmp.eq.s32.totalorder %s14, 0
    %p110 = por %p108, %p109
    %p111 = scmp.ne.s32.totalorder %s97, %s98
    %p112 = scmp.eq.s32.totalorder %s15, 1
    %p113 = por %p111, %p112
    %p115 = scmp.ne.s32.totalorder %s98, %s114
    %p116 = scmp.eq.s32.totalorder %s15, 0
    %p117 = por %p115, %p116
    %s118 = ssub.s32 %s16, %s35
    %s119 = ssub.s32 %s17, %s31
    %s120 = sor.u32 %s118, %s119
    %p121 = scmp.eq.s32.totalorder %s120, 0
    %s123 = sadd.s32 %s122, 1
    %s124 = scalar_select %p121, %s122, %s123
    %p127 = pneg %p121
    %p128 = scmp.eq.s32.totalorder %s9, 1
    %p129 = por %p127, %p128
    %p130 = scmp.ne.s32.totalorder %s122, %s125
    %p131 = scmp.eq.s32.totalorder %s9, 0
    %p132 = por %p130, %p131
    %p133 = scmp.ne.s32.totalorder %s122, %s125
    %p134 = scmp.eq.s32.totalorder %s14, 1
    %p135 = por %p133, %p134
    %p136 = scmp.ne.s32.totalorder %s125, %s126
    %p137 = scmp.eq.s32.totalorder %s14, 0
    %p138 = por %p136, %p137
    %p139 = scmp.ne.s32.totalorder %s125, %s126
    %p140 = scmp.eq.s32.totalorder %s15, 1
    %p141 = por %p139, %p140
    %p143 = scmp.ne.s32.totalorder %s126, %s142
    %p144 = scmp.eq.s32.totalorder %s15, 0
    %p145 = por %p143, %p144
    %p146 = scmp.le.s32.totalorder 1, %s9
    %p147 = scmp.lt.s32.totalorder %s9, 3
    %p148 = pnand %p146, %p147
    %p149 = pneg %p148
    // Predicated region
    $region9: #{alexnet_forward.11} parent=5 // pred_check
      _
    $region10: #{alexnet_forward.11} parent=5 // pred_check_branch
      %151 = sbr.rel (%p148) target = $region12
    $region11: #{alexnet_forward.11} parent=5 // pred_region
      %s152 = ssub.s32 %s9, 1
      // Predicated region
      $region13: #{alexnet_forward.11} parent=11 // pred_check
        %p153 = pneg %p84
      $region14: #{alexnet_forward.11} parent=11 // pred_check_branch
        %155 = sbr.rel (%p153) target = $region16
      $region15: #{alexnet_forward.11} parent=11 // pred_region
        %s156 = smul.u32 48, %s21
        %p157 = scmp.lt.s32.totalorder %s156, 47
        %s158 = scalar_select %p157, %s156, 47
        %p159 = scmp.lt.s32.totalorder %s20, 0
        %s160 = scalar_select %p159, %s20, 0
        %s161 = sadd.s32 %s160, %s158
        %s162 = smul.addr %s161, 4
        %s163 = scalar_lea.vmem %s1, %s162
        %s164 = smul.u32 48, %s21
      $region16: #{alexnet_forward.11} parent=11 // pred_fallthru
        _
      // Predicated region
      $region17: #{alexnet_forward.11} parent=11 // pred_check
        %p165 = pneg %p110
      $region18: #{alexnet_forward.11} parent=11 // pred_check_branch
        %167 = sbr.rel (%p165) target = $region20
      $region19: #{alexnet_forward.11} parent=11 // pred_region
        %p168 = scmp.lt.s32.totalorder %s20, 0
        %s169 = scalar_select %p168, %s20, 0
        %s170 = scalar_lea.vmem %s2, %s169
      $region20: #{alexnet_forward.11} parent=11 // pred_fallthru
        _
    $region12: #{alexnet_forward.11} parent=5 // pred_fallthru
      _
    %p171 = scmp.lt.s32.totalorder %s9, 2
    // Predicated region
    $region21: #{alexnet_forward.11} parent=5 // pred_check
      %p172 = pneg %p171
    $region22: #{alexnet_forward.11} parent=5 // pred_check_branch
      %174 = sbr.rel (%p172) target = $region24
    $region23: #{alexnet_forward.11} parent=5 // pred_region
      // Predicated region
      $region25: #{alexnet_forward.11} parent=23 // pred_check
        %p175 = pneg %p50
      $region26: #{alexnet_forward.11} parent=23 // pred_check_branch
        %177 = sbr.rel (%p175) target = $region28
      $region27: #{alexnet_forward.11} parent=23 // pred_region
        %s178 = smul.u32 32, %s16
        %s179 = smul.u32 3, %s18
        %p180 = scmp.lt.s32.totalorder %s178, 63
        %s181 = scalar_select %p180, %s178, 63
        %p182 = scmp.lt.s32.totalorder %s179, 2
        %s183 = scalar_select %p182, %s179, 2
        %s184 = smul.addr %s181, 3
        %s185 = sadd.s32 %s183, %s184
        %s186 = smul.addr %s185, 4
        %s187 = scalar_lea.vmem %s0, %s186
        %s188 = smul.u32 32, %s16
        %s189 = smul.u32 3, %s18
      $region28: #{alexnet_forward.11} parent=23 // pred_fallthru
        _
    $region24: #{alexnet_forward.11} parent=5 // pred_fallthru
      _
    %p190 = scmp.le.s32.totalorder 1, %s9
    %p191 = scmp.lt.s32.totalorder %s9, 3
    %p192 = pnand %p190, %p191
    %p193 = pneg %p192
    // Predicated region
    $region29: #{alexnet_forward.11} parent=5 // pred_check
      _
    $region30: #{alexnet_forward.11} parent=5 // pred_check_branch
      %195 = sbr.rel (%p192) target = $region32
    $region31: #{alexnet_forward.11} parent=5 // pred_region
      %s196 = ssub.s32 %s9, 1
      %s197 = smul.u32 32, %s19
      %s198 = smul.u32 3, %s21
      %p199 = scmp.lt.s32.totalorder %s197, 63
      %s200 = scalar_select %p199, %s197, 63
      %p201 = scmp.lt.s32.totalorder %s198, 2
      %s202 = scalar_select %p201, %s198, 2
      %s203 = smul.addr %s200, 3
      %s204 = sadd.s32 %s202, %s203
      %s205 = smul.addr %s204, 4
      %s206 = scalar_lea.vmem %s0, %s205
      %p207 = pneg %p56
      %p208 = pneg %p53
      %s209 = smul.u32 48, %s21
      %p210 = scmp.lt.s32.totalorder %s209, 47
      %s211 = scalar_select %p210, %s209, 47
      %p212 = scmp.lt.s32.totalorder %s20, 0
      %s213 = scalar_select %p212, %s20, 0
      %s214 = sadd.s32 %s213, %s211
      %s215 = smul.addr %s214, 4
      %s216 = scalar_lea.vmem %s1, %s215
      %p217 = pneg %p84
      %p218 = pneg %p81
      %p219 = scmp.lt.s32.totalorder %s20, 0
      %s220 = scalar_select %p219, %s20, 0
      %s221 = scalar_lea.vmem %s2, %s220
      %p222 = pneg %p110
      %p223 = pneg %p107
      %p224 = pneg %p138
      %p225 = pneg %p135
      %s226 = smul.u32 32, %s19
      %p227 = scmp.lt.s32.totalorder %s226, 63
      %s228 = scalar_select %p227, %s226, 63
      %p229 = scmp.lt.s32.totalorder %s20, 0
      %s230 = scalar_select %p229, %s20, 0
      %s231 = sadd.s32 %s230, %s228
      %s232 = smul.addr %s231, 4
      %s233 = scalar_lea.vmem %s3, %s232
      %s234 = smul.u32 32, %s19
      %s235 = smul.u32 3, %s21
      %p236 = scmp.lt.s32.totalorder %s234, 63
      %s237 = scalar_select %p236, %s234, 63
      %p238 = scmp.lt.s32.totalorder %s235, 2
      %s239 = scalar_select %p238, %s235, 2
      %s240 = smul.addr %s237, 3
      %s241 = sadd.s32 %s239, %s240
      %s242 = smul.addr %s241, 4
      %s243 = scalar_lea.vmem %s0, %s242
      %s244 = smul.u32 32, %s19
      %s245 = smul.u32 3, %s21
      %s246 = smul.u32 48, %s21
      %p247 = scmp.lt.s32.totalorder %s246, 47
      %s248 = scalar_select %p247, %s246, 47
      %p249 = scmp.lt.s32.totalorder %s20, 0
      %s250 = scalar_select %p249, %s20, 0
      %s251 = sadd.s32 %s250, %s248
      %s252 = smul.addr %s251, 4
      %s253 = scalar_lea.vmem %s1, %s252
      %s254 = smul.u32 48, %s21
      %p255 = scmp.lt.s32.totalorder %s20, 0
      %s256 = scalar_select %p255, %s20, 0
      %s257 = scalar_lea.vmem %s2, %s256
      %s258 = smul.u32 32, %s19
      %p259 = scmp.lt.s32.totalorder %s258, 63
      %s260 = scalar_select %p259, %s258, 63
      %p261 = scmp.lt.s32.totalorder %s20, 0
      %s262 = scalar_select %p261, %s20, 0
      %s263 = sadd.s32 %s262, %s260
      %s264 = smul.addr %s263, 4
      %s265 = scalar_lea.vmem %s3, %s264
      %s266 = smul.u32 32, %s19
      %p267 = scmp.eq.s32.totalorder %s21, 0
      // Predicated region
      $region33: #{alexnet_forward.11} parent=31 // pred_check
        %p268 = pneg %p267
      $region34: #{alexnet_forward.11} parent=31 // pred_check_branch
        %270 = sbr.rel (%p268) target = $region36
      $region35: #{alexnet_forward.11} parent=31 // pred_region
        %271 = vst [vmem:[#allocation2] sm:$0xff] 0.0
        %272 = vst [vmem:[#allocation2 + $0x8] sm:$0xff] 0.0
        %273 = vst [vmem:[#allocation2 + $0x10] sm:$0xff] 0.0
        %274 = vst [vmem:[#allocation2 + $0x18] sm:$0xff] 0.0
        %275 = vst [vmem:[#allocation2 + $0x20] sm:$0xff] 0.0
        %276 = vst [vmem:[#allocation2 + $0x28] sm:$0xff] 0.0
        %277 = vst [vmem:[#allocation2 + $0x30] sm:$0xff] 0.0
        %278 = vst [vmem:[#allocation2 + $0x38] sm:$0xff] 0.0
        %279 = vst [vmem:[#allocation2 + $0x40] sm:$0xff] 0.0
        %280 = vst [vmem:[#allocation2 + $0x48] sm:$0xff] 0.0
        %281 = vst [vmem:[#allocation2 + $0x50] sm:$0xff] 0.0
        %282 = vst [vmem:[#allocation2 + $0x58] sm:$0xff] 0.0
        %283 = vst [vmem:[#allocation2 + $0x60] sm:$0xff] 0.0
        %284 = vst [vmem:[#allocation2 + $0x68] sm:$0xff] 0.0
        %285 = vst [vmem:[#allocation2 + $0x70] sm:$0xff] 0.0
        %286 = vst [vmem:[#allocation2 + $0x78] sm:$0xff] 0.0
        %287 = vst [vmem:[#allocation2 + $0x80] sm:$0xff] 0.0
        %288 = vst [vmem:[#allocation2 + $0x88] sm:$0xff] 0.0
        %289 = vst [vmem:[#allocation2 + $0x90] sm:$0xff] 0.0
        %290 = vst [vmem:[#allocation2 + $0x98] sm:$0xff] 0.0
        %291 = vst [vmem:[#allocation2 + $0xa0] sm:$0xff] 0.0
        %292 = vst [vmem:[#allocation2 + $0xa8] sm:$0xff] 0.0
        %293 = vst [vmem:[#allocation2 + $0xb0] sm:$0xff] 0.0
        %294 = vst [vmem:[#allocation2 + $0xb8] sm:$0xff] 0.0
        %295 = vst [vmem:[#allocation2 + $0xc0] sm:$0xff] 0.0
        %296 = vst [vmem:[#allocation2 + $0xc8] sm:$0xff] 0.0
        %297 = vst [vmem:[#allocation2 + $0xd0] sm:$0xff] 0.0
        %298 = vst [vmem:[#allocation2 + $0xd8] sm:$0xff] 0.0
        %299 = vst [vmem:[#allocation2 + $0xe0] sm:$0xff] 0.0
        %300 = vst [vmem:[#allocation2 + $0xe8] sm:$0xff] 0.0
        %301 = vst [vmem:[#allocation2 + $0xf0] sm:$0xff] 0.0
        %302 = vst [vmem:[#allocation2 + $0xf8] sm:$0xff] 0.0
      $region36: #{alexnet_forward.11} parent=31 // pred_fallthru
        _
      %v303 = vld [vmem:[#allocation2] sm:$0xff]
      %v304 = vld [vmem:[#allocation2 + $0x8] sm:$0xff]
      %v305 = vld [vmem:[#allocation2 + $0x10] sm:$0xff]
      %v306 = vld [vmem:[#allocation2 + $0x18] sm:$0xff]
      %v307 = vld [vmem:[#allocation2 + $0x20] sm:$0xff]
      %v308 = vld [vmem:[#allocation2 + $0x28] sm:$0xff]
      %v309 = vld [vmem:[#allocation2 + $0x30] sm:$0xff]
      %v310 = vld [vmem:[#allocation2 + $0x38] sm:$0xff]
      %v311 = vld [vmem:[#allocation2 + $0x40] sm:$0xff]
      %v312 = vld [vmem:[#allocation2 + $0x48] sm:$0xff]
      %v313 = vld [vmem:[#allocation2 + $0x50] sm:$0xff]
      %v314 = vld [vmem:[#allocation2 + $0x58] sm:$0xff]
      %v315 = vld [vmem:[#allocation2 + $0x60] sm:$0xff]
      %v316 = vld [vmem:[#allocation2 + $0x68] sm:$0xff]
      %v317 = vld [vmem:[#allocation2 + $0x70] sm:$0xff]
      %v318 = vld [vmem:[#allocation2 + $0x78] sm:$0xff]
      %v319 = vld [vmem:[#allocation2 + $0x80] sm:$0xff]
      %v320 = vld [vmem:[#allocation2 + $0x88] sm:$0xff]
      %v321 = vld [vmem:[#allocation2 + $0x90] sm:$0xff]
      %v322 = vld [vmem:[#allocation2 + $0x98] sm:$0xff]
      %v323 = vld [vmem:[#allocation2 + $0xa0] sm:$0xff]
      %v324 = vld [vmem:[#allocation2 + $0xa8] sm:$0xff]
      %v325 = vld [vmem:[#allocation2 + $0xb0] sm:$0xff]
      %v326 = vld [vmem:[#allocation2 + $0xb8] sm:$0xff]
      %v327 = vld [vmem:[#allocation2 + $0xc0] sm:$0xff]
      %v328 = vld [vmem:[#allocation2 + $0xc8] sm:$0xff]
      %v329 = vld [vmem:[#allocation2 + $0xd0] sm:$0xff]
      %v330 = vld [vmem:[#allocation2 + $0xd8] sm:$0xff]
      %v331 = vld [vmem:[#allocation2 + $0xe0] sm:$0xff]
      %v332 = vld [vmem:[#allocation2 + $0xe8] sm:$0xff]
      %v333 = vld [vmem:[#allocation2 + $0xf0] sm:$0xff]
      %v334 = vld [vmem:[#allocation2 + $0xf8] sm:$0xff]
      %v335 = vld [vmem:[%s243] sm:$0xff]
      %v336 = vld [vmem:[%s243 + $0x8] sm:$0xf]
      %v337 = vld [vmem:[%s243 + $0xc] sm:$0xff]
      %v338 = vld [vmem:[%s243 + $0x14] sm:$0xf]
      %v339 = vld [vmem:[%s243 + $0x18] sm:$0xff]
      %v340 = vld [vmem:[%s243 + $0x20] sm:$0xf]
      %v341 = vld [vmem:[%s243 + $0x24] sm:$0xff]
      %v342 = vld [vmem:[%s243 + $0x2c] sm:$0xf]
      %v343 = vld [vmem:[%s243 + $0x30] sm:$0xff]
      %v344 = vld [vmem:[%s243 + $0x38] sm:$0xf]
      %v345 = vld [vmem:[%s243 + $0x3c] sm:$0xff]
      %v346 = vld [vmem:[%s243 + $0x44] sm:$0xf]
      %v347 = vld [vmem:[%s243 + $0x48] sm:$0xff]
      %v348 = vld [vmem:[%s243 + $0x50] sm:$0xf]
      %v349 = vld [vmem:[%s243 + $0x54] sm:$0xff]
      %v350 = vld [vmem:[%s243 + $0x5c] sm:$0xf]
      %v351 = vld [vmem:[%s243 + $0x60] sm:$0xff]
      %v352 = vld [vmem:[%s243 + $0x68] sm:$0xf]
      %v353 = vld [vmem:[%s243 + $0x6c] sm:$0xff]
      %v354 = vld [vmem:[%s243 + $0x74] sm:$0xf]
      %v355 = vld [vmem:[%s243 + $0x78] sm:$0xff]
      %v356 = vld [vmem:[%s243 + $0x80] sm:$0xf]
      %v357 = vld [vmem:[%s243 + $0x84] sm:$0xff]
      %v358 = vld [vmem:[%s243 + $0x8c] sm:$0xf]
      %v359 = vld [vmem:[%s243 + $0x90] sm:$0xff]
      %v360 = vld [vmem:[%s243 + $0x98] sm:$0xf]
      %v361 = vld [vmem:[%s243 + $0x9c] sm:$0xff]
      %v362 = vld [vmem:[%s243 + $0xa4] sm:$0xf]
      %v363 = vld [vmem:[%s243 + $0xa8] sm:$0xff]
      %v364 = vld [vmem:[%s243 + $0xb0] sm:$0xf]
      %v365 = vld [vmem:[%s243 + $0xb4] sm:$0xff]
      %v366 = vld [vmem:[%s243 + $0xbc] sm:$0xf]
      %v367 = vld [vmem:[%s243 + $0xc0] sm:$0xff]
      %v368 = vld [vmem:[%s243 + $0xc8] sm:$0xf]
      %v369 = vld [vmem:[%s243 + $0xcc] sm:$0xff]
      %v370 = vld [vmem:[%s243 + $0xd4] sm:$0xf]
      %v371 = vld [vmem:[%s243 + $0xd8] sm:$0xff]
      %v372 = vld [vmem:[%s243 + $0xe0] sm:$0xf]
      %v373 = vld [vmem:[%s243 + $0xe4] sm:$0xff]
      %v374 = vld [vmem:[%s243 + $0xec] sm:$0xf]
      %v375 = vld [vmem:[%s243 + $0xf0] sm:$0xff]
      %v376 = vld [vmem:[%s243 + $0xf8] sm:$0xf]
      %v377 = vld [vmem:[%s243 + $0xfc] sm:$0xff]
      %v378 = vld [vmem:[%s243 + $0x104] sm:$0xf]
      %v379 = vld [vmem:[%s243 + $0x108] sm:$0xff]
      %v380 = vld [vmem:[%s243 + $0x110] sm:$0xf]
      %v381 = vld [vmem:[%s243 + $0x114] sm:$0xff]
      %v382 = vld [vmem:[%s243 + $0x11c] sm:$0xf]
      %v383 = vld [vmem:[%s243 + $0x120] sm:$0xff]
      %v384 = vld [vmem:[%s243 + $0x128] sm:$0xf]
      %v385 = vld [vmem:[%s243 + $0x12c] sm:$0xff]
      %v386 = vld [vmem:[%s243 + $0x134] sm:$0xf]
      %v387 = vld [vmem:[%s243 + $0x138] sm:$0xff]
      %v388 = vld [vmem:[%s243 + $0x140] sm:$0xf]
      %v389 = vld [vmem:[%s243 + $0x144] sm:$0xff]
      %v390 = vld [vmem:[%s243 + $0x14c] sm:$0xf]
      %v391 = vld [vmem:[%s243 + $0x150] sm:$0xff]
      %v392 = vld [vmem:[%s243 + $0x158] sm:$0xf]
      %v393 = vld [vmem:[%s243 + $0x15c] sm:$0xff]
      %v394 = vld [vmem:[%s243 + $0x164] sm:$0xf]
      %v395 = vld [vmem:[%s243 + $0x168] sm:$0xff]
      %v396 = vld [vmem:[%s243 + $0x170] sm:$0xf]
      %v397 = vld [vmem:[%s243 + $0x174] sm:$0xff]
      %v398 = vld [vmem:[%s243 + $0x17c] sm:$0xf]
      %v399 = vld [vmem:[%s253] sm:$0xf]
      %v400 = vld [vmem:[%s253 + $0x4] sm:$0xf]
      %v401 = vld [vmem:[%s253 + $0x8] sm:$0xf]
      %v402 = vld [vmem:[%s253 + $0xc] sm:$0xf]
      %v403 = vld [vmem:[%s253 + $0x10] sm:$0xf]
      %v404 = vld [vmem:[%s253 + $0x14] sm:$0xf]
      %v405 = vld [vmem:[%s253 + $0x18] sm:$0xf]
      %v406 = vld [vmem:[%s253 + $0x1c] sm:$0xf]
      %v407 = vld [vmem:[%s253 + $0x20] sm:$0xf]
      %v408 = vld [vmem:[%s253 + $0x24] sm:$0xf]
      %v409 = vld [vmem:[%s253 + $0x28] sm:$0xf]
      %v410 = vld [vmem:[%s253 + $0x2c] sm:$0xf]
      %v411 = vld [vmem:[%s253 + $0x30] sm:$0xf]
      %v412 = vld [vmem:[%s253 + $0x34] sm:$0xf]
      %v413 = vld [vmem:[%s253 + $0x38] sm:$0xf]
      %v414 = vld [vmem:[%s253 + $0x3c] sm:$0xf]
      %v415 = vld [vmem:[%s253 + $0x40] sm:$0xf]
      %v416 = vld [vmem:[%s253 + $0x44] sm:$0xf]
      %v417 = vld [vmem:[%s253 + $0x48] sm:$0xf]
      %v418 = vld [vmem:[%s253 + $0x4c] sm:$0xf]
      %v419 = vld [vmem:[%s253 + $0x50] sm:$0xf]
      %v420 = vld [vmem:[%s253 + $0x54] sm:$0xf]
      %v421 = vld [vmem:[%s253 + $0x58] sm:$0xf]
      %v422 = vld [vmem:[%s253 + $0x5c] sm:$0xf]
      %v423 = vld [vmem:[%s253 + $0x60] sm:$0xf]
      %v424 = vld [vmem:[%s253 + $0x64] sm:$0xf]
      %v425 = vld [vmem:[%s253 + $0x68] sm:$0xf]
      %v426 = vld [vmem:[%s253 + $0x6c] sm:$0xf]
      %v427 = vld [vmem:[%s253 + $0x70] sm:$0xf]
      %v428 = vld [vmem:[%s253 + $0x74] sm:$0xf]
      %v429 = vld [vmem:[%s253 + $0x78] sm:$0xf]
      %v430 = vld [vmem:[%s253 + $0x7c] sm:$0xf]
      %v431 = vld [vmem:[%s253 + $0x80] sm:$0xf]
      %v432 = vld [vmem:[%s253 + $0x84] sm:$0xf]
      %v433 = vld [vmem:[%s253 + $0x88] sm:$0xf]
      %v434 = vld [vmem:[%s253 + $0x8c] sm:$0xf]
      %v435 = vld [vmem:[%s253 + $0x90] sm:$0xf]
      %v436 = vld [vmem:[%s253 + $0x94] sm:$0xf]
      %v437 = vld [vmem:[%s253 + $0x98] sm:$0xf]
      %v438 = vld [vmem:[%s253 + $0x9c] sm:$0xf]
      %v439 = vld [vmem:[%s253 + $0xa0] sm:$0xf]
      %v440 = vld [vmem:[%s253 + $0xa4] sm:$0xf]
      %v441 = vld [vmem:[%s253 + $0xa8] sm:$0xf]
      %v442 = vld [vmem:[%s253 + $0xac] sm:$0xf]
      %v443 = vld [vmem:[%s253 + $0xb0] sm:$0xf]
      %v444 = vld [vmem:[%s253 + $0xb4] sm:$0xf]
      %v445 = vld [vmem:[%s253 + $0xb8] sm:$0xf]
      %v446 = vld [vmem:[%s253 + $0xbc] sm:$0xf]
      %v511 = vunpack.c.l.b16 %v335
      %v512 = vunpack.c.h.b16 %v335
      %v513 = vunpack.c.l.b16 %v336
      %v514 = vunpack.c.l.b16 %v337
      %v515 = vunpack.c.h.b16 %v337
      %v516 = vunpack.c.l.b16 %v338
      %v517 = vunpack.c.l.b16 %v339
      %v518 = vunpack.c.h.b16 %v339
      %v519 = vunpack.c.l.b16 %v340
      %v520 = vunpack.c.l.b16 %v341
      %v521 = vunpack.c.h.b16 %v341
      %v522 = vunpack.c.l.b16 %v342
      %v523 = vunpack.c.l.b16 %v343
      %v524 = vunpack.c.h.b16 %v343
      %v525 = vunpack.c.l.b16 %v344
      %v526 = vunpack.c.l.b16 %v345
      %v527 = vunpack.c.h.b16 %v345
      %v528 = vunpack.c.l.b16 %v346
      %v529 = vunpack.c.l.b16 %v347
      %v530 = vunpack.c.h.b16 %v347
      %v531 = vunpack.c.l.b16 %v348
      %v532 = vunpack.c.l.b16 %v349
      %v533 = vunpack.c.h.b16 %v349
      %v534 = vunpack.c.l.b16 %v350
      %v535 = vunpack.c.l.b16 %v351
      %v536 = vunpack.c.h.b16 %v351
      %v537 = vunpack.c.l.b16 %v352
      %v538 = vunpack.c.l.b16 %v353
      %v539 = vunpack.c.h.b16 %v353
      %v540 = vunpack.c.l.b16 %v354
      %v541 = vunpack.c.l.b16 %v355
      %v542 = vunpack.c.h.b16 %v355
      %v543 = vunpack.c.l.b16 %v356
      %v544 = vunpack.c.l.b16 %v357
      %v545 = vunpack.c.h.b16 %v357
      %v546 = vunpack.c.l.b16 %v358
      %v547 = vunpack.c.l.b16 %v359
      %v548 = vunpack.c.h.b16 %v359
      %v549 = vunpack.c.l.b16 %v360
      %v550 = vunpack.c.l.b16 %v361
      %v551 = vunpack.c.h.b16 %v361
      %v552 = vunpack.c.l.b16 %v362
      %v553 = vunpack.c.l.b16 %v363
      %v554 = vunpack.c.h.b16 %v363
      %v555 = vunpack.c.l.b16 %v364
      %v556 = vunpack.c.l.b16 %v365
      %v557 = vunpack.c.h.b16 %v365
      %v558 = vunpack.c.l.b16 %v366
      %v559 = vunpack.c.l.b16 %v367
      %v560 = vunpack.c.h.b16 %v367
      %v561 = vunpack.c.l.b16 %v368
      %v562 = vunpack.c.l.b16 %v369
      %v563 = vunpack.c.h.b16 %v369
      %v564 = vunpack.c.l.b16 %v370
      %v565 = vunpack.c.l.b16 %v371
      %v566 = vunpack.c.h.b16 %v371
      %v567 = vunpack.c.l.b16 %v372
      %v568 = vunpack.c.l.b16 %v373
      %v569 = vunpack.c.h.b16 %v373
      %v570 = vunpack.c.l.b16 %v374
      %v571 = vunpack.c.l.b16 %v375
      %v572 = vunpack.c.h.b16 %v375
      %v573 = vunpack.c.l.b16 %v376
      %v574 = vunpack.c.l.b16 %v377
      %v575 = vunpack.c.h.b16 %v377
      %v576 = vunpack.c.l.b16 %v378
      %v577 = vunpack.c.l.b16 %v379
      %v578 = vunpack.c.h.b16 %v379
      %v579 = vunpack.c.l.b16 %v380
      %v580 = vunpack.c.l.b16 %v381
      %v581 = vunpack.c.h.b16 %v381
      %v582 = vunpack.c.l.b16 %v382
      %v583 = vunpack.c.l.b16 %v383
      %v584 = vunpack.c.h.b16 %v383
      %v585 = vunpack.c.l.b16 %v384
      %v586 = vunpack.c.l.b16 %v385
      %v587 = vunpack.c.h.b16 %v385
      %v588 = vunpack.c.l.b16 %v386
      %v589 = vunpack.c.l.b16 %v387
      %v590 = vunpack.c.h.b16 %v387
      %v591 = vunpack.c.l.b16 %v388
      %v592 = vunpack.c.l.b16 %v389
      %v593 = vunpack.c.h.b16 %v389
      %v594 = vunpack.c.l.b16 %v390
      %v595 = vunpack.c.l.b16 %v391
      %v596 = vunpack.c.h.b16 %v391
      %v597 = vunpack.c.l.b16 %v392
      %v598 = vunpack.c.l.b16 %v393
      %v599 = vunpack.c.h.b16 %v393
      %v600 = vunpack.c.l.b16 %v394
      %v601 = vunpack.c.l.b16 %v395
      %v602 = vunpack.c.h.b16 %v395
      %v603 = vunpack.c.l.b16 %v396
      %v604 = vunpack.c.l.b16 %v397
      %v605 = vunpack.c.h.b16 %v397
      %v606 = vunpack.c.l.b16 %v398
      %v607 = vpack.c.b16 %v514, %v511
      %v608 = vpack.c.b16 %v515, %v512
      %v609 = vpack.c.b16 %v516, %v513
      %v610 = vpack.c.b16 %v520, %v517
      %v611 = vpack.c.b16 %v521, %v518
      %v612 = vpack.c.b16 %v522, %v519
      %v613 = vpack.c.b16 %v526, %v523
      %v614 = vpack.c.b16 %v527, %v524
      %v615 = vpack.c.b16 %v528, %v525
      %v616 = vpack.c.b16 %v532, %v529
      %v617 = vpack.c.b16 %v533, %v530
      %v618 = vpack.c.b16 %v534, %v531
      %v619 = vpack.c.b16 %v538, %v535
      %v620 = vpack.c.b16 %v539, %v536
      %v621 = vpack.c.b16 %v540, %v537
      %v622 = vpack.c.b16 %v544, %v541
      %v623 = vpack.c.b16 %v545, %v542
      %v624 = vpack.c.b16 %v546, %v543
      %v625 = vpack.c.b16 %v550, %v547
      %v626 = vpack.c.b16 %v551, %v548
      %v627 = vpack.c.b16 %v552, %v549
      %v628 = vpack.c.b16 %v556, %v553
      %v629 = vpack.c.b16 %v557, %v554
      %v630 = vpack.c.b16 %v558, %v555
      %v631 = vpack.c.b16 %v562, %v559
      %v632 = vpack.c.b16 %v563, %v560
      %v633 = vpack.c.b16 %v564, %v561
      %v634 = vpack.c.b16 %v568, %v565
      %v635 = vpack.c.b16 %v569, %v566
      %v636 = vpack.c.b16 %v570, %v567
      %v637 = vpack.c.b16 %v574, %v571
      %v638 = vpack.c.b16 %v575, %v572
      %v639 = vpack.c.b16 %v576, %v573
      %v640 = vpack.c.b16 %v580, %v577
      %v641 = vpack.c.b16 %v581, %v578
      %v642 = vpack.c.b16 %v582, %v579
      %v643 = vpack.c.b16 %v586, %v583
      %v644 = vpack.c.b16 %v587, %v584
      %v645 = vpack.c.b16 %v588, %v585
      %v646 = vpack.c.b16 %v592, %v589
      %v647 = vpack.c.b16 %v593, %v590
      %v648 = vpack.c.b16 %v594, %v591
      %v649 = vpack.c.b16 %v598, %v595
      %v650 = vpack.c.b16 %v599, %v596
      %v651 = vpack.c.b16 %v600, %v597
      %v652 = vpack.c.b16 %v604, %v601
      %v653 = vpack.c.b16 %v605, %v602
      %v654 = vpack.c.b16 %v606, %v603
      %v751 = vunpack.c.l.b16 %v399
      %v752 = vunpack.c.l.b16 %v400
      %v753 = vunpack.c.l.b16 %v401
      %v754 = vunpack.c.l.b16 %v402
      %v755 = vunpack.c.l.b16 %v403
      %v756 = vunpack.c.l.b16 %v404
      %v757 = vunpack.c.l.b16 %v405
      %v758 = vunpack.c.l.b16 %v406
      %v759 = vunpack.c.l.b16 %v407
      %v760 = vunpack.c.l.b16 %v408
      %v761 = vunpack.c.l.b16 %v409
      %v762 = vunpack.c.l.b16 %v410
      %v763 = vunpack.c.l.b16 %v411
      %v764 = vunpack.c.l.b16 %v412
      %v765 = vunpack.c.l.b16 %v413
      %v766 = vunpack.c.l.b16 %v414
      %v767 = vunpack.c.l.b16 %v415
      %v768 = vunpack.c.l.b16 %v416
      %v769 = vunpack.c.l.b16 %v417
      %v770 = vunpack.c.l.b16 %v418
      %v771 = vunpack.c.l.b16 %v419
      %v772 = vunpack.c.l.b16 %v420
      %v773 = vunpack.c.l.b16 %v421
      %v774 = vunpack.c.l.b16 %v422
      %v775 = vunpack.c.l.b16 %v423
      %v776 = vunpack.c.l.b16 %v424
      %v777 = vunpack.c.l.b16 %v425
      %v778 = vunpack.c.l.b16 %v426
      %v779 = vunpack.c.l.b16 %v427
      %v780 = vunpack.c.l.b16 %v428
      %v781 = vunpack.c.l.b16 %v429
      %v782 = vunpack.c.l.b16 %v430
      %v783 = vunpack.c.l.b16 %v431
      %v784 = vunpack.c.l.b16 %v432
      %v785 = vunpack.c.l.b16 %v433
      %v786 = vunpack.c.l.b16 %v434
      %v787 = vunpack.c.l.b16 %v435
      %v788 = vunpack.c.l.b16 %v436
      %v789 = vunpack.c.l.b16 %v437
      %v790 = vunpack.c.l.b16 %v438
      %v791 = vunpack.c.l.b16 %v439
      %v792 = vunpack.c.l.b16 %v440
      %v793 = vunpack.c.l.b16 %v441
      %v794 = vunpack.c.l.b16 %v442
      %v795 = vunpack.c.l.b16 %v443
      %v796 = vunpack.c.l.b16 %v444
      %v797 = vunpack.c.l.b16 %v445
      %v798 = vunpack.c.l.b16 %v446
      %v799 = vpack.c.b16 %v752, %v751
      %v800 = vpack.c.b16 %v754, %v753
      %v801 = vpack.c.b16 %v756, %v755
      %v802 = vpack.c.b16 %v758, %v757
      %v803 = vpack.c.b16 %v760, %v759
      %v804 = vpack.c.b16 %v762, %v761
      %v805 = vpack.c.b16 %v764, %v763
      %v806 = vpack.c.b16 %v766, %v765
      %v807 = vpack.c.b16 %v768, %v767
      %v808 = vpack.c.b16 %v770, %v769
      %v809 = vpack.c.b16 %v772, %v771
      %v810 = vpack.c.b16 %v774, %v773
      %v811 = vpack.c.b16 %v776, %v775
      %v812 = vpack.c.b16 %v778, %v777
      %v813 = vpack.c.b16 %v780, %v779
      %v814 = vpack.c.b16 %v782, %v781
      %v815 = vpack.c.b16 %v784, %v783
      %v816 = vpack.c.b16 %v786, %v785
      %v817 = vpack.c.b16 %v788, %v787
      %v818 = vpack.c.b16 %v790, %v789
      %v819 = vpack.c.b16 %v792, %v791
      %v820 = vpack.c.b16 %v794, %v793
      %v821 = vpack.c.b16 %v796, %v795
      %v822 = vpack.c.b16 %v798, %v797
      %847 = vmatpush.bf16.msra.mxu0 %v806
      %848 = vmatpush.bf16.msra.mxu0 %v805
      %849 = vmatpush.bf16.msra.mxu0 %v804
      %850 = vmatpush.bf16.msra.mxu0 %v803
      %851 = vmatpush.bf16.msra.mxu0 %v802
      %852 = vmatpush.bf16.msra.mxu0 %v801
      %853 = vmatpush.bf16.msra.mxu0 %v800
      %854 = vmatpush.bf16.msra.mxu0 %v799
      %855 = vmatmul.bf16.gmra.mxu0 %v607
      %v856 = vpop.f32.mrf.mxu0
      %v857 = vadd.f32 0.0, %v856
      %v858 = vpop.f32.mrf.mxu0
      %v859 = vadd.f32 0.0, %v858
      %860 = vmatmul.bf16.gmra.mxu0 %v610
      %v861 = vpop.f32.mrf.mxu0
      %v862 = vadd.f32 0.0, %v861
      %v863 = vpop.f32.mrf.mxu0
      %v864 = vadd.f32 0.0, %v863
      %865 = vmatmul.bf16.gmra.mxu0 %v613
      %v866 = vpop.f32.mrf.mxu0
      %v867 = vadd.f32 0.0, %v866
      %v868 = vpop.f32.mrf.mxu0
      %v869 = vadd.f32 0.0, %v868
      %870 = vmatmul.bf16.gmra.mxu0 %v616
      %v871 = vpop.f32.mrf.mxu0
      %v872 = vadd.f32 0.0, %v871
      %v873 = vpop.f32.mrf.mxu0
      %v874 = vadd.f32 0.0, %v873
      %875 = vmatmul.bf16.gmra.mxu0 %v619
      %v876 = vpop.f32.mrf.mxu0
      %v877 = vadd.f32 0.0, %v876
      %v878 = vpop.f32.mrf.mxu0
      %v879 = vadd.f32 0.0, %v878
      %880 = vmatmul.bf16.gmra.mxu0 %v622
      %v881 = vpop.f32.mrf.mxu0
      %v882 = vadd.f32 0.0, %v881
      %v883 = vpop.f32.mrf.mxu0
      %v884 = vadd.f32 0.0, %v883
      %885 = vmatmul.bf16.gmra.mxu0 %v625
      %v886 = vpop.f32.mrf.mxu0
      %v887 = vadd.f32 0.0, %v886
      %v888 = vpop.f32.mrf.mxu0
      %v889 = vadd.f32 0.0, %v888
      %890 = vmatmul.bf16.gmra.mxu0 %v628
      %v891 = vpop.f32.mrf.mxu0
      %v892 = vadd.f32 0.0, %v891
      %v893 = vpop.f32.mrf.mxu0
      %v894 = vadd.f32 0.0, %v893
      %895 = vmatmul.bf16.gmra.mxu0 %v631
      %v896 = vpop.f32.mrf.mxu0
      %v897 = vadd.f32 0.0, %v896
      %v898 = vpop.f32.mrf.mxu0
      %v899 = vadd.f32 0.0, %v898
      %900 = vmatmul.bf16.gmra.mxu0 %v634
      %v901 = vpop.f32.mrf.mxu0
      %v902 = vadd.f32 0.0, %v901
      %v903 = vpop.f32.mrf.mxu0
      %v904 = vadd.f32 0.0, %v903
      %905 = vmatmul.bf16.gmra.mxu0 %v637
      %v906 = vpop.f32.mrf.mxu0
      %v907 = vadd.f32 0.0, %v906
      %v908 = vpop.f32.mrf.mxu0
      %v909 = vadd.f32 0.0, %v908
      %910 = vmatmul.bf16.gmra.mxu0 %v640
      %v911 = vpop.f32.mrf.mxu0
      %v912 = vadd.f32 0.0, %v911
      %v913 = vpop.f32.mrf.mxu0
      %v914 = vadd.f32 0.0, %v913
      %915 = vmatmul.bf16.gmra.mxu0 %v643
      %v916 = vpop.f32.mrf.mxu0
      %v917 = vadd.f32 0.0, %v916
      %v918 = vpop.f32.mrf.mxu0
      %v919 = vadd.f32 0.0, %v918
      %920 = vmatmul.bf16.gmra.mxu0 %v646
      %v921 = vpop.f32.mrf.mxu0
      %v922 = vadd.f32 0.0, %v921
      %v923 = vpop.f32.mrf.mxu0
      %v924 = vadd.f32 0.0, %v923
      %925 = vmatmul.bf16.gmra.mxu0 %v649
      %v926 = vpop.f32.mrf.mxu0
      %v927 = vadd.f32 0.0, %v926
      %v928 = vpop.f32.mrf.mxu0
      %v929 = vadd.f32 0.0, %v928
      %930 = vmatmul.bf16.gmra.mxu0 %v652
      %v931 = vpop.f32.mrf.mxu0
      %v932 = vadd.f32 0.0, %v931
      %v933 = vpop.f32.mrf.mxu0
      %v934 = vadd.f32 0.0, %v933
      %935 = vdwg.mxu0
      %936 = vmatpush.bf16.msra.mxu0 %v814
      %937 = vmatpush.bf16.msra.mxu0 %v813
      %938 = vmatpush.bf16.msra.mxu0 %v812
      %939 = vmatpush.bf16.msra.mxu0 %v811
      %940 = vmatpush.bf16.msra.mxu0 %v810
      %941 = vmatpush.bf16.msra.mxu0 %v809
      %942 = vmatpush.bf16.msra.mxu0 %v808
      %943 = vmatpush.bf16.msra.mxu0 %v807
      %944 = vmatmul.bf16.gmra.mxu0 %v608
      %v945 = vpop.f32.mrf.mxu0
      %v946 = vadd.f32 %v857, %v945
      %v947 = vpop.f32.mrf.mxu0
      %v948 = vadd.f32 %v859, %v947
      %949 = vmatmul.bf16.gmra.mxu0 %v611
      %v950 = vpop.f32.mrf.mxu0
      %v951 = vadd.f32 %v862, %v950
      %v952 = vpop.f32.mrf.mxu0
      %v953 = vadd.f32 %v864, %v952
      %954 = vmatmul.bf16.gmra.mxu0 %v614
      %v955 = vpop.f32.mrf.mxu0
      %v956 = vadd.f32 %v867, %v955
      %v957 = vpop.f32.mrf.mxu0
      %v958 = vadd.f32 %v869, %v957
      %959 = vmatmul.bf16.gmra.mxu0 %v617
      %v960 = vpop.f32.mrf.mxu0
      %v961 = vadd.f32 %v872, %v960
      %v962 = vpop.f32.mrf.mxu0
      %v963 = vadd.f32 %v874, %v962
      %964 = vmatmul.bf16.gmra.mxu0 %v620
      %v965 = vpop.f32.mrf.mxu0
      %v966 = vadd.f32 %v877, %v965
      %v967 = vpop.f32.mrf.mxu0
      %v968 = vadd.f32 %v879, %v967
      %969 = vmatmul.bf16.gmra.mxu0 %v623
      %v970 = vpop.f32.mrf.mxu0
      %v971 = vadd.f32 %v882, %v970
      %v972 = vpop.f32.mrf.mxu0
      %v973 = vadd.f32 %v884, %v972
      %974 = vmatmul.bf16.gmra.mxu0 %v626
      %v975 = vpop.f32.mrf.mxu0
      %v976 = vadd.f32 %v887, %v975
      %v977 = vpop.f32.mrf.mxu0
      %v978 = vadd.f32 %v889, %v977
      %979 = vmatmul.bf16.gmra.mxu0 %v629
      %v980 = vpop.f32.mrf.mxu0
      %v981 = vadd.f32 %v892, %v980
      %v982 = vpop.f32.mrf.mxu0
      %v983 = vadd.f32 %v894, %v982
      %984 = vmatmul.bf16.gmra.mxu0 %v632
      %v985 = vpop.f32.mrf.mxu0
      %v986 = vadd.f32 %v897, %v985
      %v987 = vpop.f32.mrf.mxu0
      %v988 = vadd.f32 %v899, %v987
      %989 = vmatmul.bf16.gmra.mxu0 %v635
      %v990 = vpop.f32.mrf.mxu0
      %v991 = vadd.f32 %v902, %v990
      %v992 = vpop.f32.mrf.mxu0
      %v993 = vadd.f32 %v904, %v992
      %994 = vmatmul.bf16.gmra.mxu0 %v638
      %v995 = vpop.f32.mrf.mxu0
      %v996 = vadd.f32 %v907, %v995
      %v997 = vpop.f32.mrf.mxu0
      %v998 = vadd.f32 %v909, %v997
      %999 = vmatmul.bf16.gmra.mxu0 %v641
      %v1000 = vpop.f32.mrf.mxu0
      %v1001 = vadd.f32 %v912, %v1000
      %v1002 = vpop.f32.mrf.mxu0
      %v1003 = vadd.f32 %v914, %v1002
      %1004 = vmatmul.bf16.gmra.mxu0 %v644
      %v1005 = vpop.f32.mrf.mxu0
      %v1006 = vadd.f32 %v917, %v1005
      %v1007 = vpop.f32.mrf.mxu0
      %v1008 = vadd.f32 %v919, %v1007
      %1009 = vmatmul.bf16.gmra.mxu0 %v647
      %v1010 = vpop.f32.mrf.mxu0
      %v1011 = vadd.f32 %v922, %v1010
      %v1012 = vpop.f32.mrf.mxu0
      %v1013 = vadd.f32 %v924, %v1012
      %1014 = vmatmul.bf16.gmra.mxu0 %v650
      %v1015 = vpop.f32.mrf.mxu0
      %v1016 = vadd.f32 %v927, %v1015
      %v1017 = vpop.f32.mrf.mxu0
      %v1018 = vadd.f32 %v929, %v1017
      %1019 = vmatmul.bf16.gmra.mxu0 %v653
      %v1020 = vpop.f32.mrf.mxu0
      %v1021 = vadd.f32 %v932, %v1020
      %v1022 = vpop.f32.mrf.mxu0
      %v1023 = vadd.f32 %v934, %v1022
      %1024 = vdwg.mxu0
      %1025 = vmatpush.bf16.msra.mxu0 %v822
      %1026 = vmatpush.bf16.msra.mxu0 %v821
      %1027 = vmatpush.bf16.msra.mxu0 %v820
      %1028 = vmatpush.bf16.msra.mxu0 %v819
      %1029 = vmatpush.bf16.msra.mxu0 %v818
      %1030 = vmatpush.bf16.msra.mxu0 %v817
      %1031 = vmatpush.bf16.msra.mxu0 %v816
      %1032 = vmatpush.bf16.msra.mxu0 %v815
      %1033 = vmatmul.bf16.gmra.mxu0 %v609
      %v1034 = vpop.f32.mrf.mxu0
      %v1035 = vadd.f32 %v946, %v1034
      %v1036 = vpop.f32.mrf.mxu0
      %v1037 = vadd.f32 %v948, %v1036
      %1038 = vmatmul.bf16.gmra.mxu0 %v612
      %v1039 = vpop.f32.mrf.mxu0
      %v1040 = vadd.f32 %v951, %v1039
      %v1041 = vpop.f32.mrf.mxu0
      %v1042 = vadd.f32 %v953, %v1041
      %1043 = vmatmul.bf16.gmra.mxu0 %v615
      %v1044 = vpop.f32.mrf.mxu0
      %v1045 = vadd.f32 %v956, %v1044
      %v1046 = vpop.f32.mrf.mxu0
      %v1047 = vadd.f32 %v958, %v1046
      %1048 = vmatmul.bf16.gmra.mxu0 %v618
      %v1049 = vpop.f32.mrf.mxu0
      %v1050 = vadd.f32 %v961, %v1049
      %v1051 = vpop.f32.mrf.mxu0
      %v1052 = vadd.f32 %v963, %v1051
      %1053 = vmatmul.bf16.gmra.mxu0 %v621
      %v1054 = vpop.f32.mrf.mxu0
      %v1055 = vadd.f32 %v966, %v1054
      %v1056 = vpop.f32.mrf.mxu0
      %v1057 = vadd.f32 %v968, %v1056
      %1058 = vmatmul.bf16.gmra.mxu0 %v624
      %v1059 = vpop.f32.mrf.mxu0
      %v1060 = vadd.f32 %v971, %v1059
      %v1061 = vpop.f32.mrf.mxu0
      %v1062 = vadd.f32 %v973, %v1061
      %1063 = vmatmul.bf16.gmra.mxu0 %v627
      %v1064 = vpop.f32.mrf.mxu0
      %v1065 = vadd.f32 %v976, %v1064
      %v1066 = vpop.f32.mrf.mxu0
      %v1067 = vadd.f32 %v978, %v1066
      %1068 = vmatmul.bf16.gmra.mxu0 %v630
      %v1069 = vpop.f32.mrf.mxu0
      %v1070 = vadd.f32 %v981, %v1069
      %v1071 = vpop.f32.mrf.mxu0
      %v1072 = vadd.f32 %v983, %v1071
      %1073 = vmatmul.bf16.gmra.mxu0 %v633
      %v1074 = vpop.f32.mrf.mxu0
      %v1075 = vadd.f32 %v986, %v1074
      %v1076 = vpop.f32.mrf.mxu0
      %v1077 = vadd.f32 %v988, %v1076
      %1078 = vmatmul.bf16.gmra.mxu0 %v636
      %v1079 = vpop.f32.mrf.mxu0
      %v1080 = vadd.f32 %v991, %v1079
      %v1081 = vpop.f32.mrf.mxu0
      %v1082 = vadd.f32 %v993, %v1081
      %1083 = vmatmul.bf16.gmra.mxu0 %v639
      %v1084 = vpop.f32.mrf.mxu0
      %v1085 = vadd.f32 %v996, %v1084
      %v1086 = vpop.f32.mrf.mxu0
      %v1087 = vadd.f32 %v998, %v1086
      %1088 = vmatmul.bf16.gmra.mxu0 %v642
      %v1089 = vpop.f32.mrf.mxu0
      %v1090 = vadd.f32 %v1001, %v1089
      %v1091 = vpop.f32.mrf.mxu0
      %v1092 = vadd.f32 %v1003, %v1091
      %1093 = vmatmul.bf16.gmra.mxu0 %v645
      %v1094 = vpop.f32.mrf.mxu0
      %v1095 = vadd.f32 %v1006, %v1094
      %v1096 = vpop.f32.mrf.mxu0
      %v1097 = vadd.f32 %v1008, %v1096
      %1098 = vmatmul.bf16.gmra.mxu0 %v648
      %v1099 = vpop.f32.mrf.mxu0
      %v1100 = vadd.f32 %v1011, %v1099
      %v1101 = vpop.f32.mrf.mxu0
      %v1102 = vadd.f32 %v1013, %v1101
      %1103 = vmatmul.bf16.gmra.mxu0 %v651
      %v1104 = vpop.f32.mrf.mxu0
      %v1105 = vadd.f32 %v1016, %v1104
      %v1106 = vpop.f32.mrf.mxu0
      %v1107 = vadd.f32 %v1018, %v1106
      %1108 = vmatmul.bf16.gmra.mxu0 %v654
      %v1109 = vpop.f32.mrf.mxu0
      %v1110 = vadd.f32 %v1021, %v1109
      %v1111 = vpop.f32.mrf.mxu0
      %v1112 = vadd.f32 %v1023, %v1111
      %1113 = vdwg.mxu0
      %v1114 = vadd.f32 %v303, %v1035
      %v1115 = vadd.f32 %v304, %v1037
      %v1116 = vadd.f32 %v305, %v1040
      %v1117 = vadd.f32 %v306, %v1042
      %v1118 = vadd.f32 %v307, %v1045
      %v1119 = vadd.f32 %v308, %v1047
      %v1120 = vadd.f32 %v309, %v1050
      %v1121 = vadd.f32 %v310, %v1052
      %v1122 = vadd.f32 %v311, %v1055
      %v1123 = vadd.f32 %v312, %v1057
      %v1124 = vadd.f32 %v313, %v1060
      %v1125 = vadd.f32 %v314, %v1062
      %v1126 = vadd.f32 %v315, %v1065
      %v1127 = vadd.f32 %v316, %v1067
      %v1128 = vadd.f32 %v317, %v1070
      %v1129 = vadd.f32 %v318, %v1072
      %v1130 = vadd.f32 %v319, %v1075
      %v1131 = vadd.f32 %v320, %v1077
      %v1132 = vadd.f32 %v321, %v1080
      %v1133 = vadd.f32 %v322, %v1082
      %v1134 = vadd.f32 %v323, %v1085
      %v1135 = vadd.f32 %v324, %v1087
      %v1136 = vadd.f32 %v325, %v1090
      %v1137 = vadd.f32 %v326, %v1092
      %v1138 = vadd.f32 %v327, %v1095
      %v1139 = vadd.f32 %v328, %v1097
      %v1140 = vadd.f32 %v329, %v1100
      %v1141 = vadd.f32 %v330, %v1102
      %v1142 = vadd.f32 %v331, %v1105
      %v1143 = vadd.f32 %v332, %v1107
      %v1144 = vadd.f32 %v333, %v1110
      %v1145 = vadd.f32 %v334, %v1112
      %1146 = vst [vmem:[#allocation2] sm:$0xff] %v1114
      %1147 = vst [vmem:[#allocation2 + $0x8] sm:$0xff] %v1115
      %1148 = vst [vmem:[#allocation2 + $0x10] sm:$0xff] %v1116
      %1149 = vst [vmem:[#allocation2 + $0x18] sm:$0xff] %v1117
      %1150 = vst [vmem:[#allocation2 + $0x20] sm:$0xff] %v1118
      %1151 = vst [vmem:[#allocation2 + $0x28] sm:$0xff] %v1119
      %1152 = vst [vmem:[#allocation2 + $0x30] sm:$0xff] %v1120
      %1153 = vst [vmem:[#allocation2 + $0x38] sm:$0xff] %v1121
      %1154 = vst [vmem:[#allocation2 + $0x40] sm:$0xff] %v1122
      %1155 = vst [vmem:[#allocation2 + $0x48] sm:$0xff] %v1123
      %1156 = vst [vmem:[#allocation2 + $0x50] sm:$0xff] %v1124
      %1157 = vst [vmem:[#allocation2 + $0x58] sm:$0xff] %v1125
      %1158 = vst [vmem:[#allocation2 + $0x60] sm:$0xff] %v1126
      %1159 = vst [vmem:[#allocation2 + $0x68] sm:$0xff] %v1127
      %1160 = vst [vmem:[#allocation2 + $0x70] sm:$0xff] %v1128
      %1161 = vst [vmem:[#allocation2 + $0x78] sm:$0xff] %v1129
      %1162 = vst [vmem:[#allocation2 + $0x80] sm:$0xff] %v1130
      %1163 = vst [vmem:[#allocation2 + $0x88] sm:$0xff] %v1131
      %1164 = vst [vmem:[#allocation2 + $0x90] sm:$0xff] %v1132
      %1165 = vst [vmem:[#allocation2 + $0x98] sm:$0xff] %v1133
      %1166 = vst [vmem:[#allocation2 + $0xa0] sm:$0xff] %v1134
      %1167 = vst [vmem:[#allocation2 + $0xa8] sm:$0xff] %v1135
      %1168 = vst [vmem:[#allocation2 + $0xb0] sm:$0xff] %v1136
      %1169 = vst [vmem:[#allocation2 + $0xb8] sm:$0xff] %v1137
      %1170 = vst [vmem:[#allocation2 + $0xc0] sm:$0xff] %v1138
      %1171 = vst [vmem:[#allocation2 + $0xc8] sm:$0xff] %v1139
      %1172 = vst [vmem:[#allocation2 + $0xd0] sm:$0xff] %v1140
      %1173 = vst [vmem:[#allocation2 + $0xd8] sm:$0xff] %v1141
      %1174 = vst [vmem:[#allocation2 + $0xe0] sm:$0xff] %v1142
      %1175 = vst [vmem:[#allocation2 + $0xe8] sm:$0xff] %v1143
      %1176 = vst [vmem:[#allocation2 + $0xf0] sm:$0xff] %v1144
      %1177 = vst [vmem:[#allocation2 + $0xf8] sm:$0xff] %v1145
      // Predicated region
      $region37: #{alexnet_forward.11} parent=31 // pred_check
        %p1178 = pneg %p267
      $region38: #{alexnet_forward.11} parent=31 // pred_check_branch
        %1180 = sbr.rel (%p1178) target = $region40
      $region39: #{alexnet_forward.11} parent=31 // pred_region
        %v1181 = vld [vmem:[#allocation2] sm:$0xff]
        %v1182 = vld [vmem:[#allocation2 + $0x8] sm:$0xff]
        %v1183 = vld [vmem:[#allocation2 + $0x10] sm:$0xff]
        %v1184 = vld [vmem:[#allocation2 + $0x18] sm:$0xff]
        %v1185 = vld [vmem:[#allocation2 + $0x20] sm:$0xff]
        %v1186 = vld [vmem:[#allocation2 + $0x28] sm:$0xff]
        %v1187 = vld [vmem:[#allocation2 + $0x30] sm:$0xff]
        %v1188 = vld [vmem:[#allocation2 + $0x38] sm:$0xff]
        %v1189 = vld [vmem:[#allocation2 + $0x40] sm:$0xff]
        %v1190 = vld [vmem:[#allocation2 + $0x48] sm:$0xff]
        %v1191 = vld [vmem:[#allocation2 + $0x50] sm:$0xff]
        %v1192 = vld [vmem:[#allocation2 + $0x58] sm:$0xff]
        %v1193 = vld [vmem:[#allocation2 + $0x60] sm:$0xff]
        %v1194 = vld [vmem:[#allocation2 + $0x68] sm:$0xff]
        %v1195 = vld [vmem:[#allocation2 + $0x70] sm:$0xff]
        %v1196 = vld [vmem:[#allocation2 + $0x78] sm:$0xff]
        %v1197 = vld [vmem:[#allocation2 + $0x80] sm:$0xff]
        %v1198 = vld [vmem:[#allocation2 + $0x88] sm:$0xff]
        %v1199 = vld [vmem:[#allocation2 + $0x90] sm:$0xff]
        %v1200 = vld [vmem:[#allocation2 + $0x98] sm:$0xff]
        %v1201 = vld [vmem:[#allocation2 + $0xa0] sm:$0xff]
        %v1202 = vld [vmem:[#allocation2 + $0xa8] sm:$0xff]
        %v1203 = vld [vmem:[#allocation2 + $0xb0] sm:$0xff]
        %v1204 = vld [vmem:[#allocation2 + $0xb8] sm:$0xff]
        %v1205 = vld [vmem:[#allocation2 + $0xc0] sm:$0xff]
        %v1206 = vld [vmem:[#allocation2 + $0xc8] sm:$0xff]
        %v1207 = vld [vmem:[#allocation2 + $0xd0] sm:$0xff]
        %v1208 = vld [vmem:[#allocation2 + $0xd8] sm:$0xff]
        %v1209 = vld [vmem:[#allocation2 + $0xe0] sm:$0xff]
        %v1210 = vld [vmem:[#allocation2 + $0xe8] sm:$0xff]
        %v1211 = vld [vmem:[#allocation2 + $0xf0] sm:$0xff]
        %v1212 = vld [vmem:[#allocation2 + $0xf8] sm:$0xff]
        %v1213 = vld [vmem:[%s257] sm:$0x1]
        %v1215 = vperm.slane %v1213, 0
        %v1217 = vadd.f32 %v1181, %v1215
        %v1218 = vadd.f32 %v1182, %v1215
        %v1219 = vadd.f32 %v1183, %v1215
        %v1220 = vadd.f32 %v1184, %v1215
        %v1221 = vadd.f32 %v1185, %v1215
        %v1222 = vadd.f32 %v1186, %v1215
        %v1223 = vadd.f32 %v1187, %v1215
        %v1224 = vadd.f32 %v1188, %v1215
        %v1225 = vadd.f32 %v1189, %v1215
        %v1226 = vadd.f32 %v1190, %v1215
        %v1227 = vadd.f32 %v1191, %v1215
        %v1228 = vadd.f32 %v1192, %v1215
        %v1229 = vadd.f32 %v1193, %v1215
        %v1230 = vadd.f32 %v1194, %v1215
        %v1231 = vadd.f32 %v1195, %v1215
        %v1232 = vadd.f32 %v1196, %v1215
        %v1233 = vadd.f32 %v1197, %v1215
        %v1234 = vadd.f32 %v1198, %v1215
        %v1235 = vadd.f32 %v1199, %v1215
        %v1236 = vadd.f32 %v1200, %v1215
        %v1237 = vadd.f32 %v1201, %v1215
        %v1238 = vadd.f32 %v1202, %v1215
        %v1239 = vadd.f32 %v1203, %v1215
        %v1240 = vadd.f32 %v1204, %v1215
        %v1241 = vadd.f32 %v1205, %v1215
        %v1242 = vadd.f32 %v1206, %v1215
        %v1243 = vadd.f32 %v1207, %v1215
        %v1244 = vadd.f32 %v1208, %v1215
        %v1245 = vadd.f32 %v1209, %v1215
        %v1246 = vadd.f32 %v1210, %v1215
        %v1247 = vadd.f32 %v1211, %v1215
        %v1248 = vadd.f32 %v1212, %v1215
        %v1249 = vmax.f32 %v1217, 0.0
        %v1250 = vmax.f32 %v1218, 0.0
        %v1251 = vmax.f32 %v1219, 0.0
        %v1252 = vmax.f32 %v1220, 0.0
        %v1253 = vmax.f32 %v1221, 0.0
        %v1254 = vmax.f32 %v1222, 0.0
        %v1255 = vmax.f32 %v1223, 0.0
        %v1256 = vmax.f32 %v1224, 0.0
        %v1257 = vmax.f32 %v1225, 0.0
        %v1258 = vmax.f32 %v1226, 0.0
        %v1259 = vmax.f32 %v1227, 0.0
        %v1260 = vmax.f32 %v1228, 0.0
        %v1261 = vmax.f32 %v1229, 0.0
        %v1262 = vmax.f32 %v1230, 0.0
        %v1263 = vmax.f32 %v1231, 0.0
        %v1264 = vmax.f32 %v1232, 0.0
        %v1265 = vmax.f32 %v1233, 0.0
        %v1266 = vmax.f32 %v1234, 0.0
        %v1267 = vmax.f32 %v1235, 0.0
        %v1268 = vmax.f32 %v1236, 0.0
        %v1269 = vmax.f32 %v1237, 0.0
        %v1270 = vmax.f32 %v1238, 0.0
        %v1271 = vmax.f32 %v1239, 0.0
        %v1272 = vmax.f32 %v1240, 0.0
        %v1273 = vmax.f32 %v1241, 0.0
        %v1274 = vmax.f32 %v1242, 0.0
        %v1275 = vmax.f32 %v1243, 0.0
        %v1276 = vmax.f32 %v1244, 0.0
        %v1277 = vmax.f32 %v1245, 0.0
        %v1278 = vmax.f32 %v1246, 0.0
        %v1279 = vmax.f32 %v1247, 0.0
        %v1280 = vmax.f32 %v1248, 0.0
        %v1281 = vpack.c.bf16 %v1249, %v1249
        %v1282 = vpack.c.bf16 %v1250, %v1250
        %v1283 = vpack.c.bf16 %v1251, %v1251
        %v1284 = vpack.c.bf16 %v1252, %v1252
        %v1285 = vpack.c.bf16 %v1253, %v1253
        %v1286 = vpack.c.bf16 %v1254, %v1254
        %v1287 = vpack.c.bf16 %v1255, %v1255
        %v1288 = vpack.c.bf16 %v1256, %v1256
        %v1289 = vpack.c.bf16 %v1257, %v1257
        %v1290 = vpack.c.bf16 %v1258, %v1258
        %v1291 = vpack.c.bf16 %v1259, %v1259
        %v1292 = vpack.c.bf16 %v1260, %v1260
        %v1293 = vpack.c.bf16 %v1261, %v1261
        %v1294 = vpack.c.bf16 %v1262, %v1262
        %v1295 = vpack.c.bf16 %v1263, %v1263
        %v1296 = vpack.c.bf16 %v1264, %v1264
        %v1297 = vpack.c.bf16 %v1265, %v1265
        %v1298 = vpack.c.bf16 %v1266, %v1266
        %v1299 = vpack.c.bf16 %v1267, %v1267
        %v1300 = vpack.c.bf16 %v1268, %v1268
        %v1301 = vpack.c.bf16 %v1269, %v1269
        %v1302 = vpack.c.bf16 %v1270, %v1270
        %v1303 = vpack.c.bf16 %v1271, %v1271
        %v1304 = vpack.c.bf16 %v1272, %v1272
        %v1305 = vpack.c.bf16 %v1273, %v1273
        %v1306 = vpack.c.bf16 %v1274, %v1274
        %v1307 = vpack.c.bf16 %v1275, %v1275
        %v1308 = vpack.c.bf16 %v1276, %v1276
        %v1309 = vpack.c.bf16 %v1277, %v1277
        %v1310 = vpack.c.bf16 %v1278, %v1278
        %v1311 = vpack.c.bf16 %v1279, %v1279
        %v1312 = vpack.c.bf16 %v1280, %v1280
        %1313 = vst [vmem:[%s265] sm:$0xf] %v1281
        %1314 = vst [vmem:[%s265 + $0x4] sm:$0xf] %v1282
        %1315 = vst [vmem:[%s265 + $0x8] sm:$0xf] %v1283
        %1316 = vst [vmem:[%s265 + $0xc] sm:$0xf] %v1284
        %1317 = vst [vmem:[%s265 + $0x10] sm:$0xf] %v1285
        %1318 = vst [vmem:[%s265 + $0x14] sm:$0xf] %v1286
        %1319 = vst [vmem:[%s265 + $0x18] sm:$0xf] %v1287
        %1320 = vst [vmem:[%s265 + $0x1c] sm:$0xf] %v1288
        %1321 = vst [vmem:[%s265 + $0x20] sm:$0xf] %v1289
        %1322 = vst [vmem:[%s265 + $0x24] sm:$0xf] %v1290
        %1323 = vst [vmem:[%s265 + $0x28] sm:$0xf] %v1291
        %1324 = vst [vmem:[%s265 + $0x2c] sm:$0xf] %v1292
        %1325 = vst [vmem:[%s265 + $0x30] sm:$0xf] %v1293
        %1326 = vst [vmem:[%s265 + $0x34] sm:$0xf] %v1294
        %1327 = vst [vmem:[%s265 + $0x38] sm:$0xf] %v1295
        %1328 = vst [vmem:[%s265 + $0x3c] sm:$0xf] %v1296
        %1329 = vst [vmem:[%s265 + $0x40] sm:$0xf] %v1297
        %1330 = vst [vmem:[%s265 + $0x44] sm:$0xf] %v1298
        %1331 = vst [vmem:[%s265 + $0x48] sm:$0xf] %v1299
        %1332 = vst [vmem:[%s265 + $0x4c] sm:$0xf] %v1300
        %1333 = vst [vmem:[%s265 + $0x50] sm:$0xf] %v1301
        %1334 = vst [vmem:[%s265 + $0x54] sm:$0xf] %v1302
        %1335 = vst [vmem:[%s265 + $0x58] sm:$0xf] %v1303
        %1336 = vst [vmem:[%s265 + $0x5c] sm:$0xf] %v1304
        %1337 = vst [vmem:[%s265 + $0x60] sm:$0xf] %v1305
        %1338 = vst [vmem:[%s265 + $0x64] sm:$0xf] %v1306
        %1339 = vst [vmem:[%s265 + $0x68] sm:$0xf] %v1307
        %1340 = vst [vmem:[%s265 + $0x6c] sm:$0xf] %v1308
        %1341 = vst [vmem:[%s265 + $0x70] sm:$0xf] %v1309
        %1342 = vst [vmem:[%s265 + $0x74] sm:$0xf] %v1310
        %1343 = vst [vmem:[%s265 + $0x78] sm:$0xf] %v1311
        %1344 = vst [vmem:[%s265 + $0x7c] sm:$0xf] %v1312
      $region40: #{alexnet_forward.11} parent=31 // pred_fallthru
        _
      %s1345 = smul.u32 32, %s19
      %p1346 = scmp.lt.s32.totalorder %s1345, 63
      %s1347 = scalar_select %p1346, %s1345, 63
      %p1348 = scmp.lt.s32.totalorder %s20, 0
      %s1349 = scalar_select %p1348, %s20, 0
      %s1350 = sadd.s32 %s1349, %s1347
      %s1351 = smul.addr %s1350, 4
      %s1352 = scalar_lea.vmem %s3, %s1351
      // Predicated region
      $region41: #{alexnet_forward.11} parent=31 // pred_check
        %p1353 = pneg %p135
      $region42: #{alexnet_forward.11} parent=31 // pred_check_branch
        %1355 = sbr.rel (%p1353) target = $region44
      $region43: #{alexnet_forward.11} parent=31 // pred_region
        %s1356 = smul.u32 32, %s19
      $region44: #{alexnet_forward.11} parent=31 // pred_fallthru
        _
    $region32: #{alexnet_forward.11} parent=5 // pred_fallthru
      _
    %p1357 = scmp.le.s32.totalorder 2, %s9
    // Predicated region
    $region45: #{alexnet_forward.11} parent=5 // pred_check
      %p1358 = pneg %p1357
    $region46: #{alexnet_forward.11} parent=5 // pred_check_branch
      %1360 = sbr.rel (%p1358) target = $region48
    $region47: #{alexnet_forward.11} parent=5 // pred_region
      %s1361 = ssub.s32 %s9, 2
      // Predicated region
      $region49: #{alexnet_forward.11} parent=47 // pred_check
        %p1362 = pneg %p141
      $region50: #{alexnet_forward.11} parent=47 // pred_check_branch
        %1364 = sbr.rel (%p1362) target = $region52
      $region51: #{alexnet_forward.11} parent=47 // pred_region
        %s1365 = smul.u32 32, %s22
        %p1366 = scmp.lt.s32.totalorder %s1365, 63
        %s1367 = scalar_select %p1366, %s1365, 63
        %p1368 = scmp.lt.s32.totalorder %s23, 0
        %s1369 = scalar_select %p1368, %s23, 0
        %s1370 = sadd.s32 %s1369, %s1367
        %s1371 = smul.addr %s1370, 4
        %s1372 = scalar_lea.vmem %s3, %s1371
      $region52: #{alexnet_forward.11} parent=47 // pred_fallthru
        _
    $region48: #{alexnet_forward.11} parent=5 // pred_fallthru
      _
  $region6: #{alexnet_forward.11} parent=0 // loop_footer
    %s13 = sadd.s32 1, %s9
  $region7: #{alexnet_forward.11} parent=0 // loop_footer_branch
    %8 = sbr.rel target = $region3
  $region8: #{alexnet_forward.11} parent=0 // loop_exit
    _

// kernel: alexnet_forward.12
$region0: #{alexnet_forward.12}
  #allocation0 [shape = 'u32[]', space=smem, size = 0x4, offset = 0x4, fixed_abs, tag = 'smem constant byte address 0x4 - core index']
  #allocation1 [shape = 'u32[72,128]{1,0:T(1,128)}', space=vmem, size = 0x9000, scoped, tag = 'internal scratch']
  %s0 = inlined_call_operand.vmem [shape: bf16[9,16,512], index: 0, kind: input, shape index: {}]
  %s1 = inlined_call_operand.vmem [shape: bf16[16,512], index: 1, kind: output, shape index: {}]
  %s2 = sld [smem:[#allocation0]]
  $region14: #{alexnet_forward.12} parent=0
    _
  %s4 = ssub.s32 1, %s2
  %s5 = scalar_select 0, %s4, %s2
  // Predicated region
  $region2: #{alexnet_forward.12} parent=0 // pred_check
    _
  $region3: #{alexnet_forward.12} parent=0 // pred_check_branch
    %7 = sbr.rel (0) target = $region5
  $region4: #{alexnet_forward.12} parent=0 // pred_region
    _
  $region5: #{alexnet_forward.12} parent=0 // pred_fallthru
    _
  %v8 = vld [vmem:[%s0] sm:$0xff]
  %v9 = vld [vmem:[%s0 + $0x8] sm:$0xff]
  %v10 = vld [vmem:[%s0 + $0x10] sm:$0xff]
  %v11 = vld [vmem:[%s0 + $0x18] sm:$0xff]
  %v12 = vld [vmem:[%s0 + $0x20] sm:$0xff]
  %v13 = vld [vmem:[%s0 + $0x28] sm:$0xff]
  %v14 = vld [vmem:[%s0 + $0x30] sm:$0xff]
  %v15 = vld [vmem:[%s0 + $0x38] sm:$0xff]
  %v16 = vld [vmem:[%s0 + $0x40] sm:$0xff]
  %v17 = vld [vmem:[%s0 + $0x48] sm:$0xff]
  %v18 = vld [vmem:[%s0 + $0x50] sm:$0xff]
  %v19 = vld [vmem:[%s0 + $0x58] sm:$0xff]
  %v20 = vld [vmem:[%s0 + $0x60] sm:$0xff]
  %v21 = vld [vmem:[%s0 + $0x68] sm:$0xff]
  %v22 = vld [vmem:[%s0 + $0x70] sm:$0xff]
  %v23 = vld [vmem:[%s0 + $0x78] sm:$0xff]
  %v24 = vld [vmem:[%s0 + $0x80] sm:$0xff]
  %v25 = vld [vmem:[%s0 + $0x88] sm:$0xff]
  %v26 = vld [vmem:[%s0 + $0x90] sm:$0xff]
  %v27 = vld [vmem:[%s0 + $0x98] sm:$0xff]
  %v28 = vld [vmem:[%s0 + $0xa0] sm:$0xff]
  %v29 = vld [vmem:[%s0 + $0xa8] sm:$0xff]
  %v30 = vld [vmem:[%s0 + $0xb0] sm:$0xff]
  %v31 = vld [vmem:[%s0 + $0xb8] sm:$0xff]
  %v32 = vld [vmem:[%s0 + $0xc0] sm:$0xff]
  %v33 = vld [vmem:[%s0 + $0xc8] sm:$0xff]
  %v34 = vld [vmem:[%s0 + $0xd0] sm:$0xff]
  %v35 = vld [vmem:[%s0 + $0xd8] sm:$0xff]
  %v36 = vld [vmem:[%s0 + $0xe0] sm:$0xff]
  %v37 = vld [vmem:[%s0 + $0xe8] sm:$0xff]
  %v38 = vld [vmem:[%s0 + $0xf0] sm:$0xff]
  %v39 = vld [vmem:[%s0 + $0xf8] sm:$0xff]
  %v40 = vld [vmem:[%s0 + $0x100] sm:$0xff]
  %v41 = vld [vmem:[%s0 + $0x108] sm:$0xff]
  %v42 = vld [vmem:[%s0 + $0x110] sm:$0xff]
  %v43 = vld [vmem:[%s0 + $0x118] sm:$0xff]
  %v44 = vunpack.c.l.bf16 %v8
  %v45 = vunpack.c.h.bf16 %v8
  %v46 = vunpack.c.l.bf16 %v9
  %v47 = vunpack.c.h.bf16 %v9
  %v48 = vunpack.c.l.bf16 %v10
  %v49 = vunpack.c.h.bf16 %v10
  %v50 = vunpack.c.l.bf16 %v11
  %v51 = vunpack.c.h.bf16 %v11
  %v52 = vunpack.c.l.bf16 %v12
  %v53 = vunpack.c.h.bf16 %v12
  %v54 = vunpack.c.l.bf16 %v13
  %v55 = vunpack.c.h.bf16 %v13
  %v56 = vunpack.c.l.bf16 %v14
  %v57 = vunpack.c.h.bf16 %v14
  %v58 = vunpack.c.l.bf16 %v15
  %v59 = vunpack.c.h.bf16 %v15
  %v60 = vmax.f32 %v44, %v52
  %v61 = vmax.f32 %v45, %v53
  %v62 = vmax.f32 %v46, %v54
  %v63 = vmax.f32 %v47, %v55
  %v64 = vmax.f32 %v48, %v56
  %v65 = vmax.f32 %v49, %v57
  %v66 = vmax.f32 %v50, %v58
  %v67 = vmax.f32 %v51, %v59
  %v68 = vpack.c.bf16 %v61, %v60
  %v69 = vpack.c.bf16 %v63, %v62
  %v70 = vpack.c.bf16 %v65, %v64
  %v71 = vpack.c.bf16 %v67, %v66
  %v72 = vunpack.c.l.bf16 %v68
  %v73 = vunpack.c.h.bf16 %v68
  %v74 = vunpack.c.l.bf16 %v69
  %v75 = vunpack.c.h.bf16 %v69
  %v76 = vunpack.c.l.bf16 %v70
  %v77 = vunpack.c.h.bf16 %v70
  %v78 = vunpack.c.l.bf16 %v71
  %v79 = vunpack.c.h.bf16 %v71
  %v80 = vunpack.c.l.bf16 %v16
  %v81 = vunpack.c.h.bf16 %v16
  %v82 = vunpack.c.l.bf16 %v17
  %v83 = vunpack.c.h.bf16 %v17
  %v84 = vunpack.c.l.bf16 %v18
  %v85 = vunpack.c.h.bf16 %v18
  %v86 = vunpack.c.l.bf16 %v19
  %v87 = vunpack.c.h.bf16 %v19
  %v88 = vmax.f32 %v72, %v80
  %v89 = vmax.f32 %v73, %v81
  %v90 = vmax.f32 %v74, %v82
  %v91 = vmax.f32 %v75, %v83
  %v92 = vmax.f32 %v76, %v84
  %v93 = vmax.f32 %v77, %v85
  %v94 = vmax.f32 %v78, %v86
  %v95 = vmax.f32 %v79, %v87
  %v96 = vpack.c.bf16 %v89, %v88
  %v97 = vpack.c.bf16 %v91, %v90
  %v98 = vpack.c.bf16 %v93, %v92
  %v99 = vpack.c.bf16 %v95, %v94
  %v100 = vunpack.c.l.bf16 %v96
  %v101 = vunpack.c.h.bf16 %v96
  %v102 = vunpack.c.l.bf16 %v97
  %v103 = vunpack.c.h.bf16 %v97
  %v104 = vunpack.c.l.bf16 %v98
  %v105 = vunpack.c.h.bf16 %v98
  %v106 = vunpack.c.l.bf16 %v99
  %v107 = vunpack.c.h.bf16 %v99
  %v108 = vunpack.c.l.bf16 %v20
  %v109 = vunpack.c.h.bf16 %v20
  %v110 = vunpack.c.l.bf16 %v21
  %v111 = vunpack.c.h.bf16 %v21
  %v112 = vunpack.c.l.bf16 %v22
  %v113 = vunpack.c.h.bf16 %v22
  %v114 = vunpack.c.l.bf16 %v23
  %v115 = vunpack.c.h.bf16 %v23
  %v116 = vmax.f32 %v100, %v108
  %v117 = vmax.f32 %v101, %v109
  %v118 = vmax.f32 %v102, %v110
  %v119 = vmax.f32 %v103, %v111
  %v120 = vmax.f32 %v104, %v112
  %v121 = vmax.f32 %v105, %v113
  %v122 = vmax.f32 %v106, %v114
  %v123 = vmax.f32 %v107, %v115
  %v124 = vpack.c.bf16 %v117, %v116
  %v125 = vpack.c.bf16 %v119, %v118
  %v126 = vpack.c.bf16 %v121, %v120
  %v127 = vpack.c.bf16 %v123, %v122
  %v128 = vunpack.c.l.bf16 %v124
  %v129 = vunpack.c.h.bf16 %v124
  %v130 = vunpack.c.l.bf16 %v125
  %v131 = vunpack.c.h.bf16 %v125
  %v132 = vunpack.c.l.bf16 %v126
  %v133 = vunpack.c.h.bf16 %v126
  %v134 = vunpack.c.l.bf16 %v127
  %v135 = vunpack.c.h.bf16 %v127
  %v136 = vunpack.c.l.bf16 %v24
  %v137 = vunpack.c.h.bf16 %v24
  %v138 = vunpack.c.l.bf16 %v25
  %v139 = vunpack.c.h.bf16 %v25
  %v140 = vunpack.c.l.bf16 %v26
  %v141 = vunpack.c.h.bf16 %v26
  %v142 = vunpack.c.l.bf16 %v27
  %v143 = vunpack.c.h.bf16 %v27
  %v144 = vmax.f32 %v128, %v136
  %v145 = vmax.f32 %v129, %v137
  %v146 = vmax.f32 %v130, %v138
  %v147 = vmax.f32 %v131, %v139
  %v148 = vmax.f32 %v132, %v140
  %v149 = vmax.f32 %v133, %v141
  %v150 = vmax.f32 %v134, %v142
  %v151 = vmax.f32 %v135, %v143
  %v152 = vpack.c.bf16 %v145, %v144
  %v153 = vpack.c.bf16 %v147, %v146
  %v154 = vpack.c.bf16 %v149, %v148
  %v155 = vpack.c.bf16 %v151, %v150
  %v156 = vunpack.c.l.bf16 %v152
  %v157 = vunpack.c.h.bf16 %v152
  %v158 = vunpack.c.l.bf16 %v153
  %v159 = vunpack.c.h.bf16 %v153
  %v160 = vunpack.c.l.bf16 %v154
  %v161 = vunpack.c.h.bf16 %v154
  %v162 = vunpack.c.l.bf16 %v155
  %v163 = vunpack.c.h.bf16 %v155
  %v164 = vunpack.c.l.bf16 %v28
  %v165 = vunpack.c.h.bf16 %v28
  %v166 = vunpack.c.l.bf16 %v29
  %v167 = vunpack.c.h.bf16 %v29
  %v168 = vunpack.c.l.bf16 %v30
  %v169 = vunpack.c.h.bf16 %v30
  %v170 = vunpack.c.l.bf16 %v31
  %v171 = vunpack.c.h.bf16 %v31
  %v172 = vmax.f32 %v156, %v164
  %v173 = vmax.f32 %v157, %v165
  %v174 = vmax.f32 %v158, %v166
  %v175 = vmax.f32 %v159, %v167
  %v176 = vmax.f32 %v160, %v168
  %v177 = vmax.f32 %v161, %v169
  %v178 = vmax.f32 %v162, %v170
  %v179 = vmax.f32 %v163, %v171
  %v180 = vpack.c.bf16 %v173, %v172
  %v181 = vpack.c.bf16 %v175, %v174
  %v182 = vpack.c.bf16 %v177, %v176
  %v183 = vpack.c.bf16 %v179, %v178
  %v184 = vunpack.c.l.bf16 %v180
  %v185 = vunpack.c.h.bf16 %v180
  %v186 = vunpack.c.l.bf16 %v181
  %v187 = vunpack.c.h.bf16 %v181
  %v188 = vunpack.c.l.bf16 %v182
  %v189 = vunpack.c.h.bf16 %v182
  %v190 = vunpack.c.l.bf16 %v183
  %v191 = vunpack.c.h.bf16 %v183
  %v192 = vunpack.c.l.bf16 %v32
  %v193 = vunpack.c.h.bf16 %v32
  %v194 = vunpack.c.l.bf16 %v33
  %v195 = vunpack.c.h.bf16 %v33
  %v196 = vunpack.c.l.bf16 %v34
  %v197 = vunpack.c.h.bf16 %v34
  %v198 = vunpack.c.l.bf16 %v35
  %v199 = vunpack.c.h.bf16 %v35
  %v200 = vmax.f32 %v184, %v192
  %v201 = vmax.f32 %v185, %v193
  %v202 = vmax.f32 %v186, %v194
  %v203 = vmax.f32 %v187, %v195
  %v204 = vmax.f32 %v188, %v196
  %v205 = vmax.f32 %v189, %v197
  %v206 = vmax.f32 %v190, %v198
  %v207 = vmax.f32 %v191, %v199
  %v208 = vpack.c.bf16 %v201, %v200
  %v209 = vpack.c.bf16 %v203, %v202
  %v210 = vpack.c.bf16 %v205, %v204
  %v211 = vpack.c.bf16 %v207, %v206
  %v212 = vunpack.c.l.bf16 %v208
  %v213 = vunpack.c.h.bf16 %v208
  %v214 = vunpack.c.l.bf16 %v209
  %v215 = vunpack.c.h.bf16 %v209
  %v216 = vunpack.c.l.bf16 %v210
  %v217 = vunpack.c.h.bf16 %v210
  %v218 = vunpack.c.l.bf16 %v211
  %v219 = vunpack.c.h.bf16 %v211
  %v220 = vunpack.c.l.bf16 %v36
  %v221 = vunpack.c.h.bf16 %v36
  %v222 = vunpack.c.l.bf16 %v37
  %v223 = vunpack.c.h.bf16 %v37
  %v224 = vunpack.c.l.bf16 %v38
  %v225 = vunpack.c.h.bf16 %v38
  %v226 = vunpack.c.l.bf16 %v39
  %v227 = vunpack.c.h.bf16 %v39
  %v228 = vmax.f32 %v212, %v220
  %v229 = vmax.f32 %v213, %v221
  %v230 = vmax.f32 %v214, %v222
  %v231 = vmax.f32 %v215, %v223
  %v232 = vmax.f32 %v216, %v224
  %v233 = vmax.f32 %v217, %v225
  %v234 = vmax.f32 %v218, %v226
  %v235 = vmax.f32 %v219, %v227
  %v236 = vpack.c.bf16 %v229, %v228
  %v237 = vpack.c.bf16 %v231, %v230
  %v238 = vpack.c.bf16 %v233, %v232
  %v239 = vpack.c.bf16 %v235, %v234
  %v240 = vunpack.c.l.bf16 %v236
  %v241 = vunpack.c.h.bf16 %v236
  %v242 = vunpack.c.l.bf16 %v237
  %v243 = vunpack.c.h.bf16 %v237
  %v244 = vunpack.c.l.bf16 %v238
  %v245 = vunpack.c.h.bf16 %v238
  %v246 = vunpack.c.l.bf16 %v239
  %v247 = vunpack.c.h.bf16 %v239
  %v248 = vunpack.c.l.bf16 %v40
  %v249 = vunpack.c.h.bf16 %v40
  %v250 = vunpack.c.l.bf16 %v41
  %v251 = vunpack.c.h.bf16 %v41
  %v252 = vunpack.c.l.bf16 %v42
  %v253 = vunpack.c.h.bf16 %v42
  %v254 = vunpack.c.l.bf16 %v43
  %v255 = vunpack.c.h.bf16 %v43
  %v256 = vmax.f32 %v240, %v248
  %v257 = vmax.f32 %v241, %v249
  %v258 = vmax.f32 %v242, %v250
  %v259 = vmax.f32 %v243, %v251
  %v260 = vmax.f32 %v244, %v252
  %v261 = vmax.f32 %v245, %v253
  %v262 = vmax.f32 %v246, %v254
  %v263 = vmax.f32 %v247, %v255
  %v264 = vpack.c.bf16 %v257, %v256
  %v265 = vpack.c.bf16 %v259, %v258
  %v266 = vpack.c.bf16 %v261, %v260
  %v267 = vpack.c.bf16 %v263, %v262
  %268 = vst [vmem:[%s1] sm:$0xff] %v264
  %269 = vst [vmem:[%s1 + $0x8] sm:$0xff] %v265
  %270 = vst [vmem:[%s1 + $0x10] sm:$0xff] %v266
  %271 = vst [vmem:[%s1 + $0x18] sm:$0xff] %v267
  // Predicated region
  $region6: #{alexnet_forward.12} parent=0 // pred_check
    _
  $region7: #{alexnet_forward.12} parent=0 // pred_check_branch
    %273 = sbr.rel (0) target = $region9
  $region8: #{alexnet_forward.12} parent=0 // pred_region
    _
  $region9: #{alexnet_forward.12} parent=0 // pred_fallthru
    _
  // Predicated region
  $region10: #{alexnet_forward.12} parent=0 // pred_check
    _
  $region11: #{alexnet_forward.12} parent=0 // pred_check_branch
    %275 = sbr.rel (0) target = $region13
  $region12: #{alexnet_forward.12} parent=0 // pred_region
    _
  $region13: #{alexnet_forward.12} parent=0 // pred_fallthru
    _

// kernel: alexnet_forward.13
$region0: #{alexnet_forward.13}
  #allocation0 [shape = 'u32[]', space=smem, size = 0x4, offset = 0x4, fixed_abs, tag = 'smem constant byte address 0x4 - core index']
  #allocation1 [shape = 'u32[72,128]{1,0:T(1,128)}', space=vmem, size = 0x9000, scoped, tag = 'internal scratch']
  #allocation2 [shape = 'f32[104,256]{1,0:T(8,128)}', space=vmem, size = 0x1a000, scoped, tag = 'scratch operand']
  %s0 = inlined_call_operand.vmem [shape: bf16[104,2048], index: 0, kind: input, shape index: {}]
  %s1 = inlined_call_operand.vmem [shape: bf16[2048,256], index: 1, kind: input, shape index: {}]
  %s2 = inlined_call_operand.vmem [shape: f32[1,256], index: 2, kind: input, shape index: {}]
  %s3 = inlined_call_operand.vmem [shape: bf16[104,256], index: 3, kind: output, shape index: {}]
  %s4 = sld [smem:[#allocation0]]
  $region76: #{alexnet_forward.13} parent=0
    _
  %s6 = ssub.s32 1, %s4
  %s7 = scalar_select 0, %s6, %s4
  $region1: #{alexnet_forward.13} parent=0
    #allocation3 [shape = 'u8[212992]{0}', space=vmem, size = 0x34000, scoped, tag = 'input window, operand 0']
    loop: start=0, step=1, limit=6
    $region2: #{alexnet_forward.13} parent=1 // loop_pre_header
      _
    $region3: #{alexnet_forward.13} parent=1 // loop_header
      %s9 = sphi 0, %s13
      %p10 = scmp.ge.s32.totalorder %s9, 6
      %s16 = sphi 0, %s35
      %s17 = sphi 0, %s31
      %s18 = sphi 0, %s27
      %s19 = sphi 0, %s16
      %s20 = sphi 0, %s17
      %s21 = sphi 0, %s18
      %s22 = sphi 0, %s19
      %s23 = sphi 0, %s20
      %s24 = sphi 0, %s21
      %s40 = sphi 0, %s42
      %s43 = sphi 0, %s40
      %s44 = sphi 0, %s43
      %s60 = sphi 0, %s44
      %s68 = sphi 0, %s70
      %s71 = sphi 0, %s68
      %s72 = sphi 0, %s71
      %s88 = sphi 0, %s72
      %s94 = sphi 0, %s96
      %s97 = sphi 0, %s94
      %s98 = sphi 0, %s97
      %s114 = sphi 0, %s98
      %s122 = sphi 0, %s124
      %s125 = sphi 0, %s122
      %s126 = sphi 0, %s125
      %s142 = sphi 0, %s126
    $region4: #{alexnet_forward.13} parent=1 // loop_header_branch
      %12 = sbr.rel (%p10) target = $region8
    $region5: #{alexnet_forward.13} parent=1 // loop_body
      %s14 = ssub.s32 %s9, 1
      %s15 = ssub.s32 %s9, 2
      %s25 = sadd.s32 1, %s18
      %p26 = scmp.ge.s32.totalorder %s25, 4
      %s27 = scalar_select %p26, 0, %s25
      %s28 = sadd.s32 1, %s17
      %s29 = scalar_select %p26, %s28, %s17
      %p30 = scmp.ge.s32.totalorder %s29, 1
      %s31 = scalar_select %p30, 0, %s29
      %s32 = sadd.s32 1, %s16
      %s33 = scalar_select %p30, %s32, %s16
      %p34 = scmp.ge.s32.totalorder %s33, 1
      %s35 = scalar_select %p34, 0, %s33
      %s36 = ssub.s32 %s16, %s35
      %s37 = ssub.s32 %s18, %s27
      %s38 = sor.u32 %s36, %s37
      %p39 = scmp.eq.s32.totalorder %s38, 0
      %s41 = sadd.s32 %s40, 1
      %s42 = scalar_select %p39, %s40, %s41
      %p45 = pneg %p39
      %p46 = scmp.eq.s32.totalorder %s9, 3
      %p47 = por %p45, %p46
      %p48 = scmp.ne.s32.totalorder %s40, %s43
      %p49 = scmp.eq.s32.totalorder %s9, 0
      %p50 = por %p48, %p49
      %p51 = scmp.ne.s32.totalorder %s40, %s43
      %p52 = scmp.eq.s32.totalorder %s14, 3
      %p53 = por %p51, %p52
      %p54 = scmp.ne.s32.totalorder %s43, %s44
      %p55 = scmp.eq.s32.totalorder %s14, 0
      %p56 = por %p54, %p55
      %p57 = scmp.ne.s32.totalorder %s43, %s44
      %p58 = scmp.eq.s32.totalorder %s15, 3
      %p59 = por %p57, %p58
      %p61 = scmp.ne.s32.totalorder %s44, %s60
      %p62 = scmp.eq.s32.totalorder %s15, 0
      %p63 = por %p61, %p62
      %s64 = ssub.s32 %s18, %s27
      %s65 = ssub.s32 %s17, %s31
      %s66 = sor.u32 %s64, %s65
      %p67 = scmp.eq.s32.totalorder %s66, 0
      %s69 = sadd.s32 %s68, 1
      %s70 = scalar_select %p67, %s68, %s69
      %p73 = pneg %p67
      %p74 = scmp.eq.s32.totalorder %s9, 3
      %p75 = por %p73, %p74
      %p76 = scmp.ne.s32.totalorder %s68, %s71
      %p77 = scmp.eq.s32.totalorder %s9, 0
      %p78 = por %p76, %p77
      %p79 = scmp.ne.s32.totalorder %s68, %s71
      %p80 = scmp.eq.s32.totalorder %s14, 3
      %p81 = por %p79, %p80
      %p82 = scmp.ne.s32.totalorder %s71, %s72
      %p83 = scmp.eq.s32.totalorder %s14, 0
      %p84 = por %p82, %p83
      %p85 = scmp.ne.s32.totalorder %s71, %s72
      %p86 = scmp.eq.s32.totalorder %s15, 3
      %p87 = por %p85, %p86
      %p89 = scmp.ne.s32.totalorder %s72, %s88
      %p90 = scmp.eq.s32.totalorder %s15, 0
      %p91 = por %p89, %p90
      %s92 = ssub.s32 %s17, %s31
      %p93 = scmp.eq.s32.totalorder %s92, 0
      %s95 = sadd.s32 %s94, 1
      %s96 = scalar_select %p93, %s94, %s95
      %p99 = pneg %p93
      %p100 = scmp.eq.s32.totalorder %s9, 3
      %p101 = por %p99, %p100
      %p102 = scmp.ne.s32.totalorder %s94, %s97
      %p103 = scmp.eq.s32.totalorder %s9, 0
      %p104 = por %p102, %p103
      %p105 = scmp.ne.s32.totalorder %s94, %s97
      %p106 = scmp.eq.s32.totalorder %s14, 3
      %p107 = por %p105, %p106
      %p108 = scmp.ne.s32.totalorder %s97, %s98
      %p109 = scmp.eq.s32.totalorder %s14, 0
      %p110 = por %p108, %p109
      %p111 = scmp.ne.s32.totalorder %s97, %s98
      %p112 = scmp.eq.s32.totalorder %s15, 3
      %p113 = por %p111, %p112
      %p115 = scmp.ne.s32.totalorder %s98, %s114
      %p116 = scmp.eq.s32.totalorder %s15, 0
      %p117 = por %p115, %p116
      %s118 = ssub.s32 %s16, %s35
      %s119 = ssub.s32 %s17, %s31
      %s120 = sor.u32 %s118, %s119
      %p121 = scmp.eq.s32.totalorder %s120, 0
      %s123 = sadd.s32 %s122, 1
      %s124 = scalar_select %p121, %s122, %s123
      %p127 = pneg %p121
      %p128 = scmp.eq.s32.totalorder %s9, 3
      %p129 = por %p127, %p128
      %p130 = scmp.ne.s32.totalorder %s122, %s125
      %p131 = scmp.eq.s32.totalorder %s9, 0
      %p132 = por %p130, %p131
      %p133 = scmp.ne.s32.totalorder %s122, %s125
      %p134 = scmp.eq.s32.totalorder %s14, 3
      %p135 = por %p133, %p134
      %p136 = scmp.ne.s32.totalorder %s125, %s126
      %p137 = scmp.eq.s32.totalorder %s14, 0
      %p138 = por %p136, %p137
      %p139 = scmp.ne.s32.totalorder %s125, %s126
      %p140 = scmp.eq.s32.totalorder %s15, 3
      %p141 = por %p139, %p140
      %p143 = scmp.ne.s32.totalorder %s126, %s142
      %p144 = scmp.eq.s32.totalorder %s15, 0
      %p145 = por %p143, %p144
      %p146 = scmp.le.s32.totalorder 1, %s9
      %p147 = scmp.lt.s32.totalorder %s9, 5
      %p148 = pnand %p146, %p147
      %p149 = pneg %p148
      // Predicated region
      $region9: #{alexnet_forward.13} parent=5 // pred_check
        _
      $region10: #{alexnet_forward.13} parent=5 // pred_check_branch
        %151 = sbr.rel (%p148) target = $region12
      $region11: #{alexnet_forward.13} parent=5 // pred_region
        %s152 = ssub.s32 %s9, 1
        // Predicated region
        $region13: #{alexnet_forward.13} parent=11 // pred_check
          %p153 = pneg %p110
        $region14: #{alexnet_forward.13} parent=11 // pred_check_branch
          %155 = sbr.rel (%p153) target = $region16
        $region15: #{alexnet_forward.13} parent=11 // pred_region
          %s156 = smul.u32 2, %s20
          %p157 = scmp.lt.s32.totalorder %s156, 1
          %s158 = scalar_select %p157, %s156, 1
          %s159 = scalar_lea.vmem %s2, %s158
          %s160 = smul.u32 2, %s20
        $region16: #{alexnet_forward.13} parent=11 // pred_fallthru
          _
      $region12: #{alexnet_forward.13} parent=5 // pred_fallthru
        _
      %p161 = scmp.lt.s32.totalorder %s9, 4
      // Predicated region
      $region17: #{alexnet_forward.13} parent=5 // pred_check
        %p162 = pneg %p161
      $region18: #{alexnet_forward.13} parent=5 // pred_check_branch
        %164 = sbr.rel (%p162) target = $region20
      $region19: #{alexnet_forward.13} parent=5 // pred_region
        // Predicated region
        $region21: #{alexnet_forward.13} parent=19 // pred_check
          %p165 = pneg %p50
        $region22: #{alexnet_forward.13} parent=19 // pred_check_branch
          %167 = sbr.rel (%p165) target = $region24
        $region23: #{alexnet_forward.13} parent=19 // pred_region
          %s168 = sand.u32 %s40, 1
          %s169 = sand.u32 %s40, 1
          %s170 = smul.addr %s169, 208
          %s171 = scalar_lea.vmem [#allocation3], %s170
          %s172 = smul.u32 13, %s16
          %s173 = smul.u32 4, %s18
          %s174 = smul.addr %s172, 16
          %s175 = sadd.s32 %s173, %s174
          %s176 = smul.addr %s175, 4
          %s177 = scalar_lea.vmem %s0, %s176
          // Predicated region
          $region25: #{alexnet_forward.13} parent=23 // pred_check
            _
          $region26: #{alexnet_forward.13} parent=23 // pred_check_branch
            %179 = sbr.rel (0) target = $region28
          $region27: #{alexnet_forward.13} parent=23 // pred_region
            // Predicated region
            $region29: #{alexnet_forward.13} parent=27 // pred_check
              _
            $region30: #{alexnet_forward.13} parent=27 // pred_check_branch
              %181 = sbr.rel (0) target = $region32
            $region31: #{alexnet_forward.13} parent=27 // pred_region
              loop: start=0, step=1, limit=1
              $region33: #{alexnet_forward.13} parent=31 // loop_pre_header
                _
              $region34: #{alexnet_forward.13} parent=31 // loop_header
                %s183 = sphi 0, %s187
                %p184 = scmp.ge.s32.totalorder %s183, 1
                %s188 = sphi %s177, %s177
                %s189 = sphi %s171, %s171
              $region35: #{alexnet_forward.13} parent=31 // loop_header_branch
                %186 = sbr.rel (%p184) target = $region39
              $region36: #{alexnet_forward.13} parent=31 // loop_body
                %v190 = vld [vmem:[%s188] sm:$0xff]
                %191 = vst [vmem:[%s189] sm:$0xff] %v190
                %v192 = vld [vmem:[%s188 + $0x8] sm:$0xff]
                %193 = vst [vmem:[%s189 + $0x8] sm:$0xff] %v192
                %v194 = vld [vmem:[%s188 + $0x40] sm:$0xff]
                %195 = vst [vmem:[%s189 + $0x10] sm:$0xff] %v194
                %v196 = vld [vmem:[%s188 + $0x48] sm:$0xff]
                %197 = vst [vmem:[%s189 + $0x18] sm:$0xff] %v196
                %v198 = vld [vmem:[%s188 + $0x80] sm:$0xff]
                %199 = vst [vmem:[%s189 + $0x20] sm:$0xff] %v198
                %v200 = vld [vmem:[%s188 + $0x88] sm:$0xff]
                %201 = vst [vmem:[%s189 + $0x28] sm:$0xff] %v200
                %v202 = vld [vmem:[%s188 + $0xc0] sm:$0xff]
                %203 = vst [vmem:[%s189 + $0x30] sm:$0xff] %v202
                %v204 = vld [vmem:[%s188 + $0xc8] sm:$0xff]
                %205 = vst [vmem:[%s189 + $0x38] sm:$0xff] %v204
                %v206 = vld [vmem:[%s188 + $0x100] sm:$0xff]
                %207 = vst [vmem:[%s189 + $0x40] sm:$0xff] %v206
                %v208 = vld [vmem:[%s188 + $0x108] sm:$0xff]
                %209 = vst [vmem:[%s189 + $0x48] sm:$0xff] %v208
                %v210 = vld [vmem:[%s188 + $0x140] sm:$0xff]
                %211 = vst [vmem:[%s189 + $0x50] sm:$0xff] %v210
                %v212 = vld [vmem:[%s188 + $0x148] sm:$0xff]
                %213 = vst [vmem:[%s189 + $0x58] sm:$0xff] %v212
                %v214 = vld [vmem:[%s188 + $0x180] sm:$0xff]
                %215 = vst [vmem:[%s189 + $0x60] sm:$0xff] %v214
                %v216 = vld [vmem:[%s188 + $0x188] sm:$0xff]
                %217 = vst [vmem:[%s189 + $0x68] sm:$0xff] %v216
                %v218 = vld [vmem:[%s188 + $0x1c0] sm:$0xff]
                %219 = vst [vmem:[%s189 + $0x70] sm:$0xff] %v218
                %v220 = vld [vmem:[%s188 + $0x1c8] sm:$0xff]
                %221 = vst [vmem:[%s189 + $0x78] sm:$0xff] %v220
                %v222 = vld [vmem:[%s188 + $0x200] sm:$0xff]
                %223 = vst [vmem:[%s189 + $0x80] sm:$0xff] %v222
                %v224 = vld [vmem:[%s188 + $0x208] sm:$0xff]
                %225 = vst [vmem:[%s189 + $0x88] sm:$0xff] %v224
                %v226 = vld [vmem:[%s188 + $0x240] sm:$0xff]
                %227 = vst [vmem:[%s189 + $0x90] sm:$0xff] %v226
                %v228 = vld [vmem:[%s188 + $0x248] sm:$0xff]
                %229 = vst [vmem:[%s189 + $0x98] sm:$0xff] %v228
                %v230 = vld [vmem:[%s188 + $0x280] sm:$0xff]
                %231 = vst [vmem:[%s189 + $0xa0] sm:$0xff] %v230
                %v232 = vld [vmem:[%s188 + $0x288] sm:$0xff]
                %233 = vst [vmem:[%s189 + $0xa8] sm:$0xff] %v232
                %v234 = vld [vmem:[%s188 + $0x2c0] sm:$0xff]
                %235 = vst [vmem:[%s189 + $0xb0] sm:$0xff] %v234
                %v236 = vld [vmem:[%s188 + $0x2c8] sm:$0xff]
                %237 = vst [vmem:[%s189 + $0xb8] sm:$0xff] %v236
                %v238 = vld [vmem:[%s188 + $0x300] sm:$0xff]
                %239 = vst [vmem:[%s189 + $0xc0] sm:$0xff] %v238
                %v240 = vld [vmem:[%s188 + $0x308] sm:$0xff]
                %241 = vst [vmem:[%s189 + $0xc8] sm:$0xff] %v240
              $region37: #{alexnet_forward.13} parent=31 // loop_footer
                %s187 = sadd.s32 1, %s183
              $region38: #{alexnet_forward.13} parent=31 // loop_footer_branch
                %182 = sbr.rel target = $region34
              $region39: #{alexnet_forward.13} parent=31 // loop_exit
                _
            $region32: #{alexnet_forward.13} parent=27 // pred_fallthru
              _
            // Predicated region
            $region40: #{alexnet_forward.13} parent=27 // pred_check
              _
            $region41: #{alexnet_forward.13} parent=27 // pred_check_branch
              %243 = sbr.rel target = $region43
            $region42: #{alexnet_forward.13} parent=27 // pred_region
              _
            $region43: #{alexnet_forward.13} parent=27 // pred_fallthru
              _
          $region28: #{alexnet_forward.13} parent=23 // pred_fallthru
            _
          %244 = vnop
        $region24: #{alexnet_forward.13} parent=19 // pred_fallthru
          _
        // Predicated region
        $region44: #{alexnet_forward.13} parent=19 // pred_check
          %p245 = pneg %p78
        $region45: #{alexnet_forward.13} parent=19 // pred_check_branch
          %247 = sbr.rel (%p245) target = $region47
        $region46: #{alexnet_forward.13} parent=19 // pred_region
          %s248 = smul.u32 64, %s18
          %s249 = smul.u32 2, %s17
          %p250 = scmp.lt.s32.totalorder %s248, 255
          %s251 = scalar_select %p250, %s248, 255
          %p252 = scmp.lt.s32.totalorder %s249, 1
          %s253 = scalar_select %p252, %s249, 1
          %s254 = smul.addr %s251, 2
          %s255 = sadd.s32 %s253, %s254
          %s256 = smul.addr %s255, 4
          %s257 = scalar_lea.vmem %s1, %s256
          %s258 = smul.u32 64, %s18
          %s259 = smul.u32 2, %s17
        $region47: #{alexnet_forward.13} parent=19 // pred_fallthru
          _
      $region20: #{alexnet_forward.13} parent=5 // pred_fallthru
        _
      %p260 = scmp.le.s32.totalorder 1, %s9
      %p261 = scmp.lt.s32.totalorder %s9, 5
      %p262 = pnand %p260, %p261
      %p263 = pneg %p262
      // Predicated region
      $region48: #{alexnet_forward.13} parent=5 // pred_check
        _
      $region49: #{alexnet_forward.13} parent=5 // pred_check_branch
        %265 = sbr.rel (%p262) target = $region51
      $region50: #{alexnet_forward.13} parent=5 // pred_region
        %s266 = ssub.s32 %s9, 1
        %s267 = sand.u32 %s43, 1
        %s268 = sand.u32 %s43, 1
        %s269 = smul.addr %s268, 208
        %s270 = scalar_lea.vmem [#allocation3], %s269
        // Predicated region
        $region52: #{alexnet_forward.13} parent=50 // pred_check
          %p271 = pneg %p56
        $region53: #{alexnet_forward.13} parent=50 // pred_check_branch
          %273 = sbr.rel (%p271) target = $region55
        $region54: #{alexnet_forward.13} parent=50 // pred_region
          _
        $region55: #{alexnet_forward.13} parent=50 // pred_fallthru
          _
        %s274 = sand.u32 %s43, 1
        %s275 = sand.u32 %s43, 1
        %s276 = smul.addr %s275, 208
        %s277 = scalar_lea.vmem [#allocation3], %s276
        %p278 = pneg %p56
        %p279 = pneg %p53
        %s280 = smul.u32 64, %s21
        %s281 = smul.u32 2, %s20
        %p282 = scmp.lt.s32.totalorder %s280, 255
        %s283 = scalar_select %p282, %s280, 255
        %p284 = scmp.lt.s32.totalorder %s281, 1
        %s285 = scalar_select %p284, %s281, 1
        %s286 = smul.addr %s283, 2
        %s287 = sadd.s32 %s285, %s286
        %s288 = smul.addr %s287, 4
        %s289 = scalar_lea.vmem %s1, %s288
        %p290 = pneg %p84
        %p291 = pneg %p81
        %s292 = smul.u32 2, %s20
        %p293 = scmp.lt.s32.totalorder %s292, 1
        %s294 = scalar_select %p293, %s292, 1
        %s295 = scalar_lea.vmem %s2, %s294
        %p296 = pneg %p110
        %p297 = pneg %p107
        %p298 = pneg %p138
        %p299 = pneg %p135
        %s300 = smul.u32 13, %s19
        %s301 = smul.u32 2, %s20
        %p302 = scmp.lt.s32.totalorder %s300, 12
        %s303 = scalar_select %p302, %s300, 12
        %p304 = scmp.lt.s32.totalorder %s301, 1
        %s305 = scalar_select %p304, %s301, 1
        %s306 = smul.addr %s303, 2
        %s307 = sadd.s32 %s305, %s306
        %s308 = smul.addr %s307, 4
        %s309 = scalar_lea.vmem %s3, %s308
        %s310 = smul.u32 13, %s19
        %s311 = smul.u32 4, %s21
        %s312 = smul.u32 64, %s21
        %s313 = smul.u32 2, %s20
        %p314 = scmp.lt.s32.totalorder %s312, 255
        %s315 = scalar_select %p314, %s312, 255
        %p316 = scmp.lt.s32.totalorder %s313, 1
        %s317 = scalar_select %p316, %s313, 1
        %s318 = smul.addr %s315, 2
        %s319 = sadd.s32 %s317, %s318
        %s320 = smul.addr %s319, 4
        %s321 = scalar_lea.vmem %s1, %s320
        %s322 = smul.u32 64, %s21
        %s323 = smul.u32 2, %s20
        %s324 = smul.u32 2, %s20
        %p325 = scmp.lt.s32.totalorder %s324, 1
        %s326 = scalar_select %p325, %s324, 1
        %s327 = scalar_lea.vmem %s2, %s326
        %s328 = smul.u32 2, %s20
        %s329 = smul.u32 13, %s19
        %s330 = smul.u32 2, %s20
        %p331 = scmp.lt.s32.totalorder %s329, 12
        %s332 = scalar_select %p331, %s329, 12
        %p333 = scmp.lt.s32.totalorder %s330, 1
        %s334 = scalar_select %p333, %s330, 1
        %s335 = smul.addr %s332, 2
        %s336 = sadd.s32 %s334, %s335
        %s337 = smul.addr %s336, 4
        %s338 = scalar_lea.vmem %s3, %s337
        %s339 = smul.u32 13, %s19
        %s340 = smul.u32 2, %s20
        %p341 = scmp.eq.s32.totalorder %s21, 0
        // Predicated region
        $region56: #{alexnet_forward.13} parent=50 // pred_check
          %p342 = pneg %p341
        $region57: #{alexnet_forward.13} parent=50 // pred_check_branch
          %344 = sbr.rel (%p342) target = $region59
        $region58: #{alexnet_forward.13} parent=50 // pred_region
          %345 = vst [vmem:[#allocation2] sm:$0xff] 0.0
          %346 = vst [vmem:[#allocation2 + $0x8] sm:$0xff] 0.0
          %347 = vst [vmem:[#allocation2 + $0x10] sm:$0xff] 0.0
          %348 = vst [vmem:[#allocation2 + $0x18] sm:$0xff] 0.0
          %349 = vst [vmem:[#allocation2 + $0x20] sm:$0xff] 0.0
          %350 = vst [vmem:[#allocation2 + $0x28] sm:$0xff] 0.0
          %351 = vst [vmem:[#allocation2 + $0x30] sm:$0xff] 0.0
          %352 = vst [vmem:[#allocation2 + $0x38] sm:$0xff] 0.0
          %353 = vst [vmem:[#allocation2 + $0x40] sm:$0xff] 0.0
          %354 = vst [vmem:[#allocation2 + $0x48] sm:$0xff] 0.0
          %355 = vst [vmem:[#allocation2 + $0x50] sm:$0xff] 0.0
          %356 = vst [vmem:[#allocation2 + $0x58] sm:$0xff] 0.0
          %357 = vst [vmem:[#allocation2 + $0x60] sm:$0xff] 0.0
          %358 = vst [vmem:[#allocation2 + $0x68] sm:$0xff] 0.0
          %359 = vst [vmem:[#allocation2 + $0x70] sm:$0xff] 0.0
          %360 = vst [vmem:[#allocation2 + $0x78] sm:$0xff] 0.0
          %361 = vst [vmem:[#allocation2 + $0x80] sm:$0xff] 0.0
          %362 = vst [vmem:[#allocation2 + $0x88] sm:$0xff] 0.0
          %363 = vst [vmem:[#allocation2 + $0x90] sm:$0xff] 0.0
          %364 = vst [vmem:[#allocation2 + $0x98] sm:$0xff] 0.0
          %365 = vst [vmem:[#allocation2 + $0xa0] sm:$0xff] 0.0
          %366 = vst [vmem:[#allocation2 + $0xa8] sm:$0xff] 0.0
          %367 = vst [vmem:[#allocation2 + $0xb0] sm:$0xff] 0.0
          %368 = vst [vmem:[#allocation2 + $0xb8] sm:$0xff] 0.0
          %369 = vst [vmem:[#allocation2 + $0xc0] sm:$0xff] 0.0
          %370 = vst [vmem:[#allocation2 + $0xc8] sm:$0xff] 0.0
        $region59: #{alexnet_forward.13} parent=50 // pred_fallthru
          _
        %v371 = vld [vmem:[#allocation2] sm:$0xff]
        %v372 = vld [vmem:[#allocation2 + $0x8] sm:$0xff]
        %v373 = vld [vmem:[#allocation2 + $0x10] sm:$0xff]
        %v374 = vld [vmem:[#allocation2 + $0x18] sm:$0xff]
        %v375 = vld [vmem:[#allocation2 + $0x20] sm:$0xff]
        %v376 = vld [vmem:[#allocation2 + $0x28] sm:$0xff]
        %v377 = vld [vmem:[#allocation2 + $0x30] sm:$0xff]
        %v378 = vld [vmem:[#allocation2 + $0x38] sm:$0xff]
        %v379 = vld [vmem:[#allocation2 + $0x40] sm:$0xff]
        %v380 = vld [vmem:[#allocation2 + $0x48] sm:$0xff]
        %v381 = vld [vmem:[#allocation2 + $0x50] sm:$0xff]
        %v382 = vld [vmem:[#allocation2 + $0x58] sm:$0xff]
        %v383 = vld [vmem:[#allocation2 + $0x60] sm:$0xff]
        %v384 = vld [vmem:[#allocation2 + $0x68] sm:$0xff]
        %v385 = vld [vmem:[#allocation2 + $0x70] sm:$0xff]
        %v386 = vld [vmem:[#allocation2 + $0x78] sm:$0xff]
        %v387 = vld [vmem:[#allocation2 + $0x80] sm:$0xff]
        %v388 = vld [vmem:[#allocation2 + $0x88] sm:$0xff]
        %v389 = vld [vmem:[#allocation2 + $0x90] sm:$0xff]
        %v390 = vld [vmem:[#allocation2 + $0x98] sm:$0xff]
        %v391 = vld [vmem:[#allocation2 + $0xa0] sm:$0xff]
        %v392 = vld [vmem:[#allocation2 + $0xa8] sm:$0xff]
        %v393 = vld [vmem:[#allocation2 + $0xb0] sm:$0xff]
        %v394 = vld [vmem:[#allocation2 + $0xb8] sm:$0xff]
        %v395 = vld [vmem:[#allocation2 + $0xc0] sm:$0xff]
        %v396 = vld [vmem:[#allocation2 + $0xc8] sm:$0xff]
        %v397 = vld [vmem:[%s270] sm:$0xff]
        %v398 = vld [vmem:[%s270 + $0x8] sm:$0xff]
        %v399 = vld [vmem:[%s270 + $0x10] sm:$0xff]
        %v400 = vld [vmem:[%s270 + $0x18] sm:$0xff]
        %v401 = vld [vmem:[%s270 + $0x20] sm:$0xff]
        %v402 = vld [vmem:[%s270 + $0x28] sm:$0xff]
        %v403 = vld [vmem:[%s270 + $0x30] sm:$0xff]
        %v404 = vld [vmem:[%s270 + $0x38] sm:$0xff]
        %v405 = vld [vmem:[%s270 + $0x40] sm:$0xff]
        %v406 = vld [vmem:[%s270 + $0x48] sm:$0xff]
        %v407 = vld [vmem:[%s270 + $0x50] sm:$0xff]
        %v408 = vld [vmem:[%s270 + $0x58] sm:$0xff]
        %v409 = vld [vmem:[%s270 + $0x60] sm:$0xff]
        %v410 = vld [vmem:[%s270 + $0x68] sm:$0xff]
        %v411 = vld [vmem:[%s270 + $0x70] sm:$0xff]
        %v412 = vld [vmem:[%s270 + $0x78] sm:$0xff]
        %v413 = vld [vmem:[%s270 + $0x80] sm:$0xff]
        %v414 = vld [vmem:[%s270 + $0x88] sm:$0xff]
        %v415 = vld [vmem:[%s270 + $0x90] sm:$0xff]
        %v416 = vld [vmem:[%s270 + $0x98] sm:$0xff]
        %v417 = vld [vmem:[%s270 + $0xa0] sm:$0xff]
        %v418 = vld [vmem:[%s270 + $0xa8] sm:$0xff]
        %v419 = vld [vmem:[%s270 + $0xb0] sm:$0xff]
        %v420 = vld [vmem:[%s270 + $0xb8] sm:$0xff]
        %v421 = vld [vmem:[%s270 + $0xc0] sm:$0xff]
        %v422 = vld [vmem:[%s270 + $0xc8] sm:$0xff]
        %v423 = vld [vmem:[%s321] sm:$0xff]
        %v424 = vld [vmem:[%s321 + $0x8] sm:$0xff]
        %v425 = vld [vmem:[%s321 + $0x10] sm:$0xff]
        %v426 = vld [vmem:[%s321 + $0x18] sm:$0xff]
        %v427 = vld [vmem:[%s321 + $0x20] sm:$0xff]
        %v428 = vld [vmem:[%s321 + $0x28] sm:$0xff]
        %v429 = vld [vmem:[%s321 + $0x30] sm:$0xff]
        %v430 = vld [vmem:[%s321 + $0x38] sm:$0xff]
        %v431 = vld [vmem:[%s321 + $0x40] sm:$0xff]
        %v432 = vld [vmem:[%s321 + $0x48] sm:$0xff]
        %v433 = vld [vmem:[%s321 + $0x50] sm:$0xff]
        %v434 = vld [vmem:[%s321 + $0x58] sm:$0xff]
        %v435 = vld [vmem:[%s321 + $0x60] sm:$0xff]
        %v436 = vld [vmem:[%s321 + $0x68] sm:$0xff]
        %v437 = vld [vmem:[%s321 + $0x70] sm:$0xff]
        %v438 = vld [vmem:[%s321 + $0x78] sm:$0xff]
        %v439 = vld [vmem:[%s321 + $0x80] sm:$0xff]
        %v440 = vld [vmem:[%s321 + $0x88] sm:$0xff]
        %v441 = vld [vmem:[%s321 + $0x90] sm:$0xff]
        %v442 = vld [vmem:[%s321 + $0x98] sm:$0xff]
        %v443 = vld [vmem:[%s321 + $0xa0] sm:$0xff]
        %v444 = vld [vmem:[%s321 + $0xa8] sm:$0xff]
        %v445 = vld [vmem:[%s321 + $0xb0] sm:$0xff]
        %v446 = vld [vmem:[%s321 + $0xb8] sm:$0xff]
        %v447 = vld [vmem:[%s321 + $0xc0] sm:$0xff]
        %v448 = vld [vmem:[%s321 + $0xc8] sm:$0xff]
        %v449 = vld [vmem:[%s321 + $0xd0] sm:$0xff]
        %v450 = vld [vmem:[%s321 + $0xd8] sm:$0xff]
        %v451 = vld [vmem:[%s321 + $0xe0] sm:$0xff]
        %v452 = vld [vmem:[%s321 + $0xe8] sm:$0xff]
        %v453 = vld [vmem:[%s321 + $0xf0] sm:$0xff]
        %v454 = vld [vmem:[%s321 + $0xf8] sm:$0xff]
        %v455 = vld [vmem:[%s321 + $0x100] sm:$0xff]
        %v456 = vld [vmem:[%s321 + $0x108] sm:$0xff]
        %v457 = vld [vmem:[%s321 + $0x110] sm:$0xff]
        %v458 = vld [vmem:[%s321 + $0x118] sm:$0xff]
        %v459 = vld [vmem:[%s321 + $0x120] sm:$0xff]
        %v460 = vld [vmem:[%s321 + $0x128] sm:$0xff]
        %v461 = vld [vmem:[%s321 + $0x130] sm:$0xff]
        %v462 = vld [vmem:[%s321 + $0x138] sm:$0xff]
        %v463 = vld [vmem:[%s321 + $0x140] sm:$0xff]
        %v464 = vld [vmem:[%s321 + $0x148] sm:$0xff]
        %v465 = vld [vmem:[%s321 + $0x150] sm:$0xff]
        %v466 = vld [vmem:[%s321 + $0x158] sm:$0xff]
        %v467 = vld [vmem:[%s321 + $0x160] sm:$0xff]
        %v468 = vld [vmem:[%s321 + $0x168] sm:$0xff]
        %v469 = vld [vmem:[%s321 + $0x170] sm:$0xff]
        %v470 = vld [vmem:[%s321 + $0x178] sm:$0xff]
        %v471 = vld [vmem:[%s321 + $0x180] sm:$0xff]
        %v472 = vld [vmem:[%s321 + $0x188] sm:$0xff]
        %v473 = vld [vmem:[%s321 + $0x190] sm:$0xff]
        %v474 = vld [vmem:[%s321 + $0x198] sm:$0xff]
        %v475 = vld [vmem:[%s321 + $0x1a0] sm:$0xff]
        %v476 = vld [vmem:[%s321 + $0x1a8] sm:$0xff]
        %v477 = vld [vmem:[%s321 + $0x1b0] sm:$0xff]
        %v478 = vld [vmem:[%s321 + $0x1b8] sm:$0xff]
        %v479 = vld [vmem:[%s321 + $0x1c0] sm:$0xff]
        %v480 = vld [vmem:[%s321 + $0x1c8] sm:$0xff]
        %v481 = vld [vmem:[%s321 + $0x1d0] sm:$0xff]
        %v482 = vld [vmem:[%s321 + $0x1d8] sm:$0xff]
        %v483 = vld [vmem:[%s321 + $0x1e0] sm:$0xff]
        %v484 = vld [vmem:[%s321 + $0x1e8] sm:$0xff]
        %v485 = vld [vmem:[%s321 + $0x1f0] sm:$0xff]
        %v486 = vld [vmem:[%s321 + $0x1f8] sm:$0xff]
        %v513 = vunpack.c.l.b16 %v397
        %v514 = vunpack.c.h.b16 %v397
        %v515 = vunpack.c.l.b16 %v398
        %v516 = vunpack.c.h.b16 %v398
        %v517 = vunpack.c.l.b16 %v399
        %v518 = vunpack.c.h.b16 %v399
        %v519 = vunpack.c.l.b16 %v400
        %v520 = vunpack.c.h.b16 %v400
        %v521 = vunpack.c.l.b16 %v401
        %v522 = vunpack.c.h.b16 %v401
        %v523 = vunpack.c.l.b16 %v402
        %v524 = vunpack.c.h.b16 %v402
        %v525 = vunpack.c.l.b16 %v403
        %v526 = vunpack.c.h.b16 %v403
        %v527 = vunpack.c.l.b16 %v404
        %v528 = vunpack.c.h.b16 %v404
        %v529 = vunpack.c.l.b16 %v405
        %v530 = vunpack.c.h.b16 %v405
        %v531 = vunpack.c.l.b16 %v406
        %v532 = vunpack.c.h.b16 %v406
        %v533 = vunpack.c.l.b16 %v407
        %v534 = vunpack.c.h.b16 %v407
        %v535 = vunpack.c.l.b16 %v408
        %v536 = vunpack.c.h.b16 %v408
        %v537 = vunpack.c.l.b16 %v409
        %v538 = vunpack.c.h.b16 %v409
        %v539 = vunpack.c.l.b16 %v410
        %v540 = vunpack.c.h.b16 %v410
        %v541 = vunpack.c.l.b16 %v411
        %v542 = vunpack.c.h.b16 %v411
        %v543 = vunpack.c.l.b16 %v412
        %v544 = vunpack.c.h.b16 %v412
        %v545 = vunpack.c.l.b16 %v413
        %v546 = vunpack.c.h.b16 %v413
        %v547 = vunpack.c.l.b16 %v414
        %v548 = vunpack.c.h.b16 %v414
        %v549 = vunpack.c.l.b16 %v415
        %v550 = vunpack.c.h.b16 %v415
        %v551 = vunpack.c.l.b16 %v416
        %v552 = vunpack.c.h.b16 %v416
        %v553 = vunpack.c.l.b16 %v417
        %v554 = vunpack.c.h.b16 %v417
        %v555 = vunpack.c.l.b16 %v418
        %v556 = vunpack.c.h.b16 %v418
        %v557 = vunpack.c.l.b16 %v419
        %v558 = vunpack.c.h.b16 %v419
        %v559 = vunpack.c.l.b16 %v420
        %v560 = vunpack.c.h.b16 %v420
        %v561 = vunpack.c.l.b16 %v421
        %v562 = vunpack.c.h.b16 %v421
        %v563 = vunpack.c.l.b16 %v422
        %v564 = vunpack.c.h.b16 %v422
        %v565 = vpack.c.b16 %v517, %v513
        %v566 = vpack.c.b16 %v518, %v514
        %v567 = vpack.c.b16 %v519, %v515
        %v568 = vpack.c.b16 %v520, %v516
        %v569 = vpack.c.b16 %v525, %v521
        %v570 = vpack.c.b16 %v526, %v522
        %v571 = vpack.c.b16 %v527, %v523
        %v572 = vpack.c.b16 %v528, %v524
        %v573 = vpack.c.b16 %v533, %v529
        %v574 = vpack.c.b16 %v534, %v530
        %v575 = vpack.c.b16 %v535, %v531
        %v576 = vpack.c.b16 %v536, %v532
        %v577 = vpack.c.b16 %v541, %v537
        %v578 = vpack.c.b16 %v542, %v538
        %v579 = vpack.c.b16 %v543, %v539
        %v580 = vpack.c.b16 %v544, %v540
        %v581 = vpack.c.b16 %v549, %v545
        %v582 = vpack.c.b16 %v550, %v546
        %v583 = vpack.c.b16 %v551, %v547
        %v584 = vpack.c.b16 %v552, %v548
        %v585 = vpack.c.b16 %v557, %v553
        %v586 = vpack.c.b16 %v558, %v554
        %v587 = vpack.c.b16 %v559, %v555
        %v588 = vpack.c.b16 %v560, %v556
        %v589 = vpack.c.b16 %v561, %v561
        %v590 = vpack.c.b16 %v562, %v562
        %v591 = vpack.c.b16 %v563, %v563
        %v592 = vpack.c.b16 %v564, %v564
        %v685 = vunpack.c.l.b16 %v423
        %v686 = vunpack.c.h.b16 %v423
        %v687 = vunpack.c.l.b16 %v424
        %v688 = vunpack.c.h.b16 %v424
        %v689 = vunpack.c.l.b16 %v425
        %v690 = vunpack.c.h.b16 %v425
        %v691 = vunpack.c.l.b16 %v426
        %v692 = vunpack.c.h.b16 %v426
        %v693 = vunpack.c.l.b16 %v427
        %v694 = vunpack.c.h.b16 %v427
        %v695 = vunpack.c.l.b16 %v428
        %v696 = vunpack.c.h.b16 %v428
        %v697 = vunpack.c.l.b16 %v429
        %v698 = vunpack.c.h.b16 %v429
        %v699 = vunpack.c.l.b16 %v430
        %v700 = vunpack.c.h.b16 %v430
        %v701 = vunpack.c.l.b16 %v431
        %v702 = vunpack.c.h.b16 %v431
        %v703 = vunpack.c.l.b16 %v432
        %v704 = vunpack.c.h.b16 %v432
        %v705 = vunpack.c.l.b16 %v433
        %v706 = vunpack.c.h.b16 %v433
        %v707 = vunpack.c.l.b16 %v434
        %v708 = vunpack.c.h.b16 %v434
        %v709 = vunpack.c.l.b16 %v435
        %v710 = vunpack.c.h.b16 %v435
        %v711 = vunpack.c.l.b16 %v436
        %v712 = vunpack.c.h.b16 %v436
        %v713 = vunpack.c.l.b16 %v437
        %v714 = vunpack.c.h.b16 %v437
        %v715 = vunpack.c.l.b16 %v438
        %v716 = vunpack.c.h.b16 %v438
        %v717 = vunpack.c.l.b16 %v439
        %v718 = vunpack.c.h.b16 %v439
        %v719 = vunpack.c.l.b16 %v440
        %v720 = vunpack.c.h.b16 %v440
        %v721 = vunpack.c.l.b16 %v441
        %v722 = vunpack.c.h.b16 %v441
        %v723 = vunpack.c.l.b16 %v442
        %v724 = vunpack.c.h.b16 %v442
        %v725 = vunpack.c.l.b16 %v443
        %v726 = vunpack.c.h.b16 %v443
        %v727 = vunpack.c.l.b16 %v444
        %v728 = vunpack.c.h.b16 %v444
        %v729 = vunpack.c.l.b16 %v445
        %v730 = vunpack.c.h.b16 %v445
        %v731 = vunpack.c.l.b16 %v446
        %v732 = vunpack.c.h.b16 %v446
        %v733 = vunpack.c.l.b16 %v447
        %v734 = vunpack.c.h.b16 %v447
        %v735 = vunpack.c.l.b16 %v448
        %v736 = vunpack.c.h.b16 %v448
        %v737 = vunpack.c.l.b16 %v449
        %v738 = vunpack.c.h.b16 %v449
        %v739 = vunpack.c.l.b16 %v450
        %v740 = vunpack.c.h.b16 %v450
        %v741 = vunpack.c.l.b16 %v451
        %v742 = vunpack.c.h.b16 %v451
        %v743 = vunpack.c.l.b16 %v452
        %v744 = vunpack.c.h.b16 %v452
        %v745 = vunpack.c.l.b16 %v453
        %v746 = vunpack.c.h.b16 %v453
        %v747 = vunpack.c.l.b16 %v454
        %v748 = vunpack.c.h.b16 %v454
        %v749 = vunpack.c.l.b16 %v455
        %v750 = vunpack.c.h.b16 %v455
        %v751 = vunpack.c.l.b16 %v456
        %v752 = vunpack.c.h.b16 %v456
        %v753 = vunpack.c.l.b16 %v457
        %v754 = vunpack.c.h.b16 %v457
        %v755 = vunpack.c.l.b16 %v458
        %v756 = vunpack.c.h.b16 %v458
        %v757 = vunpack.c.l.b16 %v459
        %v758 = vunpack.c.h.b16 %v459
        %v759 = vunpack.c.l.b16 %v460
        %v760 = vunpack.c.h.b16 %v460
        %v761 = vunpack.c.l.b16 %v461
        %v762 = vunpack.c.h.b16 %v461
        %v763 = vunpack.c.l.b16 %v462
        %v764 = vunpack.c.h.b16 %v462
        %v765 = vunpack.c.l.b16 %v463
        %v766 = vunpack.c.h.b16 %v463
        %v767 = vunpack.c.l.b16 %v464
        %v768 = vunpack.c.h.b16 %v464
        %v769 = vunpack.c.l.b16 %v465
        %v770 = vunpack.c.h.b16 %v465
        %v771 = vunpack.c.l.b16 %v466
        %v772 = vunpack.c.h.b16 %v466
        %v773 = vunpack.c.l.b16 %v467
        %v774 = vunpack.c.h.b16 %v467
        %v775 = vunpack.c.l.b16 %v468
        %v776 = vunpack.c.h.b16 %v468
        %v777 = vunpack.c.l.b16 %v469
        %v778 = vunpack.c.h.b16 %v469
        %v779 = vunpack.c.l.b16 %v470
        %v780 = vunpack.c.h.b16 %v470
        %v781 = vunpack.c.l.b16 %v471
        %v782 = vunpack.c.h.b16 %v471
        %v783 = vunpack.c.l.b16 %v472
        %v784 = vunpack.c.h.b16 %v472
        %v785 = vunpack.c.l.b16 %v473
        %v786 = vunpack.c.h.b16 %v473
        %v787 = vunpack.c.l.b16 %v474
        %v788 = vunpack.c.h.b16 %v474
        %v789 = vunpack.c.l.b16 %v475
        %v790 = vunpack.c.h.b16 %v475
        %v791 = vunpack.c.l.b16 %v476
        %v792 = vunpack.c.h.b16 %v476
        %v793 = vunpack.c.l.b16 %v477
        %v794 = vunpack.c.h.b16 %v477
        %v795 = vunpack.c.l.b16 %v478
        %v796 = vunpack.c.h.b16 %v478
        %v797 = vunpack.c.l.b16 %v479
        %v798 = vunpack.c.h.b16 %v479
        %v799 = vunpack.c.l.b16 %v480
        %v800 = vunpack.c.h.b16 %v480
        %v801 = vunpack.c.l.b16 %v481
        %v802 = vunpack.c.h.b16 %v481
        %v803 = vunpack.c.l.b16 %v482
        %v804 = vunpack.c.h.b16 %v482
        %v805 = vunpack.c.l.b16 %v483
        %v806 = vunpack.c.h.b16 %v483
        %v807 = vunpack.c.l.b16 %v484
        %v808 = vunpack.c.h.b16 %v484
        %v809 = vunpack.c.l.b16 %v485
        %v810 = vunpack.c.h.b16 %v485
        %v811 = vunpack.c.l.b16 %v486
        %v812 = vunpack.c.h.b16 %v486
        %v813 = vpack.c.b16 %v687, %v685
        %v814 = vpack.c.b16 %v688, %v686
        %v815 = vpack.c.b16 %v691, %v689
        %v816 = vpack.c.b16 %v692, %v690
        %v817 = vpack.c.b16 %v695, %v693
        %v818 = vpack.c.b16 %v696, %v694
        %v819 = vpack.c.b16 %v699, %v697
        %v820 = vpack.c.b16 %v700, %v698
        %v821 = vpack.c.b16 %v703, %v701
        %v822 = vpack.c.b16 %v704, %v702
        %v823 = vpack.c.b16 %v707, %v705
        %v824 = vpack.c.b16 %v708, %v706
        %v825 = vpack.c.b16 %v711, %v709
        %v826 = vpack.c.b16 %v712, %v710
        %v827 = vpack.c.b16 %v715, %v713
        %v828 = vpack.c.b16 %v716, %v714
        %v829 = vpack.c.b16 %v719, %v717
        %v830 = vpack.c.b16 %v720, %v718
        %v831 = vpack.c.b16 %v723, %v721
        %v832 = vpack.c.b16 %v724, %v722
        %v833 = vpack.c.b16 %v727, %v725
        %v834 = vpack.c.b16 %v728, %v726
        %v835 = vpack.c.b16 %v731, %v729
        %v836 = vpack.c.b16 %v732, %v730
        %v837 = vpack.c.b16 %v735, %v733
        %v838 = vpack.c.b16 %v736, %v734
        %v839 = vpack.c.b16 %v739, %v737
        %v840 = vpack.c.b16 %v740, %v738
        %v841 = vpack.c.b16 %v743, %v741
        %v842 = vpack.c.b16 %v744, %v742
        %v843 = vpack.c.b16 %v747, %v745
        %v844 = vpack.c.b16 %v748, %v746
        %v845 = vpack.c.b16 %v751, %v749
        %v846 = vpack.c.b16 %v752, %v750
        %v847 = vpack.c.b16 %v755, %v753
        %v848 = vpack.c.b16 %v756, %v754
        %v849 = vpack.c.b16 %v759, %v757
        %v850 = vpack.c.b16 %v760, %v758
        %v851 = vpack.c.b16 %v763, %v761
        %v852 = vpack.c.b16 %v764, %v762
        %v853 = vpack.c.b16 %v767, %v765
        %v854 = vpack.c.b16 %v768, %v766
        %v855 = vpack.c.b16 %v771, %v769
        %v856 = vpack.c.b16 %v772, %v770
        %v857 = vpack.c.b16 %v775, %v773
        %v858 = vpack.c.b16 %v776, %v774
        %v859 = vpack.c.b16 %v779, %v777
        %v860 = vpack.c.b16 %v780, %v778
        %v861 = vpack.c.b16 %v783, %v781
        %v862 = vpack.c.b16 %v784, %v782
        %v863 = vpack.c.b16 %v787, %v785
        %v864 = vpack.c.b16 %v788, %v786
        %v865 = vpack.c.b16 %v791, %v789
        %v866 = vpack.c.b16 %v792, %v790
        %v867 = vpack.c.b16 %v795, %v793
        %v868 = vpack.c.b16 %v796, %v794
        %v869 = vpack.c.b16 %v799, %v797
        %v870 = vpack.c.b16 %v800, %v798
        %v871 = vpack.c.b16 %v803, %v801
        %v872 = vpack.c.b16 %v804, %v802
        %v873 = vpack.c.b16 %v807, %v805
        %v874 = vpack.c.b16 %v808, %v806
        %v875 = vpack.c.b16 %v811, %v809
        %v876 = vpack.c.b16 %v812, %v810
        %941 = vmatpush.bf16.msra.mxu0 %v827
        %942 = vmatpush.bf16.msra.mxu0 %v825
        %943 = vmatpush.bf16.msra.mxu0 %v823
        %944 = vmatpush.bf16.msra.mxu0 %v821
        %945 = vmatpush.bf16.msra.mxu0 %v819
        %946 = vmatpush.bf16.msra.mxu0 %v817
        %947 = vmatpush.bf16.msra.mxu0 %v815
        %948 = vmatpush.bf16.msra.mxu0 %v813
        %949 = vmatmul.bf16.gmra.mxu0 %v565
        %v950 = vpop.f32.mrf.mxu0
        %v951 = vadd.f32 0.0, %v950
        %v952 = vpop.f32.mrf.mxu0
        %v953 = vadd.f32 0.0, %v952
        %954 = vmatmul.bf16.gmra.mxu0 %v569
        %v955 = vpop.f32.mrf.mxu0
        %v956 = vadd.f32 0.0, %v955
        %v957 = vpop.f32.mrf.mxu0
        %v958 = vadd.f32 0.0, %v957
        %959 = vmatmul.bf16.gmra.mxu0 %v573
        %v960 = vpop.f32.mrf.mxu0
        %v961 = vadd.f32 0.0, %v960
        %v962 = vpop.f32.mrf.mxu0
        %v963 = vadd.f32 0.0, %v962
        %964 = vmatmul.bf16.gmra.mxu0 %v577
        %v965 = vpop.f32.mrf.mxu0
        %v966 = vadd.f32 0.0, %v965
        %v967 = vpop.f32.mrf.mxu0
        %v968 = vadd.f32 0.0, %v967
        %969 = vmatmul.bf16.gmra.mxu0 %v581
        %v970 = vpop.f32.mrf.mxu0
        %v971 = vadd.f32 0.0, %v970
        %v972 = vpop.f32.mrf.mxu0
        %v973 = vadd.f32 0.0, %v972
        %974 = vmatmul.bf16.gmra.mxu0 %v585
        %v975 = vpop.f32.mrf.mxu0
        %v976 = vadd.f32 0.0, %v975
        %v977 = vpop.f32.mrf.mxu0
        %v978 = vadd.f32 0.0, %v977
        %979 = vmatmul.bf16.gmra.mxu0 %v589
        %v980 = vpop.f32.mrf.mxu0
        %v981 = vadd.f32 0.0, %v980
        %v982 = vpop.f32.mrf.mxu0
        %983 = vdwg.mxu0
        %984 = vmatpush.bf16.msra.mxu0 %v843
        %985 = vmatpush.bf16.msra.mxu0 %v841
        %986 = vmatpush.bf16.msra.mxu0 %v839
        %987 = vmatpush.bf16.msra.mxu0 %v837
        %988 = vmatpush.bf16.msra.mxu0 %v835
        %989 = vmatpush.bf16.msra.mxu0 %v833
        %990 = vmatpush.bf16.msra.mxu0 %v831
        %991 = vmatpush.bf16.msra.mxu0 %v829
        %992 = vmatmul.bf16.gmra.mxu0 %v566
        %v993 = vpop.f32.mrf.mxu0
        %v994 = vadd.f32 %v951, %v993
        %v995 = vpop.f32.mrf.mxu0
        %v996 = vadd.f32 %v953, %v995
        %997 = vmatmul.bf16.gmra.mxu0 %v570
        %v998 = vpop.f32.mrf.mxu0
        %v999 = vadd.f32 %v956, %v998
        %v1000 = vpop.f32.mrf.mxu0
        %v1001 = vadd.f32 %v958, %v1000
        %1002 = vmatmul.bf16.gmra.mxu0 %v574
        %v1003 = vpop.f32.mrf.mxu0
        %v1004 = vadd.f32 %v961, %v1003
        %v1005 = vpop.f32.mrf.mxu0
        %v1006 = vadd.f32 %v963, %v1005
        %1007 = vmatmul.bf16.gmra.mxu0 %v578
        %v1008 = vpop.f32.mrf.mxu0
        %v1009 = vadd.f32 %v966, %v1008
        %v1010 = vpop.f32.mrf.mxu0
        %v1011 = vadd.f32 %v968, %v1010
        %1012 = vmatmul.bf16.gmra.mxu0 %v582
        %v1013 = vpop.f32.mrf.mxu0
        %v1014 = vadd.f32 %v971, %v1013
        %v1015 = vpop.f32.mrf.mxu0
        %v1016 = vadd.f32 %v973, %v1015
        %1017 = vmatmul.bf16.gmra.mxu0 %v586
        %v1018 = vpop.f32.mrf.mxu0
        %v1019 = vadd.f32 %v976, %v1018
        %v1020 = vpop.f32.mrf.mxu0
        %v1021 = vadd.f32 %v978, %v1020
        %1022 = vmatmul.bf16.gmra.mxu0 %v590
        %v1023 = vpop.f32.mrf.mxu0
        %v1024 = vadd.f32 %v981, %v1023
        %v1025 = vpop.f32.mrf.mxu0
        %1026 = vdwg.mxu0
        %1027 = vmatpush.bf16.msra.mxu0 %v859
        %1028 = vmatpush.bf16.msra.mxu0 %v857
        %1029 = vmatpush.bf16.msra.mxu0 %v855
        %1030 = vmatpush.bf16.msra.mxu0 %v853
        %1031 = vmatpush.bf16.msra.mxu0 %v851
        %1032 = vmatpush.bf16.msra.mxu0 %v849
        %1033 = vmatpush.bf16.msra.mxu0 %v847
        %1034 = vmatpush.bf16.msra.mxu0 %v845
        %1035 = vmatmul.bf16.gmra.mxu0 %v567
        %v1036 = vpop.f32.mrf.mxu0
        %v1037 = vadd.f32 %v994, %v1036
        %v1038 = vpop.f32.mrf.mxu0
        %v1039 = vadd.f32 %v996, %v1038
        %1040 = vmatmul.bf16.gmra.mxu0 %v571
        %v1041 = vpop.f32.mrf.mxu0
        %v1042 = vadd.f32 %v999, %v1041
        %v1043 = vpop.f32.mrf.mxu0
        %v1044 = vadd.f32 %v1001, %v1043
        %1045 = vmatmul.bf16.gmra.mxu0 %v575
        %v1046 = vpop.f32.mrf.mxu0
        %v1047 = vadd.f32 %v1004, %v1046
        %v1048 = vpop.f32.mrf.mxu0
        %v1049 = vadd.f32 %v1006, %v1048
        %1050 = vmatmul.bf16.gmra.mxu0 %v579
        %v1051 = vpop.f32.mrf.mxu0
        %v1052 = vadd.f32 %v1009, %v1051
        %v1053 = vpop.f32.mrf.mxu0
        %v1054 = vadd.f32 %v1011, %v1053
        %1055 = vmatmul.bf16.gmra.mxu0 %v583
        %v1056 = vpop.f32.mrf.mxu0
        %v1057 = vadd.f32 %v1014, %v1056
        %v1058 = vpop.f32.mrf.mxu0
        %v1059 = vadd.f32 %v1016, %v1058
        %1060 = vmatmul.bf16.gmra.mxu0 %v587
        %v1061 = vpop.f32.mrf.mxu0
        %v1062 = vadd.f32 %v1019, %v1061
        %v1063 = vpop.f32.mrf.mxu0
        %v1064 = vadd.f32 %v1021, %v1063
        %1065 = vmatmul.bf16.gmra.mxu0 %v591
        %v1066 = vpop.f32.mrf.mxu0
        %v1067 = vadd.f32 %v1024, %v1066
        %v1068 = vpop.f32.mrf.mxu0
        %1069 = vdwg.mxu0
        %1070 = vmatpush.bf16.msra.mxu0 %v875
        %1071 = vmatpush.bf16.msra.mxu0 %v873
        %1072 = vmatpush.bf16.msra.mxu0 %v871
        %1073 = vmatpush.bf16.msra.mxu0 %v869
        %1074 = vmatpush.bf16.msra.mxu0 %v867
        %1075 = vmatpush.bf16.msra.mxu0 %v865
        %1076 = vmatpush.bf16.msra.mxu0 %v863
        %1077 = vmatpush.bf16.msra.mxu0 %v861
        %1078 = vmatmul.bf16.gmra.mxu0 %v568
        %v1079 = vpop.f32.mrf.mxu0
        %v1080 = vadd.f32 %v1037, %v1079
        %v1081 = vpop.f32.mrf.mxu0
        %v1082 = vadd.f32 %v1039, %v1081
        %1083 = vmatmul.bf16.gmra.mxu0 %v572
        %v1084 = vpop.f32.mrf.mxu0
        %v1085 = vadd.f32 %v1042, %v1084
        %v1086 = vpop.f32.mrf.mxu0
        %v1087 = vadd.f32 %v1044, %v1086
        %1088 = vmatmul.bf16.gmra.mxu0 %v576
        %v1089 = vpop.f32.mrf.mxu0
        %v1090 = vadd.f32 %v1047, %v1089
        %v1091 = vpop.f32.mrf.mxu0
        %v1092 = vadd.f32 %v1049, %v1091
        %1093 = vmatmul.bf16.gmra.mxu0 %v580
        %v1094 = vpop.f32.mrf.mxu0
        %v1095 = vadd.f32 %v1052, %v1094
        %v1096 = vpop.f32.mrf.mxu0
        %v1097 = vadd.f32 %v1054, %v1096
        %1098 = vmatmul.bf16.gmra.mxu0 %v584
        %v1099 = vpop.f32.mrf.mxu0
        %v1100 = vadd.f32 %v1057, %v1099
        %v1101 = vpop.f32.mrf.mxu0
        %v1102 = vadd.f32 %v1059, %v1101
        %1103 = vmatmul.bf16.gmra.mxu0 %v588
        %v1104 = vpop.f32.mrf.mxu0
        %v1105 = vadd.f32 %v1062, %v1104
        %v1106 = vpop.f32.mrf.mxu0
        %v1107 = vadd.f32 %v1064, %v1106
        %1108 = vmatmul.bf16.gmra.mxu0 %v592
        %v1109 = vpop.f32.mrf.mxu0
        %v1110 = vadd.f32 %v1067, %v1109
        %v1111 = vpop.f32.mrf.mxu0
        %1112 = vdwg.mxu0
        %1113 = vmatpush.bf16.msra.mxu0 %v828
        %1114 = vmatpush.bf16.msra.mxu0 %v826
        %1115 = vmatpush.bf16.msra.mxu0 %v824
        %1116 = vmatpush.bf16.msra.mxu0 %v822
        %1117 = vmatpush.bf16.msra.mxu0 %v820
        %1118 = vmatpush.bf16.msra.mxu0 %v818
        %1119 = vmatpush.bf16.msra.mxu0 %v816
        %1120 = vmatpush.bf16.msra.mxu0 %v814
        %1121 = vmatmul.bf16.gmra.mxu0 %v565
        %v1122 = vpop.f32.mrf.mxu0
        %v1123 = vadd.f32 0.0, %v1122
        %v1124 = vpop.f32.mrf.mxu0
        %v1125 = vadd.f32 0.0, %v1124
        %1126 = vmatmul.bf16.gmra.mxu0 %v569
        %v1127 = vpop.f32.mrf.mxu0
        %v1128 = vadd.f32 0.0, %v1127
        %v1129 = vpop.f32.mrf.mxu0
        %v1130 = vadd.f32 0.0, %v1129
        %1131 = vmatmul.bf16.gmra.mxu0 %v573
        %v1132 = vpop.f32.mrf.mxu0
        %v1133 = vadd.f32 0.0, %v1132
        %v1134 = vpop.f32.mrf.mxu0
        %v1135 = vadd.f32 0.0, %v1134
        %1136 = vmatmul.bf16.gmra.mxu0 %v577
        %v1137 = vpop.f32.mrf.mxu0
        %v1138 = vadd.f32 0.0, %v1137
        %v1139 = vpop.f32.mrf.mxu0
        %v1140 = vadd.f32 0.0, %v1139
        %1141 = vmatmul.bf16.gmra.mxu0 %v581
        %v1142 = vpop.f32.mrf.mxu0
        %v1143 = vadd.f32 0.0, %v1142
        %v1144 = vpop.f32.mrf.mxu0
        %v1145 = vadd.f32 0.0, %v1144
        %1146 = vmatmul.bf16.gmra.mxu0 %v585
        %v1147 = vpop.f32.mrf.mxu0
        %v1148 = vadd.f32 0.0, %v1147
        %v1149 = vpop.f32.mrf.mxu0
        %v1150 = vadd.f32 0.0, %v1149
        %1151 = vmatmul.bf16.gmra.mxu0 %v589
        %v1152 = vpop.f32.mrf.mxu0
        %v1153 = vadd.f32 0.0, %v1152
        %v1154 = vpop.f32.mrf.mxu0
        %1155 = vdwg.mxu0
        %1156 = vmatpush.bf16.msra.mxu0 %v844
        %1157 = vmatpush.bf16.msra.mxu0 %v842
        %1158 = vmatpush.bf16.msra.mxu0 %v840
        %1159 = vmatpush.bf16.msra.mxu0 %v838
        %1160 = vmatpush.bf16.msra.mxu0 %v836
        %1161 = vmatpush.bf16.msra.mxu0 %v834
        %1162 = vmatpush.bf16.msra.mxu0 %v832
        %1163 = vmatpush.bf16.msra.mxu0 %v830
        %1164 = vmatmul.bf16.gmra.mxu0 %v566
        %v1165 = vpop.f32.mrf.mxu0
        %v1166 = vadd.f32 %v1123, %v1165
        %v1167 = vpop.f32.mrf.mxu0
        %v1168 = vadd.f32 %v1125, %v1167
        %1169 = vmatmul.bf16.gmra.mxu0 %v570
        %v1170 = vpop.f32.mrf.mxu0
        %v1171 = vadd.f32 %v1128, %v1170
        %v1172 = vpop.f32.mrf.mxu0
        %v1173 = vadd.f32 %v1130, %v1172
        %1174 = vmatmul.bf16.gmra.mxu0 %v574
        %v1175 = vpop.f32.mrf.mxu0
        %v1176 = vadd.f32 %v1133, %v1175
        %v1177 = vpop.f32.mrf.mxu0
        %v1178 = vadd.f32 %v1135, %v1177
        %1179 = vmatmul.bf16.gmra.mxu0 %v578
        %v1180 = vpop.f32.mrf.mxu0
        %v1181 = vadd.f32 %v1138, %v1180
        %v1182 = vpop.f32.mrf.mxu0
        %v1183 = vadd.f32 %v1140, %v1182
        %1184 = vmatmul.bf16.gmra.mxu0 %v582
        %v1185 = vpop.f32.mrf.mxu0
        %v1186 = vadd.f32 %v1143, %v1185
        %v1187 = vpop.f32.mrf.mxu0
        %v1188 = vadd.f32 %v1145, %v1187
        %1189 = vmatmul.bf16.gmra.mxu0 %v586
        %v1190 = vpop.f32.mrf.mxu0
        %v1191 = vadd.f32 %v1148, %v1190
        %v1192 = vpop.f32.mrf.mxu0
        %v1193 = vadd.f32 %v1150, %v1192
        %1194 = vmatmul.bf16.gmra.mxu0 %v590
        %v1195 = vpop.f32.mrf.mxu0
        %v1196 = vadd.f32 %v1153, %v1195
        %v1197 = vpop.f32.mrf.mxu0
        %1198 = vdwg.mxu0
        %1199 = vmatpush.bf16.msra.mxu0 %v860
        %1200 = vmatpush.bf16.msra.mxu0 %v858
        %1201 = vmatpush.bf16.msra.mxu0 %v856
        %1202 = vmatpush.bf16.msra.mxu0 %v854
        %1203 = vmatpush.bf16.msra.mxu0 %v852
        %1204 = vmatpush.bf16.msra.mxu0 %v850
        %1205 = vmatpush.bf16.msra.mxu0 %v848
        %1206 = vmatpush.bf16.msra.mxu0 %v846
        %1207 = vmatmul.bf16.gmra.mxu0 %v567
        %v1208 = vpop.f32.mrf.mxu0
        %v1209 = vadd.f32 %v1166, %v1208
        %v1210 = vpop.f32.mrf.mxu0
        %v1211 = vadd.f32 %v1168, %v1210
        %1212 = vmatmul.bf16.gmra.mxu0 %v571
        %v1213 = vpop.f32.mrf.mxu0
        %v1214 = vadd.f32 %v1171, %v1213
        %v1215 = vpop.f32.mrf.mxu0
        %v1216 = vadd.f32 %v1173, %v1215
        %1217 = vmatmul.bf16.gmra.mxu0 %v575
        %v1218 = vpop.f32.mrf.mxu0
        %v1219 = vadd.f32 %v1176, %v1218
        %v1220 = vpop.f32.mrf.mxu0
        %v1221 = vadd.f32 %v1178, %v1220
        %1222 = vmatmul.bf16.gmra.mxu0 %v579
        %v1223 = vpop.f32.mrf.mxu0
        %v1224 = vadd.f32 %v1181, %v1223
        %v1225 = vpop.f32.mrf.mxu0
        %v1226 = vadd.f32 %v1183, %v1225
        %1227 = vmatmul.bf16.gmra.mxu0 %v583
        %v1228 = vpop.f32.mrf.mxu0
        %v1229 = vadd.f32 %v1186, %v1228
        %v1230 = vpop.f32.mrf.mxu0
        %v1231 = vadd.f32 %v1188, %v1230
        %1232 = vmatmul.bf16.gmra.mxu0 %v587
        %v1233 = vpop.f32.mrf.mxu0
        %v1234 = vadd.f32 %v1191, %v1233
        %v1235 = vpop.f32.mrf.mxu0
        %v1236 = vadd.f32 %v1193, %v1235
        %1237 = vmatmul.bf16.gmra.mxu0 %v591
        %v1238 = vpop.f32.mrf.mxu0
        %v1239 = vadd.f32 %v1196, %v1238
        %v1240 = vpop.f32.mrf.mxu0
        %1241 = vdwg.mxu0
        %1242 = vmatpush.bf16.msra.mxu0 %v876
        %1243 = vmatpush.bf16.msra.mxu0 %v874
        %1244 = vmatpush.bf16.msra.mxu0 %v872
        %1245 = vmatpush.bf16.msra.mxu0 %v870
        %1246 = vmatpush.bf16.msra.mxu0 %v868
        %1247 = vmatpush.bf16.msra.mxu0 %v866
        %1248 = vmatpush.bf16.msra.mxu0 %v864
        %1249 = vmatpush.bf16.msra.mxu0 %v862
        %1250 = vmatmul.bf16.gmra.mxu0 %v568
        %v1251 = vpop.f32.mrf.mxu0
        %v1252 = vadd.f32 %v1209, %v1251
        %v1253 = vpop.f32.mrf.mxu0
        %v1254 = vadd.f32 %v1211, %v1253
        %1255 = vmatmul.bf16.gmra.mxu0 %v572
        %v1256 = vpop.f32.mrf.mxu0
        %v1257 = vadd.f32 %v1214, %v1256
        %v1258 = vpop.f32.mrf.mxu0
        %v1259 = vadd.f32 %v1216, %v1258
        %1260 = vmatmul.bf16.gmra.mxu0 %v576
        %v1261 = vpop.f32.mrf.mxu0
        %v1262 = vadd.f32 %v1219, %v1261
        %v1263 = vpop.f32.mrf.mxu0
        %v1264 = vadd.f32 %v1221, %v1263
        %1265 = vmatmul.bf16.gmra.mxu0 %v580
        %v1266 = vpop.f32.mrf.mxu0
        %v1267 = vadd.f32 %v1224, %v1266
        %v1268 = vpop.f32.mrf.mxu0
        %v1269 = vadd.f32 %v1226, %v1268
        %1270 = vmatmul.bf16.gmra.mxu0 %v584
        %v1271 = vpop.f32.mrf.mxu0
        %v1272 = vadd.f32 %v1229, %v1271
        %v1273 = vpop.f32.mrf.mxu0
        %v1274 = vadd.f32 %v1231, %v1273
        %1275 = vmatmul.bf16.gmra.mxu0 %v588
        %v1276 = vpop.f32.mrf.mxu0
        %v1277 = vadd.f32 %v1234, %v1276
        %v1278 = vpop.f32.mrf.mxu0
        %v1279 = vadd.f32 %v1236, %v1278
        %1280 = vmatmul.bf16.gmra.mxu0 %v592
        %v1281 = vpop.f32.mrf.mxu0
        %v1282 = vadd.f32 %v1239, %v1281
        %v1283 = vpop.f32.mrf.mxu0
        %1284 = vdwg.mxu0
        %v1285 = vadd.f32 %v371, %v1080
        %v1286 = vadd.f32 %v372, %v1252
        %v1287 = vadd.f32 %v373, %v1082
        %v1288 = vadd.f32 %v374, %v1254
        %v1289 = vadd.f32 %v375, %v1085
        %v1290 = vadd.f32 %v376, %v1257
        %v1291 = vadd.f32 %v377, %v1087
        %v1292 = vadd.f32 %v378, %v1259
        %v1293 = vadd.f32 %v379, %v1090
        %v1294 = vadd.f32 %v380, %v1262
        %v1295 = vadd.f32 %v381, %v1092
        %v1296 = vadd.f32 %v382, %v1264
        %v1297 = vadd.f32 %v383, %v1095
        %v1298 = vadd.f32 %v384, %v1267
        %v1299 = vadd.f32 %v385, %v1097
        %v1300 = vadd.f32 %v386, %v1269
        %v1301 = vadd.f32 %v387, %v1100
        %v1302 = vadd.f32 %v388, %v1272
        %v1303 = vadd.f32 %v389, %v1102
        %v1304 = vadd.f32 %v390, %v1274
        %v1305 = vadd.f32 %v391, %v1105
        %v1306 = vadd.f32 %v392, %v1277
        %v1307 = vadd.f32 %v393, %v1107
        %v1308 = vadd.f32 %v394, %v1279
        %v1309 = vadd.f32 %v395, %v1110
        %v1310 = vadd.f32 %v396, %v1282
        %1311 = vst [vmem:[#allocation2] sm:$0xff] %v1285
        %1312 = vst [vmem:[#allocation2 + $0x8] sm:$0xff] %v1286
        %1313 = vst [vmem:[#allocation2 + $0x10] sm:$0xff] %v1287
        %1314 = vst [vmem:[#allocation2 + $0x18] sm:$0xff] %v1288
        %1315 = vst [vmem:[#allocation2 + $0x20] sm:$0xff] %v1289
        %1316 = vst [vmem:[#allocation2 + $0x28] sm:$0xff] %v1290
        %1317 = vst [vmem:[#allocation2 + $0x30] sm:$0xff] %v1291
        %1318 = vst [vmem:[#allocation2 + $0x38] sm:$0xff] %v1292
        %1319 = vst [vmem:[#allocation2 + $0x40] sm:$0xff] %v1293
        %1320 = vst [vmem:[#allocation2 + $0x48] sm:$0xff] %v1294
        %1321 = vst [vmem:[#allocation2 + $0x50] sm:$0xff] %v1295
        %1322 = vst [vmem:[#allocation2 + $0x58] sm:$0xff] %v1296
        %1323 = vst [vmem:[#allocation2 + $0x60] sm:$0xff] %v1297
        %1324 = vst [vmem:[#allocation2 + $0x68] sm:$0xff] %v1298
        %1325 = vst [vmem:[#allocation2 + $0x70] sm:$0xff] %v1299
        %1326 = vst [vmem:[#allocation2 + $0x78] sm:$0xff] %v1300
        %1327 = vst [vmem:[#allocation2 + $0x80] sm:$0xff] %v1301
        %1328 = vst [vmem:[#allocation2 + $0x88] sm:$0xff] %v1302
        %1329 = vst [vmem:[#allocation2 + $0x90] sm:$0xff] %v1303
        %1330 = vst [vmem:[#allocation2 + $0x98] sm:$0xff] %v1304
        %1331 = vst [vmem:[#allocation2 + $0xa0] sm:$0xff] %v1305
        %1332 = vst [vmem:[#allocation2 + $0xa8] sm:$0xff] %v1306
        %1333 = vst [vmem:[#allocation2 + $0xb0] sm:$0xff] %v1307
        %1334 = vst [vmem:[#allocation2 + $0xb8] sm:$0xff] %v1308
        %1335 = vst [vmem:[#allocation2 + $0xc0] sm:$0xff] %v1309
        %1336 = vst [vmem:[#allocation2 + $0xc8] sm:$0xff] %v1310
        %p1337 = scmp.eq.s32.totalorder %s21, 3
        // Predicated region
        $region60: #{alexnet_forward.13} parent=50 // pred_check
          %p1338 = pneg %p1337
        $region61: #{alexnet_forward.13} parent=50 // pred_check_branch
          %1340 = sbr.rel (%p1338) target = $region63
        $region62: #{alexnet_forward.13} parent=50 // pred_region
          %v1341 = vld [vmem:[#allocation2] sm:$0xff]
          %v1342 = vld [vmem:[#allocation2 + $0x8] sm:$0xff]
          %v1343 = vld [vmem:[#allocation2 + $0x10] sm:$0xff]
          %v1344 = vld [vmem:[#allocation2 + $0x18] sm:$0xff]
          %v1345 = vld [vmem:[#allocation2 + $0x20] sm:$0xff]
          %v1346 = vld [vmem:[#allocation2 + $0x28] sm:$0xff]
          %v1347 = vld [vmem:[#allocation2 + $0x30] sm:$0xff]
          %v1348 = vld [vmem:[#allocation2 + $0x38] sm:$0xff]
          %v1349 = vld [vmem:[#allocation2 + $0x40] sm:$0xff]
          %v1350 = vld [vmem:[#allocation2 + $0x48] sm:$0xff]
          %v1351 = vld [vmem:[#allocation2 + $0x50] sm:$0xff]
          %v1352 = vld [vmem:[#allocation2 + $0x58] sm:$0xff]
          %v1353 = vld [vmem:[#allocation2 + $0x60] sm:$0xff]
          %v1354 = vld [vmem:[#allocation2 + $0x68] sm:$0xff]
          %v1355 = vld [vmem:[#allocation2 + $0x70] sm:$0xff]
          %v1356 = vld [vmem:[#allocation2 + $0x78] sm:$0xff]
          %v1357 = vld [vmem:[#allocation2 + $0x80] sm:$0xff]
          %v1358 = vld [vmem:[#allocation2 + $0x88] sm:$0xff]
          %v1359 = vld [vmem:[#allocation2 + $0x90] sm:$0xff]
          %v1360 = vld [vmem:[#allocation2 + $0x98] sm:$0xff]
          %v1361 = vld [vmem:[#allocation2 + $0xa0] sm:$0xff]
          %v1362 = vld [vmem:[#allocation2 + $0xa8] sm:$0xff]
          %v1363 = vld [vmem:[#allocation2 + $0xb0] sm:$0xff]
          %v1364 = vld [vmem:[#allocation2 + $0xb8] sm:$0xff]
          %v1365 = vld [vmem:[#allocation2 + $0xc0] sm:$0xff]
          %v1366 = vld [vmem:[#allocation2 + $0xc8] sm:$0xff]
          %v1367 = vld [vmem:[%s327] sm:$0x3]
          %v1369 = vperm.slane %v1367, 0
          %v1370 = vperm.slane %v1367, 1
          %v1373 = vadd.f32 %v1341, %v1369
          %v1374 = vadd.f32 %v1342, %v1370
          %v1375 = vadd.f32 %v1343, %v1369
          %v1376 = vadd.f32 %v1344, %v1370
          %v1377 = vadd.f32 %v1345, %v1369
          %v1378 = vadd.f32 %v1346, %v1370
          %v1379 = vadd.f32 %v1347, %v1369
          %v1380 = vadd.f32 %v1348, %v1370
          %v1381 = vadd.f32 %v1349, %v1369
          %v1382 = vadd.f32 %v1350, %v1370
          %v1383 = vadd.f32 %v1351, %v1369
          %v1384 = vadd.f32 %v1352, %v1370
          %v1385 = vadd.f32 %v1353, %v1369
          %v1386 = vadd.f32 %v1354, %v1370
          %v1387 = vadd.f32 %v1355, %v1369
          %v1388 = vadd.f32 %v1356, %v1370
          %v1389 = vadd.f32 %v1357, %v1369
          %v1390 = vadd.f32 %v1358, %v1370
          %v1391 = vadd.f32 %v1359, %v1369
          %v1392 = vadd.f32 %v1360, %v1370
          %v1393 = vadd.f32 %v1361, %v1369
          %v1394 = vadd.f32 %v1362, %v1370
          %v1395 = vadd.f32 %v1363, %v1369
          %v1396 = vadd.f32 %v1364, %v1370
          %v1397 = vadd.f32 %v1365, %v1369
          %v1398 = vadd.f32 %v1366, %v1370
          %v1399 = vmax.f32 %v1373, 0.0
          %v1400 = vmax.f32 %v1374, 0.0
          %v1401 = vmax.f32 %v1375, 0.0
          %v1402 = vmax.f32 %v1376, 0.0
          %v1403 = vmax.f32 %v1377, 0.0
          %v1404 = vmax.f32 %v1378, 0.0
          %v1405 = vmax.f32 %v1379, 0.0
          %v1406 = vmax.f32 %v1380, 0.0
          %v1407 = vmax.f32 %v1381, 0.0
          %v1408 = vmax.f32 %v1382, 0.0
          %v1409 = vmax.f32 %v1383, 0.0
          %v1410 = vmax.f32 %v1384, 0.0
          %v1411 = vmax.f32 %v1385, 0.0
          %v1412 = vmax.f32 %v1386, 0.0
          %v1413 = vmax.f32 %v1387, 0.0
          %v1414 = vmax.f32 %v1388, 0.0
          %v1415 = vmax.f32 %v1389, 0.0
          %v1416 = vmax.f32 %v1390, 0.0
          %v1417 = vmax.f32 %v1391, 0.0
          %v1418 = vmax.f32 %v1392, 0.0
          %v1419 = vmax.f32 %v1393, 0.0
          %v1420 = vmax.f32 %v1394, 0.0
          %v1421 = vmax.f32 %v1395, 0.0
          %v1422 = vmax.f32 %v1396, 0.0
          %v1423 = vmax.f32 %v1397, 0.0
          %v1424 = vmax.f32 %v1398, 0.0
          %v1425 = vpack.c.bf16 %v1400, %v1399
          %v1426 = vpack.c.bf16 %v1402, %v1401
          %v1427 = vpack.c.bf16 %v1404, %v1403
          %v1428 = vpack.c.bf16 %v1406, %v1405
          %v1429 = vpack.c.bf16 %v1408, %v1407
          %v1430 = vpack.c.bf16 %v1410, %v1409
          %v1431 = vpack.c.bf16 %v1412, %v1411
          %v1432 = vpack.c.bf16 %v1414, %v1413
          %v1433 = vpack.c.bf16 %v1416, %v1415
          %v1434 = vpack.c.bf16 %v1418, %v1417
          %v1435 = vpack.c.bf16 %v1420, %v1419
          %v1436 = vpack.c.bf16 %v1422, %v1421
          %v1437 = vpack.c.bf16 %v1424, %v1423
          %1438 = vst [vmem:[%s338] sm:$0xff] %v1425
          %1439 = vst [vmem:[%s338 + $0x8] sm:$0xff] %v1426
          %1440 = vst [vmem:[%s338 + $0x10] sm:$0xff] %v1427
          %1441 = vst [vmem:[%s338 + $0x18] sm:$0xff] %v1428
          %1442 = vst [vmem:[%s338 + $0x20] sm:$0xff] %v1429
          %1443 = vst [vmem:[%s338 + $0x28] sm:$0xff] %v1430
          %1444 = vst [vmem:[%s338 + $0x30] sm:$0xff] %v1431
          %1445 = vst [vmem:[%s338 + $0x38] sm:$0xff] %v1432
          %1446 = vst [vmem:[%s338 + $0x40] sm:$0xff] %v1433
          %1447 = vst [vmem:[%s338 + $0x48] sm:$0xff] %v1434
          %1448 = vst [vmem:[%s338 + $0x50] sm:$0xff] %v1435
          %1449 = vst [vmem:[%s338 + $0x58] sm:$0xff] %v1436
          %1450 = vst [vmem:[%s338 + $0x60] sm:$0xff] %v1437
        $region63: #{alexnet_forward.13} parent=50 // pred_fallthru
          _
        %s1451 = smul.u32 13, %s19
        %s1452 = smul.u32 2, %s20
        %p1453 = scmp.lt.s32.totalorder %s1451, 12
        %s1454 = scalar_select %p1453, %s1451, 12
        %p1455 = scmp.lt.s32.totalorder %s1452, 1
        %s1456 = scalar_select %p1455, %s1452, 1
        %s1457 = smul.addr %s1454, 2
        %s1458 = sadd.s32 %s1456, %s1457
        %s1459 = smul.addr %s1458, 4
        %s1460 = scalar_lea.vmem %s3, %s1459
        // Predicated region
        $region64: #{alexnet_forward.13} parent=50 // pred_check
          %p1461 = pneg %p135
        $region65: #{alexnet_forward.13} parent=50 // pred_check_branch
          %1463 = sbr.rel (%p1461) target = $region67
        $region66: #{alexnet_forward.13} parent=50 // pred_region
          %s1464 = smul.u32 13, %s19
          %s1465 = smul.u32 2, %s20
        $region67: #{alexnet_forward.13} parent=50 // pred_fallthru
          _
        // Predicated region
        $region68: #{alexnet_forward.13} parent=50 // pred_check
          %p1466 = pneg %p135
        $region69: #{alexnet_forward.13} parent=50 // pred_check_branch
          %1468 = sbr.rel (%p1466) target = $region71
        $region70: #{alexnet_forward.13} parent=50 // pred_region
          %s1469 = smul.u32 13, %s19
          %s1470 = smul.u32 2, %s20
          %p1471 = scmp.lt.s32.totalorder %s1469, 12
          %s1472 = scalar_select %p1471, %s1469, 12
          %p1473 = scmp.lt.s32.totalorder %s1470, 1
          %s1474 = scalar_select %p1473, %s1470, 1
          %s1475 = smul.addr %s1472, 2
          %s1476 = sadd.s32 %s1474, %s1475
          %s1477 = smul.addr %s1476, 4
          %s1478 = scalar_lea.vmem %s3, %s1477
        $region71: #{alexnet_forward.13} parent=50 // pred_fallthru
          _
      $region51: #{alexnet_forward.13} parent=5 // pred_fallthru
        _
      %p1479 = scmp.le.s32.totalorder 2, %s9
      // Predicated region
      $region72: #{alexnet_forward.13} parent=5 // pred_check
        %p1480 = pneg %p1479
      $region73: #{alexnet_forward.13} parent=5 // pred_check_branch
        %1482 = sbr.rel (%p1480) target = $region75
      $region74: #{alexnet_forward.13} parent=5 // pred_region
        %s1483 = ssub.s32 %s9, 2
      $region75: #{alexnet_forward.13} parent=5 // pred_fallthru
        _
    $region6: #{alexnet_forward.13} parent=1 // loop_footer
      %s13 = sadd.s32 1, %s9
    $region7: #{alexnet_forward.13} parent=1 // loop_footer_branch
      %8 = sbr.rel target = $region3
    $region8: #{alexnet_forward.13} parent=1 // loop_exit
      _

// kernel: alexnet_forward.14
$region0: #{alexnet_forward.14}
  #allocation0 [shape = 'u32[]', space=smem, size = 0x4, offset = 0x4, fixed_abs, tag = 'smem constant byte address 0x4 - core index']
  #allocation1 [shape = 'u32[72,128]{1,0:T(1,128)}', space=vmem, size = 0x9000, scoped, tag = 'internal scratch']
  %s0 = inlined_call_operand.vmem [shape: bf16[9,8,512], index: 0, kind: input, shape index: {}]
  %s1 = inlined_call_operand.vmem [shape: bf16[8,512], index: 1, kind: output, shape index: {}]
  %s2 = sld [smem:[#allocation0]]
  $region14: #{alexnet_forward.14} parent=0
    _
  %s4 = ssub.s32 1, %s2
  %s5 = scalar_select 0, %s4, %s2
  // Predicated region
  $region2: #{alexnet_forward.14} parent=0 // pred_check
    _
  $region3: #{alexnet_forward.14} parent=0 // pred_check_branch
    %7 = sbr.rel (0) target = $region5
  $region4: #{alexnet_forward.14} parent=0 // pred_region
    _
  $region5: #{alexnet_forward.14} parent=0 // pred_fallthru
    _
  %v8 = vld [vmem:[%s0] sm:$0xff]
  %v9 = vld [vmem:[%s0 + $0x8] sm:$0xff]
  %v10 = vld [vmem:[%s0 + $0x10] sm:$0xff]
  %v11 = vld [vmem:[%s0 + $0x18] sm:$0xff]
  %v12 = vld [vmem:[%s0 + $0x20] sm:$0xff]
  %v13 = vld [vmem:[%s0 + $0x28] sm:$0xff]
  %v14 = vld [vmem:[%s0 + $0x30] sm:$0xff]
  %v15 = vld [vmem:[%s0 + $0x38] sm:$0xff]
  %v16 = vld [vmem:[%s0 + $0x40] sm:$0xff]
  %v17 = vld [vmem:[%s0 + $0x48] sm:$0xff]
  %v18 = vld [vmem:[%s0 + $0x50] sm:$0xff]
  %v19 = vld [vmem:[%s0 + $0x58] sm:$0xff]
  %v20 = vld [vmem:[%s0 + $0x60] sm:$0xff]
  %v21 = vld [vmem:[%s0 + $0x68] sm:$0xff]
  %v22 = vld [vmem:[%s0 + $0x70] sm:$0xff]
  %v23 = vld [vmem:[%s0 + $0x78] sm:$0xff]
  %v24 = vld [vmem:[%s0 + $0x80] sm:$0xff]
  %v25 = vld [vmem:[%s0 + $0x88] sm:$0xff]
  %v26 = vunpack.c.l.bf16 %v8
  %v27 = vunpack.c.h.bf16 %v8
  %v28 = vunpack.c.l.bf16 %v9
  %v29 = vunpack.c.h.bf16 %v9
  %v30 = vunpack.c.l.bf16 %v10
  %v31 = vunpack.c.h.bf16 %v10
  %v32 = vunpack.c.l.bf16 %v11
  %v33 = vunpack.c.h.bf16 %v11
  %v34 = vmax.f32 %v26, %v30
  %v35 = vmax.f32 %v27, %v31
  %v36 = vmax.f32 %v28, %v32
  %v37 = vmax.f32 %v29, %v33
  %v38 = vpack.c.bf16 %v35, %v34
  %v39 = vpack.c.bf16 %v37, %v36
  %v40 = vunpack.c.l.bf16 %v38
  %v41 = vunpack.c.h.bf16 %v38
  %v42 = vunpack.c.l.bf16 %v39
  %v43 = vunpack.c.h.bf16 %v39
  %v44 = vunpack.c.l.bf16 %v12
  %v45 = vunpack.c.h.bf16 %v12
  %v46 = vunpack.c.l.bf16 %v13
  %v47 = vunpack.c.h.bf16 %v13
  %v48 = vmax.f32 %v40, %v44
  %v49 = vmax.f32 %v41, %v45
  %v50 = vmax.f32 %v42, %v46
  %v51 = vmax.f32 %v43, %v47
  %v52 = vpack.c.bf16 %v49, %v48
  %v53 = vpack.c.bf16 %v51, %v50
  %v54 = vunpack.c.l.bf16 %v52
  %v55 = vunpack.c.h.bf16 %v52
  %v56 = vunpack.c.l.bf16 %v53
  %v57 = vunpack.c.h.bf16 %v53
  %v58 = vunpack.c.l.bf16 %v14
  %v59 = vunpack.c.h.bf16 %v14
  %v60 = vunpack.c.l.bf16 %v15
  %v61 = vunpack.c.h.bf16 %v15
  %v62 = vmax.f32 %v54, %v58
  %v63 = vmax.f32 %v55, %v59
  %v64 = vmax.f32 %v56, %v60
  %v65 = vmax.f32 %v57, %v61
  %v66 = vpack.c.bf16 %v63, %v62
  %v67 = vpack.c.bf16 %v65, %v64
  %v68 = vunpack.c.l.bf16 %v66
  %v69 = vunpack.c.h.bf16 %v66
  %v70 = vunpack.c.l.bf16 %v67
  %v71 = vunpack.c.h.bf16 %v67
  %v72 = vunpack.c.l.bf16 %v16
  %v73 = vunpack.c.h.bf16 %v16
  %v74 = vunpack.c.l.bf16 %v17
  %v75 = vunpack.c.h.bf16 %v17
  %v76 = vmax.f32 %v68, %v72
  %v77 = vmax.f32 %v69, %v73
  %v78 = vmax.f32 %v70, %v74
  %v79 = vmax.f32 %v71, %v75
  %v80 = vpack.c.bf16 %v77, %v76
  %v81 = vpack.c.bf16 %v79, %v78
  %v82 = vunpack.c.l.bf16 %v80
  %v83 = vunpack.c.h.bf16 %v80
  %v84 = vunpack.c.l.bf16 %v81
  %v85 = vunpack.c.h.bf16 %v81
  %v86 = vunpack.c.l.bf16 %v18
  %v87 = vunpack.c.h.bf16 %v18
  %v88 = vunpack.c.l.bf16 %v19
  %v89 = vunpack.c.h.bf16 %v19
  %v90 = vmax.f32 %v82, %v86
  %v91 = vmax.f32 %v83, %v87
  %v92 = vmax.f32 %v84, %v88
  %v93 = vmax.f32 %v85, %v89
  %v94 = vpack.c.bf16 %v91, %v90
  %v95 = vpack.c.bf16 %v93, %v92
  %v96 = vunpack.c.l.bf16 %v94
  %v97 = vunpack.c.h.bf16 %v94
  %v98 = vunpack.c.l.bf16 %v95
  %v99 = vunpack.c.h.bf16 %v95
  %v100 = vunpack.c.l.bf16 %v20
  %v101 = vunpack.c.h.bf16 %v20
  %v102 = vunpack.c.l.bf16 %v21
  %v103 = vunpack.c.h.bf16 %v21
  %v104 = vmax.f32 %v96, %v100
  %v105 = vmax.f32 %v97, %v101
  %v106 = vmax.f32 %v98, %v102
  %v107 = vmax.f32 %v99, %v103
  %v108 = vpack.c.bf16 %v105, %v104
  %v109 = vpack.c.bf16 %v107, %v106
  %v110 = vunpack.c.l.bf16 %v108
  %v111 = vunpack.c.h.bf16 %v108
  %v112 = vunpack.c.l.bf16 %v109
  %v113 = vunpack.c.h.bf16 %v109
  %v114 = vunpack.c.l.bf16 %v22
  %v115 = vunpack.c.h.bf16 %v22
  %v116 = vunpack.c.l.bf16 %v23
  %v117 = vunpack.c.h.bf16 %v23
  %v118 = vmax.f32 %v110, %v114
  %v119 = vmax.f32 %v111, %v115
  %v120 = vmax.f32 %v112, %v116
  %v121 = vmax.f32 %v113, %v117
  %v122 = vpack.c.bf16 %v119, %v118
  %v123 = vpack.c.bf16 %v121, %v120
  %v124 = vunpack.c.l.bf16 %v122
  %v125 = vunpack.c.h.bf16 %v122
  %v126 = vunpack.c.l.bf16 %v123
  %v127 = vunpack.c.h.bf16 %v123
  %v128 = vunpack.c.l.bf16 %v24
  %v129 = vunpack.c.h.bf16 %v24
  %v130 = vunpack.c.l.bf16 %v25
  %v131 = vunpack.c.h.bf16 %v25
  %v132 = vmax.f32 %v124, %v128
  %v133 = vmax.f32 %v125, %v129
  %v134 = vmax.f32 %v126, %v130
  %v135 = vmax.f32 %v127, %v131
  %v136 = vpack.c.bf16 %v133, %v132
  %v137 = vpack.c.bf16 %v135, %v134
  %138 = vst [vmem:[%s1] sm:$0xff] %v136
  %139 = vst [vmem:[%s1 + $0x8] sm:$0xff] %v137
  // Predicated region
  $region6: #{alexnet_forward.14} parent=0 // pred_check
    _
  $region7: #{alexnet_forward.14} parent=0 // pred_check_branch
    %141 = sbr.rel (0) target = $region9
  $region8: #{alexnet_forward.14} parent=0 // pred_region
    _
  $region9: #{alexnet_forward.14} parent=0 // pred_fallthru
    _
  // Predicated region
  $region10: #{alexnet_forward.14} parent=0 // pred_check
    _
  $region11: #{alexnet_forward.14} parent=0 // pred_check_branch
    %143 = sbr.rel (0) target = $region13
  $region12: #{alexnet_forward.14} parent=0 // pred_region
    _
  $region13: #{alexnet_forward.14} parent=0 // pred_fallthru
    _

// kernel: alexnet_forward.15
$region0: #{alexnet_forward.15}
  #allocation0 [shape = 'u32[]', space=smem, size = 0x4, offset = 0x4, fixed_abs, tag = 'smem constant byte address 0x4 - core index']
  #allocation1 [shape = 'u32[72,128]{1,0:T(1,128)}', space=vmem, size = 0x9000, scoped, tag = 'internal scratch']
  #allocation2 [shape = 'f32[24,128]{1,0:T(8,128)}', space=vmem, size = 0x3000, scoped, tag = 'scratch operand']
  %s0 = inlined_call_operand.vmem [shape: bf16[24,2048], index: 0, kind: input, shape index: {}]
  %s1 = inlined_call_operand.vmem [shape: bf16[2048,384], index: 1, kind: input, shape index: {}]
  %s2 = inlined_call_operand.vmem [shape: f32[1,384], index: 2, kind: input, shape index: {}]
  %s3 = inlined_call_operand.vmem [shape: bf16[24,384], index: 3, kind: output, shape index: {}]
  %s4 = sld [smem:[#allocation0]]
  $region154: #{alexnet_forward.15} parent=0
    _
  %s6 = ssub.s32 1, %s4
  %s7 = scalar_select 0, %s6, %s4
  $region1: #{alexnet_forward.15} parent=0
    #allocation3 [shape = 'u8[49152]{0}', space=vmem, size = 0xc000, scoped, tag = 'input window, operand 0']
    #allocation4 [shape = 'u8[262144]{0}', space=vmem, size = 0x40000, scoped, tag = 'input window, operand 1']
    #allocation5 [shape = 'u8[12288]{0}', space=vmem, size = 0x3000, scoped, tag = 'output window, operand 0']
    loop: start=0, step=1, limit=14
    $region2: #{alexnet_forward.15} parent=1 // loop_pre_header
      _
    $region3: #{alexnet_forward.15} parent=1 // loop_header
      %s9 = sphi 0, %s13
      %p10 = scmp.ge.s32.totalorder %s9, 14
      %s16 = sphi 0, %s35
      %s17 = sphi 0, %s31
      %s18 = sphi 0, %s27
      %s19 = sphi 0, %s16
      %s20 = sphi 0, %s17
      %s21 = sphi 0, %s18
      %s22 = sphi 0, %s19
      %s23 = sphi 0, %s20
      %s24 = sphi 0, %s21
      %s40 = sphi 0, %s42
      %s43 = sphi 0, %s40
      %s44 = sphi 0, %s43
      %s60 = sphi 0, %s44
      %s68 = sphi 0, %s70
      %s71 = sphi 0, %s68
      %s72 = sphi 0, %s71
      %s88 = sphi 0, %s72
      %s94 = sphi 0, %s96
      %s97 = sphi 0, %s94
      %s98 = sphi 0, %s97
      %s114 = sphi 0, %s98
      %s122 = sphi 0, %s124
      %s125 = sphi 0, %s122
      %s126 = sphi 0, %s125
      %s142 = sphi 0, %s126
    $region4: #{alexnet_forward.15} parent=1 // loop_header_branch
      %12 = sbr.rel (%p10) target = $region8
    $region5: #{alexnet_forward.15} parent=1 // loop_body
      %s14 = ssub.s32 %s9, 1
      %s15 = ssub.s32 %s9, 2
      %s25 = sadd.s32 1, %s18
      %p26 = scmp.ge.s32.totalorder %s25, 4
      %s27 = scalar_select %p26, 0, %s25
      %s28 = sadd.s32 1, %s17
      %s29 = scalar_select %p26, %s28, %s17
      %p30 = scmp.ge.s32.totalorder %s29, 3
      %s31 = scalar_select %p30, 0, %s29
      %s32 = sadd.s32 1, %s16
      %s33 = scalar_select %p30, %s32, %s16
      %p34 = scmp.ge.s32.totalorder %s33, 1
      %s35 = scalar_select %p34, 0, %s33
      %s36 = ssub.s32 %s16, %s35
      %s37 = ssub.s32 %s18, %s27
      %s38 = sor.u32 %s36, %s37
      %p39 = scmp.eq.s32.totalorder %s38, 0
      %s41 = sadd.s32 %s40, 1
      %s42 = scalar_select %p39, %s40, %s41
      %p45 = pneg %p39
      %p46 = scmp.eq.s32.totalorder %s9, 11
      %p47 = por %p45, %p46
      %p48 = scmp.ne.s32.totalorder %s40, %s43
      %p49 = scmp.eq.s32.totalorder %s9, 0
      %p50 = por %p48, %p49
      %p51 = scmp.ne.s32.totalorder %s40, %s43
      %p52 = scmp.eq.s32.totalorder %s14, 11
      %p53 = por %p51, %p52
      %p54 = scmp.ne.s32.totalorder %s43, %s44
      %p55 = scmp.eq.s32.totalorder %s14, 0
      %p56 = por %p54, %p55
      %p57 = scmp.ne.s32.totalorder %s43, %s44
      %p58 = scmp.eq.s32.totalorder %s15, 11
      %p59 = por %p57, %p58
      %p61 = scmp.ne.s32.totalorder %s44, %s60
      %p62 = scmp.eq.s32.totalorder %s15, 0
      %p63 = por %p61, %p62
      %s64 = ssub.s32 %s18, %s27
      %s65 = ssub.s32 %s17, %s31
      %s66 = sor.u32 %s64, %s65
      %p67 = scmp.eq.s32.totalorder %s66, 0
      %s69 = sadd.s32 %s68, 1
      %s70 = scalar_select %p67, %s68, %s69
      %p73 = pneg %p67
      %p74 = scmp.eq.s32.totalorder %s9, 11
      %p75 = por %p73, %p74
      %p76 = scmp.ne.s32.totalorder %s68, %s71
      %p77 = scmp.eq.s32.totalorder %s9, 0
      %p78 = por %p76, %p77
      %p79 = scmp.ne.s32.totalorder %s68, %s71
      %p80 = scmp.eq.s32.totalorder %s14, 11
      %p81 = por %p79, %p80
      %p82 = scmp.ne.s32.totalorder %s71, %s72
      %p83 = scmp.eq.s32.totalorder %s14, 0
      %p84 = por %p82, %p83
      %p85 = scmp.ne.s32.totalorder %s71, %s72
      %p86 = scmp.eq.s32.totalorder %s15, 11
      %p87 = por %p85, %p86
      %p89 = scmp.ne.s32.totalorder %s72, %s88
      %p90 = scmp.eq.s32.totalorder %s15, 0
      %p91 = por %p89, %p90
      %s92 = ssub.s32 %s17, %s31
      %p93 = scmp.eq.s32.totalorder %s92, 0
      %s95 = sadd.s32 %s94, 1
      %s96 = scalar_select %p93, %s94, %s95
      %p99 = pneg %p93
      %p100 = scmp.eq.s32.totalorder %s9, 11
      %p101 = por %p99, %p100
      %p102 = scmp.ne.s32.totalorder %s94, %s97
      %p103 = scmp.eq.s32.totalorder %s9, 0
      %p104 = por %p102, %p103
      %p105 = scmp.ne.s32.totalorder %s94, %s97
      %p106 = scmp.eq.s32.totalorder %s14, 11
      %p107 = por %p105, %p106
      %p108 = scmp.ne.s32.totalorder %s97, %s98
      %p109 = scmp.eq.s32.totalorder %s14, 0
      %p110 = por %p108, %p109
      %p111 = scmp.ne.s32.totalorder %s97, %s98
      %p112 = scmp.eq.s32.totalorder %s15, 11
      %p113 = por %p111, %p112
      %p115 = scmp.ne.s32.totalorder %s98, %s114
      %p116 = scmp.eq.s32.totalorder %s15, 0
      %p117 = por %p115, %p116
      %s118 = ssub.s32 %s16, %s35
      %s119 = ssub.s32 %s17, %s31
      %s120 = sor.u32 %s118, %s119
      %p121 = scmp.eq.s32.totalorder %s120, 0
      %s123 = sadd.s32 %s122, 1
      %s124 = scalar_select %p121, %s122, %s123
      %p127 = pneg %p121
      %p128 = scmp.eq.s32.totalorder %s9, 11
      %p129 = por %p127, %p128
      %p130 = scmp.ne.s32.totalorder %s122, %s125
      %p131 = scmp.eq.s32.totalorder %s9, 0
      %p132 = por %p130, %p131
      %p133 = scmp.ne.s32.totalorder %s122, %s125
      %p134 = scmp.eq.s32.totalorder %s14, 11
      %p135 = por %p133, %p134
      %p136 = scmp.ne.s32.totalorder %s125, %s126
      %p137 = scmp.eq.s32.totalorder %s14, 0
      %p138 = por %p136, %p137
      %p139 = scmp.ne.s32.totalorder %s125, %s126
      %p140 = scmp.eq.s32.totalorder %s15, 11
      %p141 = por %p139, %p140
      %p143 = scmp.ne.s32.totalorder %s126, %s142
      %p144 = scmp.eq.s32.totalorder %s15, 0
      %p145 = por %p143, %p144
      %p146 = scmp.le.s32.totalorder 1, %s9
      %p147 = scmp.lt.s32.totalorder %s9, 13
      %p148 = pnand %p146, %p147
      %p149 = pneg %p148
      // Predicated region
      $region9: #{alexnet_forward.15} parent=5 // pred_check
        _
      $region10: #{alexnet_forward.15} parent=5 // pred_check_branch
        %151 = sbr.rel (%p148) target = $region12
      $region11: #{alexnet_forward.15} parent=5 // pred_region
        %s152 = ssub.s32 %s9, 1
      $region12: #{alexnet_forward.15} parent=5 // pred_fallthru
        _
      %p153 = scmp.lt.s32.totalorder %s9, 12
      // Predicated region
      $region13: #{alexnet_forward.15} parent=5 // pred_check
        %p154 = pneg %p153
      $region14: #{alexnet_forward.15} parent=5 // pred_check_branch
        %156 = sbr.rel (%p154) target = $region16
      $region15: #{alexnet_forward.15} parent=5 // pred_region
        // Predicated region
        $region17: #{alexnet_forward.15} parent=15 // pred_check
          %p157 = pneg %p50
        $region18: #{alexnet_forward.15} parent=15 // pred_check_branch
          %159 = sbr.rel (%p157) target = $region20
        $region19: #{alexnet_forward.15} parent=15 // pred_region
          %s160 = sand.u32 %s40, 1
          %s161 = sand.u32 %s40, 1
          %s162 = smul.addr %s161, 48
          %s163 = scalar_lea.vmem [#allocation3], %s162
          %s164 = smul.u32 3, %s16
          %s165 = smul.u32 4, %s18
          %s166 = smul.addr %s164, 16
          %s167 = sadd.s32 %s165, %s166
          %s168 = smul.addr %s167, 4
          %s169 = scalar_lea.vmem %s0, %s168
          // Predicated region
          $region21: #{alexnet_forward.15} parent=19 // pred_check
            _
          $region22: #{alexnet_forward.15} parent=19 // pred_check_branch
            %171 = sbr.rel (0) target = $region24
          $region23: #{alexnet_forward.15} parent=19 // pred_region
            // Predicated region
            $region25: #{alexnet_forward.15} parent=23 // pred_check
              _
            $region26: #{alexnet_forward.15} parent=23 // pred_check_branch
              %173 = sbr.rel (0) target = $region28
            $region27: #{alexnet_forward.15} parent=23 // pred_region
              loop: start=0, step=1, limit=1
              $region29: #{alexnet_forward.15} parent=27 // loop_pre_header
                _
              $region30: #{alexnet_forward.15} parent=27 // loop_header
                %s175 = sphi 0, %s179
                %p176 = scmp.ge.s32.totalorder %s175, 1
                %s180 = sphi %s169, %s169
                %s181 = sphi %s163, %s163
              $region31: #{alexnet_forward.15} parent=27 // loop_header_branch
                %178 = sbr.rel (%p176) target = $region35
              $region32: #{alexnet_forward.15} parent=27 // loop_body
                %v182 = vld [vmem:[%s180] sm:$0xff]
                %183 = vst [vmem:[%s181] sm:$0xff] %v182
                %v184 = vld [vmem:[%s180 + $0x8] sm:$0xff]
                %185 = vst [vmem:[%s181 + $0x8] sm:$0xff] %v184
                %v186 = vld [vmem:[%s180 + $0x40] sm:$0xff]
                %187 = vst [vmem:[%s181 + $0x10] sm:$0xff] %v186
                %v188 = vld [vmem:[%s180 + $0x48] sm:$0xff]
                %189 = vst [vmem:[%s181 + $0x18] sm:$0xff] %v188
                %v190 = vld [vmem:[%s180 + $0x80] sm:$0xff]
                %191 = vst [vmem:[%s181 + $0x20] sm:$0xff] %v190
                %v192 = vld [vmem:[%s180 + $0x88] sm:$0xff]
                %193 = vst [vmem:[%s181 + $0x28] sm:$0xff] %v192
              $region33: #{alexnet_forward.15} parent=27 // loop_footer
                %s179 = sadd.s32 1, %s175
              $region34: #{alexnet_forward.15} parent=27 // loop_footer_branch
                %174 = sbr.rel target = $region30
              $region35: #{alexnet_forward.15} parent=27 // loop_exit
                _
            $region28: #{alexnet_forward.15} parent=23 // pred_fallthru
              _
            // Predicated region
            $region36: #{alexnet_forward.15} parent=23 // pred_check
              _
            $region37: #{alexnet_forward.15} parent=23 // pred_check_branch
              %195 = sbr.rel target = $region39
            $region38: #{alexnet_forward.15} parent=23 // pred_region
              _
            $region39: #{alexnet_forward.15} parent=23 // pred_fallthru
              _
          $region24: #{alexnet_forward.15} parent=19 // pred_fallthru
            _
          %196 = vnop
        $region20: #{alexnet_forward.15} parent=15 // pred_fallthru
          _
        // Predicated region
        $region40: #{alexnet_forward.15} parent=15 // pred_check
          %p197 = pneg %p78
        $region41: #{alexnet_forward.15} parent=15 // pred_check_branch
          %199 = sbr.rel (%p197) target = $region43
        $region42: #{alexnet_forward.15} parent=15 // pred_region
          %s200 = sand.u32 %s68, 1
          %s201 = sand.u32 %s68, 1
          %s202 = smul.addr %s201, 256
          %s203 = scalar_lea.vmem [#allocation4], %s202
          %s204 = smul.u32 64, %s18
          %s205 = smul.addr %s204, 3
          %s206 = sadd.s32 %s17, %s205
          %s207 = smul.addr %s206, 4
          %s208 = scalar_lea.vmem %s1, %s207
          // Predicated region
          $region44: #{alexnet_forward.15} parent=42 // pred_check
            _
          $region45: #{alexnet_forward.15} parent=42 // pred_check_branch
            %210 = sbr.rel (0) target = $region47
          $region46: #{alexnet_forward.15} parent=42 // pred_region
            // Predicated region
            $region48: #{alexnet_forward.15} parent=46 // pred_check
              _
            $region49: #{alexnet_forward.15} parent=46 // pred_check_branch
              %212 = sbr.rel target = $region51
            $region50: #{alexnet_forward.15} parent=46 // pred_region
              // Predicated region
              $region63: #{alexnet_forward.15} parent=50 // pred_check
                _
              $region64: #{alexnet_forward.15} parent=50 // pred_check_branch
                %354 = sbr.rel (0) target = $region66
              $region65: #{alexnet_forward.15} parent=50 // pred_region
                loop: start=0, step=1, limit=1
                $region67: #{alexnet_forward.15} parent=65 // loop_pre_header
                  _
                $region68: #{alexnet_forward.15} parent=65 // loop_header
                  %s356 = sphi 0, %s360
                  %p357 = scmp.ge.s32.totalorder %s356, 1
                  %s361 = sphi %s208, %s208
                  %s362 = sphi %s203, %s203
                $region69: #{alexnet_forward.15} parent=65 // loop_header_branch
                  %359 = sbr.rel (%p357) target = $region73
                $region70: #{alexnet_forward.15} parent=65 // loop_body
                  _
                $region71: #{alexnet_forward.15} parent=65 // loop_footer
                  %s360 = sadd.s32 1, %s356
                $region72: #{alexnet_forward.15} parent=65 // loop_footer_branch
                  %355 = sbr.rel target = $region68
                $region73: #{alexnet_forward.15} parent=65 // loop_exit
                  _
                %s364 = ssub.s32 16, 1
                loop: start=0, step=1, limit=1
                $region74: #{alexnet_forward.15} parent=65 // loop_pre_header
                  _
                $region75: #{alexnet_forward.15} parent=65 // loop_header
                  %s366 = sphi 0, %s370
                  %p367 = scmp.ge.s32.totalorder %s366, 1
                  %s371 = sphi %s208, %s208
                  %s372 = sphi %s203, %s203
                $region76: #{alexnet_forward.15} parent=65 // loop_header_branch
                  %369 = sbr.rel (%p367) target = $region80
                $region77: #{alexnet_forward.15} parent=65 // loop_body
                  %v373 = vld [vmem:[%s371] sm:%s364]
                  %374 = vst [vmem:[%s372] sm:%s364] %v373
                  %v375 = vld [vmem:[%s371 + $0xc] sm:%s364]
                  %376 = vst [vmem:[%s372 + $0x4] sm:%s364] %v375
                  %v377 = vld [vmem:[%s371 + $0x18] sm:%s364]
                  %378 = vst [vmem:[%s372 + $0x8] sm:%s364] %v377
                  %v379 = vld [vmem:[%s371 + $0x24] sm:%s364]
                  %380 = vst [vmem:[%s372 + $0xc] sm:%s364] %v379
                  %v381 = vld [vmem:[%s371 + $0x30] sm:%s364]
                  %382 = vst [vmem:[%s372 + $0x10] sm:%s364] %v381
                  %v383 = vld [vmem:[%s371 + $0x3c] sm:%s364]
                  %384 = vst [vmem:[%s372 + $0x14] sm:%s364] %v383
                  %v385 = vld [vmem:[%s371 + $0x48] sm:%s364]
                  %386 = vst [vmem:[%s372 + $0x18] sm:%s364] %v385
                  %v387 = vld [vmem:[%s371 + $0x54] sm:%s364]
                  %388 = vst [vmem:[%s372 + $0x1c] sm:%s364] %v387
                  %v389 = vld [vmem:[%s371 + $0x60] sm:%s364]
                  %390 = vst [vmem:[%s372 + $0x20] sm:%s364] %v389
                  %v391 = vld [vmem:[%s371 + $0x6c] sm:%s364]
                  %392 = vst [vmem:[%s372 + $0x24] sm:%s364] %v391
                  %v393 = vld [vmem:[%s371 + $0x78] sm:%s364]
                  %394 = vst [vmem:[%s372 + $0x28] sm:%s364] %v393
                  %v395 = vld [vmem:[%s371 + $0x84] sm:%s364]
                  %396 = vst [vmem:[%s372 + $0x2c] sm:%s364] %v395
                  %v397 = vld [vmem:[%s371 + $0x90] sm:%s364]
                  %398 = vst [vmem:[%s372 + $0x30] sm:%s364] %v397
                  %v399 = vld [vmem:[%s371 + $0x9c] sm:%s364]
                  %400 = vst [vmem:[%s372 + $0x34] sm:%s364] %v399
                  %v401 = vld [vmem:[%s371 + $0xa8] sm:%s364]
                  %402 = vst [vmem:[%s372 + $0x38] sm:%s364] %v401
                  %v403 = vld [vmem:[%s371 + $0xb4] sm:%s364]
                  %404 = vst [vmem:[%s372 + $0x3c] sm:%s364] %v403
                  %v405 = vld [vmem:[%s371 + $0xc0] sm:%s364]
                  %406 = vst [vmem:[%s372 + $0x40] sm:%s364] %v405
                  %v407 = vld [vmem:[%s371 + $0xcc] sm:%s364]
                  %408 = vst [vmem:[%s372 + $0x44] sm:%s364] %v407
                  %v409 = vld [vmem:[%s371 + $0xd8] sm:%s364]
                  %410 = vst [vmem:[%s372 + $0x48] sm:%s364] %v409
                  %v411 = vld [vmem:[%s371 + $0xe4] sm:%s364]
                  %412 = vst [vmem:[%s372 + $0x4c] sm:%s364] %v411
                  %v413 = vld [vmem:[%s371 + $0xf0] sm:%s364]
                  %414 = vst [vmem:[%s372 + $0x50] sm:%s364] %v413
                  %v415 = vld [vmem:[%s371 + $0xfc] sm:%s364]
                  %416 = vst [vmem:[%s372 + $0x54] sm:%s364] %v415
                  %v417 = vld [vmem:[%s371 + $0x108] sm:%s364]
                  %418 = vst [vmem:[%s372 + $0x58] sm:%s364] %v417
                  %v419 = vld [vmem:[%s371 + $0x114] sm:%s364]
                  %420 = vst [vmem:[%s372 + $0x5c] sm:%s364] %v419
                  %v421 = vld [vmem:[%s371 + $0x120] sm:%s364]
                  %422 = vst [vmem:[%s372 + $0x60] sm:%s364] %v421
                  %v423 = vld [vmem:[%s371 + $0x12c] sm:%s364]
                  %424 = vst [vmem:[%s372 + $0x64] sm:%s364] %v423
                  %v425 = vld [vmem:[%s371 + $0x138] sm:%s364]
                  %426 = vst [vmem:[%s372 + $0x68] sm:%s364] %v425
                  %v427 = vld [vmem:[%s371 + $0x144] sm:%s364]
                  %428 = vst [vmem:[%s372 + $0x6c] sm:%s364] %v427
                  %v429 = vld [vmem:[%s371 + $0x150] sm:%s364]
                  %430 = vst [vmem:[%s372 + $0x70] sm:%s364] %v429
                  %v431 = vld [vmem:[%s371 + $0x15c] sm:%s364]
                  %432 = vst [vmem:[%s372 + $0x74] sm:%s364] %v431
                  %v433 = vld [vmem:[%s371 + $0x168] sm:%s364]
                  %434 = vst [vmem:[%s372 + $0x78] sm:%s364] %v433
                  %v435 = vld [vmem:[%s371 + $0x174] sm:%s364]
                  %436 = vst [vmem:[%s372 + $0x7c] sm:%s364] %v435
                  %v437 = vld [vmem:[%s371 + $0x180] sm:%s364]
                  %438 = vst [vmem:[%s372 + $0x80] sm:%s364] %v437
                  %v439 = vld [vmem:[%s371 + $0x18c] sm:%s364]
                  %440 = vst [vmem:[%s372 + $0x84] sm:%s364] %v439
                  %v441 = vld [vmem:[%s371 + $0x198] sm:%s364]
                  %442 = vst [vmem:[%s372 + $0x88] sm:%s364] %v441
                  %v443 = vld [vmem:[%s371 + $0x1a4] sm:%s364]
                  %444 = vst [vmem:[%s372 + $0x8c] sm:%s364] %v443
                  %v445 = vld [vmem:[%s371 + $0x1b0] sm:%s364]
                  %446 = vst [vmem:[%s372 + $0x90] sm:%s364] %v445
                  %v447 = vld [vmem:[%s371 + $0x1bc] sm:%s364]
                  %448 = vst [vmem:[%s372 + $0x94] sm:%s364] %v447
                  %v449 = vld [vmem:[%s371 + $0x1c8] sm:%s364]
                  %450 = vst [vmem:[%s372 + $0x98] sm:%s364] %v449
                  %v451 = vld [vmem:[%s371 + $0x1d4] sm:%s364]
                  %452 = vst [vmem:[%s372 + $0x9c] sm:%s364] %v451
                  %v453 = vld [vmem:[%s371 + $0x1e0] sm:%s364]
                  %454 = vst [vmem:[%s372 + $0xa0] sm:%s364] %v453
                  %v455 = vld [vmem:[%s371 + $0x1ec] sm:%s364]
                  %456 = vst [vmem:[%s372 + $0xa4] sm:%s364] %v455
                  %v457 = vld [vmem:[%s371 + $0x1f8] sm:%s364]
                  %458 = vst [vmem:[%s372 + $0xa8] sm:%s364] %v457
                  %v459 = vld [vmem:[%s371 + $0x204] sm:%s364]
                  %460 = vst [vmem:[%s372 + $0xac] sm:%s364] %v459
                  %v461 = vld [vmem:[%s371 + $0x210] sm:%s364]
                  %462 = vst [vmem:[%s372 + $0xb0] sm:%s364] %v461
                  %v463 = vld [vmem:[%s371 + $0x21c] sm:%s364]
                  %464 = vst [vmem:[%s372 + $0xb4] sm:%s364] %v463
                  %v465 = vld [vmem:[%s371 + $0x228] sm:%s364]
                  %466 = vst [vmem:[%s372 + $0xb8] sm:%s364] %v465
                  %v467 = vld [vmem:[%s371 + $0x234] sm:%s364]
                  %468 = vst [vmem:[%s372 + $0xbc] sm:%s364] %v467
                  %v469 = vld [vmem:[%s371 + $0x240] sm:%s364]
                  %470 = vst [vmem:[%s372 + $0xc0] sm:%s364] %v469
                  %v471 = vld [vmem:[%s371 + $0x24c] sm:%s364]
                  %472 = vst [vmem:[%s372 + $0xc4] sm:%s364] %v471
                  %v473 = vld [vmem:[%s371 + $0x258] sm:%s364]
                  %474 = vst [vmem:[%s372 + $0xc8] sm:%s364] %v473
                  %v475 = vld [vmem:[%s371 + $0x264] sm:%s364]
                  %476 = vst [vmem:[%s372 + $0xcc] sm:%s364] %v475
                  %v477 = vld [vmem:[%s371 + $0x270] sm:%s364]
                  %478 = vst [vmem:[%s372 + $0xd0] sm:%s364] %v477
                  %v479 = vld [vmem:[%s371 + $0x27c] sm:%s364]
                  %480 = vst [vmem:[%s372 + $0xd4] sm:%s364] %v479
                  %v481 = vld [vmem:[%s371 + $0x288] sm:%s364]
                  %482 = vst [vmem:[%s372 + $0xd8] sm:%s364] %v481
                  %v483 = vld [vmem:[%s371 + $0x294] sm:%s364]
                  %484 = vst [vmem:[%s372 + $0xdc] sm:%s364] %v483
                  %v485 = vld [vmem:[%s371 + $0x2a0] sm:%s364]
                  %486 = vst [vmem:[%s372 + $0xe0] sm:%s364] %v485
                  %v487 = vld [vmem:[%s371 + $0x2ac] sm:%s364]
                  %488 = vst [vmem:[%s372 + $0xe4] sm:%s364] %v487
                  %v489 = vld [vmem:[%s371 + $0x2b8] sm:%s364]
                  %490 = vst [vmem:[%s372 + $0xe8] sm:%s364] %v489
                  %v491 = vld [vmem:[%s371 + $0x2c4] sm:%s364]
                  %492 = vst [vmem:[%s372 + $0xec] sm:%s364] %v491
                  %v493 = vld [vmem:[%s371 + $0x2d0] sm:%s364]
                  %494 = vst [vmem:[%s372 + $0xf0] sm:%s364] %v493
                  %v495 = vld [vmem:[%s371 + $0x2dc] sm:%s364]
                  %496 = vst [vmem:[%s372 + $0xf4] sm:%s364] %v495
                  %v497 = vld [vmem:[%s371 + $0x2e8] sm:%s364]
                  %498 = vst [vmem:[%s372 + $0xf8] sm:%s364] %v497
                  %v499 = vld [vmem:[%s371 + $0x2f4] sm:%s364]
                  %500 = vst [vmem:[%s372 + $0xfc] sm:%s364] %v499
                $region78: #{alexnet_forward.15} parent=65 // loop_footer
                  %s370 = sadd.s32 1, %s366
                $region79: #{alexnet_forward.15} parent=65 // loop_footer_branch
                  %365 = sbr.rel target = $region75
                $region80: #{alexnet_forward.15} parent=65 // loop_exit
                  _
              $region66: #{alexnet_forward.15} parent=50 // pred_fallthru
                _
            $region51: #{alexnet_forward.15} parent=46 // pred_fallthru
              _
            // Predicated region
            $region52: #{alexnet_forward.15} parent=46 // pred_check
              _
            $region53: #{alexnet_forward.15} parent=46 // pred_check_branch
              %214 = sbr.rel (0) target = $region55
            $region54: #{alexnet_forward.15} parent=46 // pred_region
              %s216 = ssub.s32 16, 1
              loop: start=0, step=1, limit=1
              $region56: #{alexnet_forward.15} parent=54 // loop_pre_header
                _
              $region57: #{alexnet_forward.15} parent=54 // loop_header
                %s218 = sphi 0, %s222
                %p219 = scmp.ge.s32.totalorder %s218, 1
                %s223 = sphi %s208, %s208
                %s224 = sphi %s203, %s203
              $region58: #{alexnet_forward.15} parent=54 // loop_header_branch
                %221 = sbr.rel (%p219) target = $region62
              $region59: #{alexnet_forward.15} parent=54 // loop_body
                %v225 = vld [vmem:[%s223] sm:%s216]
                %226 = vst [vmem:[%s224] sm:%s216] %v225
                %v227 = vld [vmem:[%s223 + $0xc] sm:%s216]
                %228 = vst [vmem:[%s224 + $0x4] sm:%s216] %v227
                %v229 = vld [vmem:[%s223 + $0x18] sm:%s216]
                %230 = vst [vmem:[%s224 + $0x8] sm:%s216] %v229
                %v231 = vld [vmem:[%s223 + $0x24] sm:%s216]
                %232 = vst [vmem:[%s224 + $0xc] sm:%s216] %v231
                %v233 = vld [vmem:[%s223 + $0x30] sm:%s216]
                %234 = vst [vmem:[%s224 + $0x10] sm:%s216] %v233
                %v235 = vld [vmem:[%s223 + $0x3c] sm:%s216]
                %236 = vst [vmem:[%s224 + $0x14] sm:%s216] %v235
                %v237 = vld [vmem:[%s223 + $0x48] sm:%s216]
                %238 = vst [vmem:[%s224 + $0x18] sm:%s216] %v237
                %v239 = vld [vmem:[%s223 + $0x54] sm:%s216]
                %240 = vst [vmem:[%s224 + $0x1c] sm:%s216] %v239
                %v241 = vld [vmem:[%s223 + $0x60] sm:%s216]
                %242 = vst [vmem:[%s224 + $0x20] sm:%s216] %v241
                %v243 = vld [vmem:[%s223 + $0x6c] sm:%s216]
                %244 = vst [vmem:[%s224 + $0x24] sm:%s216] %v243
                %v245 = vld [vmem:[%s223 + $0x78] sm:%s216]
                %246 = vst [vmem:[%s224 + $0x28] sm:%s216] %v245
                %v247 = vld [vmem:[%s223 + $0x84] sm:%s216]
                %248 = vst [vmem:[%s224 + $0x2c] sm:%s216] %v247
                %v249 = vld [vmem:[%s223 + $0x90] sm:%s216]
                %250 = vst [vmem:[%s224 + $0x30] sm:%s216] %v249
                %v251 = vld [vmem:[%s223 + $0x9c] sm:%s216]
                %252 = vst [vmem:[%s224 + $0x34] sm:%s216] %v251
                %v253 = vld [vmem:[%s223 + $0xa8] sm:%s216]
                %254 = vst [vmem:[%s224 + $0x38] sm:%s216] %v253
                %v255 = vld [vmem:[%s223 + $0xb4] sm:%s216]
                %256 = vst [vmem:[%s224 + $0x3c] sm:%s216] %v255
                %v257 = vld [vmem:[%s223 + $0xc0] sm:%s216]
                %258 = vst [vmem:[%s224 + $0x40] sm:%s216] %v257
                %v259 = vld [vmem:[%s223 + $0xcc] sm:%s216]
                %260 = vst [vmem:[%s224 + $0x44] sm:%s216] %v259
                %v261 = vld [vmem:[%s223 + $0xd8] sm:%s216]
                %262 = vst [vmem:[%s224 + $0x48] sm:%s216] %v261
                %v263 = vld [vmem:[%s223 + $0xe4] sm:%s216]
                %264 = vst [vmem:[%s224 + $0x4c] sm:%s216] %v263
                %v265 = vld [vmem:[%s223 + $0xf0] sm:%s216]
                %266 = vst [vmem:[%s224 + $0x50] sm:%s216] %v265
                %v267 = vld [vmem:[%s223 + $0xfc] sm:%s216]
                %268 = vst [vmem:[%s224 + $0x54] sm:%s216] %v267
                %v269 = vld [vmem:[%s223 + $0x108] sm:%s216]
                %270 = vst [vmem:[%s224 + $0x58] sm:%s216] %v269
                %v271 = vld [vmem:[%s223 + $0x114] sm:%s216]
                %272 = vst [vmem:[%s224 + $0x5c] sm:%s216] %v271
                %v273 = vld [vmem:[%s223 + $0x120] sm:%s216]
                %274 = vst [vmem:[%s224 + $0x60] sm:%s216] %v273
                %v275 = vld [vmem:[%s223 + $0x12c] sm:%s216]
                %276 = vst [vmem:[%s224 + $0x64] sm:%s216] %v275
                %v277 = vld [vmem:[%s223 + $0x138] sm:%s216]
                %278 = vst [vmem:[%s224 + $0x68] sm:%s216] %v277
                %v279 = vld [vmem:[%s223 + $0x144] sm:%s216]
                %280 = vst [vmem:[%s224 + $0x6c] sm:%s216] %v279
                %v281 = vld [vmem:[%s223 + $0x150] sm:%s216]
                %282 = vst [vmem:[%s224 + $0x70] sm:%s216] %v281
                %v283 = vld [vmem:[%s223 + $0x15c] sm:%s216]
                %284 = vst [vmem:[%s224 + $0x74] sm:%s216] %v283
                %v285 = vld [vmem:[%s223 + $0x168] sm:%s216]
                %286 = vst [vmem:[%s224 + $0x78] sm:%s216] %v285
                %v287 = vld [vmem:[%s223 + $0x174] sm:%s216]
                %288 = vst [vmem:[%s224 + $0x7c] sm:%s216] %v287
                %v289 = vld [vmem:[%s223 + $0x180] sm:%s216]
                %290 = vst [vmem:[%s224 + $0x80] sm:%s216] %v289
                %v291 = vld [vmem:[%s223 + $0x18c] sm:%s216]
                %292 = vst [vmem:[%s224 + $0x84] sm:%s216] %v291
                %v293 = vld [vmem:[%s223 + $0x198] sm:%s216]
                %294 = vst [vmem:[%s224 + $0x88] sm:%s216] %v293
                %v295 = vld [vmem:[%s223 + $0x1a4] sm:%s216]
                %296 = vst [vmem:[%s224 + $0x8c] sm:%s216] %v295
                %v297 = vld [vmem:[%s223 + $0x1b0] sm:%s216]
                %298 = vst [vmem:[%s224 + $0x90] sm:%s216] %v297
                %v299 = vld [vmem:[%s223 + $0x1bc] sm:%s216]
                %300 = vst [vmem:[%s224 + $0x94] sm:%s216] %v299
                %v301 = vld [vmem:[%s223 + $0x1c8] sm:%s216]
                %302 = vst [vmem:[%s224 + $0x98] sm:%s216] %v301
                %v303 = vld [vmem:[%s223 + $0x1d4] sm:%s216]
                %304 = vst [vmem:[%s224 + $0x9c] sm:%s216] %v303
                %v305 = vld [vmem:[%s223 + $0x1e0] sm:%s216]
                %306 = vst [vmem:[%s224 + $0xa0] sm:%s216] %v305
                %v307 = vld [vmem:[%s223 + $0x1ec] sm:%s216]
                %308 = vst [vmem:[%s224 + $0xa4] sm:%s216] %v307
                %v309 = vld [vmem:[%s223 + $0x1f8] sm:%s216]
                %310 = vst [vmem:[%s224 + $0xa8] sm:%s216] %v309
                %v311 = vld [vmem:[%s223 + $0x204] sm:%s216]
                %312 = vst [vmem:[%s224 + $0xac] sm:%s216] %v311
                %v313 = vld [vmem:[%s223 + $0x210] sm:%s216]
                %314 = vst [vmem:[%s224 + $0xb0] sm:%s216] %v313
                %v315 = vld [vmem:[%s223 + $0x21c] sm:%s216]
                %316 = vst [vmem:[%s224 + $0xb4] sm:%s216] %v315
                %v317 = vld [vmem:[%s223 + $0x228] sm:%s216]
                %318 = vst [vmem:[%s224 + $0xb8] sm:%s216] %v317
                %v319 = vld [vmem:[%s223 + $0x234] sm:%s216]
                %320 = vst [vmem:[%s224 + $0xbc] sm:%s216] %v319
                %v321 = vld [vmem:[%s223 + $0x240] sm:%s216]
                %322 = vst [vmem:[%s224 + $0xc0] sm:%s216] %v321
                %v323 = vld [vmem:[%s223 + $0x24c] sm:%s216]
                %324 = vst [vmem:[%s224 + $0xc4] sm:%s216] %v323
                %v325 = vld [vmem:[%s223 + $0x258] sm:%s216]
                %326 = vst [vmem:[%s224 + $0xc8] sm:%s216] %v325
                %v327 = vld [vmem:[%s223 + $0x264] sm:%s216]
                %328 = vst [vmem:[%s224 + $0xcc] sm:%s216] %v327
                %v329 = vld [vmem:[%s223 + $0x270] sm:%s216]
                %330 = vst [vmem:[%s224 + $0xd0] sm:%s216] %v329
                %v331 = vld [vmem:[%s223 + $0x27c] sm:%s216]
                %332 = vst [vmem:[%s224 + $0xd4] sm:%s216] %v331
                %v333 = vld [vmem:[%s223 + $0x288] sm:%s216]
                %334 = vst [vmem:[%s224 + $0xd8] sm:%s216] %v333
                %v335 = vld [vmem:[%s223 + $0x294] sm:%s216]
                %336 = vst [vmem:[%s224 + $0xdc] sm:%s216] %v335
                %v337 = vld [vmem:[%s223 + $0x2a0] sm:%s216]
                %338 = vst [vmem:[%s224 + $0xe0] sm:%s216] %v337
                %v339 = vld [vmem:[%s223 + $0x2ac] sm:%s216]
                %340 = vst [vmem:[%s224 + $0xe4] sm:%s216] %v339
                %v341 = vld [vmem:[%s223 + $0x2b8] sm:%s216]
                %342 = vst [vmem:[%s224 + $0xe8] sm:%s216] %v341
                %v343 = vld [vmem:[%s223 + $0x2c4] sm:%s216]
                %344 = vst [vmem:[%s224 + $0xec] sm:%s216] %v343
                %v345 = vld [vmem:[%s223 + $0x2d0] sm:%s216]
                %346 = vst [vmem:[%s224 + $0xf0] sm:%s216] %v345
                %v347 = vld [vmem:[%s223 + $0x2dc] sm:%s216]
                %348 = vst [vmem:[%s224 + $0xf4] sm:%s216] %v347
                %v349 = vld [vmem:[%s223 + $0x2e8] sm:%s216]
                %350 = vst [vmem:[%s224 + $0xf8] sm:%s216] %v349
                %v351 = vld [vmem:[%s223 + $0x2f4] sm:%s216]
                %352 = vst [vmem:[%s224 + $0xfc] sm:%s216] %v351
              $region60: #{alexnet_forward.15} parent=54 // loop_footer
                %s222 = sadd.s32 1, %s218
              $region61: #{alexnet_forward.15} parent=54 // loop_footer_branch
                %217 = sbr.rel target = $region57
              $region62: #{alexnet_forward.15} parent=54 // loop_exit
                _
            $region55: #{alexnet_forward.15} parent=46 // pred_fallthru
              _
          $region47: #{alexnet_forward.15} parent=42 // pred_fallthru
            _
          %501 = vnop
        $region43: #{alexnet_forward.15} parent=15 // pred_fallthru
          _
        // Predicated region
        $region81: #{alexnet_forward.15} parent=15 // pred_check
          %p502 = pneg %p104
        $region82: #{alexnet_forward.15} parent=15 // pred_check_branch
          %504 = sbr.rel (%p502) target = $region84
        $region83: #{alexnet_forward.15} parent=15 // pred_region
          %p505 = scmp.lt.s32.totalorder %s17, 2
          %s506 = scalar_select %p505, %s17, 2
          %s507 = scalar_lea.vmem %s2, %s506
        $region84: #{alexnet_forward.15} parent=15 // pred_fallthru
          _
      $region16: #{alexnet_forward.15} parent=5 // pred_fallthru
        _
      %p508 = scmp.le.s32.totalorder 1, %s9
      %p509 = scmp.lt.s32.totalorder %s9, 13
      %p510 = pnand %p508, %p509
      %p511 = pneg %p510
      // Predicated region
      $region85: #{alexnet_forward.15} parent=5 // pred_check
        _
      $region86: #{alexnet_forward.15} parent=5 // pred_check_branch
        %513 = sbr.rel (%p510) target = $region88
      $region87: #{alexnet_forward.15} parent=5 // pred_region
        %s514 = ssub.s32 %s9, 1
        %s515 = sand.u32 %s43, 1
        %s516 = sand.u32 %s43, 1
        %s517 = smul.addr %s516, 48
        %s518 = scalar_lea.vmem [#allocation3], %s517
        // Predicated region
        $region89: #{alexnet_forward.15} parent=87 // pred_check
          %p519 = pneg %p56
        $region90: #{alexnet_forward.15} parent=87 // pred_check_branch
          %521 = sbr.rel (%p519) target = $region92
        $region91: #{alexnet_forward.15} parent=87 // pred_region
          _
        $region92: #{alexnet_forward.15} parent=87 // pred_fallthru
          _
        %s522 = sand.u32 %s71, 1
        %s523 = sand.u32 %s71, 1
        %s524 = smul.addr %s523, 256
        %s525 = scalar_lea.vmem [#allocation4], %s524
        // Predicated region
        $region93: #{alexnet_forward.15} parent=87 // pred_check
          %p526 = pneg %p84
        $region94: #{alexnet_forward.15} parent=87 // pred_check_branch
          %528 = sbr.rel (%p526) target = $region96
        $region95: #{alexnet_forward.15} parent=87 // pred_region
          _
        $region96: #{alexnet_forward.15} parent=87 // pred_fallthru
          _
        %s529 = sand.u32 %s43, 1
        %s530 = sand.u32 %s43, 1
        %s531 = smul.addr %s530, 48
        %s532 = scalar_lea.vmem [#allocation3], %s531
        %p533 = pneg %p56
        %p534 = pneg %p53
        %s535 = sand.u32 %s71, 1
        %s536 = sand.u32 %s71, 1
        %s537 = smul.addr %s536, 256
        %s538 = scalar_lea.vmem [#allocation4], %s537
        %p539 = pneg %p84
        %p540 = pneg %p81
        %p541 = scmp.lt.s32.totalorder %s20, 2
        %s542 = scalar_select %p541, %s20, 2
        %s543 = scalar_lea.vmem %s2, %s542
        %p544 = pneg %p110
        %p545 = pneg %p107
        %p546 = pneg %p138
        %p547 = pneg %p135
        %s548 = sand.u32 %s125, 1
        %s549 = sand.u32 %s125, 1
        %s550 = smul.addr %s549, 12
        %s551 = scalar_lea.vmem [#allocation5], %s550
        %s552 = smul.u32 3, %s19
        %s553 = smul.u32 4, %s21
        %s554 = smul.u32 64, %s21
        %p555 = scmp.lt.s32.totalorder %s20, 2
        %s556 = scalar_select %p555, %s20, 2
        %s557 = scalar_lea.vmem %s2, %s556
        %s558 = smul.u32 3, %s19
        %p559 = scmp.eq.s32.totalorder %s21, 0
        // Predicated region
        $region97: #{alexnet_forward.15} parent=87 // pred_check
          %p560 = pneg %p559
        $region98: #{alexnet_forward.15} parent=87 // pred_check_branch
          %562 = sbr.rel (%p560) target = $region100
        $region99: #{alexnet_forward.15} parent=87 // pred_region
          %563 = vst [vmem:[#allocation2] sm:$0xff] 0.0
          %564 = vst [vmem:[#allocation2 + $0x8] sm:$0xff] 0.0
          %565 = vst [vmem:[#allocation2 + $0x10] sm:$0xff] 0.0
        $region100: #{alexnet_forward.15} parent=87 // pred_fallthru
          _
        %v566 = vld [vmem:[#allocation2] sm:$0xff]
        %v567 = vld [vmem:[#allocation2 + $0x8] sm:$0xff]
        %v568 = vld [vmem:[#allocation2 + $0x10] sm:$0xff]
        %v569 = vld [vmem:[%s518] sm:$0xff]
        %v570 = vld [vmem:[%s518 + $0x8] sm:$0xff]
        %v571 = vld [vmem:[%s518 + $0x10] sm:$0xff]
        %v572 = vld [vmem:[%s518 + $0x18] sm:$0xff]
        %v573 = vld [vmem:[%s518 + $0x20] sm:$0xff]
        %v574 = vld [vmem:[%s518 + $0x28] sm:$0xff]
        %v575 = vld [vmem:[%s525] sm:$0xf]
        %v576 = vld [vmem:[%s525 + $0x4] sm:$0xf]
        %v577 = vld [vmem:[%s525 + $0x8] sm:$0xf]
        %v578 = vld [vmem:[%s525 + $0xc] sm:$0xf]
        %v579 = vld [vmem:[%s525 + $0x10] sm:$0xf]
        %v580 = vld [vmem:[%s525 + $0x14] sm:$0xf]
        %v581 = vld [vmem:[%s525 + $0x18] sm:$0xf]
        %v582 = vld [vmem:[%s525 + $0x1c] sm:$0xf]
        %v583 = vld [vmem:[%s525 + $0x20] sm:$0xf]
        %v584 = vld [vmem:[%s525 + $0x24] sm:$0xf]
        %v585 = vld [vmem:[%s525 + $0x28] sm:$0xf]
        %v586 = vld [vmem:[%s525 + $0x2c] sm:$0xf]
        %v587 = vld [vmem:[%s525 + $0x30] sm:$0xf]
        %v588 = vld [vmem:[%s525 + $0x34] sm:$0xf]
        %v589 = vld [vmem:[%s525 + $0x38] sm:$0xf]
        %v590 = vld [vmem:[%s525 + $0x3c] sm:$0xf]
        %v591 = vld [vmem:[%s525 + $0x40] sm:$0xf]
        %v592 = vld [vmem:[%s525 + $0x44] sm:$0xf]
        %v593 = vld [vmem:[%s525 + $0x48] sm:$0xf]
        %v594 = vld [vmem:[%s525 + $0x4c] sm:$0xf]
        %v595 = vld [vmem:[%s525 + $0x50] sm:$0xf]
        %v596 = vld [vmem:[%s525 + $0x54] sm:$0xf]
        %v597 = vld [vmem:[%s525 + $0x58] sm:$0xf]
        %v598 = vld [vmem:[%s525 + $0x5c] sm:$0xf]
        %v599 = vld [vmem:[%s525 + $0x60] sm:$0xf]
        %v600 = vld [vmem:[%s525 + $0x64] sm:$0xf]
        %v601 = vld [vmem:[%s525 + $0x68] sm:$0xf]
        %v602 = vld [vmem:[%s525 + $0x6c] sm:$0xf]
        %v603 = vld [vmem:[%s525 + $0x70] sm:$0xf]
        %v604 = vld [vmem:[%s525 + $0x74] sm:$0xf]
        %v605 = vld [vmem:[%s525 + $0x78] sm:$0xf]
        %v606 = vld [vmem:[%s525 + $0x7c] sm:$0xf]
        %v607 = vld [vmem:[%s525 + $0x80] sm:$0xf]
        %v608 = vld [vmem:[%s525 + $0x84] sm:$0xf]
        %v609 = vld [vmem:[%s525 + $0x88] sm:$0xf]
        %v610 = vld [vmem:[%s525 + $0x8c] sm:$0xf]
        %v611 = vld [vmem:[%s525 + $0x90] sm:$0xf]
        %v612 = vld [vmem:[%s525 + $0x94] sm:$0xf]
        %v613 = vld [vmem:[%s525 + $0x98] sm:$0xf]
        %v614 = vld [vmem:[%s525 + $0x9c] sm:$0xf]
        %v615 = vld [vmem:[%s525 + $0xa0] sm:$0xf]
        %v616 = vld [vmem:[%s525 + $0xa4] sm:$0xf]
        %v617 = vld [vmem:[%s525 + $0xa8] sm:$0xf]
        %v618 = vld [vmem:[%s525 + $0xac] sm:$0xf]
        %v619 = vld [vmem:[%s525 + $0xb0] sm:$0xf]
        %v620 = vld [vmem:[%s525 + $0xb4] sm:$0xf]
        %v621 = vld [vmem:[%s525 + $0xb8] sm:$0xf]
        %v622 = vld [vmem:[%s525 + $0xbc] sm:$0xf]
        %v623 = vld [vmem:[%s525 + $0xc0] sm:$0xf]
        %v624 = vld [vmem:[%s525 + $0xc4] sm:$0xf]
        %v625 = vld [vmem:[%s525 + $0xc8] sm:$0xf]
        %v626 = vld [vmem:[%s525 + $0xcc] sm:$0xf]
        %v627 = vld [vmem:[%s525 + $0xd0] sm:$0xf]
        %v628 = vld [vmem:[%s525 + $0xd4] sm:$0xf]
        %v629 = vld [vmem:[%s525 + $0xd8] sm:$0xf]
        %v630 = vld [vmem:[%s525 + $0xdc] sm:$0xf]
        %v631 = vld [vmem:[%s525 + $0xe0] sm:$0xf]
        %v632 = vld [vmem:[%s525 + $0xe4] sm:$0xf]
        %v633 = vld [vmem:[%s525 + $0xe8] sm:$0xf]
        %v634 = vld [vmem:[%s525 + $0xec] sm:$0xf]
        %v635 = vld [vmem:[%s525 + $0xf0] sm:$0xf]
        %v636 = vld [vmem:[%s525 + $0xf4] sm:$0xf]
        %v637 = vld [vmem:[%s525 + $0xf8] sm:$0xf]
        %v638 = vld [vmem:[%s525 + $0xfc] sm:$0xf]
        %v645 = vunpack.c.l.b16 %v569
        %v646 = vunpack.c.h.b16 %v569
        %v647 = vunpack.c.l.b16 %v570
        %v648 = vunpack.c.h.b16 %v570
        %v649 = vunpack.c.l.b16 %v571
        %v650 = vunpack.c.h.b16 %v571
        %v651 = vunpack.c.l.b16 %v572
        %v652 = vunpack.c.h.b16 %v572
        %v653 = vunpack.c.l.b16 %v573
        %v654 = vunpack.c.h.b16 %v573
        %v655 = vunpack.c.l.b16 %v574
        %v656 = vunpack.c.h.b16 %v574
        %v657 = vpack.c.b16 %v649, %v645
        %v658 = vpack.c.b16 %v650, %v646
        %v659 = vpack.c.b16 %v651, %v647
        %v660 = vpack.c.b16 %v652, %v648
        %v661 = vpack.c.b16 %v653, %v653
        %v662 = vpack.c.b16 %v654, %v654
        %v663 = vpack.c.b16 %v655, %v655
        %v664 = vpack.c.b16 %v656, %v656
        %v737 = vunpack.c.l.b16 %v575
        %v738 = vunpack.c.l.b16 %v576
        %v739 = vunpack.c.l.b16 %v577
        %v740 = vunpack.c.l.b16 %v578
        %v741 = vunpack.c.l.b16 %v579
        %v742 = vunpack.c.l.b16 %v580
        %v743 = vunpack.c.l.b16 %v581
        %v744 = vunpack.c.l.b16 %v582
        %v745 = vunpack.c.l.b16 %v583
        %v746 = vunpack.c.l.b16 %v584
        %v747 = vunpack.c.l.b16 %v585
        %v748 = vunpack.c.l.b16 %v586
        %v749 = vunpack.c.l.b16 %v587
        %v750 = vunpack.c.l.b16 %v588
        %v751 = vunpack.c.l.b16 %v589
        %v752 = vunpack.c.l.b16 %v590
        %v753 = vunpack.c.l.b16 %v591
        %v754 = vunpack.c.l.b16 %v592
        %v755 = vunpack.c.l.b16 %v593
        %v756 = vunpack.c.l.b16 %v594
        %v757 = vunpack.c.l.b16 %v595
        %v758 = vunpack.c.l.b16 %v596
        %v759 = vunpack.c.l.b16 %v597
        %v760 = vunpack.c.l.b16 %v598
        %v761 = vunpack.c.l.b16 %v599
        %v762 = vunpack.c.l.b16 %v600
        %v763 = vunpack.c.l.b16 %v601
        %v764 = vunpack.c.l.b16 %v602
        %v765 = vunpack.c.l.b16 %v603
        %v766 = vunpack.c.l.b16 %v604
        %v767 = vunpack.c.l.b16 %v605
        %v768 = vunpack.c.l.b16 %v606
        %v769 = vunpack.c.l.b16 %v607
        %v770 = vunpack.c.l.b16 %v608
        %v771 = vunpack.c.l.b16 %v609
        %v772 = vunpack.c.l.b16 %v610
        %v773 = vunpack.c.l.b16 %v611
        %v774 = vunpack.c.l.b16 %v612
        %v775 = vunpack.c.l.b16 %v613
        %v776 = vunpack.c.l.b16 %v614
        %v777 = vunpack.c.l.b16 %v615
        %v778 = vunpack.c.l.b16 %v616
        %v779 = vunpack.c.l.b16 %v617
        %v780 = vunpack.c.l.b16 %v618
        %v781 = vunpack.c.l.b16 %v619
        %v782 = vunpack.c.l.b16 %v620
        %v783 = vunpack.c.l.b16 %v621
        %v784 = vunpack.c.l.b16 %v622
        %v785 = vunpack.c.l.b16 %v623
        %v786 = vunpack.c.l.b16 %v624
        %v787 = vunpack.c.l.b16 %v625
        %v788 = vunpack.c.l.b16 %v626
        %v789 = vunpack.c.l.b16 %v627
        %v790 = vunpack.c.l.b16 %v628
        %v791 = vunpack.c.l.b16 %v629
        %v792 = vunpack.c.l.b16 %v630
        %v793 = vunpack.c.l.b16 %v631
        %v794 = vunpack.c.l.b16 %v632
        %v795 = vunpack.c.l.b16 %v633
        %v796 = vunpack.c.l.b16 %v634
        %v797 = vunpack.c.l.b16 %v635
        %v798 = vunpack.c.l.b16 %v636
        %v799 = vunpack.c.l.b16 %v637
        %v800 = vunpack.c.l.b16 %v638
        %v801 = vpack.c.b16 %v738, %v737
        %v802 = vpack.c.b16 %v740, %v739
        %v803 = vpack.c.b16 %v742, %v741
        %v804 = vpack.c.b16 %v744, %v743
        %v805 = vpack.c.b16 %v746, %v745
        %v806 = vpack.c.b16 %v748, %v747
        %v807 = vpack.c.b16 %v750, %v749
        %v808 = vpack.c.b16 %v752, %v751
        %v809 = vpack.c.b16 %v754, %v753
        %v810 = vpack.c.b16 %v756, %v755
        %v811 = vpack.c.b16 %v758, %v757
        %v812 = vpack.c.b16 %v760, %v759
        %v813 = vpack.c.b16 %v762, %v761
        %v814 = vpack.c.b16 %v764, %v763
        %v815 = vpack.c.b16 %v766, %v765
        %v816 = vpack.c.b16 %v768, %v767
        %v817 = vpack.c.b16 %v770, %v769
        %v818 = vpack.c.b16 %v772, %v771
        %v819 = vpack.c.b16 %v774, %v773
        %v820 = vpack.c.b16 %v776, %v775
        %v821 = vpack.c.b16 %v778, %v777
        %v822 = vpack.c.b16 %v780, %v779
        %v823 = vpack.c.b16 %v782, %v781
        %v824 = vpack.c.b16 %v784, %v783
        %v825 = vpack.c.b16 %v786, %v785
        %v826 = vpack.c.b16 %v788, %v787
        %v827 = vpack.c.b16 %v790, %v789
        %v828 = vpack.c.b16 %v792, %v791
        %v829 = vpack.c.b16 %v794, %v793
        %v830 = vpack.c.b16 %v796, %v795
        %v831 = vpack.c.b16 %v798, %v797
        %v832 = vpack.c.b16 %v800, %v799
        %865 = vmatpush.bf16.msra.mxu0 %v808
        %866 = vmatpush.bf16.msra.mxu0 %v807
        %867 = vmatpush.bf16.msra.mxu0 %v806
        %868 = vmatpush.bf16.msra.mxu0 %v805
        %869 = vmatpush.bf16.msra.mxu0 %v804
        %870 = vmatpush.bf16.msra.mxu0 %v803
        %871 = vmatpush.bf16.msra.mxu0 %v802
        %872 = vmatpush.bf16.msra.mxu0 %v801
        %873 = vmatmul.bf16.gmra.mxu0 %v657
        %v874 = vpop.f32.mrf.mxu0
        %v875 = vadd.f32 0.0, %v874
        %v876 = vpop.f32.mrf.mxu0
        %v877 = vadd.f32 0.0, %v876
        %878 = vmatmul.bf16.gmra.mxu0 %v661
        %v879 = vpop.f32.mrf.mxu0
        %v880 = vadd.f32 0.0, %v879
        %v881 = vpop.f32.mrf.mxu0
        %882 = vdwg.mxu0
        %883 = vmatpush.bf16.msra.mxu0 %v816
        %884 = vmatpush.bf16.msra.mxu0 %v815
        %885 = vmatpush.bf16.msra.mxu0 %v814
        %886 = vmatpush.bf16.msra.mxu0 %v813
        %887 = vmatpush.bf16.msra.mxu0 %v812
        %888 = vmatpush.bf16.msra.mxu0 %v811
        %889 = vmatpush.bf16.msra.mxu0 %v810
        %890 = vmatpush.bf16.msra.mxu0 %v809
        %891 = vmatmul.bf16.gmra.mxu0 %v658
        %v892 = vpop.f32.mrf.mxu0
        %v893 = vadd.f32 %v875, %v892
        %v894 = vpop.f32.mrf.mxu0
        %v895 = vadd.f32 %v877, %v894
        %896 = vmatmul.bf16.gmra.mxu0 %v662
        %v897 = vpop.f32.mrf.mxu0
        %v898 = vadd.f32 %v880, %v897
        %v899 = vpop.f32.mrf.mxu0
        %900 = vdwg.mxu0
        %901 = vmatpush.bf16.msra.mxu0 %v824
        %902 = vmatpush.bf16.msra.mxu0 %v823
        %903 = vmatpush.bf16.msra.mxu0 %v822
        %904 = vmatpush.bf16.msra.mxu0 %v821
        %905 = vmatpush.bf16.msra.mxu0 %v820
        %906 = vmatpush.bf16.msra.mxu0 %v819
        %907 = vmatpush.bf16.msra.mxu0 %v818
        %908 = vmatpush.bf16.msra.mxu0 %v817
        %909 = vmatmul.bf16.gmra.mxu0 %v659
        %v910 = vpop.f32.mrf.mxu0
        %v911 = vadd.f32 %v893, %v910
        %v912 = vpop.f32.mrf.mxu0
        %v913 = vadd.f32 %v895, %v912
        %914 = vmatmul.bf16.gmra.mxu0 %v663
        %v915 = vpop.f32.mrf.mxu0
        %v916 = vadd.f32 %v898, %v915
        %v917 = vpop.f32.mrf.mxu0
        %918 = vdwg.mxu0
        %919 = vmatpush.bf16.msra.mxu0 %v832
        %920 = vmatpush.bf16.msra.mxu0 %v831
        %921 = vmatpush.bf16.msra.mxu0 %v830
        %922 = vmatpush.bf16.msra.mxu0 %v829
        %923 = vmatpush.bf16.msra.mxu0 %v828
        %924 = vmatpush.bf16.msra.mxu0 %v827
        %925 = vmatpush.bf16.msra.mxu0 %v826
        %926 = vmatpush.bf16.msra.mxu0 %v825
        %927 = vmatmul.bf16.gmra.mxu0 %v660
        %v928 = vpop.f32.mrf.mxu0
        %v929 = vadd.f32 %v911, %v928
        %v930 = vpop.f32.mrf.mxu0
        %v931 = vadd.f32 %v913, %v930
        %932 = vmatmul.bf16.gmra.mxu0 %v664
        %v933 = vpop.f32.mrf.mxu0
        %v934 = vadd.f32 %v916, %v933
        %v935 = vpop.f32.mrf.mxu0
        %936 = vdwg.mxu0
        %v937 = vadd.f32 %v566, %v929
        %v938 = vadd.f32 %v567, %v931
        %v939 = vadd.f32 %v568, %v934
        %940 = vst [vmem:[#allocation2] sm:$0xff] %v937
        %941 = vst [vmem:[#allocation2 + $0x8] sm:$0xff] %v938
        %942 = vst [vmem:[#allocation2 + $0x10] sm:$0xff] %v939
        %p943 = scmp.eq.s32.totalorder %s21, 3
        // Predicated region
        $region101: #{alexnet_forward.15} parent=87 // pred_check
          %p944 = pneg %p943
        $region102: #{alexnet_forward.15} parent=87 // pred_check_branch
          %946 = sbr.rel (%p944) target = $region104
        $region103: #{alexnet_forward.15} parent=87 // pred_region
          %v947 = vld [vmem:[#allocation2] sm:$0xff]
          %v948 = vld [vmem:[#allocation2 + $0x8] sm:$0xff]
          %v949 = vld [vmem:[#allocation2 + $0x10] sm:$0xff]
          %v950 = vld [vmem:[%s557] sm:$0x1]
          %v952 = vperm.slane %v950, 0
          %v954 = vadd.f32 %v947, %v952
          %v955 = vadd.f32 %v948, %v952
          %v956 = vadd.f32 %v949, %v952
          %v957 = vmax.f32 %v954, 0.0
          %v958 = vmax.f32 %v955, 0.0
          %v959 = vmax.f32 %v956, 0.0
          %v960 = vpack.c.bf16 %v957, %v957
          %v961 = vpack.c.bf16 %v958, %v958
          %v962 = vpack.c.bf16 %v959, %v959
          %963 = vst [vmem:[%s551] sm:$0xf] %v960
          %964 = vst [vmem:[%s551 + $0x4] sm:$0xf] %v961
          %965 = vst [vmem:[%s551 + $0x8] sm:$0xf] %v962
        $region104: #{alexnet_forward.15} parent=87 // pred_fallthru
          _
        %s966 = sand.u32 %s125, 1
        %s967 = sand.u32 %s125, 1
        %s968 = smul.addr %s967, 12
        %s969 = scalar_lea.vmem [#allocation5], %s968
        // Predicated region
        $region105: #{alexnet_forward.15} parent=87 // pred_check
          %p970 = pneg %p135
        $region106: #{alexnet_forward.15} parent=87 // pred_check_branch
          %972 = sbr.rel (%p970) target = $region108
        $region107: #{alexnet_forward.15} parent=87 // pred_region
          %s973 = smul.u32 3, %s19
          %s974 = smul.addr %s973, 3
          %s975 = sadd.s32 %s20, %s974
          %s976 = smul.addr %s975, 4
          %s977 = scalar_lea.vmem %s3, %s976
          // Predicated region
          $region109: #{alexnet_forward.15} parent=107 // pred_check
            _
          $region110: #{alexnet_forward.15} parent=107 // pred_check_branch
            %979 = sbr.rel (0) target = $region112
          $region111: #{alexnet_forward.15} parent=107 // pred_region
            // Predicated region
            $region113: #{alexnet_forward.15} parent=111 // pred_check
              _
            $region114: #{alexnet_forward.15} parent=111 // pred_check_branch
              %981 = sbr.rel target = $region116
            $region115: #{alexnet_forward.15} parent=111 // pred_region
              // Predicated region
              $region128: #{alexnet_forward.15} parent=115 // pred_check
                _
              $region129: #{alexnet_forward.15} parent=115 // pred_check_branch
                %1001 = sbr.rel (0) target = $region131
              $region130: #{alexnet_forward.15} parent=115 // pred_region
                loop: start=0, step=1, limit=1
                $region132: #{alexnet_forward.15} parent=130 // loop_pre_header
                  _
                $region133: #{alexnet_forward.15} parent=130 // loop_header
                  %s1003 = sphi 0, %s1007
                  %p1004 = scmp.ge.s32.totalorder %s1003, 1
                  %s1008 = sphi %s969, %s969
                  %s1009 = sphi %s977, %s977
                $region134: #{alexnet_forward.15} parent=130 // loop_header_branch
                  %1006 = sbr.rel (%p1004) target = $region138
                $region135: #{alexnet_forward.15} parent=130 // loop_body
                  _
                $region136: #{alexnet_forward.15} parent=130 // loop_footer
                  %s1007 = sadd.s32 1, %s1003
                $region137: #{alexnet_forward.15} parent=130 // loop_footer_branch
                  %1002 = sbr.rel target = $region133
                $region138: #{alexnet_forward.15} parent=130 // loop_exit
                  _
                %s1011 = ssub.s32 16, 1
                loop: start=0, step=1, limit=1
                $region139: #{alexnet_forward.15} parent=130 // loop_pre_header
                  _
                $region140: #{alexnet_forward.15} parent=130 // loop_header
                  %s1013 = sphi 0, %s1017
                  %p1014 = scmp.ge.s32.totalorder %s1013, 1
                  %s1018 = sphi %s969, %s969
                  %s1019 = sphi %s977, %s977
                $region141: #{alexnet_forward.15} parent=130 // loop_header_branch
                  %1016 = sbr.rel (%p1014) target = $region145
                $region142: #{alexnet_forward.15} parent=130 // loop_body
                  %v1020 = vld [vmem:[%s1018] sm:%s1011]
                  %1021 = vst [vmem:[%s1019] sm:%s1011] %v1020
                  %v1022 = vld [vmem:[%s1018 + $0x4] sm:%s1011]
                  %1023 = vst [vmem:[%s1019 + $0xc] sm:%s1011] %v1022
                  %v1024 = vld [vmem:[%s1018 + $0x8] sm:%s1011]
                  %1025 = vst [vmem:[%s1019 + $0x18] sm:%s1011] %v1024
                $region143: #{alexnet_forward.15} parent=130 // loop_footer
                  %s1017 = sadd.s32 1, %s1013
                $region144: #{alexnet_forward.15} parent=130 // loop_footer_branch
                  %1012 = sbr.rel target = $region140
                $region145: #{alexnet_forward.15} parent=130 // loop_exit
                  _
              $region131: #{alexnet_forward.15} parent=115 // pred_fallthru
                _
            $region116: #{alexnet_forward.15} parent=111 // pred_fallthru
              _
            // Predicated region
            $region117: #{alexnet_forward.15} parent=111 // pred_check
              _
            $region118: #{alexnet_forward.15} parent=111 // pred_check_branch
              %983 = sbr.rel (0) target = $region120
            $region119: #{alexnet_forward.15} parent=111 // pred_region
              %s985 = ssub.s32 16, 1
              loop: start=0, step=1, limit=1
              $region121: #{alexnet_forward.15} parent=119 // loop_pre_header
                _
              $region122: #{alexnet_forward.15} parent=119 // loop_header
                %s987 = sphi 0, %s991
                %p988 = scmp.ge.s32.totalorder %s987, 1
                %s992 = sphi %s969, %s969
                %s993 = sphi %s977, %s977
              $region123: #{alexnet_forward.15} parent=119 // loop_header_branch
                %990 = sbr.rel (%p988) target = $region127
              $region124: #{alexnet_forward.15} parent=119 // loop_body
                %v994 = vld [vmem:[%s992] sm:%s985]
                %995 = vst [vmem:[%s993] sm:%s985] %v994
                %v996 = vld [vmem:[%s992 + $0x4] sm:%s985]
                %997 = vst [vmem:[%s993 + $0xc] sm:%s985] %v996
                %v998 = vld [vmem:[%s992 + $0x8] sm:%s985]
                %999 = vst [vmem:[%s993 + $0x18] sm:%s985] %v998
              $region125: #{alexnet_forward.15} parent=119 // loop_footer
                %s991 = sadd.s32 1, %s987
              $region126: #{alexnet_forward.15} parent=119 // loop_footer_branch
                %986 = sbr.rel target = $region122
              $region127: #{alexnet_forward.15} parent=119 // loop_exit
                _
            $region120: #{alexnet_forward.15} parent=111 // pred_fallthru
              _
          $region112: #{alexnet_forward.15} parent=107 // pred_fallthru
            _
          %1026 = vnop
        $region108: #{alexnet_forward.15} parent=87 // pred_fallthru
          _
      $region88: #{alexnet_forward.15} parent=5 // pred_fallthru
        _
      %p1027 = scmp.le.s32.totalorder 2, %s9
      // Predicated region
      $region146: #{alexnet_forward.15} parent=5 // pred_check
        %p1028 = pneg %p1027
      $region147: #{alexnet_forward.15} parent=5 // pred_check_branch
        %1030 = sbr.rel (%p1028) target = $region149
      $region148: #{alexnet_forward.15} parent=5 // pred_region
        %s1031 = ssub.s32 %s9, 2
        // Predicated region
        $region150: #{alexnet_forward.15} parent=148 // pred_check
          %p1032 = pneg %p141
        $region151: #{alexnet_forward.15} parent=148 // pred_check_branch
          %1034 = sbr.rel (%p1032) target = $region153
        $region152: #{alexnet_forward.15} parent=148 // pred_region
          %s1035 = sand.u32 %s126, 1
          %s1036 = sand.u32 %s126, 1
          %s1037 = smul.addr %s1036, 12
          %s1038 = scalar_lea.vmem [#allocation5], %s1037
        $region153: #{alexnet_forward.15} parent=148 // pred_fallthru
          _
      $region149: #{alexnet_forward.15} parent=5 // pred_fallthru
        _
    $region6: #{alexnet_forward.15} parent=1 // loop_footer
      %s13 = sadd.s32 1, %s9
    $region7: #{alexnet_forward.15} parent=1 // loop_footer_branch
      %8 = sbr.rel target = $region3
    $region8: #{alexnet_forward.15} parent=1 // loop_exit
      _

// kernel: alexnet_forward.16
$region0: #{alexnet_forward.16}
  #allocation0 [shape = 'u32[]', space=smem, size = 0x4, offset = 0x4, fixed_abs, tag = 'smem constant byte address 0x4 - core index']
  #allocation1 [shape = 'u32[72,128]{1,0:T(1,128)}', space=vmem, size = 0x9000, scoped, tag = 'internal scratch']
  #allocation2 [shape = 'f32[24,256]{1,0:T(8,128)}', space=vmem, size = 0x6000, scoped, tag = 'scratch operand']
  %s0 = inlined_call_operand.vmem [shape: bf16[24,3584], index: 0, kind: input, shape index: {}]
  %s1 = inlined_call_operand.vmem [shape: bf16[3584,256], index: 1, kind: input, shape index: {}]
  %s2 = inlined_call_operand.vmem [shape: f32[1,256], index: 2, kind: input, shape index: {}]
  %s3 = inlined_call_operand.vmem [shape: bf16[24,256], index: 3, kind: output, shape index: {}]
  %s4 = sld [smem:[#allocation0]]
  $region76: #{alexnet_forward.16} parent=0
    _
  %s6 = ssub.s32 1, %s4
  %s7 = scalar_select 0, %s6, %s4
  $region1: #{alexnet_forward.16} parent=0
    #allocation3 [shape = 'u8[49152]{0}', space=vmem, size = 0xc000, scoped, tag = 'input window, operand 0']
    loop: start=0, step=1, limit=9
    $region2: #{alexnet_forward.16} parent=1 // loop_pre_header
      _
    $region3: #{alexnet_forward.16} parent=1 // loop_header
      %s9 = sphi 0, %s13
      %p10 = scmp.ge.s32.totalorder %s9, 9
      %s16 = sphi 0, %s35
      %s17 = sphi 0, %s31
      %s18 = sphi 0, %s27
      %s19 = sphi 0, %s16
      %s20 = sphi 0, %s17
      %s21 = sphi 0, %s18
      %s22 = sphi 0, %s19
      %s23 = sphi 0, %s20
      %s24 = sphi 0, %s21
      %s40 = sphi 0, %s42
      %s43 = sphi 0, %s40
      %s44 = sphi 0, %s43
      %s60 = sphi 0, %s44
      %s68 = sphi 0, %s70
      %s71 = sphi 0, %s68
      %s72 = sphi 0, %s71
      %s88 = sphi 0, %s72
      %s94 = sphi 0, %s96
      %s97 = sphi 0, %s94
      %s98 = sphi 0, %s97
      %s114 = sphi 0, %s98
      %s122 = sphi 0, %s124
      %s125 = sphi 0, %s122
      %s126 = sphi 0, %s125
      %s142 = sphi 0, %s126
    $region4: #{alexnet_forward.16} parent=1 // loop_header_branch
      %12 = sbr.rel (%p10) target = $region8
    $region5: #{alexnet_forward.16} parent=1 // loop_body
      %s14 = ssub.s32 %s9, 1
      %s15 = ssub.s32 %s9, 2
      %s25 = sadd.s32 1, %s18
      %p26 = scmp.ge.s32.totalorder %s25, 7
      %s27 = scalar_select %p26, 0, %s25
      %s28 = sadd.s32 1, %s17
      %s29 = scalar_select %p26, %s28, %s17
      %p30 = scmp.ge.s32.totalorder %s29, 1
      %s31 = scalar_select %p30, 0, %s29
      %s32 = sadd.s32 1, %s16
      %s33 = scalar_select %p30, %s32, %s16
      %p34 = scmp.ge.s32.totalorder %s33, 1
      %s35 = scalar_select %p34, 0, %s33
      %s36 = ssub.s32 %s16, %s35
      %s37 = ssub.s32 %s18, %s27
      %s38 = sor.u32 %s36, %s37
      %p39 = scmp.eq.s32.totalorder %s38, 0
      %s41 = sadd.s32 %s40, 1
      %s42 = scalar_select %p39, %s40, %s41
      %p45 = pneg %p39
      %p46 = scmp.eq.s32.totalorder %s9, 6
      %p47 = por %p45, %p46
      %p48 = scmp.ne.s32.totalorder %s40, %s43
      %p49 = scmp.eq.s32.totalorder %s9, 0
      %p50 = por %p48, %p49
      %p51 = scmp.ne.s32.totalorder %s40, %s43
      %p52 = scmp.eq.s32.totalorder %s14, 6
      %p53 = por %p51, %p52
      %p54 = scmp.ne.s32.totalorder %s43, %s44
      %p55 = scmp.eq.s32.totalorder %s14, 0
      %p56 = por %p54, %p55
      %p57 = scmp.ne.s32.totalorder %s43, %s44
      %p58 = scmp.eq.s32.totalorder %s15, 6
      %p59 = por %p57, %p58
      %p61 = scmp.ne.s32.totalorder %s44, %s60
      %p62 = scmp.eq.s32.totalorder %s15, 0
      %p63 = por %p61, %p62
      %s64 = ssub.s32 %s18, %s27
      %s65 = ssub.s32 %s17, %s31
      %s66 = sor.u32 %s64, %s65
      %p67 = scmp.eq.s32.totalorder %s66, 0
      %s69 = sadd.s32 %s68, 1
      %s70 = scalar_select %p67, %s68, %s69
      %p73 = pneg %p67
      %p74 = scmp.eq.s32.totalorder %s9, 6
      %p75 = por %p73, %p74
      %p76 = scmp.ne.s32.totalorder %s68, %s71
      %p77 = scmp.eq.s32.totalorder %s9, 0
      %p78 = por %p76, %p77
      %p79 = scmp.ne.s32.totalorder %s68, %s71
      %p80 = scmp.eq.s32.totalorder %s14, 6
      %p81 = por %p79, %p80
      %p82 = scmp.ne.s32.totalorder %s71, %s72
      %p83 = scmp.eq.s32.totalorder %s14, 0
      %p84 = por %p82, %p83
      %p85 = scmp.ne.s32.totalorder %s71, %s72
      %p86 = scmp.eq.s32.totalorder %s15, 6
      %p87 = por %p85, %p86
      %p89 = scmp.ne.s32.totalorder %s72, %s88
      %p90 = scmp.eq.s32.totalorder %s15, 0
      %p91 = por %p89, %p90
      %s92 = ssub.s32 %s17, %s31
      %p93 = scmp.eq.s32.totalorder %s92, 0
      %s95 = sadd.s32 %s94, 1
      %s96 = scalar_select %p93, %s94, %s95
      %p99 = pneg %p93
      %p100 = scmp.eq.s32.totalorder %s9, 6
      %p101 = por %p99, %p100
      %p102 = scmp.ne.s32.totalorder %s94, %s97
      %p103 = scmp.eq.s32.totalorder %s9, 0
      %p104 = por %p102, %p103
      %p105 = scmp.ne.s32.totalorder %s94, %s97
      %p106 = scmp.eq.s32.totalorder %s14, 6
      %p107 = por %p105, %p106
      %p108 = scmp.ne.s32.totalorder %s97, %s98
      %p109 = scmp.eq.s32.totalorder %s14, 0
      %p110 = por %p108, %p109
      %p111 = scmp.ne.s32.totalorder %s97, %s98
      %p112 = scmp.eq.s32.totalorder %s15, 6
      %p113 = por %p111, %p112
      %p115 = scmp.ne.s32.totalorder %s98, %s114
      %p116 = scmp.eq.s32.totalorder %s15, 0
      %p117 = por %p115, %p116
      %s118 = ssub.s32 %s16, %s35
      %s119 = ssub.s32 %s17, %s31
      %s120 = sor.u32 %s118, %s119
      %p121 = scmp.eq.s32.totalorder %s120, 0
      %s123 = sadd.s32 %s122, 1
      %s124 = scalar_select %p121, %s122, %s123
      %p127 = pneg %p121
      %p128 = scmp.eq.s32.totalorder %s9, 6
      %p129 = por %p127, %p128
      %p130 = scmp.ne.s32.totalorder %s122, %s125
      %p131 = scmp.eq.s32.totalorder %s9, 0
      %p132 = por %p130, %p131
      %p133 = scmp.ne.s32.totalorder %s122, %s125
      %p134 = scmp.eq.s32.totalorder %s14, 6
      %p135 = por %p133, %p134
      %p136 = scmp.ne.s32.totalorder %s125, %s126
      %p137 = scmp.eq.s32.totalorder %s14, 0
      %p138 = por %p136, %p137
      %p139 = scmp.ne.s32.totalorder %s125, %s126
      %p140 = scmp.eq.s32.totalorder %s15, 6
      %p141 = por %p139, %p140
      %p143 = scmp.ne.s32.totalorder %s126, %s142
      %p144 = scmp.eq.s32.totalorder %s15, 0
      %p145 = por %p143, %p144
      %p146 = scmp.le.s32.totalorder 1, %s9
      %p147 = scmp.lt.s32.totalorder %s9, 8
      %p148 = pnand %p146, %p147
      %p149 = pneg %p148
      // Predicated region
      $region9: #{alexnet_forward.16} parent=5 // pred_check
        _
      $region10: #{alexnet_forward.16} parent=5 // pred_check_branch
        %151 = sbr.rel (%p148) target = $region12
      $region11: #{alexnet_forward.16} parent=5 // pred_region
        %s152 = ssub.s32 %s9, 1
        // Predicated region
        $region13: #{alexnet_forward.16} parent=11 // pred_check
          %p153 = pneg %p110
        $region14: #{alexnet_forward.16} parent=11 // pred_check_branch
          %155 = sbr.rel (%p153) target = $region16
        $region15: #{alexnet_forward.16} parent=11 // pred_region
          %s156 = smul.u32 2, %s20
          %p157 = scmp.lt.s32.totalorder %s156, 1
          %s158 = scalar_select %p157, %s156, 1
          %s159 = scalar_lea.vmem %s2, %s158
          %s160 = smul.u32 2, %s20
        $region16: #{alexnet_forward.16} parent=11 // pred_fallthru
          _
      $region12: #{alexnet_forward.16} parent=5 // pred_fallthru
        _
      %p161 = scmp.lt.s32.totalorder %s9, 7
      // Predicated region
      $region17: #{alexnet_forward.16} parent=5 // pred_check
        %p162 = pneg %p161
      $region18: #{alexnet_forward.16} parent=5 // pred_check_branch
        %164 = sbr.rel (%p162) target = $region20
      $region19: #{alexnet_forward.16} parent=5 // pred_region
        // Predicated region
        $region21: #{alexnet_forward.16} parent=19 // pred_check
          %p165 = pneg %p50
        $region22: #{alexnet_forward.16} parent=19 // pred_check_branch
          %167 = sbr.rel (%p165) target = $region24
        $region23: #{alexnet_forward.16} parent=19 // pred_region
          %s168 = sand.u32 %s40, 1
          %s169 = sand.u32 %s40, 1
          %s170 = smul.addr %s169, 48
          %s171 = scalar_lea.vmem [#allocation3], %s170
          %s172 = smul.u32 3, %s16
          %s173 = smul.u32 4, %s18
          %s174 = smul.addr %s172, 28
          %s175 = sadd.s32 %s173, %s174
          %s176 = smul.addr %s175, 4
          %s177 = scalar_lea.vmem %s0, %s176
          // Predicated region
          $region25: #{alexnet_forward.16} parent=23 // pred_check
            _
          $region26: #{alexnet_forward.16} parent=23 // pred_check_branch
            %179 = sbr.rel (0) target = $region28
          $region27: #{alexnet_forward.16} parent=23 // pred_region
            // Predicated region
            $region29: #{alexnet_forward.16} parent=27 // pred_check
              _
            $region30: #{alexnet_forward.16} parent=27 // pred_check_branch
              %181 = sbr.rel (0) target = $region32
            $region31: #{alexnet_forward.16} parent=27 // pred_region
              loop: start=0, step=1, limit=1
              $region33: #{alexnet_forward.16} parent=31 // loop_pre_header
                _
              $region34: #{alexnet_forward.16} parent=31 // loop_header
                %s183 = sphi 0, %s187
                %p184 = scmp.ge.s32.totalorder %s183, 1
                %s188 = sphi %s177, %s177
                %s189 = sphi %s171, %s171
              $region35: #{alexnet_forward.16} parent=31 // loop_header_branch
                %186 = sbr.rel (%p184) target = $region39
              $region36: #{alexnet_forward.16} parent=31 // loop_body
                %v190 = vld [vmem:[%s188] sm:$0xff]
                %191 = vst [vmem:[%s189] sm:$0xff] %v190
                %v192 = vld [vmem:[%s188 + $0x8] sm:$0xff]
                %193 = vst [vmem:[%s189 + $0x8] sm:$0xff] %v192
                %v194 = vld [vmem:[%s188 + $0x70] sm:$0xff]
                %195 = vst [vmem:[%s189 + $0x10] sm:$0xff] %v194
                %v196 = vld [vmem:[%s188 + $0x78] sm:$0xff]
                %197 = vst [vmem:[%s189 + $0x18] sm:$0xff] %v196
                %v198 = vld [vmem:[%s188 + $0xe0] sm:$0xff]
                %199 = vst [vmem:[%s189 + $0x20] sm:$0xff] %v198
                %v200 = vld [vmem:[%s188 + $0xe8] sm:$0xff]
                %201 = vst [vmem:[%s189 + $0x28] sm:$0xff] %v200
              $region37: #{alexnet_forward.16} parent=31 // loop_footer
                %s187 = sadd.s32 1, %s183
              $region38: #{alexnet_forward.16} parent=31 // loop_footer_branch
                %182 = sbr.rel target = $region34
              $region39: #{alexnet_forward.16} parent=31 // loop_exit
                _
            $region32: #{alexnet_forward.16} parent=27 // pred_fallthru
              _
            // Predicated region
            $region40: #{alexnet_forward.16} parent=27 // pred_check
              _
            $region41: #{alexnet_forward.16} parent=27 // pred_check_branch
              %203 = sbr.rel target = $region43
            $region42: #{alexnet_forward.16} parent=27 // pred_region
              _
            $region43: #{alexnet_forward.16} parent=27 // pred_fallthru
              _
          $region28: #{alexnet_forward.16} parent=23 // pred_fallthru
            _
          %204 = vnop
        $region24: #{alexnet_forward.16} parent=19 // pred_fallthru
          _
        // Predicated region
        $region44: #{alexnet_forward.16} parent=19 // pred_check
          %p205 = pneg %p78
        $region45: #{alexnet_forward.16} parent=19 // pred_check_branch
          %207 = sbr.rel (%p205) target = $region47
        $region46: #{alexnet_forward.16} parent=19 // pred_region
          %s208 = smul.u32 64, %s18
          %s209 = smul.u32 2, %s17
          %p210 = scmp.lt.s32.totalorder %s208, 447
          %s211 = scalar_select %p210, %s208, 447
          %p212 = scmp.lt.s32.totalorder %s209, 1
          %s213 = scalar_select %p212, %s209, 1
          %s214 = smul.addr %s211, 2
          %s215 = sadd.s32 %s213, %s214
          %s216 = smul.addr %s215, 4
          %s217 = scalar_lea.vmem %s1, %s216
          %s218 = smul.u32 64, %s18
          %s219 = smul.u32 2, %s17
        $region47: #{alexnet_forward.16} parent=19 // pred_fallthru
          _
      $region20: #{alexnet_forward.16} parent=5 // pred_fallthru
        _
      %p220 = scmp.le.s32.totalorder 1, %s9
      %p221 = scmp.lt.s32.totalorder %s9, 8
      %p222 = pnand %p220, %p221
      %p223 = pneg %p222
      // Predicated region
      $region48: #{alexnet_forward.16} parent=5 // pred_check
        _
      $region49: #{alexnet_forward.16} parent=5 // pred_check_branch
        %225 = sbr.rel (%p222) target = $region51
      $region50: #{alexnet_forward.16} parent=5 // pred_region
        %s226 = ssub.s32 %s9, 1
        %s227 = sand.u32 %s43, 1
        %s228 = sand.u32 %s43, 1
        %s229 = smul.addr %s228, 48
        %s230 = scalar_lea.vmem [#allocation3], %s229
        // Predicated region
        $region52: #{alexnet_forward.16} parent=50 // pred_check
          %p231 = pneg %p56
        $region53: #{alexnet_forward.16} parent=50 // pred_check_branch
          %233 = sbr.rel (%p231) target = $region55
        $region54: #{alexnet_forward.16} parent=50 // pred_region
          _
        $region55: #{alexnet_forward.16} parent=50 // pred_fallthru
          _
        %s234 = sand.u32 %s43, 1
        %s235 = sand.u32 %s43, 1
        %s236 = smul.addr %s235, 48
        %s237 = scalar_lea.vmem [#allocation3], %s236
        %p238 = pneg %p56
        %p239 = pneg %p53
        %s240 = smul.u32 64, %s21
        %s241 = smul.u32 2, %s20
        %p242 = scmp.lt.s32.totalorder %s240, 447
        %s243 = scalar_select %p242, %s240, 447
        %p244 = scmp.lt.s32.totalorder %s241, 1
        %s245 = scalar_select %p244, %s241, 1
        %s246 = smul.addr %s243, 2
        %s247 = sadd.s32 %s245, %s246
        %s248 = smul.addr %s247, 4
        %s249 = scalar_lea.vmem %s1, %s248
        %p250 = pneg %p84
        %p251 = pneg %p81
        %s252 = smul.u32 2, %s20
        %p253 = scmp.lt.s32.totalorder %s252, 1
        %s254 = scalar_select %p253, %s252, 1
        %s255 = scalar_lea.vmem %s2, %s254
        %p256 = pneg %p110
        %p257 = pneg %p107
        %p258 = pneg %p138
        %p259 = pneg %p135
        %s260 = smul.u32 3, %s19
        %s261 = smul.u32 2, %s20
        %p262 = scmp.lt.s32.totalorder %s260, 2
        %s263 = scalar_select %p262, %s260, 2
        %p264 = scmp.lt.s32.totalorder %s261, 1
        %s265 = scalar_select %p264, %s261, 1
        %s266 = smul.addr %s263, 2
        %s267 = sadd.s32 %s265, %s266
        %s268 = smul.addr %s267, 4
        %s269 = scalar_lea.vmem %s3, %s268
        %s270 = smul.u32 3, %s19
        %s271 = smul.u32 4, %s21
        %s272 = smul.u32 64, %s21
        %s273 = smul.u32 2, %s20
        %p274 = scmp.lt.s32.totalorder %s272, 447
        %s275 = scalar_select %p274, %s272, 447
        %p276 = scmp.lt.s32.totalorder %s273, 1
        %s277 = scalar_select %p276, %s273, 1
        %s278 = smul.addr %s275, 2
        %s279 = sadd.s32 %s277, %s278
        %s280 = smul.addr %s279, 4
        %s281 = scalar_lea.vmem %s1, %s280
        %s282 = smul.u32 64, %s21
        %s283 = smul.u32 2, %s20
        %s284 = smul.u32 2, %s20
        %p285 = scmp.lt.s32.totalorder %s284, 1
        %s286 = scalar_select %p285, %s284, 1
        %s287 = scalar_lea.vmem %s2, %s286
        %s288 = smul.u32 2, %s20
        %s289 = smul.u32 3, %s19
        %s290 = smul.u32 2, %s20
        %p291 = scmp.lt.s32.totalorder %s289, 2
        %s292 = scalar_select %p291, %s289, 2
        %p293 = scmp.lt.s32.totalorder %s290, 1
        %s294 = scalar_select %p293, %s290, 1
        %s295 = smul.addr %s292, 2
        %s296 = sadd.s32 %s294, %s295
        %s297 = smul.addr %s296, 4
        %s298 = scalar_lea.vmem %s3, %s297
        %s299 = smul.u32 3, %s19
        %s300 = smul.u32 2, %s20
        %p301 = scmp.eq.s32.totalorder %s21, 0
        // Predicated region
        $region56: #{alexnet_forward.16} parent=50 // pred_check
          %p302 = pneg %p301
        $region57: #{alexnet_forward.16} parent=50 // pred_check_branch
          %304 = sbr.rel (%p302) target = $region59
        $region58: #{alexnet_forward.16} parent=50 // pred_region
          %305 = vst [vmem:[#allocation2] sm:$0xff] 0.0
          %306 = vst [vmem:[#allocation2 + $0x8] sm:$0xff] 0.0
          %307 = vst [vmem:[#allocation2 + $0x10] sm:$0xff] 0.0
          %308 = vst [vmem:[#allocation2 + $0x18] sm:$0xff] 0.0
          %309 = vst [vmem:[#allocation2 + $0x20] sm:$0xff] 0.0
          %310 = vst [vmem:[#allocation2 + $0x28] sm:$0xff] 0.0
        $region59: #{alexnet_forward.16} parent=50 // pred_fallthru
          _
        %v311 = vld [vmem:[#allocation2] sm:$0xff]
        %v312 = vld [vmem:[#allocation2 + $0x8] sm:$0xff]
        %v313 = vld [vmem:[#allocation2 + $0x10] sm:$0xff]
        %v314 = vld [vmem:[#allocation2 + $0x18] sm:$0xff]
        %v315 = vld [vmem:[#allocation2 + $0x20] sm:$0xff]
        %v316 = vld [vmem:[#allocation2 + $0x28] sm:$0xff]
        %v317 = vld [vmem:[%s230] sm:$0xff]
        %v318 = vld [vmem:[%s230 + $0x8] sm:$0xff]
        %v319 = vld [vmem:[%s230 + $0x10] sm:$0xff]
        %v320 = vld [vmem:[%s230 + $0x18] sm:$0xff]
        %v321 = vld [vmem:[%s230 + $0x20] sm:$0xff]
        %v322 = vld [vmem:[%s230 + $0x28] sm:$0xff]
        %v323 = vld [vmem:[%s281] sm:$0xff]
        %v324 = vld [vmem:[%s281 + $0x8] sm:$0xff]
        %v325 = vld [vmem:[%s281 + $0x10] sm:$0xff]
        %v326 = vld [vmem:[%s281 + $0x18] sm:$0xff]
        %v327 = vld [vmem:[%s281 + $0x20] sm:$0xff]
        %v328 = vld [vmem:[%s281 + $0x28] sm:$0xff]
        %v329 = vld [vmem:[%s281 + $0x30] sm:$0xff]
        %v330 = vld [vmem:[%s281 + $0x38] sm:$0xff]
        %v331 = vld [vmem:[%s281 + $0x40] sm:$0xff]
        %v332 = vld [vmem:[%s281 + $0x48] sm:$0xff]
        %v333 = vld [vmem:[%s281 + $0x50] sm:$0xff]
        %v334 = vld [vmem:[%s281 + $0x58] sm:$0xff]
        %v335 = vld [vmem:[%s281 + $0x60] sm:$0xff]
        %v336 = vld [vmem:[%s281 + $0x68] sm:$0xff]
        %v337 = vld [vmem:[%s281 + $0x70] sm:$0xff]
        %v338 = vld [vmem:[%s281 + $0x78] sm:$0xff]
        %v339 = vld [vmem:[%s281 + $0x80] sm:$0xff]
        %v340 = vld [vmem:[%s281 + $0x88] sm:$0xff]
        %v341 = vld [vmem:[%s281 + $0x90] sm:$0xff]
        %v342 = vld [vmem:[%s281 + $0x98] sm:$0xff]
        %v343 = vld [vmem:[%s281 + $0xa0] sm:$0xff]
        %v344 = vld [vmem:[%s281 + $0xa8] sm:$0xff]
        %v345 = vld [vmem:[%s281 + $0xb0] sm:$0xff]
        %v346 = vld [vmem:[%s281 + $0xb8] sm:$0xff]
        %v347 = vld [vmem:[%s281 + $0xc0] sm:$0xff]
        %v348 = vld [vmem:[%s281 + $0xc8] sm:$0xff]
        %v349 = vld [vmem:[%s281 + $0xd0] sm:$0xff]
        %v350 = vld [vmem:[%s281 + $0xd8] sm:$0xff]
        %v351 = vld [vmem:[%s281 + $0xe0] sm:$0xff]
        %v352 = vld [vmem:[%s281 + $0xe8] sm:$0xff]
        %v353 = vld [vmem:[%s281 + $0xf0] sm:$0xff]
        %v354 = vld [vmem:[%s281 + $0xf8] sm:$0xff]
        %v355 = vld [vmem:[%s281 + $0x100] sm:$0xff]
        %v356 = vld [vmem:[%s281 + $0x108] sm:$0xff]
        %v357 = vld [vmem:[%s281 + $0x110] sm:$0xff]
        %v358 = vld [vmem:[%s281 + $0x118] sm:$0xff]
        %v359 = vld [vmem:[%s281 + $0x120] sm:$0xff]
        %v360 = vld [vmem:[%s281 + $0x128] sm:$0xff]
        %v361 = vld [vmem:[%s281 + $0x130] sm:$0xff]
        %v362 = vld [vmem:[%s281 + $0x138] sm:$0xff]
        %v363 = vld [vmem:[%s281 + $0x140] sm:$0xff]
        %v364 = vld [vmem:[%s281 + $0x148] sm:$0xff]
        %v365 = vld [vmem:[%s281 + $0x150] sm:$0xff]
        %v366 = vld [vmem:[%s281 + $0x158] sm:$0xff]
        %v367 = vld [vmem:[%s281 + $0x160] sm:$0xff]
        %v368 = vld [vmem:[%s281 + $0x168] sm:$0xff]
        %v369 = vld [vmem:[%s281 + $0x170] sm:$0xff]
        %v370 = vld [vmem:[%s281 + $0x178] sm:$0xff]
        %v371 = vld [vmem:[%s281 + $0x180] sm:$0xff]
        %v372 = vld [vmem:[%s281 + $0x188] sm:$0xff]
        %v373 = vld [vmem:[%s281 + $0x190] sm:$0xff]
        %v374 = vld [vmem:[%s281 + $0x198] sm:$0xff]
        %v375 = vld [vmem:[%s281 + $0x1a0] sm:$0xff]
        %v376 = vld [vmem:[%s281 + $0x1a8] sm:$0xff]
        %v377 = vld [vmem:[%s281 + $0x1b0] sm:$0xff]
        %v378 = vld [vmem:[%s281 + $0x1b8] sm:$0xff]
        %v379 = vld [vmem:[%s281 + $0x1c0] sm:$0xff]
        %v380 = vld [vmem:[%s281 + $0x1c8] sm:$0xff]
        %v381 = vld [vmem:[%s281 + $0x1d0] sm:$0xff]
        %v382 = vld [vmem:[%s281 + $0x1d8] sm:$0xff]
        %v383 = vld [vmem:[%s281 + $0x1e0] sm:$0xff]
        %v384 = vld [vmem:[%s281 + $0x1e8] sm:$0xff]
        %v385 = vld [vmem:[%s281 + $0x1f0] sm:$0xff]
        %v386 = vld [vmem:[%s281 + $0x1f8] sm:$0xff]
        %v393 = vunpack.c.l.b16 %v317
        %v394 = vunpack.c.h.b16 %v317
        %v395 = vunpack.c.l.b16 %v318
        %v396 = vunpack.c.h.b16 %v318
        %v397 = vunpack.c.l.b16 %v319
        %v398 = vunpack.c.h.b16 %v319
        %v399 = vunpack.c.l.b16 %v320
        %v400 = vunpack.c.h.b16 %v320
        %v401 = vunpack.c.l.b16 %v321
        %v402 = vunpack.c.h.b16 %v321
        %v403 = vunpack.c.l.b16 %v322
        %v404 = vunpack.c.h.b16 %v322
        %v405 = vpack.c.b16 %v397, %v393
        %v406 = vpack.c.b16 %v398, %v394
        %v407 = vpack.c.b16 %v399, %v395
        %v408 = vpack.c.b16 %v400, %v396
        %v409 = vpack.c.b16 %v401, %v401
        %v410 = vpack.c.b16 %v402, %v402
        %v411 = vpack.c.b16 %v403, %v403
        %v412 = vpack.c.b16 %v404, %v404
        %v485 = vunpack.c.l.b16 %v323
        %v486 = vunpack.c.h.b16 %v323
        %v487 = vunpack.c.l.b16 %v324
        %v488 = vunpack.c.h.b16 %v324
        %v489 = vunpack.c.l.b16 %v325
        %v490 = vunpack.c.h.b16 %v325
        %v491 = vunpack.c.l.b16 %v326
        %v492 = vunpack.c.h.b16 %v326
        %v493 = vunpack.c.l.b16 %v327
        %v494 = vunpack.c.h.b16 %v327
        %v495 = vunpack.c.l.b16 %v328
        %v496 = vunpack.c.h.b16 %v328
        %v497 = vunpack.c.l.b16 %v329
        %v498 = vunpack.c.h.b16 %v329
        %v499 = vunpack.c.l.b16 %v330
        %v500 = vunpack.c.h.b16 %v330
        %v501 = vunpack.c.l.b16 %v331
        %v502 = vunpack.c.h.b16 %v331
        %v503 = vunpack.c.l.b16 %v332
        %v504 = vunpack.c.h.b16 %v332
        %v505 = vunpack.c.l.b16 %v333
        %v506 = vunpack.c.h.b16 %v333
        %v507 = vunpack.c.l.b16 %v334
        %v508 = vunpack.c.h.b16 %v334
        %v509 = vunpack.c.l.b16 %v335
        %v510 = vunpack.c.h.b16 %v335
        %v511 = vunpack.c.l.b16 %v336
        %v512 = vunpack.c.h.b16 %v336
        %v513 = vunpack.c.l.b16 %v337
        %v514 = vunpack.c.h.b16 %v337
        %v515 = vunpack.c.l.b16 %v338
        %v516 = vunpack.c.h.b16 %v338
        %v517 = vunpack.c.l.b16 %v339
        %v518 = vunpack.c.h.b16 %v339
        %v519 = vunpack.c.l.b16 %v340
        %v520 = vunpack.c.h.b16 %v340
        %v521 = vunpack.c.l.b16 %v341
        %v522 = vunpack.c.h.b16 %v341
        %v523 = vunpack.c.l.b16 %v342
        %v524 = vunpack.c.h.b16 %v342
        %v525 = vunpack.c.l.b16 %v343
        %v526 = vunpack.c.h.b16 %v343
        %v527 = vunpack.c.l.b16 %v344
        %v528 = vunpack.c.h.b16 %v344
        %v529 = vunpack.c.l.b16 %v345
        %v530 = vunpack.c.h.b16 %v345
        %v531 = vunpack.c.l.b16 %v346
        %v532 = vunpack.c.h.b16 %v346
        %v533 = vunpack.c.l.b16 %v347
        %v534 = vunpack.c.h.b16 %v347
        %v535 = vunpack.c.l.b16 %v348
        %v536 = vunpack.c.h.b16 %v348
        %v537 = vunpack.c.l.b16 %v349
        %v538 = vunpack.c.h.b16 %v349
        %v539 = vunpack.c.l.b16 %v350
        %v540 = vunpack.c.h.b16 %v350
        %v541 = vunpack.c.l.b16 %v351
        %v542 = vunpack.c.h.b16 %v351
        %v543 = vunpack.c.l.b16 %v352
        %v544 = vunpack.c.h.b16 %v352
        %v545 = vunpack.c.l.b16 %v353
        %v546 = vunpack.c.h.b16 %v353
        %v547 = vunpack.c.l.b16 %v354
        %v548 = vunpack.c.h.b16 %v354
        %v549 = vunpack.c.l.b16 %v355
        %v550 = vunpack.c.h.b16 %v355
        %v551 = vunpack.c.l.b16 %v356
        %v552 = vunpack.c.h.b16 %v356
        %v553 = vunpack.c.l.b16 %v357
        %v554 = vunpack.c.h.b16 %v357
        %v555 = vunpack.c.l.b16 %v358
        %v556 = vunpack.c.h.b16 %v358
        %v557 = vunpack.c.l.b16 %v359
        %v558 = vunpack.c.h.b16 %v359
        %v559 = vunpack.c.l.b16 %v360
        %v560 = vunpack.c.h.b16 %v360
        %v561 = vunpack.c.l.b16 %v361
        %v562 = vunpack.c.h.b16 %v361
        %v563 = vunpack.c.l.b16 %v362
        %v564 = vunpack.c.h.b16 %v362
        %v565 = vunpack.c.l.b16 %v363
        %v566 = vunpack.c.h.b16 %v363
        %v567 = vunpack.c.l.b16 %v364
        %v568 = vunpack.c.h.b16 %v364
        %v569 = vunpack.c.l.b16 %v365
        %v570 = vunpack.c.h.b16 %v365
        %v571 = vunpack.c.l.b16 %v366
        %v572 = vunpack.c.h.b16 %v366
        %v573 = vunpack.c.l.b16 %v367
        %v574 = vunpack.c.h.b16 %v367
        %v575 = vunpack.c.l.b16 %v368
        %v576 = vunpack.c.h.b16 %v368
        %v577 = vunpack.c.l.b16 %v369
        %v578 = vunpack.c.h.b16 %v369
        %v579 = vunpack.c.l.b16 %v370
        %v580 = vunpack.c.h.b16 %v370
        %v581 = vunpack.c.l.b16 %v371
        %v582 = vunpack.c.h.b16 %v371
        %v583 = vunpack.c.l.b16 %v372
        %v584 = vunpack.c.h.b16 %v372
        %v585 = vunpack.c.l.b16 %v373
        %v586 = vunpack.c.h.b16 %v373
        %v587 = vunpack.c.l.b16 %v374
        %v588 = vunpack.c.h.b16 %v374
        %v589 = vunpack.c.l.b16 %v375
        %v590 = vunpack.c.h.b16 %v375
        %v591 = vunpack.c.l.b16 %v376
        %v592 = vunpack.c.h.b16 %v376
        %v593 = vunpack.c.l.b16 %v377
        %v594 = vunpack.c.h.b16 %v377
        %v595 = vunpack.c.l.b16 %v378
        %v596 = vunpack.c.h.b16 %v378
        %v597 = vunpack.c.l.b16 %v379
        %v598 = vunpack.c.h.b16 %v379
        %v599 = vunpack.c.l.b16 %v380
        %v600 = vunpack.c.h.b16 %v380
        %v601 = vunpack.c.l.b16 %v381
        %v602 = vunpack.c.h.b16 %v381
        %v603 = vunpack.c.l.b16 %v382
        %v604 = vunpack.c.h.b16 %v382
        %v605 = vunpack.c.l.b16 %v383
        %v606 = vunpack.c.h.b16 %v383
        %v607 = vunpack.c.l.b16 %v384
        %v608 = vunpack.c.h.b16 %v384
        %v609 = vunpack.c.l.b16 %v385
        %v610 = vunpack.c.h.b16 %v385
        %v611 = vunpack.c.l.b16 %v386
        %v612 = vunpack.c.h.b16 %v386
        %v613 = vpack.c.b16 %v487, %v485
        %v614 = vpack.c.b16 %v488, %v486
        %v615 = vpack.c.b16 %v491, %v489
        %v616 = vpack.c.b16 %v492, %v490
        %v617 = vpack.c.b16 %v495, %v493
        %v618 = vpack.c.b16 %v496, %v494
        %v619 = vpack.c.b16 %v499, %v497
        %v620 = vpack.c.b16 %v500, %v498
        %v621 = vpack.c.b16 %v503, %v501
        %v622 = vpack.c.b16 %v504, %v502
        %v623 = vpack.c.b16 %v507, %v505
        %v624 = vpack.c.b16 %v508, %v506
        %v625 = vpack.c.b16 %v511, %v509
        %v626 = vpack.c.b16 %v512, %v510
        %v627 = vpack.c.b16 %v515, %v513
        %v628 = vpack.c.b16 %v516, %v514
        %v629 = vpack.c.b16 %v519, %v517
        %v630 = vpack.c.b16 %v520, %v518
        %v631 = vpack.c.b16 %v523, %v521
        %v632 = vpack.c.b16 %v524, %v522
        %v633 = vpack.c.b16 %v527, %v525
        %v634 = vpack.c.b16 %v528, %v526
        %v635 = vpack.c.b16 %v531, %v529
        %v636 = vpack.c.b16 %v532, %v530
        %v637 = vpack.c.b16 %v535, %v533
        %v638 = vpack.c.b16 %v536, %v534
        %v639 = vpack.c.b16 %v539, %v537
        %v640 = vpack.c.b16 %v540, %v538
        %v641 = vpack.c.b16 %v543, %v541
        %v642 = vpack.c.b16 %v544, %v542
        %v643 = vpack.c.b16 %v547, %v545
        %v644 = vpack.c.b16 %v548, %v546
        %v645 = vpack.c.b16 %v551, %v549
        %v646 = vpack.c.b16 %v552, %v550
        %v647 = vpack.c.b16 %v555, %v553
        %v648 = vpack.c.b16 %v556, %v554
        %v649 = vpack.c.b16 %v559, %v557
        %v650 = vpack.c.b16 %v560, %v558
        %v651 = vpack.c.b16 %v563, %v561
        %v652 = vpack.c.b16 %v564, %v562
        %v653 = vpack.c.b16 %v567, %v565
        %v654 = vpack.c.b16 %v568, %v566
        %v655 = vpack.c.b16 %v571, %v569
        %v656 = vpack.c.b16 %v572, %v570
        %v657 = vpack.c.b16 %v575, %v573
        %v658 = vpack.c.b16 %v576, %v574
        %v659 = vpack.c.b16 %v579, %v577
        %v660 = vpack.c.b16 %v580, %v578
        %v661 = vpack.c.b16 %v583, %v581
        %v662 = vpack.c.b16 %v584, %v582
        %v663 = vpack.c.b16 %v587, %v585
        %v664 = vpack.c.b16 %v588, %v586
        %v665 = vpack.c.b16 %v591, %v589
        %v666 = vpack.c.b16 %v592, %v590
        %v667 = vpack.c.b16 %v595, %v593
        %v668 = vpack.c.b16 %v596, %v594
        %v669 = vpack.c.b16 %v599, %v597
        %v670 = vpack.c.b16 %v600, %v598
        %v671 = vpack.c.b16 %v603, %v601
        %v672 = vpack.c.b16 %v604, %v602
        %v673 = vpack.c.b16 %v607, %v605
        %v674 = vpack.c.b16 %v608, %v606
        %v675 = vpack.c.b16 %v611, %v609
        %v676 = vpack.c.b16 %v612, %v610
        %741 = vmatpush.bf16.msra.mxu0 %v627
        %742 = vmatpush.bf16.msra.mxu0 %v625
        %743 = vmatpush.bf16.msra.mxu0 %v623
        %744 = vmatpush.bf16.msra.mxu0 %v621
        %745 = vmatpush.bf16.msra.mxu0 %v619
        %746 = vmatpush.bf16.msra.mxu0 %v617
        %747 = vmatpush.bf16.msra.mxu0 %v615
        %748 = vmatpush.bf16.msra.mxu0 %v613
        %749 = vmatmul.bf16.gmra.mxu0 %v405
        %v750 = vpop.f32.mrf.mxu0
        %v751 = vadd.f32 0.0, %v750
        %v752 = vpop.f32.mrf.mxu0
        %v753 = vadd.f32 0.0, %v752
        %754 = vmatmul.bf16.gmra.mxu0 %v409
        %v755 = vpop.f32.mrf.mxu0
        %v756 = vadd.f32 0.0, %v755
        %v757 = vpop.f32.mrf.mxu0
        %758 = vdwg.mxu0
        %759 = vmatpush.bf16.msra.mxu0 %v643
        %760 = vmatpush.bf16.msra.mxu0 %v641
        %761 = vmatpush.bf16.msra.mxu0 %v639
        %762 = vmatpush.bf16.msra.mxu0 %v637
        %763 = vmatpush.bf16.msra.mxu0 %v635
        %764 = vmatpush.bf16.msra.mxu0 %v633
        %765 = vmatpush.bf16.msra.mxu0 %v631
        %766 = vmatpush.bf16.msra.mxu0 %v629
        %767 = vmatmul.bf16.gmra.mxu0 %v406
        %v768 = vpop.f32.mrf.mxu0
        %v769 = vadd.f32 %v751, %v768
        %v770 = vpop.f32.mrf.mxu0
        %v771 = vadd.f32 %v753, %v770
        %772 = vmatmul.bf16.gmra.mxu0 %v410
        %v773 = vpop.f32.mrf.mxu0
        %v774 = vadd.f32 %v756, %v773
        %v775 = vpop.f32.mrf.mxu0
        %776 = vdwg.mxu0
        %777 = vmatpush.bf16.msra.mxu0 %v659
        %778 = vmatpush.bf16.msra.mxu0 %v657
        %779 = vmatpush.bf16.msra.mxu0 %v655
        %780 = vmatpush.bf16.msra.mxu0 %v653
        %781 = vmatpush.bf16.msra.mxu0 %v651
        %782 = vmatpush.bf16.msra.mxu0 %v649
        %783 = vmatpush.bf16.msra.mxu0 %v647
        %784 = vmatpush.bf16.msra.mxu0 %v645
        %785 = vmatmul.bf16.gmra.mxu0 %v407
        %v786 = vpop.f32.mrf.mxu0
        %v787 = vadd.f32 %v769, %v786
        %v788 = vpop.f32.mrf.mxu0
        %v789 = vadd.f32 %v771, %v788
        %790 = vmatmul.bf16.gmra.mxu0 %v411
        %v791 = vpop.f32.mrf.mxu0
        %v792 = vadd.f32 %v774, %v791
        %v793 = vpop.f32.mrf.mxu0
        %794 = vdwg.mxu0
        %795 = vmatpush.bf16.msra.mxu0 %v675
        %796 = vmatpush.bf16.msra.mxu0 %v673
        %797 = vmatpush.bf16.msra.mxu0 %v671
        %798 = vmatpush.bf16.msra.mxu0 %v669
        %799 = vmatpush.bf16.msra.mxu0 %v667
        %800 = vmatpush.bf16.msra.mxu0 %v665
        %801 = vmatpush.bf16.msra.mxu0 %v663
        %802 = vmatpush.bf16.msra.mxu0 %v661
        %803 = vmatmul.bf16.gmra.mxu0 %v408
        %v804 = vpop.f32.mrf.mxu0
        %v805 = vadd.f32 %v787, %v804
        %v806 = vpop.f32.mrf.mxu0
        %v807 = vadd.f32 %v789, %v806
        %808 = vmatmul.bf16.gmra.mxu0 %v412
        %v809 = vpop.f32.mrf.mxu0
        %v810 = vadd.f32 %v792, %v809
        %v811 = vpop.f32.mrf.mxu0
        %812 = vdwg.mxu0
        %813 = vmatpush.bf16.msra.mxu0 %v628
        %814 = vmatpush.bf16.msra.mxu0 %v626
        %815 = vmatpush.bf16.msra.mxu0 %v624
        %816 = vmatpush.bf16.msra.mxu0 %v622
        %817 = vmatpush.bf16.msra.mxu0 %v620
        %818 = vmatpush.bf16.msra.mxu0 %v618
        %819 = vmatpush.bf16.msra.mxu0 %v616
        %820 = vmatpush.bf16.msra.mxu0 %v614
        %821 = vmatmul.bf16.gmra.mxu0 %v405
        %v822 = vpop.f32.mrf.mxu0
        %v823 = vadd.f32 0.0, %v822
        %v824 = vpop.f32.mrf.mxu0
        %v825 = vadd.f32 0.0, %v824
        %826 = vmatmul.bf16.gmra.mxu0 %v409
        %v827 = vpop.f32.mrf.mxu0
        %v828 = vadd.f32 0.0, %v827
        %v829 = vpop.f32.mrf.mxu0
        %830 = vdwg.mxu0
        %831 = vmatpush.bf16.msra.mxu0 %v644
        %832 = vmatpush.bf16.msra.mxu0 %v642
        %833 = vmatpush.bf16.msra.mxu0 %v640
        %834 = vmatpush.bf16.msra.mxu0 %v638
        %835 = vmatpush.bf16.msra.mxu0 %v636
        %836 = vmatpush.bf16.msra.mxu0 %v634
        %837 = vmatpush.bf16.msra.mxu0 %v632
        %838 = vmatpush.bf16.msra.mxu0 %v630
        %839 = vmatmul.bf16.gmra.mxu0 %v406
        %v840 = vpop.f32.mrf.mxu0
        %v841 = vadd.f32 %v823, %v840
        %v842 = vpop.f32.mrf.mxu0
        %v843 = vadd.f32 %v825, %v842
        %844 = vmatmul.bf16.gmra.mxu0 %v410
        %v845 = vpop.f32.mrf.mxu0
        %v846 = vadd.f32 %v828, %v845
        %v847 = vpop.f32.mrf.mxu0
        %848 = vdwg.mxu0
        %849 = vmatpush.bf16.msra.mxu0 %v660
        %850 = vmatpush.bf16.msra.mxu0 %v658
        %851 = vmatpush.bf16.msra.mxu0 %v656
        %852 = vmatpush.bf16.msra.mxu0 %v654
        %853 = vmatpush.bf16.msra.mxu0 %v652
        %854 = vmatpush.bf16.msra.mxu0 %v650
        %855 = vmatpush.bf16.msra.mxu0 %v648
        %856 = vmatpush.bf16.msra.mxu0 %v646
        %857 = vmatmul.bf16.gmra.mxu0 %v407
        %v858 = vpop.f32.mrf.mxu0
        %v859 = vadd.f32 %v841, %v858
        %v860 = vpop.f32.mrf.mxu0
        %v861 = vadd.f32 %v843, %v860
        %862 = vmatmul.bf16.gmra.mxu0 %v411
        %v863 = vpop.f32.mrf.mxu0
        %v864 = vadd.f32 %v846, %v863
        %v865 = vpop.f32.mrf.mxu0
        %866 = vdwg.mxu0
        %867 = vmatpush.bf16.msra.mxu0 %v676
        %868 = vmatpush.bf16.msra.mxu0 %v674
        %869 = vmatpush.bf16.msra.mxu0 %v672
        %870 = vmatpush.bf16.msra.mxu0 %v670
        %871 = vmatpush.bf16.msra.mxu0 %v668
        %872 = vmatpush.bf16.msra.mxu0 %v666
        %873 = vmatpush.bf16.msra.mxu0 %v664
        %874 = vmatpush.bf16.msra.mxu0 %v662
        %875 = vmatmul.bf16.gmra.mxu0 %v408
        %v876 = vpop.f32.mrf.mxu0
        %v877 = vadd.f32 %v859, %v876
        %v878 = vpop.f32.mrf.mxu0
        %v879 = vadd.f32 %v861, %v878
        %880 = vmatmul.bf16.gmra.mxu0 %v412
        %v881 = vpop.f32.mrf.mxu0
        %v882 = vadd.f32 %v864, %v881
        %v883 = vpop.f32.mrf.mxu0
        %884 = vdwg.mxu0
        %v885 = vadd.f32 %v311, %v805
        %v886 = vadd.f32 %v312, %v877
        %v887 = vadd.f32 %v313, %v807
        %v888 = vadd.f32 %v314, %v879
        %v889 = vadd.f32 %v315, %v810
        %v890 = vadd.f32 %v316, %v882
        %891 = vst [vmem:[#allocation2] sm:$0xff] %v885
        %892 = vst [vmem:[#allocation2 + $0x8] sm:$0xff] %v886
        %893 = vst [vmem:[#allocation2 + $0x10] sm:$0xff] %v887
        %894 = vst [vmem:[#allocation2 + $0x18] sm:$0xff] %v888
        %895 = vst [vmem:[#allocation2 + $0x20] sm:$0xff] %v889
        %896 = vst [vmem:[#allocation2 + $0x28] sm:$0xff] %v890
        %p897 = scmp.eq.s32.totalorder %s21, 6
        // Predicated region
        $region60: #{alexnet_forward.16} parent=50 // pred_check
          %p898 = pneg %p897
        $region61: #{alexnet_forward.16} parent=50 // pred_check_branch
          %900 = sbr.rel (%p898) target = $region63
        $region62: #{alexnet_forward.16} parent=50 // pred_region
          %v901 = vld [vmem:[#allocation2] sm:$0xff]
          %v902 = vld [vmem:[#allocation2 + $0x8] sm:$0xff]
          %v903 = vld [vmem:[#allocation2 + $0x10] sm:$0xff]
          %v904 = vld [vmem:[#allocation2 + $0x18] sm:$0xff]
          %v905 = vld [vmem:[#allocation2 + $0x20] sm:$0xff]
          %v906 = vld [vmem:[#allocation2 + $0x28] sm:$0xff]
          %v907 = vld [vmem:[%s287] sm:$0x3]
          %v909 = vperm.slane %v907, 0
          %v910 = vperm.slane %v907, 1
          %v913 = vadd.f32 %v901, %v909
          %v914 = vadd.f32 %v902, %v910
          %v915 = vadd.f32 %v903, %v909
          %v916 = vadd.f32 %v904, %v910
          %v917 = vadd.f32 %v905, %v909
          %v918 = vadd.f32 %v906, %v910
          %v919 = vmax.f32 %v913, 0.0
          %v920 = vmax.f32 %v914, 0.0
          %v921 = vmax.f32 %v915, 0.0
          %v922 = vmax.f32 %v916, 0.0
          %v923 = vmax.f32 %v917, 0.0
          %v924 = vmax.f32 %v918, 0.0
          %v925 = vpack.c.bf16 %v920, %v919
          %v926 = vpack.c.bf16 %v922, %v921
          %v927 = vpack.c.bf16 %v924, %v923
          %928 = vst [vmem:[%s298] sm:$0xff] %v925
          %929 = vst [vmem:[%s298 + $0x8] sm:$0xff] %v926
          %930 = vst [vmem:[%s298 + $0x10] sm:$0xff] %v927
        $region63: #{alexnet_forward.16} parent=50 // pred_fallthru
          _
        %s931 = smul.u32 3, %s19
        %s932 = smul.u32 2, %s20
        %p933 = scmp.lt.s32.totalorder %s931, 2
        %s934 = scalar_select %p933, %s931, 2
        %p935 = scmp.lt.s32.totalorder %s932, 1
        %s936 = scalar_select %p935, %s932, 1
        %s937 = smul.addr %s934, 2
        %s938 = sadd.s32 %s936, %s937
        %s939 = smul.addr %s938, 4
        %s940 = scalar_lea.vmem %s3, %s939
        // Predicated region
        $region64: #{alexnet_forward.16} parent=50 // pred_check
          %p941 = pneg %p135
        $region65: #{alexnet_forward.16} parent=50 // pred_check_branch
          %943 = sbr.rel (%p941) target = $region67
        $region66: #{alexnet_forward.16} parent=50 // pred_region
          %s944 = smul.u32 3, %s19
          %s945 = smul.u32 2, %s20
        $region67: #{alexnet_forward.16} parent=50 // pred_fallthru
          _
        // Predicated region
        $region68: #{alexnet_forward.16} parent=50 // pred_check
          %p946 = pneg %p135
        $region69: #{alexnet_forward.16} parent=50 // pred_check_branch
          %948 = sbr.rel (%p946) target = $region71
        $region70: #{alexnet_forward.16} parent=50 // pred_region
          %s949 = smul.u32 3, %s19
          %s950 = smul.u32 2, %s20
          %p951 = scmp.lt.s32.totalorder %s949, 2
          %s952 = scalar_select %p951, %s949, 2
          %p953 = scmp.lt.s32.totalorder %s950, 1
          %s954 = scalar_select %p953, %s950, 1
          %s955 = smul.addr %s952, 2
          %s956 = sadd.s32 %s954, %s955
          %s957 = smul.addr %s956, 4
          %s958 = scalar_lea.vmem %s3, %s957
        $region71: #{alexnet_forward.16} parent=50 // pred_fallthru
          _
      $region51: #{alexnet_forward.16} parent=5 // pred_fallthru
        _
      %p959 = scmp.le.s32.totalorder 2, %s9
      // Predicated region
      $region72: #{alexnet_forward.16} parent=5 // pred_check
        %p960 = pneg %p959
      $region73: #{alexnet_forward.16} parent=5 // pred_check_branch
        %962 = sbr.rel (%p960) target = $region75
      $region74: #{alexnet_forward.16} parent=5 // pred_region
        %s963 = ssub.s32 %s9, 2
      $region75: #{alexnet_forward.16} parent=5 // pred_fallthru
        _
    $region6: #{alexnet_forward.16} parent=1 // loop_footer
      %s13 = sadd.s32 1, %s9
    $region7: #{alexnet_forward.16} parent=1 // loop_footer_branch
      %8 = sbr.rel target = $region3
    $region8: #{alexnet_forward.16} parent=1 // loop_exit
      _

// kernel: alexnet_forward.17
$region0: #{alexnet_forward.17}
  #allocation0 [shape = 'u32[]', space=smem, size = 0x4, offset = 0x4, fixed_abs, tag = 'smem constant byte address 0x4 - core index']
  #allocation1 [shape = 'u32[72,128]{1,0:T(1,128)}', space=vmem, size = 0x9000, scoped, tag = 'internal scratch']
  #allocation2 [shape = 'f32[24,256]{1,0:T(8,128)}', space=vmem, size = 0x6000, scoped, tag = 'scratch operand']
  %s0 = inlined_call_operand.vmem [shape: bf16[24,2560], index: 0, kind: input, shape index: {}]
  %s1 = inlined_call_operand.vmem [shape: bf16[2560,256], index: 1, kind: input, shape index: {}]
  %s2 = inlined_call_operand.vmem [shape: f32[1,256], index: 2, kind: input, shape index: {}]
  %s3 = inlined_call_operand.vmem [shape: bf16[24,256], index: 3, kind: output, shape index: {}]
  %s4 = sld [smem:[#allocation0]]
  $region76: #{alexnet_forward.17} parent=0
    _
  %s6 = ssub.s32 1, %s4
  %s7 = scalar_select 0, %s6, %s4
  $region1: #{alexnet_forward.17} parent=0
    #allocation3 [shape = 'u8[49152]{0}', space=vmem, size = 0xc000, scoped, tag = 'input window, operand 0']
    loop: start=0, step=1, limit=7
    $region2: #{alexnet_forward.17} parent=1 // loop_pre_header
      _
    $region3: #{alexnet_forward.17} parent=1 // loop_header
      %s9 = sphi 0, %s13
      %p10 = scmp.ge.s32.totalorder %s9, 7
      %s16 = sphi 0, %s35
      %s17 = sphi 0, %s31
      %s18 = sphi 0, %s27
      %s19 = sphi 0, %s16
      %s20 = sphi 0, %s17
      %s21 = sphi 0, %s18
      %s22 = sphi 0, %s19
      %s23 = sphi 0, %s20
      %s24 = sphi 0, %s21
      %s40 = sphi 0, %s42
      %s43 = sphi 0, %s40
      %s44 = sphi 0, %s43
      %s60 = sphi 0, %s44
      %s68 = sphi 0, %s70
      %s71 = sphi 0, %s68
      %s72 = sphi 0, %s71
      %s88 = sphi 0, %s72
      %s94 = sphi 0, %s96
      %s97 = sphi 0, %s94
      %s98 = sphi 0, %s97
      %s114 = sphi 0, %s98
      %s122 = sphi 0, %s124
      %s125 = sphi 0, %s122
      %s126 = sphi 0, %s125
      %s142 = sphi 0, %s126
    $region4: #{alexnet_forward.17} parent=1 // loop_header_branch
      %12 = sbr.rel (%p10) target = $region8
    $region5: #{alexnet_forward.17} parent=1 // loop_body
      %s14 = ssub.s32 %s9, 1
      %s15 = ssub.s32 %s9, 2
      %s25 = sadd.s32 1, %s18
      %p26 = scmp.ge.s32.totalorder %s25, 5
      %s27 = scalar_select %p26, 0, %s25
      %s28 = sadd.s32 1, %s17
      %s29 = scalar_select %p26, %s28, %s17
      %p30 = scmp.ge.s32.totalorder %s29, 1
      %s31 = scalar_select %p30, 0, %s29
      %s32 = sadd.s32 1, %s16
      %s33 = scalar_select %p30, %s32, %s16
      %p34 = scmp.ge.s32.totalorder %s33, 1
      %s35 = scalar_select %p34, 0, %s33
      %s36 = ssub.s32 %s16, %s35
      %s37 = ssub.s32 %s18, %s27
      %s38 = sor.u32 %s36, %s37
      %p39 = scmp.eq.s32.totalorder %s38, 0
      %s41 = sadd.s32 %s40, 1
      %s42 = scalar_select %p39, %s40, %s41
      %p45 = pneg %p39
      %p46 = scmp.eq.s32.totalorder %s9, 4
      %p47 = por %p45, %p46
      %p48 = scmp.ne.s32.totalorder %s40, %s43
      %p49 = scmp.eq.s32.totalorder %s9, 0
      %p50 = por %p48, %p49
      %p51 = scmp.ne.s32.totalorder %s40, %s43
      %p52 = scmp.eq.s32.totalorder %s14, 4
      %p53 = por %p51, %p52
      %p54 = scmp.ne.s32.totalorder %s43, %s44
      %p55 = scmp.eq.s32.totalorder %s14, 0
      %p56 = por %p54, %p55
      %p57 = scmp.ne.s32.totalorder %s43, %s44
      %p58 = scmp.eq.s32.totalorder %s15, 4
      %p59 = por %p57, %p58
      %p61 = scmp.ne.s32.totalorder %s44, %s60
      %p62 = scmp.eq.s32.totalorder %s15, 0
      %p63 = por %p61, %p62
      %s64 = ssub.s32 %s18, %s27
      %s65 = ssub.s32 %s17, %s31
      %s66 = sor.u32 %s64, %s65
      %p67 = scmp.eq.s32.totalorder %s66, 0
      %s69 = sadd.s32 %s68, 1
      %s70 = scalar_select %p67, %s68, %s69
      %p73 = pneg %p67
      %p74 = scmp.eq.s32.totalorder %s9, 4
      %p75 = por %p73, %p74
      %p76 = scmp.ne.s32.totalorder %s68, %s71
      %p77 = scmp.eq.s32.totalorder %s9, 0
      %p78 = por %p76, %p77
      %p79 = scmp.ne.s32.totalorder %s68, %s71
      %p80 = scmp.eq.s32.totalorder %s14, 4
      %p81 = por %p79, %p80
      %p82 = scmp.ne.s32.totalorder %s71, %s72
      %p83 = scmp.eq.s32.totalorder %s14, 0
      %p84 = por %p82, %p83
      %p85 = scmp.ne.s32.totalorder %s71, %s72
      %p86 = scmp.eq.s32.totalorder %s15, 4
      %p87 = por %p85, %p86
      %p89 = scmp.ne.s32.totalorder %s72, %s88
      %p90 = scmp.eq.s32.totalorder %s15, 0
      %p91 = por %p89, %p90
      %s92 = ssub.s32 %s17, %s31
      %p93 = scmp.eq.s32.totalorder %s92, 0
      %s95 = sadd.s32 %s94, 1
      %s96 = scalar_select %p93, %s94, %s95
      %p99 = pneg %p93
      %p100 = scmp.eq.s32.totalorder %s9, 4
      %p101 = por %p99, %p100
      %p102 = scmp.ne.s32.totalorder %s94, %s97
      %p103 = scmp.eq.s32.totalorder %s9, 0
      %p104 = por %p102, %p103
      %p105 = scmp.ne.s32.totalorder %s94, %s97
      %p106 = scmp.eq.s32.totalorder %s14, 4
      %p107 = por %p105, %p106
      %p108 = scmp.ne.s32.totalorder %s97, %s98
      %p109 = scmp.eq.s32.totalorder %s14, 0
      %p110 = por %p108, %p109
      %p111 = scmp.ne.s32.totalorder %s97, %s98
      %p112 = scmp.eq.s32.totalorder %s15, 4
      %p113 = por %p111, %p112
      %p115 = scmp.ne.s32.totalorder %s98, %s114
      %p116 = scmp.eq.s32.totalorder %s15, 0
      %p117 = por %p115, %p116
      %s118 = ssub.s32 %s16, %s35
      %s119 = ssub.s32 %s17, %s31
      %s120 = sor.u32 %s118, %s119
      %p121 = scmp.eq.s32.totalorder %s120, 0
      %s123 = sadd.s32 %s122, 1
      %s124 = scalar_select %p121, %s122, %s123
      %p127 = pneg %p121
      %p128 = scmp.eq.s32.totalorder %s9, 4
      %p129 = por %p127, %p128
      %p130 = scmp.ne.s32.totalorder %s122, %s125
      %p131 = scmp.eq.s32.totalorder %s9, 0
      %p132 = por %p130, %p131
      %p133 = scmp.ne.s32.totalorder %s122, %s125
      %p134 = scmp.eq.s32.totalorder %s14, 4
      %p135 = por %p133, %p134
      %p136 = scmp.ne.s32.totalorder %s125, %s126
      %p137 = scmp.eq.s32.totalorder %s14, 0
      %p138 = por %p136, %p137
      %p139 = scmp.ne.s32.totalorder %s125, %s126
      %p140 = scmp.eq.s32.totalorder %s15, 4
      %p141 = por %p139, %p140
      %p143 = scmp.ne.s32.totalorder %s126, %s142
      %p144 = scmp.eq.s32.totalorder %s15, 0
      %p145 = por %p143, %p144
      %p146 = scmp.le.s32.totalorder 1, %s9
      %p147 = scmp.lt.s32.totalorder %s9, 6
      %p148 = pnand %p146, %p147
      %p149 = pneg %p148
      // Predicated region
      $region9: #{alexnet_forward.17} parent=5 // pred_check
        _
      $region10: #{alexnet_forward.17} parent=5 // pred_check_branch
        %151 = sbr.rel (%p148) target = $region12
      $region11: #{alexnet_forward.17} parent=5 // pred_region
        %s152 = ssub.s32 %s9, 1
        // Predicated region
        $region13: #{alexnet_forward.17} parent=11 // pred_check
          %p153 = pneg %p110
        $region14: #{alexnet_forward.17} parent=11 // pred_check_branch
          %155 = sbr.rel (%p153) target = $region16
        $region15: #{alexnet_forward.17} parent=11 // pred_region
          %s156 = smul.u32 2, %s20
          %p157 = scmp.lt.s32.totalorder %s156, 1
          %s158 = scalar_select %p157, %s156, 1
          %s159 = scalar_lea.vmem %s2, %s158
          %s160 = smul.u32 2, %s20
        $region16: #{alexnet_forward.17} parent=11 // pred_fallthru
          _
      $region12: #{alexnet_forward.17} parent=5 // pred_fallthru
        _
      %p161 = scmp.lt.s32.totalorder %s9, 5
      // Predicated region
      $region17: #{alexnet_forward.17} parent=5 // pred_check
        %p162 = pneg %p161
      $region18: #{alexnet_forward.17} parent=5 // pred_check_branch
        %164 = sbr.rel (%p162) target = $region20
      $region19: #{alexnet_forward.17} parent=5 // pred_region
        // Predicated region
        $region21: #{alexnet_forward.17} parent=19 // pred_check
          %p165 = pneg %p50
        $region22: #{alexnet_forward.17} parent=19 // pred_check_branch
          %167 = sbr.rel (%p165) target = $region24
        $region23: #{alexnet_forward.17} parent=19 // pred_region
          %s168 = sand.u32 %s40, 1
          %s169 = sand.u32 %s40, 1
          %s170 = smul.addr %s169, 48
          %s171 = scalar_lea.vmem [#allocation3], %s170
          %s172 = smul.u32 3, %s16
          %s173 = smul.u32 4, %s18
          %s174 = smul.addr %s172, 20
          %s175 = sadd.s32 %s173, %s174
          %s176 = smul.addr %s175, 4
          %s177 = scalar_lea.vmem %s0, %s176
          // Predicated region
          $region25: #{alexnet_forward.17} parent=23 // pred_check
            _
          $region26: #{alexnet_forward.17} parent=23 // pred_check_branch
            %179 = sbr.rel (0) target = $region28
          $region27: #{alexnet_forward.17} parent=23 // pred_region
            // Predicated region
            $region29: #{alexnet_forward.17} parent=27 // pred_check
              _
            $region30: #{alexnet_forward.17} parent=27 // pred_check_branch
              %181 = sbr.rel (0) target = $region32
            $region31: #{alexnet_forward.17} parent=27 // pred_region
              loop: start=0, step=1, limit=1
              $region33: #{alexnet_forward.17} parent=31 // loop_pre_header
                _
              $region34: #{alexnet_forward.17} parent=31 // loop_header
                %s183 = sphi 0, %s187
                %p184 = scmp.ge.s32.totalorder %s183, 1
                %s188 = sphi %s177, %s177
                %s189 = sphi %s171, %s171
              $region35: #{alexnet_forward.17} parent=31 // loop_header_branch
                %186 = sbr.rel (%p184) target = $region39
              $region36: #{alexnet_forward.17} parent=31 // loop_body
                %v190 = vld [vmem:[%s188] sm:$0xff]
                %191 = vst [vmem:[%s189] sm:$0xff] %v190
                %v192 = vld [vmem:[%s188 + $0x8] sm:$0xff]
                %193 = vst [vmem:[%s189 + $0x8] sm:$0xff] %v192
                %v194 = vld [vmem:[%s188 + $0x50] sm:$0xff]
                %195 = vst [vmem:[%s189 + $0x10] sm:$0xff] %v194
                %v196 = vld [vmem:[%s188 + $0x58] sm:$0xff]
                %197 = vst [vmem:[%s189 + $0x18] sm:$0xff] %v196
                %v198 = vld [vmem:[%s188 + $0xa0] sm:$0xff]
                %199 = vst [vmem:[%s189 + $0x20] sm:$0xff] %v198
                %v200 = vld [vmem:[%s188 + $0xa8] sm:$0xff]
                %201 = vst [vmem:[%s189 + $0x28] sm:$0xff] %v200
              $region37: #{alexnet_forward.17} parent=31 // loop_footer
                %s187 = sadd.s32 1, %s183
              $region38: #{alexnet_forward.17} parent=31 // loop_footer_branch
                %182 = sbr.rel target = $region34
              $region39: #{alexnet_forward.17} parent=31 // loop_exit
                _
            $region32: #{alexnet_forward.17} parent=27 // pred_fallthru
              _
            // Predicated region
            $region40: #{alexnet_forward.17} parent=27 // pred_check
              _
            $region41: #{alexnet_forward.17} parent=27 // pred_check_branch
              %203 = sbr.rel target = $region43
            $region42: #{alexnet_forward.17} parent=27 // pred_region
              _
            $region43: #{alexnet_forward.17} parent=27 // pred_fallthru
              _
          $region28: #{alexnet_forward.17} parent=23 // pred_fallthru
            _
          %204 = vnop
        $region24: #{alexnet_forward.17} parent=19 // pred_fallthru
          _
        // Predicated region
        $region44: #{alexnet_forward.17} parent=19 // pred_check
          %p205 = pneg %p78
        $region45: #{alexnet_forward.17} parent=19 // pred_check_branch
          %207 = sbr.rel (%p205) target = $region47
        $region46: #{alexnet_forward.17} parent=19 // pred_region
          %s208 = smul.u32 64, %s18
          %s209 = smul.u32 2, %s17
          %p210 = scmp.lt.s32.totalorder %s208, 319
          %s211 = scalar_select %p210, %s208, 319
          %p212 = scmp.lt.s32.totalorder %s209, 1
          %s213 = scalar_select %p212, %s209, 1
          %s214 = smul.addr %s211, 2
          %s215 = sadd.s32 %s213, %s214
          %s216 = smul.addr %s215, 4
          %s217 = scalar_lea.vmem %s1, %s216
          %s218 = smul.u32 64, %s18
          %s219 = smul.u32 2, %s17
        $region47: #{alexnet_forward.17} parent=19 // pred_fallthru
          _
      $region20: #{alexnet_forward.17} parent=5 // pred_fallthru
        _
      %p220 = scmp.le.s32.totalorder 1, %s9
      %p221 = scmp.lt.s32.totalorder %s9, 6
      %p222 = pnand %p220, %p221
      %p223 = pneg %p222
      // Predicated region
      $region48: #{alexnet_forward.17} parent=5 // pred_check
        _
      $region49: #{alexnet_forward.17} parent=5 // pred_check_branch
        %225 = sbr.rel (%p222) target = $region51
      $region50: #{alexnet_forward.17} parent=5 // pred_region
        %s226 = ssub.s32 %s9, 1
        %s227 = sand.u32 %s43, 1
        %s228 = sand.u32 %s43, 1
        %s229 = smul.addr %s228, 48
        %s230 = scalar_lea.vmem [#allocation3], %s229
        // Predicated region
        $region52: #{alexnet_forward.17} parent=50 // pred_check
          %p231 = pneg %p56
        $region53: #{alexnet_forward.17} parent=50 // pred_check_branch
          %233 = sbr.rel (%p231) target = $region55
        $region54: #{alexnet_forward.17} parent=50 // pred_region
          _
        $region55: #{alexnet_forward.17} parent=50 // pred_fallthru
          _
        %s234 = sand.u32 %s43, 1
        %s235 = sand.u32 %s43, 1
        %s236 = smul.addr %s235, 48
        %s237 = scalar_lea.vmem [#allocation3], %s236
        %p238 = pneg %p56
        %p239 = pneg %p53
        %s240 = smul.u32 64, %s21
        %s241 = smul.u32 2, %s20
        %p242 = scmp.lt.s32.totalorder %s240, 319
        %s243 = scalar_select %p242, %s240, 319
        %p244 = scmp.lt.s32.totalorder %s241, 1
        %s245 = scalar_select %p244, %s241, 1
        %s246 = smul.addr %s243, 2
        %s247 = sadd.s32 %s245, %s246
        %s248 = smul.addr %s247, 4
        %s249 = scalar_lea.vmem %s1, %s248
        %p250 = pneg %p84
        %p251 = pneg %p81
        %s252 = smul.u32 2, %s20
        %p253 = scmp.lt.s32.totalorder %s252, 1
        %s254 = scalar_select %p253, %s252, 1
        %s255 = scalar_lea.vmem %s2, %s254
        %p256 = pneg %p110
        %p257 = pneg %p107
        %p258 = pneg %p138
        %p259 = pneg %p135
        %s260 = smul.u32 3, %s19
        %s261 = smul.u32 2, %s20
        %p262 = scmp.lt.s32.totalorder %s260, 2
        %s263 = scalar_select %p262, %s260, 2
        %p264 = scmp.lt.s32.totalorder %s261, 1
        %s265 = scalar_select %p264, %s261, 1
        %s266 = smul.addr %s263, 2
        %s267 = sadd.s32 %s265, %s266
        %s268 = smul.addr %s267, 4
        %s269 = scalar_lea.vmem %s3, %s268
        %s270 = smul.u32 3, %s19
        %s271 = smul.u32 4, %s21
        %s272 = smul.u32 64, %s21
        %s273 = smul.u32 2, %s20
        %p274 = scmp.lt.s32.totalorder %s272, 319
        %s275 = scalar_select %p274, %s272, 319
        %p276 = scmp.lt.s32.totalorder %s273, 1
        %s277 = scalar_select %p276, %s273, 1
        %s278 = smul.addr %s275, 2
        %s279 = sadd.s32 %s277, %s278
        %s280 = smul.addr %s279, 4
        %s281 = scalar_lea.vmem %s1, %s280
        %s282 = smul.u32 64, %s21
        %s283 = smul.u32 2, %s20
        %s284 = smul.u32 2, %s20
        %p285 = scmp.lt.s32.totalorder %s284, 1
        %s286 = scalar_select %p285, %s284, 1
        %s287 = scalar_lea.vmem %s2, %s286
        %s288 = smul.u32 2, %s20
        %s289 = smul.u32 3, %s19
        %s290 = smul.u32 2, %s20
        %p291 = scmp.lt.s32.totalorder %s289, 2
        %s292 = scalar_select %p291, %s289, 2
        %p293 = scmp.lt.s32.totalorder %s290, 1
        %s294 = scalar_select %p293, %s290, 1
        %s295 = smul.addr %s292, 2
        %s296 = sadd.s32 %s294, %s295
        %s297 = smul.addr %s296, 4
        %s298 = scalar_lea.vmem %s3, %s297
        %s299 = smul.u32 3, %s19
        %s300 = smul.u32 2, %s20
        %p301 = scmp.eq.s32.totalorder %s21, 0
        // Predicated region
        $region56: #{alexnet_forward.17} parent=50 // pred_check
          %p302 = pneg %p301
        $region57: #{alexnet_forward.17} parent=50 // pred_check_branch
          %304 = sbr.rel (%p302) target = $region59
        $region58: #{alexnet_forward.17} parent=50 // pred_region
          %305 = vst [vmem:[#allocation2] sm:$0xff] 0.0
          %306 = vst [vmem:[#allocation2 + $0x8] sm:$0xff] 0.0
          %307 = vst [vmem:[#allocation2 + $0x10] sm:$0xff] 0.0
          %308 = vst [vmem:[#allocation2 + $0x18] sm:$0xff] 0.0
          %309 = vst [vmem:[#allocation2 + $0x20] sm:$0xff] 0.0
          %310 = vst [vmem:[#allocation2 + $0x28] sm:$0xff] 0.0
        $region59: #{alexnet_forward.17} parent=50 // pred_fallthru
          _
        %v311 = vld [vmem:[#allocation2] sm:$0xff]
        %v312 = vld [vmem:[#allocation2 + $0x8] sm:$0xff]
        %v313 = vld [vmem:[#allocation2 + $0x10] sm:$0xff]
        %v314 = vld [vmem:[#allocation2 + $0x18] sm:$0xff]
        %v315 = vld [vmem:[#allocation2 + $0x20] sm:$0xff]
        %v316 = vld [vmem:[#allocation2 + $0x28] sm:$0xff]
        %v317 = vld [vmem:[%s230] sm:$0xff]
        %v318 = vld [vmem:[%s230 + $0x8] sm:$0xff]
        %v319 = vld [vmem:[%s230 + $0x10] sm:$0xff]
        %v320 = vld [vmem:[%s230 + $0x18] sm:$0xff]
        %v321 = vld [vmem:[%s230 + $0x20] sm:$0xff]
        %v322 = vld [vmem:[%s230 + $0x28] sm:$0xff]
        %v323 = vld [vmem:[%s281] sm:$0xff]
        %v324 = vld [vmem:[%s281 + $0x8] sm:$0xff]
        %v325 = vld [vmem:[%s281 + $0x10] sm:$0xff]
        %v326 = vld [vmem:[%s281 + $0x18] sm:$0xff]
        %v327 = vld [vmem:[%s281 + $0x20] sm:$0xff]
        %v328 = vld [vmem:[%s281 + $0x28] sm:$0xff]
        %v329 = vld [vmem:[%s281 + $0x30] sm:$0xff]
        %v330 = vld [vmem:[%s281 + $0x38] sm:$0xff]
        %v331 = vld [vmem:[%s281 + $0x40] sm:$0xff]
        %v332 = vld [vmem:[%s281 + $0x48] sm:$0xff]
        %v333 = vld [vmem:[%s281 + $0x50] sm:$0xff]
        %v334 = vld [vmem:[%s281 + $0x58] sm:$0xff]
        %v335 = vld [vmem:[%s281 + $0x60] sm:$0xff]
        %v336 = vld [vmem:[%s281 + $0x68] sm:$0xff]
        %v337 = vld [vmem:[%s281 + $0x70] sm:$0xff]
        %v338 = vld [vmem:[%s281 + $0x78] sm:$0xff]
        %v339 = vld [vmem:[%s281 + $0x80] sm:$0xff]
        %v340 = vld [vmem:[%s281 + $0x88] sm:$0xff]
        %v341 = vld [vmem:[%s281 + $0x90] sm:$0xff]
        %v342 = vld [vmem:[%s281 + $0x98] sm:$0xff]
        %v343 = vld [vmem:[%s281 + $0xa0] sm:$0xff]
        %v344 = vld [vmem:[%s281 + $0xa8] sm:$0xff]
        %v345 = vld [vmem:[%s281 + $0xb0] sm:$0xff]
        %v346 = vld [vmem:[%s281 + $0xb8] sm:$0xff]
        %v347 = vld [vmem:[%s281 + $0xc0] sm:$0xff]
        %v348 = vld [vmem:[%s281 + $0xc8] sm:$0xff]
        %v349 = vld [vmem:[%s281 + $0xd0] sm:$0xff]
        %v350 = vld [vmem:[%s281 + $0xd8] sm:$0xff]
        %v351 = vld [vmem:[%s281 + $0xe0] sm:$0xff]
        %v352 = vld [vmem:[%s281 + $0xe8] sm:$0xff]
        %v353 = vld [vmem:[%s281 + $0xf0] sm:$0xff]
        %v354 = vld [vmem:[%s281 + $0xf8] sm:$0xff]
        %v355 = vld [vmem:[%s281 + $0x100] sm:$0xff]
        %v356 = vld [vmem:[%s281 + $0x108] sm:$0xff]
        %v357 = vld [vmem:[%s281 + $0x110] sm:$0xff]
        %v358 = vld [vmem:[%s281 + $0x118] sm:$0xff]
        %v359 = vld [vmem:[%s281 + $0x120] sm:$0xff]
        %v360 = vld [vmem:[%s281 + $0x128] sm:$0xff]
        %v361 = vld [vmem:[%s281 + $0x130] sm:$0xff]
        %v362 = vld [vmem:[%s281 + $0x138] sm:$0xff]
        %v363 = vld [vmem:[%s281 + $0x140] sm:$0xff]
        %v364 = vld [vmem:[%s281 + $0x148] sm:$0xff]
        %v365 = vld [vmem:[%s281 + $0x150] sm:$0xff]
        %v366 = vld [vmem:[%s281 + $0x158] sm:$0xff]
        %v367 = vld [vmem:[%s281 + $0x160] sm:$0xff]
        %v368 = vld [vmem:[%s281 + $0x168] sm:$0xff]
        %v369 = vld [vmem:[%s281 + $0x170] sm:$0xff]
        %v370 = vld [vmem:[%s281 + $0x178] sm:$0xff]
        %v371 = vld [vmem:[%s281 + $0x180] sm:$0xff]
        %v372 = vld [vmem:[%s281 + $0x188] sm:$0xff]
        %v373 = vld [vmem:[%s281 + $0x190] sm:$0xff]
        %v374 = vld [vmem:[%s281 + $0x198] sm:$0xff]
        %v375 = vld [vmem:[%s281 + $0x1a0] sm:$0xff]
        %v376 = vld [vmem:[%s281 + $0x1a8] sm:$0xff]
        %v377 = vld [vmem:[%s281 + $0x1b0] sm:$0xff]
        %v378 = vld [vmem:[%s281 + $0x1b8] sm:$0xff]
        %v379 = vld [vmem:[%s281 + $0x1c0] sm:$0xff]
        %v380 = vld [vmem:[%s281 + $0x1c8] sm:$0xff]
        %v381 = vld [vmem:[%s281 + $0x1d0] sm:$0xff]
        %v382 = vld [vmem:[%s281 + $0x1d8] sm:$0xff]
        %v383 = vld [vmem:[%s281 + $0x1e0] sm:$0xff]
        %v384 = vld [vmem:[%s281 + $0x1e8] sm:$0xff]
        %v385 = vld [vmem:[%s281 + $0x1f0] sm:$0xff]
        %v386 = vld [vmem:[%s281 + $0x1f8] sm:$0xff]
        %v393 = vunpack.c.l.b16 %v317
        %v394 = vunpack.c.h.b16 %v317
        %v395 = vunpack.c.l.b16 %v318
        %v396 = vunpack.c.h.b16 %v318
        %v397 = vunpack.c.l.b16 %v319
        %v398 = vunpack.c.h.b16 %v319
        %v399 = vunpack.c.l.b16 %v320
        %v400 = vunpack.c.h.b16 %v320
        %v401 = vunpack.c.l.b16 %v321
        %v402 = vunpack.c.h.b16 %v321
        %v403 = vunpack.c.l.b16 %v322
        %v404 = vunpack.c.h.b16 %v322
        %v405 = vpack.c.b16 %v397, %v393
        %v406 = vpack.c.b16 %v398, %v394
        %v407 = vpack.c.b16 %v399, %v395
        %v408 = vpack.c.b16 %v400, %v396
        %v409 = vpack.c.b16 %v401, %v401
        %v410 = vpack.c.b16 %v402, %v402
        %v411 = vpack.c.b16 %v403, %v403
        %v412 = vpack.c.b16 %v404, %v404
        %v485 = vunpack.c.l.b16 %v323
        %v486 = vunpack.c.h.b16 %v323
        %v487 = vunpack.c.l.b16 %v324
        %v488 = vunpack.c.h.b16 %v324
        %v489 = vunpack.c.l.b16 %v325
        %v490 = vunpack.c.h.b16 %v325
        %v491 = vunpack.c.l.b16 %v326
        %v492 = vunpack.c.h.b16 %v326
        %v493 = vunpack.c.l.b16 %v327
        %v494 = vunpack.c.h.b16 %v327
        %v495 = vunpack.c.l.b16 %v328
        %v496 = vunpack.c.h.b16 %v328
        %v497 = vunpack.c.l.b16 %v329
        %v498 = vunpack.c.h.b16 %v329
        %v499 = vunpack.c.l.b16 %v330
        %v500 = vunpack.c.h.b16 %v330
        %v501 = vunpack.c.l.b16 %v331
        %v502 = vunpack.c.h.b16 %v331
        %v503 = vunpack.c.l.b16 %v332
        %v504 = vunpack.c.h.b16 %v332
        %v505 = vunpack.c.l.b16 %v333
        %v506 = vunpack.c.h.b16 %v333
        %v507 = vunpack.c.l.b16 %v334
        %v508 = vunpack.c.h.b16 %v334
        %v509 = vunpack.c.l.b16 %v335
        %v510 = vunpack.c.h.b16 %v335
        %v511 = vunpack.c.l.b16 %v336
        %v512 = vunpack.c.h.b16 %v336
        %v513 = vunpack.c.l.b16 %v337
        %v514 = vunpack.c.h.b16 %v337
        %v515 = vunpack.c.l.b16 %v338
        %v516 = vunpack.c.h.b16 %v338
        %v517 = vunpack.c.l.b16 %v339
        %v518 = vunpack.c.h.b16 %v339
        %v519 = vunpack.c.l.b16 %v340
        %v520 = vunpack.c.h.b16 %v340
        %v521 = vunpack.c.l.b16 %v341
        %v522 = vunpack.c.h.b16 %v341
        %v523 = vunpack.c.l.b16 %v342
        %v524 = vunpack.c.h.b16 %v342
        %v525 = vunpack.c.l.b16 %v343
        %v526 = vunpack.c.h.b16 %v343
        %v527 = vunpack.c.l.b16 %v344
        %v528 = vunpack.c.h.b16 %v344
        %v529 = vunpack.c.l.b16 %v345
        %v530 = vunpack.c.h.b16 %v345
        %v531 = vunpack.c.l.b16 %v346
        %v532 = vunpack.c.h.b16 %v346
        %v533 = vunpack.c.l.b16 %v347
        %v534 = vunpack.c.h.b16 %v347
        %v535 = vunpack.c.l.b16 %v348
        %v536 = vunpack.c.h.b16 %v348
        %v537 = vunpack.c.l.b16 %v349
        %v538 = vunpack.c.h.b16 %v349
        %v539 = vunpack.c.l.b16 %v350
        %v540 = vunpack.c.h.b16 %v350
        %v541 = vunpack.c.l.b16 %v351
        %v542 = vunpack.c.h.b16 %v351
        %v543 = vunpack.c.l.b16 %v352
        %v544 = vunpack.c.h.b16 %v352
        %v545 = vunpack.c.l.b16 %v353
        %v546 = vunpack.c.h.b16 %v353
        %v547 = vunpack.c.l.b16 %v354
        %v548 = vunpack.c.h.b16 %v354
        %v549 = vunpack.c.l.b16 %v355
        %v550 = vunpack.c.h.b16 %v355
        %v551 = vunpack.c.l.b16 %v356
        %v552 = vunpack.c.h.b16 %v356
        %v553 = vunpack.c.l.b16 %v357
        %v554 = vunpack.c.h.b16 %v357
        %v555 = vunpack.c.l.b16 %v358
        %v556 = vunpack.c.h.b16 %v358
        %v557 = vunpack.c.l.b16 %v359
        %v558 = vunpack.c.h.b16 %v359
        %v559 = vunpack.c.l.b16 %v360
        %v560 = vunpack.c.h.b16 %v360
        %v561 = vunpack.c.l.b16 %v361
        %v562 = vunpack.c.h.b16 %v361
        %v563 = vunpack.c.l.b16 %v362
        %v564 = vunpack.c.h.b16 %v362
        %v565 = vunpack.c.l.b16 %v363
        %v566 = vunpack.c.h.b16 %v363
        %v567 = vunpack.c.l.b16 %v364
        %v568 = vunpack.c.h.b16 %v364
        %v569 = vunpack.c.l.b16 %v365
        %v570 = vunpack.c.h.b16 %v365
        %v571 = vunpack.c.l.b16 %v366
        %v572 = vunpack.c.h.b16 %v366
        %v573 = vunpack.c.l.b16 %v367
        %v574 = vunpack.c.h.b16 %v367
        %v575 = vunpack.c.l.b16 %v368
        %v576 = vunpack.c.h.b16 %v368
        %v577 = vunpack.c.l.b16 %v369
        %v578 = vunpack.c.h.b16 %v369
        %v579 = vunpack.c.l.b16 %v370
        %v580 = vunpack.c.h.b16 %v370
        %v581 = vunpack.c.l.b16 %v371
        %v582 = vunpack.c.h.b16 %v371
        %v583 = vunpack.c.l.b16 %v372
        %v584 = vunpack.c.h.b16 %v372
        %v585 = vunpack.c.l.b16 %v373
        %v586 = vunpack.c.h.b16 %v373
        %v587 = vunpack.c.l.b16 %v374
        %v588 = vunpack.c.h.b16 %v374
        %v589 = vunpack.c.l.b16 %v375
        %v590 = vunpack.c.h.b16 %v375
        %v591 = vunpack.c.l.b16 %v376
        %v592 = vunpack.c.h.b16 %v376
        %v593 = vunpack.c.l.b16 %v377
        %v594 = vunpack.c.h.b16 %v377
        %v595 = vunpack.c.l.b16 %v378
        %v596 = vunpack.c.h.b16 %v378
        %v597 = vunpack.c.l.b16 %v379
        %v598 = vunpack.c.h.b16 %v379
        %v599 = vunpack.c.l.b16 %v380
        %v600 = vunpack.c.h.b16 %v380
        %v601 = vunpack.c.l.b16 %v381
        %v602 = vunpack.c.h.b16 %v381
        %v603 = vunpack.c.l.b16 %v382
        %v604 = vunpack.c.h.b16 %v382
        %v605 = vunpack.c.l.b16 %v383
        %v606 = vunpack.c.h.b16 %v383
        %v607 = vunpack.c.l.b16 %v384
        %v608 = vunpack.c.h.b16 %v384
        %v609 = vunpack.c.l.b16 %v385
        %v610 = vunpack.c.h.b16 %v385
        %v611 = vunpack.c.l.b16 %v386
        %v612 = vunpack.c.h.b16 %v386
        %v613 = vpack.c.b16 %v487, %v485
        %v614 = vpack.c.b16 %v488, %v486
        %v615 = vpack.c.b16 %v491, %v489
        %v616 = vpack.c.b16 %v492, %v490
        %v617 = vpack.c.b16 %v495, %v493
        %v618 = vpack.c.b16 %v496, %v494
        %v619 = vpack.c.b16 %v499, %v497
        %v620 = vpack.c.b16 %v500, %v498
        %v621 = vpack.c.b16 %v503, %v501
        %v622 = vpack.c.b16 %v504, %v502
        %v623 = vpack.c.b16 %v507, %v505
        %v624 = vpack.c.b16 %v508, %v506
        %v625 = vpack.c.b16 %v511, %v509
        %v626 = vpack.c.b16 %v512, %v510
        %v627 = vpack.c.b16 %v515, %v513
        %v628 = vpack.c.b16 %v516, %v514
        %v629 = vpack.c.b16 %v519, %v517
        %v630 = vpack.c.b16 %v520, %v518
        %v631 = vpack.c.b16 %v523, %v521
        %v632 = vpack.c.b16 %v524, %v522
        %v633 = vpack.c.b16 %v527, %v525
        %v634 = vpack.c.b16 %v528, %v526
        %v635 = vpack.c.b16 %v531, %v529
        %v636 = vpack.c.b16 %v532, %v530
        %v637 = vpack.c.b16 %v535, %v533
        %v638 = vpack.c.b16 %v536, %v534
        %v639 = vpack.c.b16 %v539, %v537
        %v640 = vpack.c.b16 %v540, %v538
        %v641 = vpack.c.b16 %v543, %v541
        %v642 = vpack.c.b16 %v544, %v542
        %v643 = vpack.c.b16 %v547, %v545
        %v644 = vpack.c.b16 %v548, %v546
        %v645 = vpack.c.b16 %v551, %v549
        %v646 = vpack.c.b16 %v552, %v550
        %v647 = vpack.c.b16 %v555, %v553
        %v648 = vpack.c.b16 %v556, %v554
        %v649 = vpack.c.b16 %v559, %v557
        %v650 = vpack.c.b16 %v560, %v558
        %v651 = vpack.c.b16 %v563, %v561
        %v652 = vpack.c.b16 %v564, %v562
        %v653 = vpack.c.b16 %v567, %v565
        %v654 = vpack.c.b16 %v568, %v566
        %v655 = vpack.c.b16 %v571, %v569
        %v656 = vpack.c.b16 %v572, %v570
        %v657 = vpack.c.b16 %v575, %v573
        %v658 = vpack.c.b16 %v576, %v574
        %v659 = vpack.c.b16 %v579, %v577
        %v660 = vpack.c.b16 %v580, %v578
        %v661 = vpack.c.b16 %v583, %v581
        %v662 = vpack.c.b16 %v584, %v582
        %v663 = vpack.c.b16 %v587, %v585
        %v664 = vpack.c.b16 %v588, %v586
        %v665 = vpack.c.b16 %v591, %v589
        %v666 = vpack.c.b16 %v592, %v590
        %v667 = vpack.c.b16 %v595, %v593
        %v668 = vpack.c.b16 %v596, %v594
        %v669 = vpack.c.b16 %v599, %v597
        %v670 = vpack.c.b16 %v600, %v598
        %v671 = vpack.c.b16 %v603, %v601
        %v672 = vpack.c.b16 %v604, %v602
        %v673 = vpack.c.b16 %v607, %v605
        %v674 = vpack.c.b16 %v608, %v606
        %v675 = vpack.c.b16 %v611, %v609
        %v676 = vpack.c.b16 %v612, %v610
        %741 = vmatpush.bf16.msra.mxu0 %v627
        %742 = vmatpush.bf16.msra.mxu0 %v625
        %743 = vmatpush.bf16.msra.mxu0 %v623
        %744 = vmatpush.bf16.msra.mxu0 %v621
        %745 = vmatpush.bf16.msra.mxu0 %v619
        %746 = vmatpush.bf16.msra.mxu0 %v617
        %747 = vmatpush.bf16.msra.mxu0 %v615
        %748 = vmatpush.bf16.msra.mxu0 %v613
        %749 = vmatmul.bf16.gmra.mxu0 %v405
        %v750 = vpop.f32.mrf.mxu0
        %v751 = vadd.f32 0.0, %v750
        %v752 = vpop.f32.mrf.mxu0
        %v753 = vadd.f32 0.0, %v752
        %754 = vmatmul.bf16.gmra.mxu0 %v409
        %v755 = vpop.f32.mrf.mxu0
        %v756 = vadd.f32 0.0, %v755
        %v757 = vpop.f32.mrf.mxu0
        %758 = vdwg.mxu0
        %759 = vmatpush.bf16.msra.mxu0 %v643
        %760 = vmatpush.bf16.msra.mxu0 %v641
        %761 = vmatpush.bf16.msra.mxu0 %v639
        %762 = vmatpush.bf16.msra.mxu0 %v637
        %763 = vmatpush.bf16.msra.mxu0 %v635
        %764 = vmatpush.bf16.msra.mxu0 %v633
        %765 = vmatpush.bf16.msra.mxu0 %v631
        %766 = vmatpush.bf16.msra.mxu0 %v629
        %767 = vmatmul.bf16.gmra.mxu0 %v406
        %v768 = vpop.f32.mrf.mxu0
        %v769 = vadd.f32 %v751, %v768
        %v770 = vpop.f32.mrf.mxu0
        %v771 = vadd.f32 %v753, %v770
        %772 = vmatmul.bf16.gmra.mxu0 %v410
        %v773 = vpop.f32.mrf.mxu0
        %v774 = vadd.f32 %v756, %v773
        %v775 = vpop.f32.mrf.mxu0
        %776 = vdwg.mxu0
        %777 = vmatpush.bf16.msra.mxu0 %v659
        %778 = vmatpush.bf16.msra.mxu0 %v657
        %779 = vmatpush.bf16.msra.mxu0 %v655
        %780 = vmatpush.bf16.msra.mxu0 %v653
        %781 = vmatpush.bf16.msra.mxu0 %v651
        %782 = vmatpush.bf16.msra.mxu0 %v649
        %783 = vmatpush.bf16.msra.mxu0 %v647
        %784 = vmatpush.bf16.msra.mxu0 %v645
        %785 = vmatmul.bf16.gmra.mxu0 %v407
        %v786 = vpop.f32.mrf.mxu0
        %v787 = vadd.f32 %v769, %v786
        %v788 = vpop.f32.mrf.mxu0
        %v789 = vadd.f32 %v771, %v788
        %790 = vmatmul.bf16.gmra.mxu0 %v411
        %v791 = vpop.f32.mrf.mxu0
        %v792 = vadd.f32 %v774, %v791
        %v793 = vpop.f32.mrf.mxu0
        %794 = vdwg.mxu0
        %795 = vmatpush.bf16.msra.mxu0 %v675
        %796 = vmatpush.bf16.msra.mxu0 %v673
        %797 = vmatpush.bf16.msra.mxu0 %v671
        %798 = vmatpush.bf16.msra.mxu0 %v669
        %799 = vmatpush.bf16.msra.mxu0 %v667
        %800 = vmatpush.bf16.msra.mxu0 %v665
        %801 = vmatpush.bf16.msra.mxu0 %v663
        %802 = vmatpush.bf16.msra.mxu0 %v661
        %803 = vmatmul.bf16.gmra.mxu0 %v408
        %v804 = vpop.f32.mrf.mxu0
        %v805 = vadd.f32 %v787, %v804
        %v806 = vpop.f32.mrf.mxu0
        %v807 = vadd.f32 %v789, %v806
        %808 = vmatmul.bf16.gmra.mxu0 %v412
        %v809 = vpop.f32.mrf.mxu0
        %v810 = vadd.f32 %v792, %v809
        %v811 = vpop.f32.mrf.mxu0
        %812 = vdwg.mxu0
        %813 = vmatpush.bf16.msra.mxu0 %v628
        %814 = vmatpush.bf16.msra.mxu0 %v626
        %815 = vmatpush.bf16.msra.mxu0 %v624
        %816 = vmatpush.bf16.msra.mxu0 %v622
        %817 = vmatpush.bf16.msra.mxu0 %v620
        %818 = vmatpush.bf16.msra.mxu0 %v618
        %819 = vmatpush.bf16.msra.mxu0 %v616
        %820 = vmatpush.bf16.msra.mxu0 %v614
        %821 = vmatmul.bf16.gmra.mxu0 %v405
        %v822 = vpop.f32.mrf.mxu0
        %v823 = vadd.f32 0.0, %v822
        %v824 = vpop.f32.mrf.mxu0
        %v825 = vadd.f32 0.0, %v824
        %826 = vmatmul.bf16.gmra.mxu0 %v409
        %v827 = vpop.f32.mrf.mxu0
        %v828 = vadd.f32 0.0, %v827
        %v829 = vpop.f32.mrf.mxu0
        %830 = vdwg.mxu0
        %831 = vmatpush.bf16.msra.mxu0 %v644
        %832 = vmatpush.bf16.msra.mxu0 %v642
        %833 = vmatpush.bf16.msra.mxu0 %v640
        %834 = vmatpush.bf16.msra.mxu0 %v638
        %835 = vmatpush.bf16.msra.mxu0 %v636
        %836 = vmatpush.bf16.msra.mxu0 %v634
        %837 = vmatpush.bf16.msra.mxu0 %v632
        %838 = vmatpush.bf16.msra.mxu0 %v630
        %839 = vmatmul.bf16.gmra.mxu0 %v406
        %v840 = vpop.f32.mrf.mxu0
        %v841 = vadd.f32 %v823, %v840
        %v842 = vpop.f32.mrf.mxu0
        %v843 = vadd.f32 %v825, %v842
        %844 = vmatmul.bf16.gmra.mxu0 %v410
        %v845 = vpop.f32.mrf.mxu0
        %v846 = vadd.f32 %v828, %v845
        %v847 = vpop.f32.mrf.mxu0
        %848 = vdwg.mxu0
        %849 = vmatpush.bf16.msra.mxu0 %v660
        %850 = vmatpush.bf16.msra.mxu0 %v658
        %851 = vmatpush.bf16.msra.mxu0 %v656
        %852 = vmatpush.bf16.msra.mxu0 %v654
        %853 = vmatpush.bf16.msra.mxu0 %v652
        %854 = vmatpush.bf16.msra.mxu0 %v650
        %855 = vmatpush.bf16.msra.mxu0 %v648
        %856 = vmatpush.bf16.msra.mxu0 %v646
        %857 = vmatmul.bf16.gmra.mxu0 %v407
        %v858 = vpop.f32.mrf.mxu0
        %v859 = vadd.f32 %v841, %v858
        %v860 = vpop.f32.mrf.mxu0
        %v861 = vadd.f32 %v843, %v860
        %862 = vmatmul.bf16.gmra.mxu0 %v411
        %v863 = vpop.f32.mrf.mxu0
        %v864 = vadd.f32 %v846, %v863
        %v865 = vpop.f32.mrf.mxu0
        %866 = vdwg.mxu0
        %867 = vmatpush.bf16.msra.mxu0 %v676
        %868 = vmatpush.bf16.msra.mxu0 %v674
        %869 = vmatpush.bf16.msra.mxu0 %v672
        %870 = vmatpush.bf16.msra.mxu0 %v670
        %871 = vmatpush.bf16.msra.mxu0 %v668
        %872 = vmatpush.bf16.msra.mxu0 %v666
        %873 = vmatpush.bf16.msra.mxu0 %v664
        %874 = vmatpush.bf16.msra.mxu0 %v662
        %875 = vmatmul.bf16.gmra.mxu0 %v408
        %v876 = vpop.f32.mrf.mxu0
        %v877 = vadd.f32 %v859, %v876
        %v878 = vpop.f32.mrf.mxu0
        %v879 = vadd.f32 %v861, %v878
        %880 = vmatmul.bf16.gmra.mxu0 %v412
        %v881 = vpop.f32.mrf.mxu0
        %v882 = vadd.f32 %v864, %v881
        %v883 = vpop.f32.mrf.mxu0
        %884 = vdwg.mxu0
        %v885 = vadd.f32 %v311, %v805
        %v886 = vadd.f32 %v312, %v877
        %v887 = vadd.f32 %v313, %v807
        %v888 = vadd.f32 %v314, %v879
        %v889 = vadd.f32 %v315, %v810
        %v890 = vadd.f32 %v316, %v882
        %891 = vst [vmem:[#allocation2] sm:$0xff] %v885
        %892 = vst [vmem:[#allocation2 + $0x8] sm:$0xff] %v886
        %893 = vst [vmem:[#allocation2 + $0x10] sm:$0xff] %v887
        %894 = vst [vmem:[#allocation2 + $0x18] sm:$0xff] %v888
        %895 = vst [vmem:[#allocation2 + $0x20] sm:$0xff] %v889
        %896 = vst [vmem:[#allocation2 + $0x28] sm:$0xff] %v890
        %p897 = scmp.eq.s32.totalorder %s21, 4
        // Predicated region
        $region60: #{alexnet_forward.17} parent=50 // pred_check
          %p898 = pneg %p897
        $region61: #{alexnet_forward.17} parent=50 // pred_check_branch
          %900 = sbr.rel (%p898) target = $region63
        $region62: #{alexnet_forward.17} parent=50 // pred_region
          %v901 = vld [vmem:[#allocation2] sm:$0xff]
          %v902 = vld [vmem:[#allocation2 + $0x8] sm:$0xff]
          %v903 = vld [vmem:[#allocation2 + $0x10] sm:$0xff]
          %v904 = vld [vmem:[#allocation2 + $0x18] sm:$0xff]
          %v905 = vld [vmem:[#allocation2 + $0x20] sm:$0xff]
          %v906 = vld [vmem:[#allocation2 + $0x28] sm:$0xff]
          %v907 = vld [vmem:[%s287] sm:$0x3]
          %v909 = vperm.slane %v907, 0
          %v910 = vperm.slane %v907, 1
          %v913 = vadd.f32 %v901, %v909
          %v914 = vadd.f32 %v902, %v910
          %v915 = vadd.f32 %v903, %v909
          %v916 = vadd.f32 %v904, %v910
          %v917 = vadd.f32 %v905, %v909
          %v918 = vadd.f32 %v906, %v910
          %v919 = vmax.f32 %v913, 0.0
          %v920 = vmax.f32 %v914, 0.0
          %v921 = vmax.f32 %v915, 0.0
          %v922 = vmax.f32 %v916, 0.0
          %v923 = vmax.f32 %v917, 0.0
          %v924 = vmax.f32 %v918, 0.0
          %v925 = vpack.c.bf16 %v920, %v919
          %v926 = vpack.c.bf16 %v922, %v921
          %v927 = vpack.c.bf16 %v924, %v923
          %928 = vst [vmem:[%s298] sm:$0xff] %v925
          %929 = vst [vmem:[%s298 + $0x8] sm:$0xff] %v926
          %930 = vst [vmem:[%s298 + $0x10] sm:$0xff] %v927
        $region63: #{alexnet_forward.17} parent=50 // pred_fallthru
          _
        %s931 = smul.u32 3, %s19
        %s932 = smul.u32 2, %s20
        %p933 = scmp.lt.s32.totalorder %s931, 2
        %s934 = scalar_select %p933, %s931, 2
        %p935 = scmp.lt.s32.totalorder %s932, 1
        %s936 = scalar_select %p935, %s932, 1
        %s937 = smul.addr %s934, 2
        %s938 = sadd.s32 %s936, %s937
        %s939 = smul.addr %s938, 4
        %s940 = scalar_lea.vmem %s3, %s939
        // Predicated region
        $region64: #{alexnet_forward.17} parent=50 // pred_check
          %p941 = pneg %p135
        $region65: #{alexnet_forward.17} parent=50 // pred_check_branch
          %943 = sbr.rel (%p941) target = $region67
        $region66: #{alexnet_forward.17} parent=50 // pred_region
          %s944 = smul.u32 3, %s19
          %s945 = smul.u32 2, %s20
        $region67: #{alexnet_forward.17} parent=50 // pred_fallthru
          _
        // Predicated region
        $region68: #{alexnet_forward.17} parent=50 // pred_check
          %p946 = pneg %p135
        $region69: #{alexnet_forward.17} parent=50 // pred_check_branch
          %948 = sbr.rel (%p946) target = $region71
        $region70: #{alexnet_forward.17} parent=50 // pred_region
          %s949 = smul.u32 3, %s19
          %s950 = smul.u32 2, %s20
          %p951 = scmp.lt.s32.totalorder %s949, 2
          %s952 = scalar_select %p951, %s949, 2
          %p953 = scmp.lt.s32.totalorder %s950, 1
          %s954 = scalar_select %p953, %s950, 1
          %s955 = smul.addr %s952, 2
          %s956 = sadd.s32 %s954, %s955
          %s957 = smul.addr %s956, 4
          %s958 = scalar_lea.vmem %s3, %s957
        $region71: #{alexnet_forward.17} parent=50 // pred_fallthru
          _
      $region51: #{alexnet_forward.17} parent=5 // pred_fallthru
        _
      %p959 = scmp.le.s32.totalorder 2, %s9
      // Predicated region
      $region72: #{alexnet_forward.17} parent=5 // pred_check
        %p960 = pneg %p959
      $region73: #{alexnet_forward.17} parent=5 // pred_check_branch
        %962 = sbr.rel (%p960) target = $region75
      $region74: #{alexnet_forward.17} parent=5 // pred_region
        %s963 = ssub.s32 %s9, 2
      $region75: #{alexnet_forward.17} parent=5 // pred_fallthru
        _
    $region6: #{alexnet_forward.17} parent=1 // loop_footer
      %s13 = sadd.s32 1, %s9
    $region7: #{alexnet_forward.17} parent=1 // loop_footer_branch
      %8 = sbr.rel target = $region3
    $region8: #{alexnet_forward.17} parent=1 // loop_exit
      _

// kernel: alexnet_forward.19
$region0: #{alexnet_forward.19}
  #allocation0 [shape = 'u32[]', space=smem, size = 0x4, offset = 0x4, fixed_abs, tag = 'smem constant byte address 0x4 - core index']
  #allocation1 [shape = 'u32[72,128]{1,0:T(1,128)}', space=vmem, size = 0x9000, scoped, tag = 'internal scratch']
  #allocation2 [shape = 'f32[8,256]{1,0:T(8,128)}', space=vmem, size = 0x2000, scoped, tag = 'scratch operand']
  %s0 = inlined_call_operand.vmem [shape: bf16[8,9216], index: 0, kind: input, shape index: {}]
  %s1 = inlined_call_operand.vmem [shape: bf16[9216,512], index: 1, kind: input, shape index: {}]
  %s2 = inlined_call_operand.vmem [shape: f32[1,512], index: 2, kind: input, shape index: {}]
  %s3 = inlined_call_operand.vmem [shape: bf16[8,512], index: 3, kind: output, shape index: {}]
  %s4 = sld [smem:[#allocation0]]
  $region91: #{alexnet_forward.19} parent=0
    _
  %s6 = ssub.s32 1, %s4
  %s7 = scalar_select 0, %s6, %s4
  $region1: #{alexnet_forward.19} parent=0
    #allocation3 [shape = 'u8[524288]{0}', space=vmem, size = 0x80000, scoped, tag = 'input window, operand 1']
    loop: start=0, step=1, limit=38
    $region2: #{alexnet_forward.19} parent=1 // loop_pre_header
      _
    $region3: #{alexnet_forward.19} parent=1 // loop_header
      %s9 = sphi 0, %s13
      %p10 = scmp.ge.s32.totalorder %s9, 38
      %s16 = sphi 0, %s35
      %s17 = sphi 0, %s31
      %s18 = sphi 0, %s27
      %s19 = sphi 0, %s16
      %s20 = sphi 0, %s17
      %s21 = sphi 0, %s18
      %s22 = sphi 0, %s19
      %s23 = sphi 0, %s20
      %s24 = sphi 0, %s21
      %s40 = sphi 0, %s42
      %s43 = sphi 0, %s40
      %s44 = sphi 0, %s43
      %s60 = sphi 0, %s44
      %s68 = sphi 0, %s70
      %s71 = sphi 0, %s68
      %s72 = sphi 0, %s71
      %s88 = sphi 0, %s72
      %s94 = sphi 0, %s96
      %s97 = sphi 0, %s94
      %s98 = sphi 0, %s97
      %s114 = sphi 0, %s98
      %s122 = sphi 0, %s124
      %s125 = sphi 0, %s122
      %s126 = sphi 0, %s125
      %s142 = sphi 0, %s126
    $region4: #{alexnet_forward.19} parent=1 // loop_header_branch
      %12 = sbr.rel (%p10) target = $region8
    $region5: #{alexnet_forward.19} parent=1 // loop_body
      %s14 = ssub.s32 %s9, 1
      %s15 = ssub.s32 %s9, 2
      %s25 = sadd.s32 1, %s18
      %p26 = scmp.ge.s32.totalorder %s25, 18
      %s27 = scalar_select %p26, 0, %s25
      %s28 = sadd.s32 1, %s17
      %s29 = scalar_select %p26, %s28, %s17
      %p30 = scmp.ge.s32.totalorder %s29, 2
      %s31 = scalar_select %p30, 0, %s29
      %s32 = sadd.s32 1, %s16
      %s33 = scalar_select %p30, %s32, %s16
      %p34 = scmp.ge.s32.totalorder %s33, 1
      %s35 = scalar_select %p34, 0, %s33
      %s36 = ssub.s32 %s16, %s35
      %s37 = ssub.s32 %s18, %s27
      %s38 = sor.u32 %s36, %s37
      %p39 = scmp.eq.s32.totalorder %s38, 0
      %s41 = sadd.s32 %s40, 1
      %s42 = scalar_select %p39, %s40, %s41
      %p45 = pneg %p39
      %p46 = scmp.eq.s32.totalorder %s9, 35
      %p47 = por %p45, %p46
      %p48 = scmp.ne.s32.totalorder %s40, %s43
      %p49 = scmp.eq.s32.totalorder %s9, 0
      %p50 = por %p48, %p49
      %p51 = scmp.ne.s32.totalorder %s40, %s43
      %p52 = scmp.eq.s32.totalorder %s14, 35
      %p53 = por %p51, %p52
      %p54 = scmp.ne.s32.totalorder %s43, %s44
      %p55 = scmp.eq.s32.totalorder %s14, 0
      %p56 = por %p54, %p55
      %p57 = scmp.ne.s32.totalorder %s43, %s44
      %p58 = scmp.eq.s32.totalorder %s15, 35
      %p59 = por %p57, %p58
      %p61 = scmp.ne.s32.totalorder %s44, %s60
      %p62 = scmp.eq.s32.totalorder %s15, 0
      %p63 = por %p61, %p62
      %s64 = ssub.s32 %s18, %s27
      %s65 = ssub.s32 %s17, %s31
      %s66 = sor.u32 %s64, %s65
      %p67 = scmp.eq.s32.totalorder %s66, 0
      %s69 = sadd.s32 %s68, 1
      %s70 = scalar_select %p67, %s68, %s69
      %p73 = pneg %p67
      %p74 = scmp.eq.s32.totalorder %s9, 35
      %p75 = por %p73, %p74
      %p76 = scmp.ne.s32.totalorder %s68, %s71
      %p77 = scmp.eq.s32.totalorder %s9, 0
      %p78 = por %p76, %p77
      %p79 = scmp.ne.s32.totalorder %s68, %s71
      %p80 = scmp.eq.s32.totalorder %s14, 35
      %p81 = por %p79, %p80
      %p82 = scmp.ne.s32.totalorder %s71, %s72
      %p83 = scmp.eq.s32.totalorder %s14, 0
      %p84 = por %p82, %p83
      %p85 = scmp.ne.s32.totalorder %s71, %s72
      %p86 = scmp.eq.s32.totalorder %s15, 35
      %p87 = por %p85, %p86
      %p89 = scmp.ne.s32.totalorder %s72, %s88
      %p90 = scmp.eq.s32.totalorder %s15, 0
      %p91 = por %p89, %p90
      %s92 = ssub.s32 %s17, %s31
      %p93 = scmp.eq.s32.totalorder %s92, 0
      %s95 = sadd.s32 %s94, 1
      %s96 = scalar_select %p93, %s94, %s95
      %p99 = pneg %p93
      %p100 = scmp.eq.s32.totalorder %s9, 35
      %p101 = por %p99, %p100
      %p102 = scmp.ne.s32.totalorder %s94, %s97
      %p103 = scmp.eq.s32.totalorder %s9, 0
      %p104 = por %p102, %p103
      %p105 = scmp.ne.s32.totalorder %s94, %s97
      %p106 = scmp.eq.s32.totalorder %s14, 35
      %p107 = por %p105, %p106
      %p108 = scmp.ne.s32.totalorder %s97, %s98
      %p109 = scmp.eq.s32.totalorder %s14, 0
      %p110 = por %p108, %p109
      %p111 = scmp.ne.s32.totalorder %s97, %s98
      %p112 = scmp.eq.s32.totalorder %s15, 35
      %p113 = por %p111, %p112
      %p115 = scmp.ne.s32.totalorder %s98, %s114
      %p116 = scmp.eq.s32.totalorder %s15, 0
      %p117 = por %p115, %p116
      %s118 = ssub.s32 %s16, %s35
      %s119 = ssub.s32 %s17, %s31
      %s120 = sor.u32 %s118, %s119
      %p121 = scmp.eq.s32.totalorder %s120, 0
      %s123 = sadd.s32 %s122, 1
      %s124 = scalar_select %p121, %s122, %s123
      %p127 = pneg %p121
      %p128 = scmp.eq.s32.totalorder %s9, 35
      %p129 = por %p127, %p128
      %p130 = scmp.ne.s32.totalorder %s122, %s125
      %p131 = scmp.eq.s32.totalorder %s9, 0
      %p132 = por %p130, %p131
      %p133 = scmp.ne.s32.totalorder %s122, %s125
      %p134 = scmp.eq.s32.totalorder %s14, 35
      %p135 = por %p133, %p134
      %p136 = scmp.ne.s32.totalorder %s125, %s126
      %p137 = scmp.eq.s32.totalorder %s14, 0
      %p138 = por %p136, %p137
      %p139 = scmp.ne.s32.totalorder %s125, %s126
      %p140 = scmp.eq.s32.totalorder %s15, 35
      %p141 = por %p139, %p140
      %p143 = scmp.ne.s32.totalorder %s126, %s142
      %p144 = scmp.eq.s32.totalorder %s15, 0
      %p145 = por %p143, %p144
      %p146 = scmp.le.s32.totalorder 1, %s9
      %p147 = scmp.lt.s32.totalorder %s9, 37
      %p148 = pnand %p146, %p147
      %p149 = pneg %p148
      // Predicated region
      $region9: #{alexnet_forward.19} parent=5 // pred_check
        _
      $region10: #{alexnet_forward.19} parent=5 // pred_check_branch
        %151 = sbr.rel (%p148) target = $region12
      $region11: #{alexnet_forward.19} parent=5 // pred_region
        %s152 = ssub.s32 %s9, 1
      $region12: #{alexnet_forward.19} parent=5 // pred_fallthru
        _
      %p153 = scmp.lt.s32.totalorder %s9, 36
      // Predicated region
      $region13: #{alexnet_forward.19} parent=5 // pred_check
        %p154 = pneg %p153
      $region14: #{alexnet_forward.19} parent=5 // pred_check_branch
        %156 = sbr.rel (%p154) target = $region16
      $region15: #{alexnet_forward.19} parent=5 // pred_region
        // Predicated region
        $region17: #{alexnet_forward.19} parent=15 // pred_check
          %p157 = pneg %p50
        $region18: #{alexnet_forward.19} parent=15 // pred_check_branch
          %159 = sbr.rel (%p157) target = $region20
        $region19: #{alexnet_forward.19} parent=15 // pred_region
          %s160 = smul.u32 4, %s18
          %p161 = scmp.lt.s32.totalorder %s16, 0
          %s162 = scalar_select %p161, %s16, 0
          %p163 = scmp.lt.s32.totalorder %s160, 71
          %s164 = scalar_select %p163, %s160, 71
          %s165 = smul.addr %s162, 72
          %s166 = sadd.s32 %s164, %s165
          %s167 = smul.addr %s166, 4
          %s168 = scalar_lea.vmem %s0, %s167
          %s169 = smul.u32 4, %s18
        $region20: #{alexnet_forward.19} parent=15 // pred_fallthru
          _
        // Predicated region
        $region21: #{alexnet_forward.19} parent=15 // pred_check
          %p170 = pneg %p78
        $region22: #{alexnet_forward.19} parent=15 // pred_check_branch
          %172 = sbr.rel (%p170) target = $region24
        $region23: #{alexnet_forward.19} parent=15 // pred_region
          %s173 = sand.u32 %s68, 1
          %s174 = sand.u32 %s68, 1
          %s175 = smul.addr %s174, 512
          %s176 = scalar_lea.vmem [#allocation3], %s175
          %s177 = smul.u32 64, %s18
          %s178 = smul.u32 2, %s17
          %s179 = smul.addr %s177, 4
          %s180 = sadd.s32 %s178, %s179
          %s181 = smul.addr %s180, 4
          %s182 = scalar_lea.vmem %s1, %s181
          // Predicated region
          $region25: #{alexnet_forward.19} parent=23 // pred_check
            _
          $region26: #{alexnet_forward.19} parent=23 // pred_check_branch
            %184 = sbr.rel (0) target = $region28
          $region27: #{alexnet_forward.19} parent=23 // pred_region
            // Predicated region
            $region29: #{alexnet_forward.19} parent=27 // pred_check
              _
            $region30: #{alexnet_forward.19} parent=27 // pred_check_branch
              %186 = sbr.rel (0) target = $region32
            $region31: #{alexnet_forward.19} parent=27 // pred_region
              // Predicated region
              $region44: #{alexnet_forward.19} parent=31 // pred_check
                _
              $region45: #{alexnet_forward.19} parent=31 // pred_check_branch
                %328 = sbr.rel (0) target = $region47
              $region46: #{alexnet_forward.19} parent=31 // pred_region
                loop: start=0, step=1, limit=1
                $region48: #{alexnet_forward.19} parent=46 // loop_pre_header
                  _
                $region49: #{alexnet_forward.19} parent=46 // loop_header
                  %s330 = sphi 0, %s334
                  %p331 = scmp.ge.s32.totalorder %s330, 1
                  %s335 = sphi %s182, %s182
                  %s336 = sphi %s176, %s176
                $region50: #{alexnet_forward.19} parent=46 // loop_header_branch
                  %333 = sbr.rel (%p331) target = $region54
                $region51: #{alexnet_forward.19} parent=46 // loop_body
                  %v337 = vld [vmem:[%s335] sm:$0xff]
                  %338 = vst [vmem:[%s336] sm:$0xff] %v337
                  %v339 = vld [vmem:[%s335 + $0x10] sm:$0xff]
                  %340 = vst [vmem:[%s336 + $0x8] sm:$0xff] %v339
                  %v341 = vld [vmem:[%s335 + $0x20] sm:$0xff]
                  %342 = vst [vmem:[%s336 + $0x10] sm:$0xff] %v341
                  %v343 = vld [vmem:[%s335 + $0x30] sm:$0xff]
                  %344 = vst [vmem:[%s336 + $0x18] sm:$0xff] %v343
                  %v345 = vld [vmem:[%s335 + $0x40] sm:$0xff]
                  %346 = vst [vmem:[%s336 + $0x20] sm:$0xff] %v345
                  %v347 = vld [vmem:[%s335 + $0x50] sm:$0xff]
                  %348 = vst [vmem:[%s336 + $0x28] sm:$0xff] %v347
                  %v349 = vld [vmem:[%s335 + $0x60] sm:$0xff]
                  %350 = vst [vmem:[%s336 + $0x30] sm:$0xff] %v349
                  %v351 = vld [vmem:[%s335 + $0x70] sm:$0xff]
                  %352 = vst [vmem:[%s336 + $0x38] sm:$0xff] %v351
                  %v353 = vld [vmem:[%s335 + $0x80] sm:$0xff]
                  %354 = vst [vmem:[%s336 + $0x40] sm:$0xff] %v353
                  %v355 = vld [vmem:[%s335 + $0x90] sm:$0xff]
                  %356 = vst [vmem:[%s336 + $0x48] sm:$0xff] %v355
                  %v357 = vld [vmem:[%s335 + $0xa0] sm:$0xff]
                  %358 = vst [vmem:[%s336 + $0x50] sm:$0xff] %v357
                  %v359 = vld [vmem:[%s335 + $0xb0] sm:$0xff]
                  %360 = vst [vmem:[%s336 + $0x58] sm:$0xff] %v359
                  %v361 = vld [vmem:[%s335 + $0xc0] sm:$0xff]
                  %362 = vst [vmem:[%s336 + $0x60] sm:$0xff] %v361
                  %v363 = vld [vmem:[%s335 + $0xd0] sm:$0xff]
                  %364 = vst [vmem:[%s336 + $0x68] sm:$0xff] %v363
                  %v365 = vld [vmem:[%s335 + $0xe0] sm:$0xff]
                  %366 = vst [vmem:[%s336 + $0x70] sm:$0xff] %v365
                  %v367 = vld [vmem:[%s335 + $0xf0] sm:$0xff]
                  %368 = vst [vmem:[%s336 + $0x78] sm:$0xff] %v367
                  %v369 = vld [vmem:[%s335 + $0x100] sm:$0xff]
                  %370 = vst [vmem:[%s336 + $0x80] sm:$0xff] %v369
                  %v371 = vld [vmem:[%s335 + $0x110] sm:$0xff]
                  %372 = vst [vmem:[%s336 + $0x88] sm:$0xff] %v371
                  %v373 = vld [vmem:[%s335 + $0x120] sm:$0xff]
                  %374 = vst [vmem:[%s336 + $0x90] sm:$0xff] %v373
                  %v375 = vld [vmem:[%s335 + $0x130] sm:$0xff]
                  %376 = vst [vmem:[%s336 + $0x98] sm:$0xff] %v375
                  %v377 = vld [vmem:[%s335 + $0x140] sm:$0xff]
                  %378 = vst [vmem:[%s336 + $0xa0] sm:$0xff] %v377
                  %v379 = vld [vmem:[%s335 + $0x150] sm:$0xff]
                  %380 = vst [vmem:[%s336 + $0xa8] sm:$0xff] %v379
                  %v381 = vld [vmem:[%s335 + $0x160] sm:$0xff]
                  %382 = vst [vmem:[%s336 + $0xb0] sm:$0xff] %v381
                  %v383 = vld [vmem:[%s335 + $0x170] sm:$0xff]
                  %384 = vst [vmem:[%s336 + $0xb8] sm:$0xff] %v383
                  %v385 = vld [vmem:[%s335 + $0x180] sm:$0xff]
                  %386 = vst [vmem:[%s336 + $0xc0] sm:$0xff] %v385
                  %v387 = vld [vmem:[%s335 + $0x190] sm:$0xff]
                  %388 = vst [vmem:[%s336 + $0xc8] sm:$0xff] %v387
                  %v389 = vld [vmem:[%s335 + $0x1a0] sm:$0xff]
                  %390 = vst [vmem:[%s336 + $0xd0] sm:$0xff] %v389
                  %v391 = vld [vmem:[%s335 + $0x1b0] sm:$0xff]
                  %392 = vst [vmem:[%s336 + $0xd8] sm:$0xff] %v391
                  %v393 = vld [vmem:[%s335 + $0x1c0] sm:$0xff]
                  %394 = vst [vmem:[%s336 + $0xe0] sm:$0xff] %v393
                  %v395 = vld [vmem:[%s335 + $0x1d0] sm:$0xff]
                  %396 = vst [vmem:[%s336 + $0xe8] sm:$0xff] %v395
                  %v397 = vld [vmem:[%s335 + $0x1e0] sm:$0xff]
                  %398 = vst [vmem:[%s336 + $0xf0] sm:$0xff] %v397
                  %v399 = vld [vmem:[%s335 + $0x1f0] sm:$0xff]
                  %400 = vst [vmem:[%s336 + $0xf8] sm:$0xff] %v399
                  %v401 = vld [vmem:[%s335 + $0x200] sm:$0xff]
                  %402 = vst [vmem:[%s336 + $0x100] sm:$0xff] %v401
                  %v403 = vld [vmem:[%s335 + $0x210] sm:$0xff]
                  %404 = vst [vmem:[%s336 + $0x108] sm:$0xff] %v403
                  %v405 = vld [vmem:[%s335 + $0x220] sm:$0xff]
                  %406 = vst [vmem:[%s336 + $0x110] sm:$0xff] %v405
                  %v407 = vld [vmem:[%s335 + $0x230] sm:$0xff]
                  %408 = vst [vmem:[%s336 + $0x118] sm:$0xff] %v407
                  %v409 = vld [vmem:[%s335 + $0x240] sm:$0xff]
                  %410 = vst [vmem:[%s336 + $0x120] sm:$0xff] %v409
                  %v411 = vld [vmem:[%s335 + $0x250] sm:$0xff]
                  %412 = vst [vmem:[%s336 + $0x128] sm:$0xff] %v411
                  %v413 = vld [vmem:[%s335 + $0x260] sm:$0xff]
                  %414 = vst [vmem:[%s336 + $0x130] sm:$0xff] %v413
                  %v415 = vld [vmem:[%s335 + $0x270] sm:$0xff]
                  %416 = vst [vmem:[%s336 + $0x138] sm:$0xff] %v415
                  %v417 = vld [vmem:[%s335 + $0x280] sm:$0xff]
                  %418 = vst [vmem:[%s336 + $0x140] sm:$0xff] %v417
                  %v419 = vld [vmem:[%s335 + $0x290] sm:$0xff]
                  %420 = vst [vmem:[%s336 + $0x148] sm:$0xff] %v419
                  %v421 = vld [vmem:[%s335 + $0x2a0] sm:$0xff]
                  %422 = vst [vmem:[%s336 + $0x150] sm:$0xff] %v421
                  %v423 = vld [vmem:[%s335 + $0x2b0] sm:$0xff]
                  %424 = vst [vmem:[%s336 + $0x158] sm:$0xff] %v423
                  %v425 = vld [vmem:[%s335 + $0x2c0] sm:$0xff]
                  %426 = vst [vmem:[%s336 + $0x160] sm:$0xff] %v425
                  %v427 = vld [vmem:[%s335 + $0x2d0] sm:$0xff]
                  %428 = vst [vmem:[%s336 + $0x168] sm:$0xff] %v427
                  %v429 = vld [vmem:[%s335 + $0x2e0] sm:$0xff]
                  %430 = vst [vmem:[%s336 + $0x170] sm:$0xff] %v429
                  %v431 = vld [vmem:[%s335 + $0x2f0] sm:$0xff]
                  %432 = vst [vmem:[%s336 + $0x178] sm:$0xff] %v431
                  %v433 = vld [vmem:[%s335 + $0x300] sm:$0xff]
                  %434 = vst [vmem:[%s336 + $0x180] sm:$0xff] %v433
                  %v435 = vld [vmem:[%s335 + $0x310] sm:$0xff]
                  %436 = vst [vmem:[%s336 + $0x188] sm:$0xff] %v435
                  %v437 = vld [vmem:[%s335 + $0x320] sm:$0xff]
                  %438 = vst [vmem:[%s336 + $0x190] sm:$0xff] %v437
                  %v439 = vld [vmem:[%s335 + $0x330] sm:$0xff]
                  %440 = vst [vmem:[%s336 + $0x198] sm:$0xff] %v439
                  %v441 = vld [vmem:[%s335 + $0x340] sm:$0xff]
                  %442 = vst [vmem:[%s336 + $0x1a0] sm:$0xff] %v441
                  %v443 = vld [vmem:[%s335 + $0x350] sm:$0xff]
                  %444 = vst [vmem:[%s336 + $0x1a8] sm:$0xff] %v443
                  %v445 = vld [vmem:[%s335 + $0x360] sm:$0xff]
                  %446 = vst [vmem:[%s336 + $0x1b0] sm:$0xff] %v445
                  %v447 = vld [vmem:[%s335 + $0x370] sm:$0xff]
                  %448 = vst [vmem:[%s336 + $0x1b8] sm:$0xff] %v447
                  %v449 = vld [vmem:[%s335 + $0x380] sm:$0xff]
                  %450 = vst [vmem:[%s336 + $0x1c0] sm:$0xff] %v449
                  %v451 = vld [vmem:[%s335 + $0x390] sm:$0xff]
                  %452 = vst [vmem:[%s336 + $0x1c8] sm:$0xff] %v451
                  %v453 = vld [vmem:[%s335 + $0x3a0] sm:$0xff]
                  %454 = vst [vmem:[%s336 + $0x1d0] sm:$0xff] %v453
                  %v455 = vld [vmem:[%s335 + $0x3b0] sm:$0xff]
                  %456 = vst [vmem:[%s336 + $0x1d8] sm:$0xff] %v455
                  %v457 = vld [vmem:[%s335 + $0x3c0] sm:$0xff]
                  %458 = vst [vmem:[%s336 + $0x1e0] sm:$0xff] %v457
                  %v459 = vld [vmem:[%s335 + $0x3d0] sm:$0xff]
                  %460 = vst [vmem:[%s336 + $0x1e8] sm:$0xff] %v459
                  %v461 = vld [vmem:[%s335 + $0x3e0] sm:$0xff]
                  %462 = vst [vmem:[%s336 + $0x1f0] sm:$0xff] %v461
                  %v463 = vld [vmem:[%s335 + $0x3f0] sm:$0xff]
                  %464 = vst [vmem:[%s336 + $0x1f8] sm:$0xff] %v463
                $region52: #{alexnet_forward.19} parent=46 // loop_footer
                  %s334 = sadd.s32 1, %s330
                $region53: #{alexnet_forward.19} parent=46 // loop_footer_branch
                  %329 = sbr.rel target = $region49
                $region54: #{alexnet_forward.19} parent=46 // loop_exit
                  _
              $region47: #{alexnet_forward.19} parent=31 // pred_fallthru
                _
              // Predicated region
              $region55: #{alexnet_forward.19} parent=31 // pred_check
                _
              $region56: #{alexnet_forward.19} parent=31 // pred_check_branch
                %466 = sbr.rel target = $region58
              $region57: #{alexnet_forward.19} parent=31 // pred_region
                _
              $region58: #{alexnet_forward.19} parent=31 // pred_fallthru
                _
            $region32: #{alexnet_forward.19} parent=27 // pred_fallthru
              _
            // Predicated region
            $region33: #{alexnet_forward.19} parent=27 // pred_check
              _
            $region34: #{alexnet_forward.19} parent=27 // pred_check_branch
              %188 = sbr.rel target = $region36
            $region35: #{alexnet_forward.19} parent=27 // pred_region
              %s190 = ssub.s32 256, 1
              loop: start=0, step=1, limit=1
              $region37: #{alexnet_forward.19} parent=35 // loop_pre_header
                _
              $region38: #{alexnet_forward.19} parent=35 // loop_header
                %s192 = sphi 0, %s196
                %p193 = scmp.ge.s32.totalorder %s192, 1
                %s197 = sphi %s182, %s182
                %s198 = sphi %s176, %s176
              $region39: #{alexnet_forward.19} parent=35 // loop_header_branch
                %195 = sbr.rel (%p193) target = $region43
              $region40: #{alexnet_forward.19} parent=35 // loop_body
                %v199 = vld [vmem:[%s197] sm:%s190]
                %200 = vst [vmem:[%s198] sm:%s190] %v199
                %v201 = vld [vmem:[%s197 + $0x10] sm:%s190]
                %202 = vst [vmem:[%s198 + $0x8] sm:%s190] %v201
                %v203 = vld [vmem:[%s197 + $0x20] sm:%s190]
                %204 = vst [vmem:[%s198 + $0x10] sm:%s190] %v203
                %v205 = vld [vmem:[%s197 + $0x30] sm:%s190]
                %206 = vst [vmem:[%s198 + $0x18] sm:%s190] %v205
                %v207 = vld [vmem:[%s197 + $0x40] sm:%s190]
                %208 = vst [vmem:[%s198 + $0x20] sm:%s190] %v207
                %v209 = vld [vmem:[%s197 + $0x50] sm:%s190]
                %210 = vst [vmem:[%s198 + $0x28] sm:%s190] %v209
                %v211 = vld [vmem:[%s197 + $0x60] sm:%s190]
                %212 = vst [vmem:[%s198 + $0x30] sm:%s190] %v211
                %v213 = vld [vmem:[%s197 + $0x70] sm:%s190]
                %214 = vst [vmem:[%s198 + $0x38] sm:%s190] %v213
                %v215 = vld [vmem:[%s197 + $0x80] sm:%s190]
                %216 = vst [vmem:[%s198 + $0x40] sm:%s190] %v215
                %v217 = vld [vmem:[%s197 + $0x90] sm:%s190]
                %218 = vst [vmem:[%s198 + $0x48] sm:%s190] %v217
                %v219 = vld [vmem:[%s197 + $0xa0] sm:%s190]
                %220 = vst [vmem:[%s198 + $0x50] sm:%s190] %v219
                %v221 = vld [vmem:[%s197 + $0xb0] sm:%s190]
                %222 = vst [vmem:[%s198 + $0x58] sm:%s190] %v221
                %v223 = vld [vmem:[%s197 + $0xc0] sm:%s190]
                %224 = vst [vmem:[%s198 + $0x60] sm:%s190] %v223
                %v225 = vld [vmem:[%s197 + $0xd0] sm:%s190]
                %226 = vst [vmem:[%s198 + $0x68] sm:%s190] %v225
                %v227 = vld [vmem:[%s197 + $0xe0] sm:%s190]
                %228 = vst [vmem:[%s198 + $0x70] sm:%s190] %v227
                %v229 = vld [vmem:[%s197 + $0xf0] sm:%s190]
                %230 = vst [vmem:[%s198 + $0x78] sm:%s190] %v229
                %v231 = vld [vmem:[%s197 + $0x100] sm:%s190]
                %232 = vst [vmem:[%s198 + $0x80] sm:%s190] %v231
                %v233 = vld [vmem:[%s197 + $0x110] sm:%s190]
                %234 = vst [vmem:[%s198 + $0x88] sm:%s190] %v233
                %v235 = vld [vmem:[%s197 + $0x120] sm:%s190]
                %236 = vst [vmem:[%s198 + $0x90] sm:%s190] %v235
                %v237 = vld [vmem:[%s197 + $0x130] sm:%s190]
                %238 = vst [vmem:[%s198 + $0x98] sm:%s190] %v237
                %v239 = vld [vmem:[%s197 + $0x140] sm:%s190]
                %240 = vst [vmem:[%s198 + $0xa0] sm:%s190] %v239
                %v241 = vld [vmem:[%s197 + $0x150] sm:%s190]
                %242 = vst [vmem:[%s198 + $0xa8] sm:%s190] %v241
                %v243 = vld [vmem:[%s197 + $0x160] sm:%s190]
                %244 = vst [vmem:[%s198 + $0xb0] sm:%s190] %v243
                %v245 = vld [vmem:[%s197 + $0x170] sm:%s190]
                %246 = vst [vmem:[%s198 + $0xb8] sm:%s190] %v245
                %v247 = vld [vmem:[%s197 + $0x180] sm:%s190]
                %248 = vst [vmem:[%s198 + $0xc0] sm:%s190] %v247
                %v249 = vld [vmem:[%s197 + $0x190] sm:%s190]
                %250 = vst [vmem:[%s198 + $0xc8] sm:%s190] %v249
                %v251 = vld [vmem:[%s197 + $0x1a0] sm:%s190]
                %252 = vst [vmem:[%s198 + $0xd0] sm:%s190] %v251
                %v253 = vld [vmem:[%s197 + $0x1b0] sm:%s190]
                %254 = vst [vmem:[%s198 + $0xd8] sm:%s190] %v253
                %v255 = vld [vmem:[%s197 + $0x1c0] sm:%s190]
                %256 = vst [vmem:[%s198 + $0xe0] sm:%s190] %v255
                %v257 = vld [vmem:[%s197 + $0x1d0] sm:%s190]
                %258 = vst [vmem:[%s198 + $0xe8] sm:%s190] %v257
                %v259 = vld [vmem:[%s197 + $0x1e0] sm:%s190]
                %260 = vst [vmem:[%s198 + $0xf0] sm:%s190] %v259
                %v261 = vld [vmem:[%s197 + $0x1f0] sm:%s190]
                %262 = vst [vmem:[%s198 + $0xf8] sm:%s190] %v261
                %v263 = vld [vmem:[%s197 + $0x200] sm:%s190]
                %264 = vst [vmem:[%s198 + $0x100] sm:%s190] %v263
                %v265 = vld [vmem:[%s197 + $0x210] sm:%s190]
                %266 = vst [vmem:[%s198 + $0x108] sm:%s190] %v265
                %v267 = vld [vmem:[%s197 + $0x220] sm:%s190]
                %268 = vst [vmem:[%s198 + $0x110] sm:%s190] %v267
                %v269 = vld [vmem:[%s197 + $0x230] sm:%s190]
                %270 = vst [vmem:[%s198 + $0x118] sm:%s190] %v269
                %v271 = vld [vmem:[%s197 + $0x240] sm:%s190]
                %272 = vst [vmem:[%s198 + $0x120] sm:%s190] %v271
                %v273 = vld [vmem:[%s197 + $0x250] sm:%s190]
                %274 = vst [vmem:[%s198 + $0x128] sm:%s190] %v273
                %v275 = vld [vmem:[%s197 + $0x260] sm:%s190]
                %276 = vst [vmem:[%s198 + $0x130] sm:%s190] %v275
                %v277 = vld [vmem:[%s197 + $0x270] sm:%s190]
                %278 = vst [vmem:[%s198 + $0x138] sm:%s190] %v277
                %v279 = vld [vmem:[%s197 + $0x280] sm:%s190]
                %280 = vst [vmem:[%s198 + $0x140] sm:%s190] %v279
                %v281 = vld [vmem:[%s197 + $0x290] sm:%s190]
                %282 = vst [vmem:[%s198 + $0x148] sm:%s190] %v281
                %v283 = vld [vmem:[%s197 + $0x2a0] sm:%s190]
                %284 = vst [vmem:[%s198 + $0x150] sm:%s190] %v283
                %v285 = vld [vmem:[%s197 + $0x2b0] sm:%s190]
                %286 = vst [vmem:[%s198 + $0x158] sm:%s190] %v285
                %v287 = vld [vmem:[%s197 + $0x2c0] sm:%s190]
                %288 = vst [vmem:[%s198 + $0x160] sm:%s190] %v287
                %v289 = vld [vmem:[%s197 + $0x2d0] sm:%s190]
                %290 = vst [vmem:[%s198 + $0x168] sm:%s190] %v289
                %v291 = vld [vmem:[%s197 + $0x2e0] sm:%s190]
                %292 = vst [vmem:[%s198 + $0x170] sm:%s190] %v291
                %v293 = vld [vmem:[%s197 + $0x2f0] sm:%s190]
                %294 = vst [vmem:[%s198 + $0x178] sm:%s190] %v293
                %v295 = vld [vmem:[%s197 + $0x300] sm:%s190]
                %296 = vst [vmem:[%s198 + $0x180] sm:%s190] %v295
                %v297 = vld [vmem:[%s197 + $0x310] sm:%s190]
                %298 = vst [vmem:[%s198 + $0x188] sm:%s190] %v297
                %v299 = vld [vmem:[%s197 + $0x320] sm:%s190]
                %300 = vst [vmem:[%s198 + $0x190] sm:%s190] %v299
                %v301 = vld [vmem:[%s197 + $0x330] sm:%s190]
                %302 = vst [vmem:[%s198 + $0x198] sm:%s190] %v301
                %v303 = vld [vmem:[%s197 + $0x340] sm:%s190]
                %304 = vst [vmem:[%s198 + $0x1a0] sm:%s190] %v303
                %v305 = vld [vmem:[%s197 + $0x350] sm:%s190]
                %306 = vst [vmem:[%s198 + $0x1a8] sm:%s190] %v305
                %v307 = vld [vmem:[%s197 + $0x360] sm:%s190]
                %308 = vst [vmem:[%s198 + $0x1b0] sm:%s190] %v307
                %v309 = vld [vmem:[%s197 + $0x370] sm:%s190]
                %310 = vst [vmem:[%s198 + $0x1b8] sm:%s190] %v309
                %v311 = vld [vmem:[%s197 + $0x380] sm:%s190]
                %312 = vst [vmem:[%s198 + $0x1c0] sm:%s190] %v311
                %v313 = vld [vmem:[%s197 + $0x390] sm:%s190]
                %314 = vst [vmem:[%s198 + $0x1c8] sm:%s190] %v313
                %v315 = vld [vmem:[%s197 + $0x3a0] sm:%s190]
                %316 = vst [vmem:[%s198 + $0x1d0] sm:%s190] %v315
                %v317 = vld [vmem:[%s197 + $0x3b0] sm:%s190]
                %318 = vst [vmem:[%s198 + $0x1d8] sm:%s190] %v317
                %v319 = vld [vmem:[%s197 + $0x3c0] sm:%s190]
                %320 = vst [vmem:[%s198 + $0x1e0] sm:%s190] %v319
                %v321 = vld [vmem:[%s197 + $0x3d0] sm:%s190]
                %322 = vst [vmem:[%s198 + $0x1e8] sm:%s190] %v321
                %v323 = vld [vmem:[%s197 + $0x3e0] sm:%s190]
                %324 = vst [vmem:[%s198 + $0x1f0] sm:%s190] %v323
                %v325 = vld [vmem:[%s197 + $0x3f0] sm:%s190]
                %326 = vst [vmem:[%s198 + $0x1f8] sm:%s190] %v325
              $region41: #{alexnet_forward.19} parent=35 // loop_footer
                %s196 = sadd.s32 1, %s192
              $region42: #{alexnet_forward.19} parent=35 // loop_footer_branch
                %191 = sbr.rel target = $region38
              $region43: #{alexnet_forward.19} parent=35 // loop_exit
                _
            $region36: #{alexnet_forward.19} parent=27 // pred_fallthru
              _
          $region28: #{alexnet_forward.19} parent=23 // pred_fallthru
            _
          %467 = vnop
        $region24: #{alexnet_forward.19} parent=15 // pred_fallthru
          _
        // Predicated region
        $region59: #{alexnet_forward.19} parent=15 // pred_check
          %p468 = pneg %p104
        $region60: #{alexnet_forward.19} parent=15 // pred_check_branch
          %470 = sbr.rel (%p468) target = $region62
        $region61: #{alexnet_forward.19} parent=15 // pred_region
          %s471 = smul.u32 2, %s17
          %p472 = scmp.lt.s32.totalorder %s471, 3
          %s473 = scalar_select %p472, %s471, 3
          %s474 = scalar_lea.vmem %s2, %s473
          %s475 = smul.u32 2, %s17
        $region62: #{alexnet_forward.19} parent=15 // pred_fallthru
          _
      $region16: #{alexnet_forward.19} parent=5 // pred_fallthru
        _
      %p476 = scmp.le.s32.totalorder 1, %s9
      %p477 = scmp.lt.s32.totalorder %s9, 37
      %p478 = pnand %p476, %p477
      %p479 = pneg %p478
      // Predicated region
      $region63: #{alexnet_forward.19} parent=5 // pred_check
        _
      $region64: #{alexnet_forward.19} parent=5 // pred_check_branch
        %481 = sbr.rel (%p478) target = $region66
      $region65: #{alexnet_forward.19} parent=5 // pred_region
        %s482 = ssub.s32 %s9, 1
        %s483 = sand.u32 %s71, 1
        %s484 = sand.u32 %s71, 1
        %s485 = smul.addr %s484, 512
        %s486 = scalar_lea.vmem [#allocation3], %s485
        // Predicated region
        $region67: #{alexnet_forward.19} parent=65 // pred_check
          %p487 = pneg %p84
        $region68: #{alexnet_forward.19} parent=65 // pred_check_branch
          %489 = sbr.rel (%p487) target = $region70
        $region69: #{alexnet_forward.19} parent=65 // pred_region
          _
        $region70: #{alexnet_forward.19} parent=65 // pred_fallthru
          _
        %s490 = smul.u32 4, %s21
        %p491 = scmp.lt.s32.totalorder %s19, 0
        %s492 = scalar_select %p491, %s19, 0
        %p493 = scmp.lt.s32.totalorder %s490, 71
        %s494 = scalar_select %p493, %s490, 71
        %s495 = smul.addr %s492, 72
        %s496 = sadd.s32 %s494, %s495
        %s497 = smul.addr %s496, 4
        %s498 = scalar_lea.vmem %s0, %s497
        %p499 = pneg %p56
        %p500 = pneg %p53
        %s501 = sand.u32 %s71, 1
        %s502 = sand.u32 %s71, 1
        %s503 = smul.addr %s502, 512
        %s504 = scalar_lea.vmem [#allocation3], %s503
        %p505 = pneg %p84
        %p506 = pneg %p81
        %s507 = smul.u32 2, %s20
        %p508 = scmp.lt.s32.totalorder %s507, 3
        %s509 = scalar_select %p508, %s507, 3
        %s510 = scalar_lea.vmem %s2, %s509
        %p511 = pneg %p110
        %p512 = pneg %p107
        %p513 = pneg %p138
        %p514 = pneg %p135
        %s515 = smul.u32 2, %s20
        %p516 = scmp.lt.s32.totalorder %s19, 0
        %s517 = scalar_select %p516, %s19, 0
        %p518 = scmp.lt.s32.totalorder %s515, 3
        %s519 = scalar_select %p518, %s515, 3
        %s520 = smul.addr %s517, 4
        %s521 = sadd.s32 %s519, %s520
        %s522 = smul.addr %s521, 4
        %s523 = scalar_lea.vmem %s3, %s522
        %s524 = smul.u32 4, %s21
        %p525 = scmp.lt.s32.totalorder %s19, 0
        %s526 = scalar_select %p525, %s19, 0
        %p527 = scmp.lt.s32.totalorder %s524, 71
        %s528 = scalar_select %p527, %s524, 71
        %s529 = smul.addr %s526, 72
        %s530 = sadd.s32 %s528, %s529
        %s531 = smul.addr %s530, 4
        %s532 = scalar_lea.vmem %s0, %s531
        %s533 = smul.u32 4, %s21
        %s534 = smul.u32 64, %s21
        %s535 = smul.u32 2, %s20
        %s536 = smul.u32 2, %s20
        %p537 = scmp.lt.s32.totalorder %s536, 3
        %s538 = scalar_select %p537, %s536, 3
        %s539 = scalar_lea.vmem %s2, %s538
        %s540 = smul.u32 2, %s20
        %s541 = smul.u32 2, %s20
        %p542 = scmp.lt.s32.totalorder %s19, 0
        %s543 = scalar_select %p542, %s19, 0
        %p544 = scmp.lt.s32.totalorder %s541, 3
        %s545 = scalar_select %p544, %s541, 3
        %s546 = smul.addr %s543, 4
        %s547 = sadd.s32 %s545, %s546
        %s548 = smul.addr %s547, 4
        %s549 = scalar_lea.vmem %s3, %s548
        %s550 = smul.u32 2, %s20
        %p551 = scmp.eq.s32.totalorder %s21, 0
        // Predicated region
        $region71: #{alexnet_forward.19} parent=65 // pred_check
          %p552 = pneg %p551
        $region72: #{alexnet_forward.19} parent=65 // pred_check_branch
          %554 = sbr.rel (%p552) target = $region74
        $region73: #{alexnet_forward.19} parent=65 // pred_region
          %555 = vst [vmem:[#allocation2] sm:$0xff] 0.0
          %556 = vst [vmem:[#allocation2 + $0x8] sm:$0xff] 0.0
        $region74: #{alexnet_forward.19} parent=65 // pred_fallthru
          _
        %v557 = vld [vmem:[#allocation2] sm:$0xff]
        %v558 = vld [vmem:[#allocation2 + $0x8] sm:$0xff]
        %v559 = vld [vmem:[%s532] sm:$0xff]
        %v560 = vld [vmem:[%s532 + $0x8] sm:$0xff]
        %v561 = vld [vmem:[%s486] sm:$0xff]
        %v562 = vld [vmem:[%s486 + $0x8] sm:$0xff]
        %v563 = vld [vmem:[%s486 + $0x10] sm:$0xff]
        %v564 = vld [vmem:[%s486 + $0x18] sm:$0xff]
        %v565 = vld [vmem:[%s486 + $0x20] sm:$0xff]
        %v566 = vld [vmem:[%s486 + $0x28] sm:$0xff]
        %v567 = vld [vmem:[%s486 + $0x30] sm:$0xff]
        %v568 = vld [vmem:[%s486 + $0x38] sm:$0xff]
        %v569 = vld [vmem:[%s486 + $0x40] sm:$0xff]
        %v570 = vld [vmem:[%s486 + $0x48] sm:$0xff]
        %v571 = vld [vmem:[%s486 + $0x50] sm:$0xff]
        %v572 = vld [vmem:[%s486 + $0x58] sm:$0xff]
        %v573 = vld [vmem:[%s486 + $0x60] sm:$0xff]
        %v574 = vld [vmem:[%s486 + $0x68] sm:$0xff]
        %v575 = vld [vmem:[%s486 + $0x70] sm:$0xff]
        %v576 = vld [vmem:[%s486 + $0x78] sm:$0xff]
        %v577 = vld [vmem:[%s486 + $0x80] sm:$0xff]
        %v578 = vld [vmem:[%s486 + $0x88] sm:$0xff]
        %v579 = vld [vmem:[%s486 + $0x90] sm:$0xff]
        %v580 = vld [vmem:[%s486 + $0x98] sm:$0xff]
        %v581 = vld [vmem:[%s486 + $0xa0] sm:$0xff]
        %v582 = vld [vmem:[%s486 + $0xa8] sm:$0xff]
        %v583 = vld [vmem:[%s486 + $0xb0] sm:$0xff]
        %v584 = vld [vmem:[%s486 + $0xb8] sm:$0xff]
        %v585 = vld [vmem:[%s486 + $0xc0] sm:$0xff]
        %v586 = vld [vmem:[%s486 + $0xc8] sm:$0xff]
        %v587 = vld [vmem:[%s486 + $0xd0] sm:$0xff]
        %v588 = vld [vmem:[%s486 + $0xd8] sm:$0xff]
        %v589 = vld [vmem:[%s486 + $0xe0] sm:$0xff]
        %v590 = vld [vmem:[%s486 + $0xe8] sm:$0xff]
        %v591 = vld [vmem:[%s486 + $0xf0] sm:$0xff]
        %v592 = vld [vmem:[%s486 + $0xf8] sm:$0xff]
        %v593 = vld [vmem:[%s486 + $0x100] sm:$0xff]
        %v594 = vld [vmem:[%s486 + $0x108] sm:$0xff]
        %v595 = vld [vmem:[%s486 + $0x110] sm:$0xff]
        %v596 = vld [vmem:[%s486 + $0x118] sm:$0xff]
        %v597 = vld [vmem:[%s486 + $0x120] sm:$0xff]
        %v598 = vld [vmem:[%s486 + $0x128] sm:$0xff]
        %v599 = vld [vmem:[%s486 + $0x130] sm:$0xff]
        %v600 = vld [vmem:[%s486 + $0x138] sm:$0xff]
        %v601 = vld [vmem:[%s486 + $0x140] sm:$0xff]
        %v602 = vld [vmem:[%s486 + $0x148] sm:$0xff]
        %v603 = vld [vmem:[%s486 + $0x150] sm:$0xff]
        %v604 = vld [vmem:[%s486 + $0x158] sm:$0xff]
        %v605 = vld [vmem:[%s486 + $0x160] sm:$0xff]
        %v606 = vld [vmem:[%s486 + $0x168] sm:$0xff]
        %v607 = vld [vmem:[%s486 + $0x170] sm:$0xff]
        %v608 = vld [vmem:[%s486 + $0x178] sm:$0xff]
        %v609 = vld [vmem:[%s486 + $0x180] sm:$0xff]
        %v610 = vld [vmem:[%s486 + $0x188] sm:$0xff]
        %v611 = vld [vmem:[%s486 + $0x190] sm:$0xff]
        %v612 = vld [vmem:[%s486 + $0x198] sm:$0xff]
        %v613 = vld [vmem:[%s486 + $0x1a0] sm:$0xff]
        %v614 = vld [vmem:[%s486 + $0x1a8] sm:$0xff]
        %v615 = vld [vmem:[%s486 + $0x1b0] sm:$0xff]
        %v616 = vld [vmem:[%s486 + $0x1b8] sm:$0xff]
        %v617 = vld [vmem:[%s486 + $0x1c0] sm:$0xff]
        %v618 = vld [vmem:[%s486 + $0x1c8] sm:$0xff]
        %v619 = vld [vmem:[%s486 + $0x1d0] sm:$0xff]
        %v620 = vld [vmem:[%s486 + $0x1d8] sm:$0xff]
        %v621 = vld [vmem:[%s486 + $0x1e0] sm:$0xff]
        %v622 = vld [vmem:[%s486 + $0x1e8] sm:$0xff]
        %v623 = vld [vmem:[%s486 + $0x1f0] sm:$0xff]
        %v624 = vld [vmem:[%s486 + $0x1f8] sm:$0xff]
        %v627 = vunpack.c.l.b16 %v559
        %v628 = vunpack.c.h.b16 %v559
        %v629 = vunpack.c.l.b16 %v560
        %v630 = vunpack.c.h.b16 %v560
        %v631 = vpack.c.b16 %v627, %v627
        %v632 = vpack.c.b16 %v628, %v628
        %v633 = vpack.c.b16 %v629, %v629
        %v634 = vpack.c.b16 %v630, %v630
        %v703 = vunpack.c.l.b16 %v561
        %v704 = vunpack.c.h.b16 %v561
        %v705 = vunpack.c.l.b16 %v562
        %v706 = vunpack.c.h.b16 %v562
        %v707 = vunpack.c.l.b16 %v563
        %v708 = vunpack.c.h.b16 %v563
        %v709 = vunpack.c.l.b16 %v564
        %v710 = vunpack.c.h.b16 %v564
        %v711 = vunpack.c.l.b16 %v565
        %v712 = vunpack.c.h.b16 %v565
        %v713 = vunpack.c.l.b16 %v566
        %v714 = vunpack.c.h.b16 %v566
        %v715 = vunpack.c.l.b16 %v567
        %v716 = vunpack.c.h.b16 %v567
        %v717 = vunpack.c.l.b16 %v568
        %v718 = vunpack.c.h.b16 %v568
        %v719 = vunpack.c.l.b16 %v569
        %v720 = vunpack.c.h.b16 %v569
        %v721 = vunpack.c.l.b16 %v570
        %v722 = vunpack.c.h.b16 %v570
        %v723 = vunpack.c.l.b16 %v571
        %v724 = vunpack.c.h.b16 %v571
        %v725 = vunpack.c.l.b16 %v572
        %v726 = vunpack.c.h.b16 %v572
        %v727 = vunpack.c.l.b16 %v573
        %v728 = vunpack.c.h.b16 %v573
        %v729 = vunpack.c.l.b16 %v574
        %v730 = vunpack.c.h.b16 %v574
        %v731 = vunpack.c.l.b16 %v575
        %v732 = vunpack.c.h.b16 %v575
        %v733 = vunpack.c.l.b16 %v576
        %v734 = vunpack.c.h.b16 %v576
        %v735 = vunpack.c.l.b16 %v577
        %v736 = vunpack.c.h.b16 %v577
        %v737 = vunpack.c.l.b16 %v578
        %v738 = vunpack.c.h.b16 %v578
        %v739 = vunpack.c.l.b16 %v579
        %v740 = vunpack.c.h.b16 %v579
        %v741 = vunpack.c.l.b16 %v580
        %v742 = vunpack.c.h.b16 %v580
        %v743 = vunpack.c.l.b16 %v581
        %v744 = vunpack.c.h.b16 %v581
        %v745 = vunpack.c.l.b16 %v582
        %v746 = vunpack.c.h.b16 %v582
        %v747 = vunpack.c.l.b16 %v583
        %v748 = vunpack.c.h.b16 %v583
        %v749 = vunpack.c.l.b16 %v584
        %v750 = vunpack.c.h.b16 %v584
        %v751 = vunpack.c.l.b16 %v585
        %v752 = vunpack.c.h.b16 %v585
        %v753 = vunpack.c.l.b16 %v586
        %v754 = vunpack.c.h.b16 %v586
        %v755 = vunpack.c.l.b16 %v587
        %v756 = vunpack.c.h.b16 %v587
        %v757 = vunpack.c.l.b16 %v588
        %v758 = vunpack.c.h.b16 %v588
        %v759 = vunpack.c.l.b16 %v589
        %v760 = vunpack.c.h.b16 %v589
        %v761 = vunpack.c.l.b16 %v590
        %v762 = vunpack.c.h.b16 %v590
        %v763 = vunpack.c.l.b16 %v591
        %v764 = vunpack.c.h.b16 %v591
        %v765 = vunpack.c.l.b16 %v592
        %v766 = vunpack.c.h.b16 %v592
        %v767 = vunpack.c.l.b16 %v593
        %v768 = vunpack.c.h.b16 %v593
        %v769 = vunpack.c.l.b16 %v594
        %v770 = vunpack.c.h.b16 %v594
        %v771 = vunpack.c.l.b16 %v595
        %v772 = vunpack.c.h.b16 %v595
        %v773 = vunpack.c.l.b16 %v596
        %v774 = vunpack.c.h.b16 %v596
        %v775 = vunpack.c.l.b16 %v597
        %v776 = vunpack.c.h.b16 %v597
        %v777 = vunpack.c.l.b16 %v598
        %v778 = vunpack.c.h.b16 %v598
        %v779 = vunpack.c.l.b16 %v599
        %v780 = vunpack.c.h.b16 %v599
        %v781 = vunpack.c.l.b16 %v600
        %v782 = vunpack.c.h.b16 %v600
        %v783 = vunpack.c.l.b16 %v601
        %v784 = vunpack.c.h.b16 %v601
        %v785 = vunpack.c.l.b16 %v602
        %v786 = vunpack.c.h.b16 %v602
        %v787 = vunpack.c.l.b16 %v603
        %v788 = vunpack.c.h.b16 %v603
        %v789 = vunpack.c.l.b16 %v604
        %v790 = vunpack.c.h.b16 %v604
        %v791 = vunpack.c.l.b16 %v605
        %v792 = vunpack.c.h.b16 %v605
        %v793 = vunpack.c.l.b16 %v606
        %v794 = vunpack.c.h.b16 %v606
        %v795 = vunpack.c.l.b16 %v607
        %v796 = vunpack.c.h.b16 %v607
        %v797 = vunpack.c.l.b16 %v608
        %v798 = vunpack.c.h.b16 %v608
        %v799 = vunpack.c.l.b16 %v609
        %v800 = vunpack.c.h.b16 %v609
        %v801 = vunpack.c.l.b16 %v610
        %v802 = vunpack.c.h.b16 %v610
        %v803 = vunpack.c.l.b16 %v611
        %v804 = vunpack.c.h.b16 %v611
        %v805 = vunpack.c.l.b16 %v612
        %v806 = vunpack.c.h.b16 %v612
        %v807 = vunpack.c.l.b16 %v613
        %v808 = vunpack.c.h.b16 %v613
        %v809 = vunpack.c.l.b16 %v614
        %v810 = vunpack.c.h.b16 %v614
        %v811 = vunpack.c.l.b16 %v615
        %v812 = vunpack.c.h.b16 %v615
        %v813 = vunpack.c.l.b16 %v616
        %v814 = vunpack.c.h.b16 %v616
        %v815 = vunpack.c.l.b16 %v617
        %v816 = vunpack.c.h.b16 %v617
        %v817 = vunpack.c.l.b16 %v618
        %v818 = vunpack.c.h.b16 %v618
        %v819 = vunpack.c.l.b16 %v619
        %v820 = vunpack.c.h.b16 %v619
        %v821 = vunpack.c.l.b16 %v620
        %v822 = vunpack.c.h.b16 %v620
        %v823 = vunpack.c.l.b16 %v621
        %v824 = vunpack.c.h.b16 %v621
        %v825 = vunpack.c.l.b16 %v622
        %v826 = vunpack.c.h.b16 %v622
        %v827 = vunpack.c.l.b16 %v623
        %v828 = vunpack.c.h.b16 %v623
        %v829 = vunpack.c.l.b16 %v624
        %v830 = vunpack.c.h.b16 %v624
        %v831 = vpack.c.b16 %v705, %v703
        %v832 = vpack.c.b16 %v706, %v704
        %v833 = vpack.c.b16 %v709, %v707
        %v834 = vpack.c.b16 %v710, %v708
        %v835 = vpack.c.b16 %v713, %v711
        %v836 = vpack.c.b16 %v714, %v712
        %v837 = vpack.c.b16 %v717, %v715
        %v838 = vpack.c.b16 %v718, %v716
        %v839 = vpack.c.b16 %v721, %v719
        %v840 = vpack.c.b16 %v722, %v720
        %v841 = vpack.c.b16 %v725, %v723
        %v842 = vpack.c.b16 %v726, %v724
        %v843 = vpack.c.b16 %v729, %v727
        %v844 = vpack.c.b16 %v730, %v728
        %v845 = vpack.c.b16 %v733, %v731
        %v846 = vpack.c.b16 %v734, %v732
        %v847 = vpack.c.b16 %v737, %v735
        %v848 = vpack.c.b16 %v738, %v736
        %v849 = vpack.c.b16 %v741, %v739
        %v850 = vpack.c.b16 %v742, %v740
        %v851 = vpack.c.b16 %v745, %v743
        %v852 = vpack.c.b16 %v746, %v744
        %v853 = vpack.c.b16 %v749, %v747
        %v854 = vpack.c.b16 %v750, %v748
        %v855 = vpack.c.b16 %v753, %v751
        %v856 = vpack.c.b16 %v754, %v752
        %v857 = vpack.c.b16 %v757, %v755
        %v858 = vpack.c.b16 %v758, %v756
        %v859 = vpack.c.b16 %v761, %v759
        %v860 = vpack.c.b16 %v762, %v760
        %v861 = vpack.c.b16 %v765, %v763
        %v862 = vpack.c.b16 %v766, %v764
        %v863 = vpack.c.b16 %v769, %v767
        %v864 = vpack.c.b16 %v770, %v768
        %v865 = vpack.c.b16 %v773, %v771
        %v866 = vpack.c.b16 %v774, %v772
        %v867 = vpack.c.b16 %v777, %v775
        %v868 = vpack.c.b16 %v778, %v776
        %v869 = vpack.c.b16 %v781, %v779
        %v870 = vpack.c.b16 %v782, %v780
        %v871 = vpack.c.b16 %v785, %v783
        %v872 = vpack.c.b16 %v786, %v784
        %v873 = vpack.c.b16 %v789, %v787
        %v874 = vpack.c.b16 %v790, %v788
        %v875 = vpack.c.b16 %v793, %v791
        %v876 = vpack.c.b16 %v794, %v792
        %v877 = vpack.c.b16 %v797, %v795
        %v878 = vpack.c.b16 %v798, %v796
        %v879 = vpack.c.b16 %v801, %v799
        %v880 = vpack.c.b16 %v802, %v800
        %v881 = vpack.c.b16 %v805, %v803
        %v882 = vpack.c.b16 %v806, %v804
        %v883 = vpack.c.b16 %v809, %v807
        %v884 = vpack.c.b16 %v810, %v808
        %v885 = vpack.c.b16 %v813, %v811
        %v886 = vpack.c.b16 %v814, %v812
        %v887 = vpack.c.b16 %v817, %v815
        %v888 = vpack.c.b16 %v818, %v816
        %v889 = vpack.c.b16 %v821, %v819
        %v890 = vpack.c.b16 %v822, %v820
        %v891 = vpack.c.b16 %v825, %v823
        %v892 = vpack.c.b16 %v826, %v824
        %v893 = vpack.c.b16 %v829, %v827
        %v894 = vpack.c.b16 %v830, %v828
        %959 = vmatpush.bf16.msra.mxu0 %v845
        %960 = vmatpush.bf16.msra.mxu0 %v843
        %961 = vmatpush.bf16.msra.mxu0 %v841
        %962 = vmatpush.bf16.msra.mxu0 %v839
        %963 = vmatpush.bf16.msra.mxu0 %v837
        %964 = vmatpush.bf16.msra.mxu0 %v835
        %965 = vmatpush.bf16.msra.mxu0 %v833
        %966 = vmatpush.bf16.msra.mxu0 %v831
        %967 = vmatmul.bf16.gmra.mxu0 %v631
        %v968 = vpop.f32.mrf.mxu0
        %v969 = vadd.f32 0.0, %v968
        %v970 = vpop.f32.mrf.mxu0
        %971 = vdwg.mxu0
        %972 = vmatpush.bf16.msra.mxu0 %v861
        %973 = vmatpush.bf16.msra.mxu0 %v859
        %974 = vmatpush.bf16.msra.mxu0 %v857
        %975 = vmatpush.bf16.msra.mxu0 %v855
        %976 = vmatpush.bf16.msra.mxu0 %v853
        %977 = vmatpush.bf16.msra.mxu0 %v851
        %978 = vmatpush.bf16.msra.mxu0 %v849
        %979 = vmatpush.bf16.msra.mxu0 %v847
        %980 = vmatmul.bf16.gmra.mxu0 %v632
        %v981 = vpop.f32.mrf.mxu0
        %v982 = vadd.f32 %v969, %v981
        %v983 = vpop.f32.mrf.mxu0
        %984 = vdwg.mxu0
        %985 = vmatpush.bf16.msra.mxu0 %v877
        %986 = vmatpush.bf16.msra.mxu0 %v875
        %987 = vmatpush.bf16.msra.mxu0 %v873
        %988 = vmatpush.bf16.msra.mxu0 %v871
        %989 = vmatpush.bf16.msra.mxu0 %v869
        %990 = vmatpush.bf16.msra.mxu0 %v867
        %991 = vmatpush.bf16.msra.mxu0 %v865
        %992 = vmatpush.bf16.msra.mxu0 %v863
        %993 = vmatmul.bf16.gmra.mxu0 %v633
        %v994 = vpop.f32.mrf.mxu0
        %v995 = vadd.f32 %v982, %v994
        %v996 = vpop.f32.mrf.mxu0
        %997 = vdwg.mxu0
        %998 = vmatpush.bf16.msra.mxu0 %v893
        %999 = vmatpush.bf16.msra.mxu0 %v891
        %1000 = vmatpush.bf16.msra.mxu0 %v889
        %1001 = vmatpush.bf16.msra.mxu0 %v887
        %1002 = vmatpush.bf16.msra.mxu0 %v885
        %1003 = vmatpush.bf16.msra.mxu0 %v883
        %1004 = vmatpush.bf16.msra.mxu0 %v881
        %1005 = vmatpush.bf16.msra.mxu0 %v879
        %1006 = vmatmul.bf16.gmra.mxu0 %v634
        %v1007 = vpop.f32.mrf.mxu0
        %v1008 = vadd.f32 %v995, %v1007
        %v1009 = vpop.f32.mrf.mxu0
        %1010 = vdwg.mxu0
        %1011 = vmatpush.bf16.msra.mxu0 %v846
        %1012 = vmatpush.bf16.msra.mxu0 %v844
        %1013 = vmatpush.bf16.msra.mxu0 %v842
        %1014 = vmatpush.bf16.msra.mxu0 %v840
        %1015 = vmatpush.bf16.msra.mxu0 %v838
        %1016 = vmatpush.bf16.msra.mxu0 %v836
        %1017 = vmatpush.bf16.msra.mxu0 %v834
        %1018 = vmatpush.bf16.msra.mxu0 %v832
        %1019 = vmatmul.bf16.gmra.mxu0 %v631
        %v1020 = vpop.f32.mrf.mxu0
        %v1021 = vadd.f32 0.0, %v1020
        %v1022 = vpop.f32.mrf.mxu0
        %1023 = vdwg.mxu0
        %1024 = vmatpush.bf16.msra.mxu0 %v862
        %1025 = vmatpush.bf16.msra.mxu0 %v860
        %1026 = vmatpush.bf16.msra.mxu0 %v858
        %1027 = vmatpush.bf16.msra.mxu0 %v856
        %1028 = vmatpush.bf16.msra.mxu0 %v854
        %1029 = vmatpush.bf16.msra.mxu0 %v852
        %1030 = vmatpush.bf16.msra.mxu0 %v850
        %1031 = vmatpush.bf16.msra.mxu0 %v848
        %1032 = vmatmul.bf16.gmra.mxu0 %v632
        %v1033 = vpop.f32.mrf.mxu0
        %v1034 = vadd.f32 %v1021, %v1033
        %v1035 = vpop.f32.mrf.mxu0
        %1036 = vdwg.mxu0
        %1037 = vmatpush.bf16.msra.mxu0 %v878
        %1038 = vmatpush.bf16.msra.mxu0 %v876
        %1039 = vmatpush.bf16.msra.mxu0 %v874
        %1040 = vmatpush.bf16.msra.mxu0 %v872
        %1041 = vmatpush.bf16.msra.mxu0 %v870
        %1042 = vmatpush.bf16.msra.mxu0 %v868
        %1043 = vmatpush.bf16.msra.mxu0 %v866
        %1044 = vmatpush.bf16.msra.mxu0 %v864
        %1045 = vmatmul.bf16.gmra.mxu0 %v633
        %v1046 = vpop.f32.mrf.mxu0
        %v1047 = vadd.f32 %v1034, %v1046
        %v1048 = vpop.f32.mrf.mxu0
        %1049 = vdwg.mxu0
        %1050 = vmatpush.bf16.msra.mxu0 %v894
        %1051 = vmatpush.bf16.msra.mxu0 %v892
        %1052 = vmatpush.bf16.msra.mxu0 %v890
        %1053 = vmatpush.bf16.msra.mxu0 %v888
        %1054 = vmatpush.bf16.msra.mxu0 %v886
        %1055 = vmatpush.bf16.msra.mxu0 %v884
        %1056 = vmatpush.bf16.msra.mxu0 %v882
        %1057 = vmatpush.bf16.msra.mxu0 %v880
        %1058 = vmatmul.bf16.gmra.mxu0 %v634
        %v1059 = vpop.f32.mrf.mxu0
        %v1060 = vadd.f32 %v1047, %v1059
        %v1061 = vpop.f32.mrf.mxu0
        %1062 = vdwg.mxu0
        %v1063 = vadd.f32 %v557, %v1008
        %v1064 = vadd.f32 %v558, %v1060
        %1065 = vst [vmem:[#allocation2] sm:$0xff] %v1063
        %1066 = vst [vmem:[#allocation2 + $0x8] sm:$0xff] %v1064
        %p1067 = scmp.eq.s32.totalorder %s21, 17
        // Predicated region
        $region75: #{alexnet_forward.19} parent=65 // pred_check
          %p1068 = pneg %p1067
        $region76: #{alexnet_forward.19} parent=65 // pred_check_branch
          %1070 = sbr.rel (%p1068) target = $region78
        $region77: #{alexnet_forward.19} parent=65 // pred_region
          %v1071 = vld [vmem:[#allocation2] sm:$0xff]
          %v1072 = vld [vmem:[#allocation2 + $0x8] sm:$0xff]
          %v1073 = vld [vmem:[%s539] sm:$0x3]
          %v1075 = vperm.slane %v1073, 0
          %v1076 = vperm.slane %v1073, 1
          %v1079 = vadd.f32 %v1071, %v1075
          %v1080 = vadd.f32 %v1072, %v1076
          %v1081 = vmax.f32 %v1079, 0.0
          %v1082 = vmax.f32 %v1080, 0.0
          %v1083 = vpack.c.bf16 %v1082, %v1081
          %1084 = vst [vmem:[%s549] sm:$0xff] %v1083
        $region78: #{alexnet_forward.19} parent=65 // pred_fallthru
          _
        %s1085 = smul.u32 2, %s20
        %p1086 = scmp.lt.s32.totalorder %s19, 0
        %s1087 = scalar_select %p1086, %s19, 0
        %p1088 = scmp.lt.s32.totalorder %s1085, 3
        %s1089 = scalar_select %p1088, %s1085, 3
        %s1090 = smul.addr %s1087, 4
        %s1091 = sadd.s32 %s1089, %s1090
        %s1092 = smul.addr %s1091, 4
        %s1093 = scalar_lea.vmem %s3, %s1092
        // Predicated region
        $region79: #{alexnet_forward.19} parent=65 // pred_check
          %p1094 = pneg %p135
        $region80: #{alexnet_forward.19} parent=65 // pred_check_branch
          %1096 = sbr.rel (%p1094) target = $region82
        $region81: #{alexnet_forward.19} parent=65 // pred_region
          %s1097 = smul.u32 2, %s20
        $region82: #{alexnet_forward.19} parent=65 // pred_fallthru
          _
      $region66: #{alexnet_forward.19} parent=5 // pred_fallthru
        _
      %p1098 = scmp.le.s32.totalorder 2, %s9
      // Predicated region
      $region83: #{alexnet_forward.19} parent=5 // pred_check
        %p1099 = pneg %p1098
      $region84: #{alexnet_forward.19} parent=5 // pred_check_branch
        %1101 = sbr.rel (%p1099) target = $region86
      $region85: #{alexnet_forward.19} parent=5 // pred_region
        %s1102 = ssub.s32 %s9, 2
        // Predicated region
        $region87: #{alexnet_forward.19} parent=85 // pred_check
          %p1103 = pneg %p141
        $region88: #{alexnet_forward.19} parent=85 // pred_check_branch
          %1105 = sbr.rel (%p1103) target = $region90
        $region89: #{alexnet_forward.19} parent=85 // pred_region
          %s1106 = smul.u32 2, %s23
          %p1107 = scmp.lt.s32.totalorder %s22, 0
          %s1108 = scalar_select %p1107, %s22, 0
          %p1109 = scmp.lt.s32.totalorder %s1106, 3
          %s1110 = scalar_select %p1109, %s1106, 3
          %s1111 = smul.addr %s1108, 4
          %s1112 = sadd.s32 %s1110, %s1111
          %s1113 = smul.addr %s1112, 4
          %s1114 = scalar_lea.vmem %s3, %s1113
        $region90: #{alexnet_forward.19} parent=85 // pred_fallthru
          _
      $region86: #{alexnet_forward.19} parent=5 // pred_fallthru
        _
    $region6: #{alexnet_forward.19} parent=1 // loop_footer
      %s13 = sadd.s32 1, %s9
    $region7: #{alexnet_forward.19} parent=1 // loop_footer_branch
      %8 = sbr.rel target = $region3
    $region8: #{alexnet_forward.19} parent=1 // loop_exit
      _

// kernel: alexnet_forward.20
$region0: #{alexnet_forward.20}
  #allocation0 [shape = 'u32[]', space=smem, size = 0x4, offset = 0x4, fixed_abs, tag = 'smem constant byte address 0x4 - core index']
  #allocation1 [shape = 'u32[72,128]{1,0:T(1,128)}', space=vmem, size = 0x9000, scoped, tag = 'internal scratch']
  #allocation2 [shape = 'f32[8,128]{1,0:T(8,128)}', space=vmem, size = 0x1000, scoped, tag = 'scratch operand']
  %s0 = inlined_call_operand.vmem [shape: bf16[8,512], index: 0, kind: input, shape index: {}]
  %s1 = inlined_call_operand.vmem [shape: bf16[512,128], index: 1, kind: input, shape index: {}]
  %s2 = inlined_call_operand.vmem [shape: f32[1,128], index: 2, kind: input, shape index: {}]
  %s3 = inlined_call_operand.vmem [shape: bf16[8,128], index: 3, kind: output, shape index: {}]
  %s4 = sld [smem:[#allocation0]]
  $region30: #{alexnet_forward.20} parent=0
    _
  %s6 = ssub.s32 1, %s4
  %s7 = scalar_select 0, %s6, %s4
  // Predicated region
  $region2: #{alexnet_forward.20} parent=0 // pred_check
    _
  $region3: #{alexnet_forward.20} parent=0 // pred_check_branch
    %9 = sbr.rel (0) target = $region5
  $region4: #{alexnet_forward.20} parent=0 // pred_region
    _
  $region5: #{alexnet_forward.20} parent=0 // pred_fallthru
    _
  // Predicated region
  $region6: #{alexnet_forward.20} parent=0 // pred_check
    _
  $region7: #{alexnet_forward.20} parent=0 // pred_check_branch
    %11 = sbr.rel (0) target = $region9
  $region8: #{alexnet_forward.20} parent=0 // pred_region
    _
  $region9: #{alexnet_forward.20} parent=0 // pred_fallthru
    _
  // Predicated region
  $region10: #{alexnet_forward.20} parent=0 // pred_check
    _
  $region11: #{alexnet_forward.20} parent=0 // pred_check_branch
    %13 = sbr.rel (0) target = $region13
  $region12: #{alexnet_forward.20} parent=0 // pred_region
    _
  $region13: #{alexnet_forward.20} parent=0 // pred_fallthru
    _
  %p14 = scmp.eq.s32.totalorder 0, 0
  // Predicated region
  $region14: #{alexnet_forward.20} parent=0 // pred_check
    %p15 = pneg %p14
  $region15: #{alexnet_forward.20} parent=0 // pred_check_branch
    %17 = sbr.rel (%p15) target = $region17
  $region16: #{alexnet_forward.20} parent=0 // pred_region
    %18 = vst [vmem:[#allocation2] sm:$0xff] 0.0
  $region17: #{alexnet_forward.20} parent=0 // pred_fallthru
    _
  %v19 = vld [vmem:[#allocation2] sm:$0xff]
  %v20 = vld [vmem:[%s0] sm:$0xff]
  %v21 = vld [vmem:[%s0 + $0x8] sm:$0xff]
  %v22 = vld [vmem:[%s1] sm:$0xf]
  %v23 = vld [vmem:[%s1 + $0x4] sm:$0xf]
  %v24 = vld [vmem:[%s1 + $0x8] sm:$0xf]
  %v25 = vld [vmem:[%s1 + $0xc] sm:$0xf]
  %v26 = vld [vmem:[%s1 + $0x10] sm:$0xf]
  %v27 = vld [vmem:[%s1 + $0x14] sm:$0xf]
  %v28 = vld [vmem:[%s1 + $0x18] sm:$0xf]
  %v29 = vld [vmem:[%s1 + $0x1c] sm:$0xf]
  %v30 = vld [vmem:[%s1 + $0x20] sm:$0xf]
  %v31 = vld [vmem:[%s1 + $0x24] sm:$0xf]
  %v32 = vld [vmem:[%s1 + $0x28] sm:$0xf]
  %v33 = vld [vmem:[%s1 + $0x2c] sm:$0xf]
  %v34 = vld [vmem:[%s1 + $0x30] sm:$0xf]
  %v35 = vld [vmem:[%s1 + $0x34] sm:$0xf]
  %v36 = vld [vmem:[%s1 + $0x38] sm:$0xf]
  %v37 = vld [vmem:[%s1 + $0x3c] sm:$0xf]
  %v38 = vld [vmem:[%s1 + $0x40] sm:$0xf]
  %v39 = vld [vmem:[%s1 + $0x44] sm:$0xf]
  %v40 = vld [vmem:[%s1 + $0x48] sm:$0xf]
  %v41 = vld [vmem:[%s1 + $0x4c] sm:$0xf]
  %v42 = vld [vmem:[%s1 + $0x50] sm:$0xf]
  %v43 = vld [vmem:[%s1 + $0x54] sm:$0xf]
  %v44 = vld [vmem:[%s1 + $0x58] sm:$0xf]
  %v45 = vld [vmem:[%s1 + $0x5c] sm:$0xf]
  %v46 = vld [vmem:[%s1 + $0x60] sm:$0xf]
  %v47 = vld [vmem:[%s1 + $0x64] sm:$0xf]
  %v48 = vld [vmem:[%s1 + $0x68] sm:$0xf]
  %v49 = vld [vmem:[%s1 + $0x6c] sm:$0xf]
  %v50 = vld [vmem:[%s1 + $0x70] sm:$0xf]
  %v51 = vld [vmem:[%s1 + $0x74] sm:$0xf]
  %v52 = vld [vmem:[%s1 + $0x78] sm:$0xf]
  %v53 = vld [vmem:[%s1 + $0x7c] sm:$0xf]
  %v54 = vld [vmem:[%s1 + $0x80] sm:$0xf]
  %v55 = vld [vmem:[%s1 + $0x84] sm:$0xf]
  %v56 = vld [vmem:[%s1 + $0x88] sm:$0xf]
  %v57 = vld [vmem:[%s1 + $0x8c] sm:$0xf]
  %v58 = vld [vmem:[%s1 + $0x90] sm:$0xf]
  %v59 = vld [vmem:[%s1 + $0x94] sm:$0xf]
  %v60 = vld [vmem:[%s1 + $0x98] sm:$0xf]
  %v61 = vld [vmem:[%s1 + $0x9c] sm:$0xf]
  %v62 = vld [vmem:[%s1 + $0xa0] sm:$0xf]
  %v63 = vld [vmem:[%s1 + $0xa4] sm:$0xf]
  %v64 = vld [vmem:[%s1 + $0xa8] sm:$0xf]
  %v65 = vld [vmem:[%s1 + $0xac] sm:$0xf]
  %v66 = vld [vmem:[%s1 + $0xb0] sm:$0xf]
  %v67 = vld [vmem:[%s1 + $0xb4] sm:$0xf]
  %v68 = vld [vmem:[%s1 + $0xb8] sm:$0xf]
  %v69 = vld [vmem:[%s1 + $0xbc] sm:$0xf]
  %v70 = vld [vmem:[%s1 + $0xc0] sm:$0xf]
  %v71 = vld [vmem:[%s1 + $0xc4] sm:$0xf]
  %v72 = vld [vmem:[%s1 + $0xc8] sm:$0xf]
  %v73 = vld [vmem:[%s1 + $0xcc] sm:$0xf]
  %v74 = vld [vmem:[%s1 + $0xd0] sm:$0xf]
  %v75 = vld [vmem:[%s1 + $0xd4] sm:$0xf]
  %v76 = vld [vmem:[%s1 + $0xd8] sm:$0xf]
  %v77 = vld [vmem:[%s1 + $0xdc] sm:$0xf]
  %v78 = vld [vmem:[%s1 + $0xe0] sm:$0xf]
  %v79 = vld [vmem:[%s1 + $0xe4] sm:$0xf]
  %v80 = vld [vmem:[%s1 + $0xe8] sm:$0xf]
  %v81 = vld [vmem:[%s1 + $0xec] sm:$0xf]
  %v82 = vld [vmem:[%s1 + $0xf0] sm:$0xf]
  %v83 = vld [vmem:[%s1 + $0xf4] sm:$0xf]
  %v84 = vld [vmem:[%s1 + $0xf8] sm:$0xf]
  %v85 = vld [vmem:[%s1 + $0xfc] sm:$0xf]
  %v88 = vunpack.c.l.b16 %v20
  %v89 = vunpack.c.h.b16 %v20
  %v90 = vunpack.c.l.b16 %v21
  %v91 = vunpack.c.h.b16 %v21
  %v92 = vpack.c.b16 %v88, %v88
  %v93 = vpack.c.b16 %v89, %v89
  %v94 = vpack.c.b16 %v90, %v90
  %v95 = vpack.c.b16 %v91, %v91
  %v164 = vunpack.c.l.b16 %v22
  %v165 = vunpack.c.l.b16 %v23
  %v166 = vunpack.c.l.b16 %v24
  %v167 = vunpack.c.l.b16 %v25
  %v168 = vunpack.c.l.b16 %v26
  %v169 = vunpack.c.l.b16 %v27
  %v170 = vunpack.c.l.b16 %v28
  %v171 = vunpack.c.l.b16 %v29
  %v172 = vunpack.c.l.b16 %v30
  %v173 = vunpack.c.l.b16 %v31
  %v174 = vunpack.c.l.b16 %v32
  %v175 = vunpack.c.l.b16 %v33
  %v176 = vunpack.c.l.b16 %v34
  %v177 = vunpack.c.l.b16 %v35
  %v178 = vunpack.c.l.b16 %v36
  %v179 = vunpack.c.l.b16 %v37
  %v180 = vunpack.c.l.b16 %v38
  %v181 = vunpack.c.l.b16 %v39
  %v182 = vunpack.c.l.b16 %v40
  %v183 = vunpack.c.l.b16 %v41
  %v184 = vunpack.c.l.b16 %v42
  %v185 = vunpack.c.l.b16 %v43
  %v186 = vunpack.c.l.b16 %v44
  %v187 = vunpack.c.l.b16 %v45
  %v188 = vunpack.c.l.b16 %v46
  %v189 = vunpack.c.l.b16 %v47
  %v190 = vunpack.c.l.b16 %v48
  %v191 = vunpack.c.l.b16 %v49
  %v192 = vunpack.c.l.b16 %v50
  %v193 = vunpack.c.l.b16 %v51
  %v194 = vunpack.c.l.b16 %v52
  %v195 = vunpack.c.l.b16 %v53
  %v196 = vunpack.c.l.b16 %v54
  %v197 = vunpack.c.l.b16 %v55
  %v198 = vunpack.c.l.b16 %v56
  %v199 = vunpack.c.l.b16 %v57
  %v200 = vunpack.c.l.b16 %v58
  %v201 = vunpack.c.l.b16 %v59
  %v202 = vunpack.c.l.b16 %v60
  %v203 = vunpack.c.l.b16 %v61
  %v204 = vunpack.c.l.b16 %v62
  %v205 = vunpack.c.l.b16 %v63
  %v206 = vunpack.c.l.b16 %v64
  %v207 = vunpack.c.l.b16 %v65
  %v208 = vunpack.c.l.b16 %v66
  %v209 = vunpack.c.l.b16 %v67
  %v210 = vunpack.c.l.b16 %v68
  %v211 = vunpack.c.l.b16 %v69
  %v212 = vunpack.c.l.b16 %v70
  %v213 = vunpack.c.l.b16 %v71
  %v214 = vunpack.c.l.b16 %v72
  %v215 = vunpack.c.l.b16 %v73
  %v216 = vunpack.c.l.b16 %v74
  %v217 = vunpack.c.l.b16 %v75
  %v218 = vunpack.c.l.b16 %v76
  %v219 = vunpack.c.l.b16 %v77
  %v220 = vunpack.c.l.b16 %v78
  %v221 = vunpack.c.l.b16 %v79
  %v222 = vunpack.c.l.b16 %v80
  %v223 = vunpack.c.l.b16 %v81
  %v224 = vunpack.c.l.b16 %v82
  %v225 = vunpack.c.l.b16 %v83
  %v226 = vunpack.c.l.b16 %v84
  %v227 = vunpack.c.l.b16 %v85
  %v228 = vpack.c.b16 %v165, %v164
  %v229 = vpack.c.b16 %v167, %v166
  %v230 = vpack.c.b16 %v169, %v168
  %v231 = vpack.c.b16 %v171, %v170
  %v232 = vpack.c.b16 %v173, %v172
  %v233 = vpack.c.b16 %v175, %v174
  %v234 = vpack.c.b16 %v177, %v176
  %v235 = vpack.c.b16 %v179, %v178
  %v236 = vpack.c.b16 %v181, %v180
  %v237 = vpack.c.b16 %v183, %v182
  %v238 = vpack.c.b16 %v185, %v184
  %v239 = vpack.c.b16 %v187, %v186
  %v240 = vpack.c.b16 %v189, %v188
  %v241 = vpack.c.b16 %v191, %v190
  %v242 = vpack.c.b16 %v193, %v192
  %v243 = vpack.c.b16 %v195, %v194
  %v244 = vpack.c.b16 %v197, %v196
  %v245 = vpack.c.b16 %v199, %v198
  %v246 = vpack.c.b16 %v201, %v200
  %v247 = vpack.c.b16 %v203, %v202
  %v248 = vpack.c.b16 %v205, %v204
  %v249 = vpack.c.b16 %v207, %v206
  %v250 = vpack.c.b16 %v209, %v208
  %v251 = vpack.c.b16 %v211, %v210
  %v252 = vpack.c.b16 %v213, %v212
  %v253 = vpack.c.b16 %v215, %v214
  %v254 = vpack.c.b16 %v217, %v216
  %v255 = vpack.c.b16 %v219, %v218
  %v256 = vpack.c.b16 %v221, %v220
  %v257 = vpack.c.b16 %v223, %v222
  %v258 = vpack.c.b16 %v225, %v224
  %v259 = vpack.c.b16 %v227, %v226
  %292 = vmatpush.bf16.msra.mxu0 %v235
  %293 = vmatpush.bf16.msra.mxu0 %v234
  %294 = vmatpush.bf16.msra.mxu0 %v233
  %295 = vmatpush.bf16.msra.mxu0 %v232
  %296 = vmatpush.bf16.msra.mxu0 %v231
  %297 = vmatpush.bf16.msra.mxu0 %v230
  %298 = vmatpush.bf16.msra.mxu0 %v229
  %299 = vmatpush.bf16.msra.mxu0 %v228
  %300 = vmatmul.bf16.gmra.mxu0 %v92
  %v301 = vpop.f32.mrf.mxu0
  %v302 = vadd.f32 0.0, %v301
  %v303 = vpop.f32.mrf.mxu0
  %304 = vdwg.mxu0
  %305 = vmatpush.bf16.msra.mxu0 %v243
  %306 = vmatpush.bf16.msra.mxu0 %v242
  %307 = vmatpush.bf16.msra.mxu0 %v241
  %308 = vmatpush.bf16.msra.mxu0 %v240
  %309 = vmatpush.bf16.msra.mxu0 %v239
  %310 = vmatpush.bf16.msra.mxu0 %v238
  %311 = vmatpush.bf16.msra.mxu0 %v237
  %312 = vmatpush.bf16.msra.mxu0 %v236
  %313 = vmatmul.bf16.gmra.mxu0 %v93
  %v314 = vpop.f32.mrf.mxu0
  %v315 = vadd.f32 %v302, %v314
  %v316 = vpop.f32.mrf.mxu0
  %317 = vdwg.mxu0
  %318 = vmatpush.bf16.msra.mxu0 %v251
  %319 = vmatpush.bf16.msra.mxu0 %v250
  %320 = vmatpush.bf16.msra.mxu0 %v249
  %321 = vmatpush.bf16.msra.mxu0 %v248
  %322 = vmatpush.bf16.msra.mxu0 %v247
  %323 = vmatpush.bf16.msra.mxu0 %v246
  %324 = vmatpush.bf16.msra.mxu0 %v245
  %325 = vmatpush.bf16.msra.mxu0 %v244
  %326 = vmatmul.bf16.gmra.mxu0 %v94
  %v327 = vpop.f32.mrf.mxu0
  %v328 = vadd.f32 %v315, %v327
  %v329 = vpop.f32.mrf.mxu0
  %330 = vdwg.mxu0
  %331 = vmatpush.bf16.msra.mxu0 %v259
  %332 = vmatpush.bf16.msra.mxu0 %v258
  %333 = vmatpush.bf16.msra.mxu0 %v257
  %334 = vmatpush.bf16.msra.mxu0 %v256
  %335 = vmatpush.bf16.msra.mxu0 %v255
  %336 = vmatpush.bf16.msra.mxu0 %v254
  %337 = vmatpush.bf16.msra.mxu0 %v253
  %338 = vmatpush.bf16.msra.mxu0 %v252
  %339 = vmatmul.bf16.gmra.mxu0 %v95
  %v340 = vpop.f32.mrf.mxu0
  %v341 = vadd.f32 %v328, %v340
  %v342 = vpop.f32.mrf.mxu0
  %343 = vdwg.mxu0
  %v344 = vadd.f32 %v19, %v341
  %345 = vst [vmem:[#allocation2] sm:$0xff] %v344
  // Predicated region
  $region18: #{alexnet_forward.20} parent=0 // pred_check
    %p346 = pneg %p14
  $region19: #{alexnet_forward.20} parent=0 // pred_check_branch
    %348 = sbr.rel (%p346) target = $region21
  $region20: #{alexnet_forward.20} parent=0 // pred_region
    %v349 = vld [vmem:[#allocation2] sm:$0xff]
    %v350 = vld [vmem:[%s2] sm:$0x1]
    %v352 = vperm.slane %v350, 0
    %v354 = vadd.f32 %v349, %v352
    %v355 = vmax.f32 %v354, 0.0
    %v356 = vpack.c.bf16 %v355, %v355
    %357 = vst [vmem:[%s3] sm:$0xf] %v356
  $region21: #{alexnet_forward.20} parent=0 // pred_fallthru
    _
  // Predicated region
  $region22: #{alexnet_forward.20} parent=0 // pred_check
    _
  $region23: #{alexnet_forward.20} parent=0 // pred_check_branch
    %359 = sbr.rel (0) target = $region25
  $region24: #{alexnet_forward.20} parent=0 // pred_region
    _
  $region25: #{alexnet_forward.20} parent=0 // pred_fallthru
    _
  // Predicated region
  $region26: #{alexnet_forward.20} parent=0 // pred_check
    _
  $region27: #{alexnet_forward.20} parent=0 // pred_check_branch
    %361 = sbr.rel (0) target = $region29
  $region28: #{alexnet_forward.20} parent=0 // pred_region
    _
  $region29: #{alexnet_forward.20} parent=0 // pred_fallthru
    _

// kernel: alexnet_forward.21
$region0: #{alexnet_forward.21}
  #allocation0 [shape = 'u32[]', space=smem, size = 0x4, offset = 0x4, fixed_abs, tag = 'smem constant byte address 0x4 - core index']
  #allocation1 [shape = 'u32[72,128]{1,0:T(1,128)}', space=vmem, size = 0x9000, scoped, tag = 'internal scratch']
  #allocation2 [shape = 'f32[8,128]{1,0:T(8,128)}', space=vmem, size = 0x1000, scoped, tag = 'scratch operand']
  %s0 = inlined_call_operand.vmem [shape: bf16[8,128], index: 0, kind: input, shape index: {}]
  %s1 = inlined_call_operand.vmem [shape: bf16[128,128], index: 1, kind: input, shape index: {}]
  %s2 = inlined_call_operand.vmem [shape: f32[1,128], index: 2, kind: input, shape index: {}]
  %s3 = inlined_call_operand.vmem [shape: f32[8,128], index: 3, kind: output, shape index: {}]
  %s4 = sld [smem:[#allocation0]]
  $region30: #{alexnet_forward.21} parent=0
    _
  %s6 = ssub.s32 1, %s4
  %s7 = scalar_select 0, %s6, %s4
  // Predicated region
  $region2: #{alexnet_forward.21} parent=0 // pred_check
    _
  $region3: #{alexnet_forward.21} parent=0 // pred_check_branch
    %9 = sbr.rel (0) target = $region5
  $region4: #{alexnet_forward.21} parent=0 // pred_region
    _
  $region5: #{alexnet_forward.21} parent=0 // pred_fallthru
    _
  // Predicated region
  $region6: #{alexnet_forward.21} parent=0 // pred_check
    _
  $region7: #{alexnet_forward.21} parent=0 // pred_check_branch
    %11 = sbr.rel (0) target = $region9
  $region8: #{alexnet_forward.21} parent=0 // pred_region
    _
  $region9: #{alexnet_forward.21} parent=0 // pred_fallthru
    _
  // Predicated region
  $region10: #{alexnet_forward.21} parent=0 // pred_check
    _
  $region11: #{alexnet_forward.21} parent=0 // pred_check_branch
    %13 = sbr.rel (0) target = $region13
  $region12: #{alexnet_forward.21} parent=0 // pred_region
    _
  $region13: #{alexnet_forward.21} parent=0 // pred_fallthru
    _
  %p14 = scmp.eq.s32.totalorder 0, 0
  // Predicated region
  $region14: #{alexnet_forward.21} parent=0 // pred_check
    %p15 = pneg %p14
  $region15: #{alexnet_forward.21} parent=0 // pred_check_branch
    %17 = sbr.rel (%p15) target = $region17
  $region16: #{alexnet_forward.21} parent=0 // pred_region
    %18 = vst [vmem:[#allocation2] sm:$0xff] 0.0
  $region17: #{alexnet_forward.21} parent=0 // pred_fallthru
    _
  %v19 = vld [vmem:[#allocation2] sm:$0xff]
  %v20 = vld [vmem:[%s0] sm:$0xf]
  %v21 = vld [vmem:[%s1] sm:$0xf]
  %v22 = vld [vmem:[%s1 + $0x4] sm:$0xf]
  %v23 = vld [vmem:[%s1 + $0x8] sm:$0xf]
  %v24 = vld [vmem:[%s1 + $0xc] sm:$0xf]
  %v25 = vld [vmem:[%s1 + $0x10] sm:$0xf]
  %v26 = vld [vmem:[%s1 + $0x14] sm:$0xf]
  %v27 = vld [vmem:[%s1 + $0x18] sm:$0xf]
  %v28 = vld [vmem:[%s1 + $0x1c] sm:$0xf]
  %v29 = vld [vmem:[%s1 + $0x20] sm:$0xf]
  %v30 = vld [vmem:[%s1 + $0x24] sm:$0xf]
  %v31 = vld [vmem:[%s1 + $0x28] sm:$0xf]
  %v32 = vld [vmem:[%s1 + $0x2c] sm:$0xf]
  %v33 = vld [vmem:[%s1 + $0x30] sm:$0xf]
  %v34 = vld [vmem:[%s1 + $0x34] sm:$0xf]
  %v35 = vld [vmem:[%s1 + $0x38] sm:$0xf]
  %v36 = vld [vmem:[%s1 + $0x3c] sm:$0xf]
  %v53 = vunpack.c.l.b16 %v21
  %v54 = vunpack.c.l.b16 %v22
  %v55 = vunpack.c.l.b16 %v23
  %v56 = vunpack.c.l.b16 %v24
  %v57 = vunpack.c.l.b16 %v25
  %v58 = vunpack.c.l.b16 %v26
  %v59 = vunpack.c.l.b16 %v27
  %v60 = vunpack.c.l.b16 %v28
  %v61 = vunpack.c.l.b16 %v29
  %v62 = vunpack.c.l.b16 %v30
  %v63 = vunpack.c.l.b16 %v31
  %v64 = vunpack.c.l.b16 %v32
  %v65 = vunpack.c.l.b16 %v33
  %v66 = vunpack.c.l.b16 %v34
  %v67 = vunpack.c.l.b16 %v35
  %v68 = vunpack.c.l.b16 %v36
  %v69 = vpack.c.b16 %v54, %v53
  %v70 = vpack.c.b16 %v56, %v55
  %v71 = vpack.c.b16 %v58, %v57
  %v72 = vpack.c.b16 %v60, %v59
  %v73 = vpack.c.b16 %v62, %v61
  %v74 = vpack.c.b16 %v64, %v63
  %v75 = vpack.c.b16 %v66, %v65
  %v76 = vpack.c.b16 %v68, %v67
  %85 = vmatpush.bf16.msra.mxu0 %v76
  %86 = vmatpush.bf16.msra.mxu0 %v75
  %87 = vmatpush.bf16.msra.mxu0 %v74
  %88 = vmatpush.bf16.msra.mxu0 %v73
  %89 = vmatpush.bf16.msra.mxu0 %v72
  %90 = vmatpush.bf16.msra.mxu0 %v71
  %91 = vmatpush.bf16.msra.mxu0 %v70
  %92 = vmatpush.bf16.msra.mxu0 %v69
  %93 = vmatmul.bf16.gmra.mxu0 %v20
  %v94 = vpop.f32.mrf.mxu0
  %v95 = vadd.f32 0.0, %v94
  %v96 = vpop.f32.mrf.mxu0
  %97 = vdwg.mxu0
  %v98 = vadd.f32 %v19, %v95
  %99 = vst [vmem:[#allocation2] sm:$0xff] %v98
  // Predicated region
  $region18: #{alexnet_forward.21} parent=0 // pred_check
    %p100 = pneg %p14
  $region19: #{alexnet_forward.21} parent=0 // pred_check_branch
    %102 = sbr.rel (%p100) target = $region21
  $region20: #{alexnet_forward.21} parent=0 // pred_region
    %v103 = vld [vmem:[#allocation2] sm:$0xff]
    %v104 = vld [vmem:[%s2] sm:$0x1]
    %v106 = vperm.slane %v104, 0
    %v108 = vadd.f32 %v103, %v106
    %109 = vst [vmem:[%s3] sm:$0xff] %v108
  $region21: #{alexnet_forward.21} parent=0 // pred_fallthru
    _
  // Predicated region
  $region22: #{alexnet_forward.21} parent=0 // pred_check
    _
  $region23: #{alexnet_forward.21} parent=0 // pred_check_branch
    %111 = sbr.rel (0) target = $region25
  $region24: #{alexnet_forward.21} parent=0 // pred_region
    _
  $region25: #{alexnet_forward.21} parent=0 // pred_fallthru
    _
  // Predicated region
  $region26: #{alexnet_forward.21} parent=0 // pred_check
    _
  $region27: #{alexnet_forward.21} parent=0 // pred_check_branch
    %113 = sbr.rel (0) target = $region29
  $region28: #{alexnet_forward.21} parent=0 // pred_region
    _
  $region29: #{alexnet_forward.21} parent=0 // pred_fallthru
    _

</llo_original>
